<compile_context>
chip_gen: v7x
topology: tpu7x:2x2x1
jax: 0.10.0
libtpu: 0.0.40
codegen_flags: <defaults>
</compile_context>

<pallas_src>
import functools
import math

import jax
import jax.numpy as jnp
from jax.experimental import pallas as pl
from jax.experimental.pallas import tpu as pltpu


# ----------------------------- kernel helpers ------------------------------

def _layernorm(x, g, b, eps=1e-5):
    mu = jnp.mean(x, axis=-1, keepdims=True)
    var = jnp.mean((x - mu) ** 2, axis=-1, keepdims=True)
    return (x - mu) * jax.lax.rsqrt(var + eps) * g + b


def _zero_map(n):
    def im(l):
        return (0,) * n
    return im


def _layer_map(n):
    def im(l):
        return (l,) + (0,) * (n - 1)
    return im


# ------------------------------- fused kernel -------------------------------

def vit_kernel(num_heads,
               patches_ref, patch_w_ref, cls_ref, pos_ref,
               ln1g_ref, ln1b_ref,
               wqkv_ref, bqkv_ref, wo_ref, bo_ref,
               ln2g_ref, ln2b_ref,
               w1_ref, b1_ref, w2_ref, b2_ref,
               hg_ref, hb_ref, hw_ref, hbias_ref,
               logits_ref, x_scr):
    l = pl.program_id(0)
    B, S, D = x_scr.shape
    N = S - 1
    H = num_heads
    dh = D // H
    scale = 1.0 / math.sqrt(dh)

    # ---- grid step 0: patch embedding + class token + position embedding ----
    @pl.when(l == 0)
    def _():
        p = patches_ref[...].reshape(B * N, -1).astype(jnp.bfloat16)   # (B*N, CPP)
        emb = jnp.dot(p, patch_w_ref[...],
                      preferred_element_type=jnp.float32)              # (B*N, D)
        emb = emb.reshape(B, N, D) + pos_ref[1:, :][None]              # (B, N, D)
        cls_row = cls_ref[...] + pos_ref[0:1, :]                       # (1, D)
        x_scr[:, 0:1, :] = jnp.broadcast_to(cls_row[None], (B, 1, D))
        x_scr[:, 1:, :] = emb

    x = x_scr[...]                                                     # (B, S, D) f32

    # ---------------------- attention branch (pre-LN) ------------------------
    h = _layernorm(x, ln1g_ref[0], ln1b_ref[0])
    h2 = h.reshape(B * S, D).astype(jnp.bfloat16)
    qkv = (jnp.dot(h2, wqkv_ref[0], preferred_element_type=jnp.float32)
           + bqkv_ref[0])                                              # (B*S, 3D)
    q = (qkv[:, 0:D] * scale).reshape(B, S, D)          # fold 1/sqrt(dh) into Q
    k = qkv[:, D:2 * D].reshape(B, S, D)
    v = qkv[:, 2 * D:3 * D].reshape(B, S, D)

    wo = wo_ref[0]                                                     # (D, D) bf16
    attn = jnp.zeros((B * S, D), jnp.float32)
    for hh in range(H):                      # static unrolled loop over heads,
        sl = slice(hh * dh, (hh + 1) * dh)   # each head is batched over B (3-D dot)
        qh = q[:, :, sl].astype(jnp.bfloat16)
        kh = k[:, :, sl].astype(jnp.bfloat16)
        vh = v[:, :, sl].astype(jnp.bfloat16)
        s = jnp.einsum('bqd,bkd->bqk', qh, kh,
                       preferred_element_type=jnp.float32)             # (B, S, S)
        s = s - jnp.max(s, axis=-1, keepdims=True)
        p = jnp.exp(s)
        p = p * pl.reciprocal(jnp.sum(p, axis=-1, keepdims=True), approx=True)
        ctx = jnp.einsum('bqk,bkd->bqd', p.astype(jnp.bfloat16), vh,
                         preferred_element_type=jnp.float32)           # (B, S, dh)
        # output projection accumulated per head:
        #   concat(heads) @ Wo == sum_h ctx_h @ Wo[h]
        attn = attn + jnp.dot(ctx.reshape(B * S, dh).astype(jnp.bfloat16),
                              wo[sl, :], preferred_element_type=jnp.float32)
    attn = attn + bo_ref[0]
    x = x + attn.reshape(B, S, D)

    # -------------------------- MLP branch (pre-LN) --------------------------
    hm = _layernorm(x, ln2g_ref[0], ln2b_ref[0]).reshape(B * S, D).astype(jnp.bfloat16)
    m = jnp.dot(hm, w1_ref[0], preferred_element_type=jnp.float32) + b1_ref[0]
    # TODO(synk): PyTorch nn.GELU default is exact erf; tanh approximation used here.
    m = jax.nn.gelu(m, approximate=True)
    m = jnp.dot(m.astype(jnp.bfloat16), w2_ref[0],
                preferred_element_type=jnp.float32) + b2_ref[0]
    x = x + m.reshape(B, S, D)
    x_scr[...] = x                          # activation stays resident in VMEM

    # ------------------ MLP head, fused into the last layer ------------------
    @pl.when(l == pl.num_programs(0) - 1)
    def _():
        cls_out = x[:, 0, :]                                           # (B, D)
        hc = _layernorm(cls_out, hg_ref[...], hb_ref[...])
        logits_ref[...] = (jnp.dot(hc.astype(jnp.bfloat16), hw_ref[...],
                                   preferred_element_type=jnp.float32)
                           + hbias_ref[...])                           # (B, NC_padded)


# ------------------------------ pallas wrapper -------------------------------

_LAYER_KEYS = ("ln1_g", "ln1_b", "wqkv", "bqkv", "wo", "bo",
               "ln2_g", "ln2_b", "w1", "b1", "w2", "b2")


def vit_forward(x, params, *, patch_size, num_heads, num_classes):
    # x: (B, C, H, W) float32 (NCHW, same as PyTorch)
    B, C, Hh, W = x.shape
    P = patch_size
    # torch: x.unfold(1,C,C).unfold(2,P,P).unfold(3,P,P).view(B, -1, C*P*P)
    xp = x.reshape(B, C, Hh // P, P, W // P, P)
    xp = jnp.transpose(xp, (0, 2, 4, 1, 3, 5))          # (B, hP, wP, C, P, P)
    patches = xp.reshape(B, (Hh // P) * (W // P), C * P * P).astype(jnp.float32)

    N, CPP = patches.shape[1], patches.shape[2]
    D = params["patch_w"].shape[1]
    S = N + 1
    L = params["wqkv"].shape[0]
    NCp = params["head_w"].shape[1]                     # lane-padded classes

    layer_params = [params[k] for k in _LAYER_KEYS]

    in_specs = [
        pl.BlockSpec((B, N, CPP), _zero_map(3)),        # patches (loaded once)
        pl.BlockSpec((CPP, D), _zero_map(2)),           # patch embedding weight
        pl.BlockSpec((1, D), _zero_map(2)),             # class token
        pl.BlockSpec((S, D), _zero_map(2)),             # position embedding
    ]
    # per-layer weights: block index follows the layer grid axis (streamed)
    for p in layer_params:
        in_specs.append(pl.BlockSpec((1,) + p.shape[1:], _layer_map(p.ndim)))
    in_specs += [
        pl.BlockSpec((1, D), _zero_map(2)),             # head LN gamma
        pl.BlockSpec((1, D), _zero_map(2)),             # head LN beta
        pl.BlockSpec((D, NCp), _zero_map(2)),           # head weight (padded)
        pl.BlockSpec((1, NCp), _zero_map(2)),           # head bias   (padded)
    ]

    logits_padded = pl.pallas_call(
        functools.partial(vit_kernel, num_heads),
        out_shape=jax.ShapeDtypeStruct((B, NCp), jnp.float32),
        grid=(L,),                                      # layer axis is sequential
        in_specs=in_specs,
        out_specs=pl.BlockSpec((B, NCp), _zero_map(2)), # resident; written at last layer
        scratch_shapes=[pltpu.VMEM((B, S, D), jnp.float32)],  # resident activation
        compiler_params=pltpu.CompilerParams(
            dimension_semantics=("arbitrary",),
        ),
    )(patches, params["patch_w"], params["cls"], params["pos"],
      *layer_params,
      params["head_ln_g"], params["head_ln_b"], params["head_w"], params["head_b"])

    return logits_padded[:, :num_classes]


# ------------------------------ parameter init -------------------------------

def init_params(key, *, patch_size, channel_size, num_layers, embedding_dim,
                num_heads, hidden_dim, num_classes, num_patches):
    D, Hd, L = embedding_dim, hidden_dim, num_layers
    CPP = patch_size * patch_size * channel_size
    NCp = ((num_classes + 127) // 128) * 128            # lane-pad classifier output
    keys = iter(jax.random.split(key, 16))

    def randn(shape, scale=1.0, dtype=jnp.float32):
        return (scale * jax.random.normal(next(keys), shape, jnp.float32)).astype(dtype)

    head_w = randn((D, num_classes), 0.02)
    head_w = jnp.pad(head_w, ((0, 0), (0, NCp - num_classes))).astype(jnp.bfloat16)

    # fused Q/K/V projection (single (D, 3D) matmul per layer)
    wq = randn((L, D, D), 0.02)
    wk = randn((L, D, D), 0.02)
    wv = randn((L, D, D), 0.02)
    wqkv = jnp.concatenate([wq, wk, wv], axis=-1).astype(jnp.bfloat16)   # (L, D, 3D)

    params = {
        # MXU operands stored in bf16; additive params kept in f32
        "patch_w": randn((CPP, D), dtype=jnp.bfloat16),          # torch.randn
        "pos": randn((num_patches + 1, D)),                      # torch.randn
        "cls": randn((1, D)),                                    # torch.randn (1,1,D)
        "head_ln_g": jnp.ones((1, D), jnp.float32),
        "head_ln_b": jnp.zeros((1, D), jnp.float32),
        "head_w": head_w,
        "head_b": jnp.zeros((1, NCp), jnp.float32),
        # per-layer weights stacked along a leading L axis
        "ln1_g": jnp.ones((L, 1, D), jnp.float32),
        "ln1_b": jnp.zeros((L, 1, D), jnp.float32),
        "wqkv": wqkv,
        "bqkv": jnp.zeros((L, 1, 3 * D), jnp.float32),
        "wo": randn((L, D, D), 0.02, jnp.bfloat16),
        "bo": jnp.zeros((L, 1, D), jnp.float32),
        "ln2_g": jnp.ones((L, 1, D), jnp.float32),
        "ln2_b": jnp.zeros((L, 1, D), jnp.float32),
        "w1": randn((L, D, Hd), 0.02, jnp.bfloat16),
        "b1": jnp.zeros((L, 1, Hd), jnp.float32),
        "w2": randn((L, Hd, D), 0.02, jnp.bfloat16),
        "b2": jnp.zeros((L, 1, D), jnp.float32),
    }
    return params


# ----------------------------------- main ------------------------------------

if __name__ == "__main__":
    # small, lane-dense configuration (D and Hd are multiples of 128)
    cfg = dict(patch_size=4, image_size=16, channel_size=3, num_layers=2,
               embedding_dim=128, num_heads=4, hidden_dim=256, num_classes=10)
    num_patches = (cfg["image_size"] // cfg["patch_size"]) ** 2      # 16 -> seq 17
    batch = 2

    key = jax.random.PRNGKey(0)
    kx, kp = jax.random.split(key)
    x = jax.random.normal(kx, (batch, cfg["channel_size"], cfg["image_size"],
                               cfg["image_size"]), dtype=jnp.float32)

    params = init_params(kp,
                         patch_size=cfg["patch_size"],
                         channel_size=cfg["channel_size"],
                         num_layers=cfg["num_layers"],
                         embedding_dim=cfg["embedding_dim"],
                         num_heads=cfg["num_heads"],
                         hidden_dim=cfg["hidden_dim"],
                         num_classes=cfg["num_classes"],
                         num_patches=num_patches)

    logits = vit_forward(x, params,
                         patch_size=cfg["patch_size"],
                         num_heads=cfg["num_heads"],
                         num_classes=cfg["num_classes"])
    jax.block_until_ready(logits)
    assert logits.shape == (batch, cfg["num_classes"])
    print("KERNEL_OK")
</pallas_src>

<mosaic_0001>
module attributes {stable_mosaic.version = 11 : i64} {
  func.func @vit_kernel(%arg0: i32, %arg1: memref<2x16x48xf32, #tpu.memory_space<vmem>>, %arg2: memref<48x128xbf16, #tpu.memory_space<vmem>>, %arg3: memref<1x128xf32, #tpu.memory_space<vmem>>, %arg4: memref<17x128xf32, #tpu.memory_space<vmem>>, %arg5: memref<1x1x128xf32, #tpu.memory_space<vmem>>, %arg6: memref<1x1x128xf32, #tpu.memory_space<vmem>>, %arg7: memref<1x128x384xbf16, #tpu.memory_space<vmem>>, %arg8: memref<1x1x384xf32, #tpu.memory_space<vmem>>, %arg9: memref<1x128x128xbf16, #tpu.memory_space<vmem>>, %arg10: memref<1x1x128xf32, #tpu.memory_space<vmem>>, %arg11: memref<1x1x128xf32, #tpu.memory_space<vmem>>, %arg12: memref<1x1x128xf32, #tpu.memory_space<vmem>>, %arg13: memref<1x128x256xbf16, #tpu.memory_space<vmem>>, %arg14: memref<1x1x256xf32, #tpu.memory_space<vmem>>, %arg15: memref<1x256x128xbf16, #tpu.memory_space<vmem>>, %arg16: memref<1x1x128xf32, #tpu.memory_space<vmem>>, %arg17: memref<1x128xf32, #tpu.memory_space<vmem>>, %arg18: memref<1x128xf32, #tpu.memory_space<vmem>>, %arg19: memref<128x128xbf16, #tpu.memory_space<vmem>>, %arg20: memref<1x128xf32, #tpu.memory_space<vmem>>, %arg21: memref<2x128xf32, #tpu.memory_space<vmem>>, %arg22: memref<2x17x128xf32, #tpu.memory_space<vmem>>) attributes {dimension_semantics = [#tpu.dimension_semantics<arbitrary>], iteration_bounds = array<i64: 2>, scalar_prefetch = 0 : i64, scratch_operands = 1 : i64, tpu.core_type = #tpu.core_type<tc>, window_params = [{pipeline_mode = #tpu.pipeline_mode<synchronous>, transform_indices = @transform_0, window_bounds = array<i64: 2, 16, 48>}, {pipeline_mode = #tpu.pipeline_mode<synchronous>, transform_indices = @transform_1, window_bounds = array<i64: 48, 128>}, {pipeline_mode = #tpu.pipeline_mode<synchronous>, transform_indices = @transform_2, window_bounds = array<i64: 1, 128>}, {pipeline_mode = #tpu.pipeline_mode<synchronous>, transform_indices = @transform_3, window_bounds = array<i64: 17, 128>}, {transform_indices = @transform_4, window_bounds = array<i64: 1, 1, 128>}, {transform_indices = @transform_5, window_bounds = array<i64: 1, 1, 128>}, {transform_indices = @transform_6, window_bounds = array<i64: 1, 128, 384>}, {transform_indices = @transform_7, window_bounds = array<i64: 1, 1, 384>}, {transform_indices = @transform_8, window_bounds = array<i64: 1, 128, 128>}, {transform_indices = @transform_9, window_bounds = array<i64: 1, 1, 128>}, {transform_indices = @transform_10, window_bounds = array<i64: 1, 1, 128>}, {transform_indices = @transform_11, window_bounds = array<i64: 1, 1, 128>}, {transform_indices = @transform_12, window_bounds = array<i64: 1, 128, 256>}, {transform_indices = @transform_13, window_bounds = array<i64: 1, 1, 256>}, {transform_indices = @transform_14, window_bounds = array<i64: 1, 256, 128>}, {transform_indices = @transform_15, window_bounds = array<i64: 1, 1, 128>}, {pipeline_mode = #tpu.pipeline_mode<synchronous>, transform_indices = @transform_16, window_bounds = array<i64: 1, 128>}, {pipeline_mode = #tpu.pipeline_mode<synchronous>, transform_indices = @transform_17, window_bounds = array<i64: 1, 128>}, {pipeline_mode = #tpu.pipeline_mode<synchronous>, transform_indices = @transform_18, window_bounds = array<i64: 128, 128>}, {pipeline_mode = #tpu.pipeline_mode<synchronous>, transform_indices = @transform_19, window_bounds = array<i64: 1, 128>}, {pipeline_mode = #tpu.pipeline_mode<synchronous>, transform_indices = @transform_20, window_bounds = array<i64: 2, 128>}]} {
    %c0_i32 = arith.constant 0 : i32
    %0 = arith.cmpi eq, %arg0, %c0_i32 : i32
    %1 = arith.extui %0 : i1 to i32
    %c0_i32_0 = arith.constant 0 : i32
    %2 = arith.cmpi ne, %1, %c0_i32_0 : i32
    scf.if %2 {
      %c0_81 = arith.constant 0 : index
      %c0_82 = arith.constant 0 : index
      %c0_83 = arith.constant 0 : index
      %218 = vector.load %arg1[%c0_81, %c0_82, %c0_83] : memref<2x16x48xf32, #tpu.memory_space<vmem>>, vector<2x16x48xf32>
      %219 = vector.shape_cast %218 : vector<2x16x48xf32> to vector<32x48xf32>
      %220 = arith.truncf %219 : vector<32x48xf32> to vector<32x48xbf16>
      %c0_84 = arith.constant 0 : index
      %c0_85 = arith.constant 0 : index
      %221 = vector.load %arg2[%c0_84, %c0_85] : memref<48x128xbf16, #tpu.memory_space<vmem>>, vector<48x128xbf16>
      %cst_86 = arith.constant dense<0.000000e+00> : vector<32x128xf32>
      %222 = tpu.matmul %220, %221, %cst_86 {dimension_numbers = #tpu.dot_dimension_numbers<[1], [0], [0], [1], [0, 0, 1, 1], [], []>} : vector<32x48xbf16>, vector<48x128xbf16>, vector<32x128xf32> -> vector<32x128xf32>
      %223 = vector.shape_cast %222 : vector<32x128xf32> to vector<2x16x128xf32>
      %c1 = arith.constant 1 : index
      %c0_87 = arith.constant 0 : index
      %224 = vector.load %arg4[%c1, %c0_87] : memref<17x128xf32, #tpu.memory_space<vmem>>, vector<16x128xf32>
      %225 = vector.shape_cast %224 : vector<16x128xf32> to vector<1x16x128xf32>
      %226 = vector.broadcast %225 : vector<1x16x128xf32> to vector<2x16x128xf32>
      %227 = arith.addf %223, %226 : vector<2x16x128xf32>
      %c0_88 = arith.constant 0 : index
      %c0_89 = arith.constant 0 : index
      %228 = vector.load %arg3[%c0_88, %c0_89] : memref<1x128xf32, #tpu.memory_space<vmem>>, vector<1x128xf32>
      %c0_90 = arith.constant 0 : index
      %c0_91 = arith.constant 0 : index
      %229 = vector.load %arg4[%c0_90, %c0_91] : memref<17x128xf32, #tpu.memory_space<vmem>>, vector<1x128xf32>
      %230 = arith.addf %228, %229 : vector<1x128xf32>
      %231 = vector.shape_cast %230 : vector<1x128xf32> to vector<1x1x128xf32>
      %232 = vector.shape_cast %231 : vector<1x1x128xf32> to vector<1x1x128xf32>
      %233 = vector.broadcast %232 : vector<1x1x128xf32> to vector<2x1x128xf32>
      %c0_92 = arith.constant 0 : index
      %c0_93 = arith.constant 0 : index
      %c0_94 = arith.constant 0 : index
      %234 = vector.load %arg22[%c0_92, %c0_93, %c0_94] : memref<2x17x128xf32, #tpu.memory_space<vmem>>, vector<2x1x128xf32>
      tpu.vector_store %arg22[%c0_92, %c0_93, %c0_94], %233 {strides = array<i32>} : memref<2x17x128xf32, #tpu.memory_space<vmem>>, vector<2x1x128xf32>,
      %c0_95 = arith.constant 0 : index
      %c1_96 = arith.constant 1 : index
      %c0_97 = arith.constant 0 : index
      %235 = vector.load %arg22[%c0_95, %c1_96, %c0_97] : memref<2x17x128xf32, #tpu.memory_space<vmem>>, vector<2x16x128xf32>
      tpu.vector_store %arg22[%c0_95, %c1_96, %c0_97], %227 {strides = array<i32>} : memref<2x17x128xf32, #tpu.memory_space<vmem>>, vector<2x16x128xf32>,
    } else {
    }
    %c0 = arith.constant 0 : index
    %c0_1 = arith.constant 0 : index
    %c0_2 = arith.constant 0 : index
    %3 = vector.load %arg22[%c0, %c0_1, %c0_2] : memref<2x17x128xf32, #tpu.memory_space<vmem>>, vector<2x17x128xf32>
    %c0_3 = arith.constant 0 : index
    %c0_4 = arith.constant 0 : index
    %c0_5 = arith.constant 0 : index
    %4 = vector.load %arg5[%c0_3, %c0_4, %c0_5] : memref<1x1x128xf32, #tpu.memory_space<vmem>>, vector<1x1x128xf32>
    %5 = vector.shape_cast %4 : vector<1x1x128xf32> to vector<1x128xf32>
    %c0_6 = arith.constant 0 : index
    %c0_7 = arith.constant 0 : index
    %c0_8 = arith.constant 0 : index
    %6 = vector.load %arg6[%c0_6, %c0_7, %c0_8] : memref<1x1x128xf32, #tpu.memory_space<vmem>>, vector<1x1x128xf32>
    %7 = vector.shape_cast %6 : vector<1x1x128xf32> to vector<1x128xf32>
    %cst = arith.constant dense<0.000000e+00> : vector<2x17xf32>
    %8 = vector.multi_reduction <add>, %3, %cst [2] : vector<2x17x128xf32> to vector<2x17xf32>
    %9 = vector.shape_cast %8 : vector<2x17xf32> to vector<2x17x1xf32>
    %cst_9 = arith.constant 1.280000e+02 : f32
    %10 = vector.broadcast %cst_9 : f32 to vector<2x17x1xf32>
    %11 = arith.divf %9, %10 : vector<2x17x1xf32>
    %12 = vector.broadcast %11 : vector<2x17x1xf32> to vector<2x17x128xf32>
    %13 = arith.subf %3, %12 : vector<2x17x128xf32>
    %14 = arith.mulf %13, %13 : vector<2x17x128xf32>
    %cst_10 = arith.constant dense<0.000000e+00> : vector<2x17xf32>
    %15 = vector.multi_reduction <add>, %14, %cst_10 [2] : vector<2x17x128xf32> to vector<2x17xf32>
    %16 = vector.shape_cast %15 : vector<2x17xf32> to vector<2x17x1xf32>
    %cst_11 = arith.constant 1.280000e+02 : f32
    %17 = vector.broadcast %cst_11 : f32 to vector<2x17x1xf32>
    %18 = arith.divf %16, %17 : vector<2x17x1xf32>
    %19 = vector.broadcast %11 : vector<2x17x1xf32> to vector<2x17x128xf32>
    %20 = arith.subf %3, %19 : vector<2x17x128xf32>
    %cst_12 = arith.constant 9.99999974E-6 : f32
    %21 = vector.broadcast %cst_12 : f32 to vector<2x17x1xf32>
    %22 = arith.addf %18, %21 : vector<2x17x1xf32>
    %23 = math.rsqrt %22 : vector<2x17x1xf32>
    %24 = vector.broadcast %23 : vector<2x17x1xf32> to vector<2x17x128xf32>
    %25 = arith.mulf %20, %24 : vector<2x17x128xf32>
    %26 = vector.shape_cast %5 : vector<1x128xf32> to vector<1x1x128xf32>
    %27 = vector.broadcast %26 : vector<1x1x128xf32> to vector<2x17x128xf32>
    %28 = arith.mulf %25, %27 : vector<2x17x128xf32>
    %29 = vector.shape_cast %7 : vector<1x128xf32> to vector<1x1x128xf32>
    %30 = vector.broadcast %29 : vector<1x1x128xf32> to vector<2x17x128xf32>
    %31 = arith.addf %28, %30 : vector<2x17x128xf32>
    %32 = vector.shape_cast %31 : vector<2x17x128xf32> to vector<34x128xf32>
    %33 = arith.truncf %32 : vector<34x128xf32> to vector<34x128xbf16>
    %c0_13 = arith.constant 0 : index
    %c0_14 = arith.constant 0 : index
    %c0_15 = arith.constant 0 : index
    %34 = vector.load %arg7[%c0_13, %c0_14, %c0_15] : memref<1x128x384xbf16, #tpu.memory_space<vmem>>, vector<1x128x384xbf16>
    %35 = vector.shape_cast %34 : vector<1x128x384xbf16> to vector<128x384xbf16>
    %cst_16 = arith.constant dense<0.000000e+00> : vector<34x384xf32>
    %36 = tpu.matmul %33, %35, %cst_16 {dimension_numbers = #tpu.dot_dimension_numbers<[1], [0], [0], [1], [0, 0, 1, 1], [], []>} : vector<34x128xbf16>, vector<128x384xbf16>, vector<34x384xf32> -> vector<34x384xf32>
    %c0_17 = arith.constant 0 : index
    %c0_18 = arith.constant 0 : index
    %c0_19 = arith.constant 0 : index
    %37 = vector.load %arg8[%c0_17, %c0_18, %c0_19] : memref<1x1x384xf32, #tpu.memory_space<vmem>>, vector<1x1x384xf32>
    %38 = vector.shape_cast %37 : vector<1x1x384xf32> to vector<1x384xf32>
    %39 = vector.broadcast %38 : vector<1x384xf32> to vector<34x384xf32>
    %40 = arith.addf %36, %39 : vector<34x384xf32>
    %41 = vector.extract_strided_slice %40 {offsets = [0, 0], sizes = [34, 128], strides = [1, 1]} : vector<34x384xf32> to vector<34x128xf32>
    %cst_20 = arith.constant 0.176776692 : f32
    %42 = vector.broadcast %cst_20 : f32 to vector<34x128xf32>
    %43 = arith.mulf %41, %42 : vector<34x128xf32>
    %44 = vector.shape_cast %43 : vector<34x128xf32> to vector<2x17x128xf32>
    %45 = vector.extract_strided_slice %40 {offsets = [0, 128], sizes = [34, 128], strides = [1, 1]} : vector<34x384xf32> to vector<34x128xf32>
    %46 = vector.shape_cast %45 : vector<34x128xf32> to vector<2x17x128xf32>
    %47 = vector.extract_strided_slice %40 {offsets = [0, 256], sizes = [34, 128], strides = [1, 1]} : vector<34x384xf32> to vector<34x128xf32>
    %48 = vector.shape_cast %47 : vector<34x128xf32> to vector<2x17x128xf32>
    %c0_21 = arith.constant 0 : index
    %c0_22 = arith.constant 0 : index
    %c0_23 = arith.constant 0 : index
    %49 = vector.load %arg9[%c0_21, %c0_22, %c0_23] : memref<1x128x128xbf16, #tpu.memory_space<vmem>>, vector<1x128x128xbf16>
    %50 = vector.shape_cast %49 : vector<1x128x128xbf16> to vector<128x128xbf16>
    %cst_24 = arith.constant 0.000000e+00 : f32
    %51 = vector.broadcast %cst_24 : f32 to vector<34x128xf32>
    %52 = vector.extract_strided_slice %44 {offsets = [0, 0, 0], sizes = [2, 17, 32], strides = [1, 1, 1]} : vector<2x17x128xf32> to vector<2x17x32xf32>
    %53 = arith.truncf %52 : vector<2x17x32xf32> to vector<2x17x32xbf16>
    %54 = vector.extract_strided_slice %46 {offsets = [0, 0, 0], sizes = [2, 17, 32], strides = [1, 1, 1]} : vector<2x17x128xf32> to vector<2x17x32xf32>
    %55 = arith.truncf %54 : vector<2x17x32xf32> to vector<2x17x32xbf16>
    %56 = vector.extract_strided_slice %48 {offsets = [0, 0, 0], sizes = [2, 17, 32], strides = [1, 1, 1]} : vector<2x17x128xf32> to vector<2x17x32xf32>
    %57 = arith.truncf %56 : vector<2x17x32xf32> to vector<2x17x32xbf16>
    "tpu.trace_start"() <{level = 10 : i32, message = "bqd,bkd->bqk"}> : () -> ()
    %cst_25 = arith.constant dense<0.000000e+00> : vector<2x17x17xf32>
    %58 = tpu.matmul %53, %55, %cst_25 {dimension_numbers = #tpu.dot_dimension_numbers<[2], [2], [1], [1], [0, 0, 0, 1, 1, 1], [0], [0]>} : vector<2x17x32xbf16>, vector<2x17x32xbf16>, vector<2x17x17xf32> -> vector<2x17x17xf32>
    "tpu.trace_stop"() : () -> ()
    %cst_26 = arith.constant dense<0xFF800000> : vector<2x17xf32>
    %59 = vector.multi_reduction <maximumf>, %58, %cst_26 [2] : vector<2x17x17xf32> to vector<2x17xf32>
    %60 = vector.shape_cast %59 : vector<2x17xf32> to vector<2x17x1xf32>
    %61 = vector.broadcast %60 : vector<2x17x1xf32> to vector<2x17x17xf32>
    %62 = arith.subf %58, %61 : vector<2x17x17xf32>
    %63 = math.exp %62 : vector<2x17x17xf32>
    %cst_27 = arith.constant dense<0.000000e+00> : vector<2x17xf32>
    %64 = vector.multi_reduction <add>, %63, %cst_27 [2] : vector<2x17x17xf32> to vector<2x17xf32>
    %65 = vector.shape_cast %64 : vector<2x17xf32> to vector<2x17x1xf32>
    %66 = tpu.reciprocal %65 {approx = true} : vector<2x17x1xf32> -> vector<2x17x1xf32>
    %67 = vector.broadcast %66 : vector<2x17x1xf32> to vector<2x17x17xf32>
    %68 = arith.mulf %63, %67 : vector<2x17x17xf32>
    %69 = arith.truncf %68 : vector<2x17x17xf32> to vector<2x17x17xbf16>
    "tpu.trace_start"() <{level = 10 : i32, message = "bqk,bkd->bqd"}> : () -> ()
    %cst_28 = arith.constant dense<0.000000e+00> : vector<2x17x32xf32>
    %70 = tpu.matmul %69, %57, %cst_28 {dimension_numbers = #tpu.dot_dimension_numbers<[2], [1], [1], [2], [0, 0, 0, 1, 1, 2], [0], [0]>} : vector<2x17x17xbf16>, vector<2x17x32xbf16>, vector<2x17x32xf32> -> vector<2x17x32xf32>
    "tpu.trace_stop"() : () -> ()
    %71 = vector.shape_cast %70 : vector<2x17x32xf32> to vector<34x32xf32>
    %72 = arith.truncf %71 : vector<34x32xf32> to vector<34x32xbf16>
    %73 = vector.extract_strided_slice %50 {offsets = [0, 0], sizes = [32, 128], strides = [1, 1]} : vector<128x128xbf16> to vector<32x128xbf16>
    %cst_29 = arith.constant dense<0.000000e+00> : vector<34x128xf32>
    %74 = tpu.matmul %72, %73, %cst_29 {dimension_numbers = #tpu.dot_dimension_numbers<[1], [0], [0], [1], [0, 0, 1, 1], [], []>} : vector<34x32xbf16>, vector<32x128xbf16>, vector<34x128xf32> -> vector<34x128xf32>
    %75 = arith.addf %51, %74 : vector<34x128xf32>
    %76 = vector.extract_strided_slice %44 {offsets = [0, 0, 32], sizes = [2, 17, 32], strides = [1, 1, 1]} : vector<2x17x128xf32> to vector<2x17x32xf32>
    %77 = arith.truncf %76 : vector<2x17x32xf32> to vector<2x17x32xbf16>
    %78 = vector.extract_strided_slice %46 {offsets = [0, 0, 32], sizes = [2, 17, 32], strides = [1, 1, 1]} : vector<2x17x128xf32> to vector<2x17x32xf32>
    %79 = arith.truncf %78 : vector<2x17x32xf32> to vector<2x17x32xbf16>
    %80 = vector.extract_strided_slice %48 {offsets = [0, 0, 32], sizes = [2, 17, 32], strides = [1, 1, 1]} : vector<2x17x128xf32> to vector<2x17x32xf32>
    %81 = arith.truncf %80 : vector<2x17x32xf32> to vector<2x17x32xbf16>
    "tpu.trace_start"() <{level = 10 : i32, message = "bqd,bkd->bqk"}> : () -> ()
    %cst_30 = arith.constant dense<0.000000e+00> : vector<2x17x17xf32>
    %82 = tpu.matmul %77, %79, %cst_30 {dimension_numbers = #tpu.dot_dimension_numbers<[2], [2], [1], [1], [0, 0, 0, 1, 1, 1], [0], [0]>} : vector<2x17x32xbf16>, vector<2x17x32xbf16>, vector<2x17x17xf32> -> vector<2x17x17xf32>
    "tpu.trace_stop"() : () -> ()
    %cst_31 = arith.constant dense<0xFF800000> : vector<2x17xf32>
    %83 = vector.multi_reduction <maximumf>, %82, %cst_31 [2] : vector<2x17x17xf32> to vector<2x17xf32>
    %84 = vector.shape_cast %83 : vector<2x17xf32> to vector<2x17x1xf32>
    %85 = vector.broadcast %84 : vector<2x17x1xf32> to vector<2x17x17xf32>
    %86 = arith.subf %82, %85 : vector<2x17x17xf32>
    %87 = math.exp %86 : vector<2x17x17xf32>
    %cst_32 = arith.constant dense<0.000000e+00> : vector<2x17xf32>
    %88 = vector.multi_reduction <add>, %87, %cst_32 [2] : vector<2x17x17xf32> to vector<2x17xf32>
    %89 = vector.shape_cast %88 : vector<2x17xf32> to vector<2x17x1xf32>
    %90 = tpu.reciprocal %89 {approx = true} : vector<2x17x1xf32> -> vector<2x17x1xf32>
    %91 = vector.broadcast %90 : vector<2x17x1xf32> to vector<2x17x17xf32>
    %92 = arith.mulf %87, %91 : vector<2x17x17xf32>
    %93 = arith.truncf %92 : vector<2x17x17xf32> to vector<2x17x17xbf16>
    "tpu.trace_start"() <{level = 10 : i32, message = "bqk,bkd->bqd"}> : () -> ()
    %cst_33 = arith.constant dense<0.000000e+00> : vector<2x17x32xf32>
    %94 = tpu.matmul %93, %81, %cst_33 {dimension_numbers = #tpu.dot_dimension_numbers<[2], [1], [1], [2], [0, 0, 0, 1, 1, 2], [0], [0]>} : vector<2x17x17xbf16>, vector<2x17x32xbf16>, vector<2x17x32xf32> -> vector<2x17x32xf32>
    "tpu.trace_stop"() : () -> ()
    %95 = vector.shape_cast %94 : vector<2x17x32xf32> to vector<34x32xf32>
    %96 = arith.truncf %95 : vector<34x32xf32> to vector<34x32xbf16>
    %97 = vector.extract_strided_slice %50 {offsets = [32, 0], sizes = [32, 128], strides = [1, 1]} : vector<128x128xbf16> to vector<32x128xbf16>
    %cst_34 = arith.constant dense<0.000000e+00> : vector<34x128xf32>
    %98 = tpu.matmul %96, %97, %cst_34 {dimension_numbers = #tpu.dot_dimension_numbers<[1], [0], [0], [1], [0, 0, 1, 1], [], []>} : vector<34x32xbf16>, vector<32x128xbf16>, vector<34x128xf32> -> vector<34x128xf32>
    %99 = arith.addf %75, %98 : vector<34x128xf32>
    %100 = vector.extract_strided_slice %44 {offsets = [0, 0, 64], sizes = [2, 17, 32], strides = [1, 1, 1]} : vector<2x17x128xf32> to vector<2x17x32xf32>
    %101 = arith.truncf %100 : vector<2x17x32xf32> to vector<2x17x32xbf16>
    %102 = vector.extract_strided_slice %46 {offsets = [0, 0, 64], sizes = [2, 17, 32], strides = [1, 1, 1]} : vector<2x17x128xf32> to vector<2x17x32xf32>
    %103 = arith.truncf %102 : vector<2x17x32xf32> to vector<2x17x32xbf16>
    %104 = vector.extract_strided_slice %48 {offsets = [0, 0, 64], sizes = [2, 17, 32], strides = [1, 1, 1]} : vector<2x17x128xf32> to vector<2x17x32xf32>
    %105 = arith.truncf %104 : vector<2x17x32xf32> to vector<2x17x32xbf16>
    "tpu.trace_start"() <{level = 10 : i32, message = "bqd,bkd->bqk"}> : () -> ()
    %cst_35 = arith.constant dense<0.000000e+00> : vector<2x17x17xf32>
    %106 = tpu.matmul %101, %103, %cst_35 {dimension_numbers = #tpu.dot_dimension_numbers<[2], [2], [1], [1], [0, 0, 0, 1, 1, 1], [0], [0]>} : vector<2x17x32xbf16>, vector<2x17x32xbf16>, vector<2x17x17xf32> -> vector<2x17x17xf32>
    "tpu.trace_stop"() : () -> ()
    %cst_36 = arith.constant dense<0xFF800000> : vector<2x17xf32>
    %107 = vector.multi_reduction <maximumf>, %106, %cst_36 [2] : vector<2x17x17xf32> to vector<2x17xf32>
    %108 = vector.shape_cast %107 : vector<2x17xf32> to vector<2x17x1xf32>
    %109 = vector.broadcast %108 : vector<2x17x1xf32> to vector<2x17x17xf32>
    %110 = arith.subf %106, %109 : vector<2x17x17xf32>
    %111 = math.exp %110 : vector<2x17x17xf32>
    %cst_37 = arith.constant dense<0.000000e+00> : vector<2x17xf32>
    %112 = vector.multi_reduction <add>, %111, %cst_37 [2] : vector<2x17x17xf32> to vector<2x17xf32>
    %113 = vector.shape_cast %112 : vector<2x17xf32> to vector<2x17x1xf32>
    %114 = tpu.reciprocal %113 {approx = true} : vector<2x17x1xf32> -> vector<2x17x1xf32>
    %115 = vector.broadcast %114 : vector<2x17x1xf32> to vector<2x17x17xf32>
    %116 = arith.mulf %111, %115 : vector<2x17x17xf32>
    %117 = arith.truncf %116 : vector<2x17x17xf32> to vector<2x17x17xbf16>
    "tpu.trace_start"() <{level = 10 : i32, message = "bqk,bkd->bqd"}> : () -> ()
    %cst_38 = arith.constant dense<0.000000e+00> : vector<2x17x32xf32>
    %118 = tpu.matmul %117, %105, %cst_38 {dimension_numbers = #tpu.dot_dimension_numbers<[2], [1], [1], [2], [0, 0, 0, 1, 1, 2], [0], [0]>} : vector<2x17x17xbf16>, vector<2x17x32xbf16>, vector<2x17x32xf32> -> vector<2x17x32xf32>
    "tpu.trace_stop"() : () -> ()
    %119 = vector.shape_cast %118 : vector<2x17x32xf32> to vector<34x32xf32>
    %120 = arith.truncf %119 : vector<34x32xf32> to vector<34x32xbf16>
    %121 = vector.extract_strided_slice %50 {offsets = [64, 0], sizes = [32, 128], strides = [1, 1]} : vector<128x128xbf16> to vector<32x128xbf16>
    %cst_39 = arith.constant dense<0.000000e+00> : vector<34x128xf32>
    %122 = tpu.matmul %120, %121, %cst_39 {dimension_numbers = #tpu.dot_dimension_numbers<[1], [0], [0], [1], [0, 0, 1, 1], [], []>} : vector<34x32xbf16>, vector<32x128xbf16>, vector<34x128xf32> -> vector<34x128xf32>
    %123 = arith.addf %99, %122 : vector<34x128xf32>
    %124 = vector.extract_strided_slice %44 {offsets = [0, 0, 96], sizes = [2, 17, 32], strides = [1, 1, 1]} : vector<2x17x128xf32> to vector<2x17x32xf32>
    %125 = arith.truncf %124 : vector<2x17x32xf32> to vector<2x17x32xbf16>
    %126 = vector.extract_strided_slice %46 {offsets = [0, 0, 96], sizes = [2, 17, 32], strides = [1, 1, 1]} : vector<2x17x128xf32> to vector<2x17x32xf32>
    %127 = arith.truncf %126 : vector<2x17x32xf32> to vector<2x17x32xbf16>
    %128 = vector.extract_strided_slice %48 {offsets = [0, 0, 96], sizes = [2, 17, 32], strides = [1, 1, 1]} : vector<2x17x128xf32> to vector<2x17x32xf32>
    %129 = arith.truncf %128 : vector<2x17x32xf32> to vector<2x17x32xbf16>
    "tpu.trace_start"() <{level = 10 : i32, message = "bqd,bkd->bqk"}> : () -> ()
    %cst_40 = arith.constant dense<0.000000e+00> : vector<2x17x17xf32>
    %130 = tpu.matmul %125, %127, %cst_40 {dimension_numbers = #tpu.dot_dimension_numbers<[2], [2], [1], [1], [0, 0, 0, 1, 1, 1], [0], [0]>} : vector<2x17x32xbf16>, vector<2x17x32xbf16>, vector<2x17x17xf32> -> vector<2x17x17xf32>
    "tpu.trace_stop"() : () -> ()
    %cst_41 = arith.constant dense<0xFF800000> : vector<2x17xf32>
    %131 = vector.multi_reduction <maximumf>, %130, %cst_41 [2] : vector<2x17x17xf32> to vector<2x17xf32>
    %132 = vector.shape_cast %131 : vector<2x17xf32> to vector<2x17x1xf32>
    %133 = vector.broadcast %132 : vector<2x17x1xf32> to vector<2x17x17xf32>
    %134 = arith.subf %130, %133 : vector<2x17x17xf32>
    %135 = math.exp %134 : vector<2x17x17xf32>
    %cst_42 = arith.constant dense<0.000000e+00> : vector<2x17xf32>
    %136 = vector.multi_reduction <add>, %135, %cst_42 [2] : vector<2x17x17xf32> to vector<2x17xf32>
    %137 = vector.shape_cast %136 : vector<2x17xf32> to vector<2x17x1xf32>
    %138 = tpu.reciprocal %137 {approx = true} : vector<2x17x1xf32> -> vector<2x17x1xf32>
    %139 = vector.broadcast %138 : vector<2x17x1xf32> to vector<2x17x17xf32>
    %140 = arith.mulf %135, %139 : vector<2x17x17xf32>
    %141 = arith.truncf %140 : vector<2x17x17xf32> to vector<2x17x17xbf16>
    "tpu.trace_start"() <{level = 10 : i32, message = "bqk,bkd->bqd"}> : () -> ()
    %cst_43 = arith.constant dense<0.000000e+00> : vector<2x17x32xf32>
    %142 = tpu.matmul %141, %129, %cst_43 {dimension_numbers = #tpu.dot_dimension_numbers<[2], [1], [1], [2], [0, 0, 0, 1, 1, 2], [0], [0]>} : vector<2x17x17xbf16>, vector<2x17x32xbf16>, vector<2x17x32xf32> -> vector<2x17x32xf32>
    "tpu.trace_stop"() : () -> ()
    %143 = vector.shape_cast %142 : vector<2x17x32xf32> to vector<34x32xf32>
    %144 = arith.truncf %143 : vector<34x32xf32> to vector<34x32xbf16>
    %145 = vector.extract_strided_slice %50 {offsets = [96, 0], sizes = [32, 128], strides = [1, 1]} : vector<128x128xbf16> to vector<32x128xbf16>
    %cst_44 = arith.constant dense<0.000000e+00> : vector<34x128xf32>
    %146 = tpu.matmul %144, %145, %cst_44 {dimension_numbers = #tpu.dot_dimension_numbers<[1], [0], [0], [1], [0, 0, 1, 1], [], []>} : vector<34x32xbf16>, vector<32x128xbf16>, vector<34x128xf32> -> vector<34x128xf32>
    %147 = arith.addf %123, %146 : vector<34x128xf32>
    %c0_45 = arith.constant 0 : index
    %c0_46 = arith.constant 0 : index
    %c0_47 = arith.constant 0 : index
    %148 = vector.load %arg10[%c0_45, %c0_46, %c0_47] : memref<1x1x128xf32, #tpu.memory_space<vmem>>, vector<1x1x128xf32>
    %149 = vector.shape_cast %148 : vector<1x1x128xf32> to vector<1x128xf32>
    %150 = vector.broadcast %149 : vector<1x128xf32> to vector<34x128xf32>
    %151 = arith.addf %147, %150 : vector<34x128xf32>
    %152 = vector.shape_cast %151 : vector<34x128xf32> to vector<2x17x128xf32>
    %153 = arith.addf %3, %152 : vector<2x17x128xf32>
    %c0_48 = arith.constant 0 : index
    %c0_49 = arith.constant 0 : index
    %c0_50 = arith.constant 0 : index
    %154 = vector.load %arg11[%c0_48, %c0_49, %c0_50] : memref<1x1x128xf32, #tpu.memory_space<vmem>>, vector<1x1x128xf32>
    %155 = vector.shape_cast %154 : vector<1x1x128xf32> to vector<1x128xf32>
    %c0_51 = arith.constant 0 : index
    %c0_52 = arith.constant 0 : index
    %c0_53 = arith.constant 0 : index
    %156 = vector.load %arg12[%c0_51, %c0_52, %c0_53] : memref<1x1x128xf32, #tpu.memory_space<vmem>>, vector<1x1x128xf32>
    %157 = vector.shape_cast %156 : vector<1x1x128xf32> to vector<1x128xf32>
    %cst_54 = arith.constant dense<0.000000e+00> : vector<2x17xf32>
    %158 = vector.multi_reduction <add>, %153, %cst_54 [2] : vector<2x17x128xf32> to vector<2x17xf32>
    %159 = vector.shape_cast %158 : vector<2x17xf32> to vector<2x17x1xf32>
    %cst_55 = arith.constant 1.280000e+02 : f32
    %160 = vector.broadcast %cst_55 : f32 to vector<2x17x1xf32>
    %161 = arith.divf %159, %160 : vector<2x17x1xf32>
    %162 = vector.broadcast %161 : vector<2x17x1xf32> to vector<2x17x128xf32>
    %163 = arith.subf %153, %162 : vector<2x17x128xf32>
    %164 = arith.mulf %163, %163 : vector<2x17x128xf32>
    %cst_56 = arith.constant dense<0.000000e+00> : vector<2x17xf32>
    %165 = vector.multi_reduction <add>, %164, %cst_56 [2] : vector<2x17x128xf32> to vector<2x17xf32>
    %166 = vector.shape_cast %165 : vector<2x17xf32> to vector<2x17x1xf32>
    %cst_57 = arith.constant 1.280000e+02 : f32
    %167 = vector.broadcast %cst_57 : f32 to vector<2x17x1xf32>
    %168 = arith.divf %166, %167 : vector<2x17x1xf32>
    %169 = vector.broadcast %161 : vector<2x17x1xf32> to vector<2x17x128xf32>
    %170 = arith.subf %153, %169 : vector<2x17x128xf32>
    %cst_58 = arith.constant 9.99999974E-6 : f32
    %171 = vector.broadcast %cst_58 : f32 to vector<2x17x1xf32>
    %172 = arith.addf %168, %171 : vector<2x17x1xf32>
    %173 = math.rsqrt %172 : vector<2x17x1xf32>
    %174 = vector.broadcast %173 : vector<2x17x1xf32> to vector<2x17x128xf32>
    %175 = arith.mulf %170, %174 : vector<2x17x128xf32>
    %176 = vector.shape_cast %155 : vector<1x128xf32> to vector<1x1x128xf32>
    %177 = vector.broadcast %176 : vector<1x1x128xf32> to vector<2x17x128xf32>
    %178 = arith.mulf %175, %177 : vector<2x17x128xf32>
    %179 = vector.shape_cast %157 : vector<1x128xf32> to vector<1x1x128xf32>
    %180 = vector.broadcast %179 : vector<1x1x128xf32> to vector<2x17x128xf32>
    %181 = arith.addf %178, %180 : vector<2x17x128xf32>
    %182 = vector.shape_cast %181 : vector<2x17x128xf32> to vector<34x128xf32>
    %183 = arith.truncf %182 : vector<34x128xf32> to vector<34x128xbf16>
    %c0_59 = arith.constant 0 : index
    %c0_60 = arith.constant 0 : index
    %c0_61 = arith.constant 0 : index
    %184 = vector.load %arg13[%c0_59, %c0_60, %c0_61] : memref<1x128x256xbf16, #tpu.memory_space<vmem>>, vector<1x128x256xbf16>
    %185 = vector.shape_cast %184 : vector<1x128x256xbf16> to vector<128x256xbf16>
    %cst_62 = arith.constant dense<0.000000e+00> : vector<34x256xf32>
    %186 = tpu.matmul %183, %185, %cst_62 {dimension_numbers = #tpu.dot_dimension_numbers<[1], [0], [0], [1], [0, 0, 1, 1], [], []>} : vector<34x128xbf16>, vector<128x256xbf16>, vector<34x256xf32> -> vector<34x256xf32>
    %c0_63 = arith.constant 0 : index
    %c0_64 = arith.constant 0 : index
    %c0_65 = arith.constant 0 : index
    %187 = vector.load %arg14[%c0_63, %c0_64, %c0_65] : memref<1x1x256xf32, #tpu.memory_space<vmem>>, vector<1x1x256xf32>
    %188 = vector.shape_cast %187 : vector<1x1x256xf32> to vector<1x256xf32>
    %189 = vector.broadcast %188 : vector<1x256xf32> to vector<34x256xf32>
    %190 = arith.addf %186, %189 : vector<34x256xf32>
    %191 = arith.mulf %190, %190 : vector<34x256xf32>
    %192 = arith.mulf %190, %191 : vector<34x256xf32>
    %cst_66 = arith.constant 4.471500e-02 : f32
    %193 = vector.broadcast %cst_66 : f32 to vector<34x256xf32>
    %194 = arith.mulf %193, %192 : vector<34x256xf32>
    %195 = arith.addf %190, %194 : vector<34x256xf32>
    %cst_67 = arith.constant 0.797884583 : f32
    %196 = vector.broadcast %cst_67 : f32 to vector<34x256xf32>
    %197 = arith.mulf %196, %195 : vector<34x256xf32>
    %198 = math.tanh %197 : vector<34x256xf32>
    %cst_68 = arith.constant 1.000000e+00 : f32
    %199 = vector.broadcast %cst_68 : f32 to vector<34x256xf32>
    %200 = arith.addf %199, %198 : vector<34x256xf32>
    %cst_69 = arith.constant 5.000000e-01 : f32
    %201 = vector.broadcast %cst_69 : f32 to vector<34x256xf32>
    %202 = arith.mulf %201, %200 : vector<34x256xf32>
    %203 = arith.mulf %190, %202 : vector<34x256xf32>
    %204 = arith.truncf %203 : vector<34x256xf32> to vector<34x256xbf16>
    %c0_70 = arith.constant 0 : index
    %c0_71 = arith.constant 0 : index
    %c0_72 = arith.constant 0 : index
    %205 = vector.load %arg15[%c0_70, %c0_71, %c0_72] : memref<1x256x128xbf16, #tpu.memory_space<vmem>>, vector<1x256x128xbf16>
    %206 = vector.shape_cast %205 : vector<1x256x128xbf16> to vector<256x128xbf16>
    %cst_73 = arith.constant dense<0.000000e+00> : vector<34x128xf32>
    %207 = tpu.matmul %204, %206, %cst_73 {dimension_numbers = #tpu.dot_dimension_numbers<[1], [0], [0], [1], [0, 0, 1, 1], [], []>} : vector<34x256xbf16>, vector<256x128xbf16>, vector<34x128xf32> -> vector<34x128xf32>
    %c0_74 = arith.constant 0 : index
    %c0_75 = arith.constant 0 : index
    %c0_76 = arith.constant 0 : index
    %208 = vector.load %arg16[%c0_74, %c0_75, %c0_76] : memref<1x1x128xf32, #tpu.memory_space<vmem>>, vector<1x1x128xf32>
    %209 = vector.shape_cast %208 : vector<1x1x128xf32> to vector<1x128xf32>
    %210 = vector.broadcast %209 : vector<1x128xf32> to vector<34x128xf32>
    %211 = arith.addf %207, %210 : vector<34x128xf32>
    %212 = vector.shape_cast %211 : vector<34x128xf32> to vector<2x17x128xf32>
    %213 = arith.addf %153, %212 : vector<2x17x128xf32>
    %c0_77 = arith.constant 0 : index
    %c0_78 = arith.constant 0 : index
    %c0_79 = arith.constant 0 : index
    %214 = vector.load %arg22[%c0_77, %c0_78, %c0_79] : memref<2x17x128xf32, #tpu.memory_space<vmem>>, vector<2x17x128xf32>
    tpu.vector_store %arg22[%c0_77, %c0_78, %c0_79], %213 {strides = array<i32>} : memref<2x17x128xf32, #tpu.memory_space<vmem>>, vector<2x17x128xf32>,
    %c1_i32 = arith.constant 1 : i32
    %215 = arith.cmpi eq, %arg0, %c1_i32 : i32
    %216 = arith.extui %215 : i1 to i32
    %c0_i32_80 = arith.constant 0 : i32
    %217 = arith.cmpi ne, %216, %c0_i32_80 : i32
    scf.if %217 {
      %218 = vector.extract_strided_slice %213 {offsets = [0, 0, 0], sizes = [2, 1, 128], strides = [1, 1, 1]} : vector<2x17x128xf32> to vector<2x1x128xf32>
      %219 = vector.shape_cast %218 : vector<2x1x128xf32> to vector<2x128xf32>
      %c0_81 = arith.constant 0 : index
      %c0_82 = arith.constant 0 : index
      %220 = vector.load %arg17[%c0_81, %c0_82] : memref<1x128xf32, #tpu.memory_space<vmem>>, vector<1x128xf32>
      %c0_83 = arith.constant 0 : index
      %c0_84 = arith.constant 0 : index
      %221 = vector.load %arg18[%c0_83, %c0_84] : memref<1x128xf32, #tpu.memory_space<vmem>>, vector<1x128xf32>
      %cst_85 = arith.constant dense<0.000000e+00> : vector<2xf32>
      %222 = vector.multi_reduction <add>, %219, %cst_85 [1] : vector<2x128xf32> to vector<2xf32>
      %223 = vector.shape_cast %222 : vector<2xf32> to vector<2x1xf32>
      %cst_86 = arith.constant 1.280000e+02 : f32
      %224 = vector.broadcast %cst_86 : f32 to vector<2x1xf32>
      %225 = arith.divf %223, %224 : vector<2x1xf32>
      %226 = vector.broadcast %225 : vector<2x1xf32> to vector<2x128xf32>
      %227 = arith.subf %219, %226 : vector<2x128xf32>
      %228 = arith.mulf %227, %227 : vector<2x128xf32>
      %cst_87 = arith.constant dense<0.000000e+00> : vector<2xf32>
      %229 = vector.multi_reduction <add>, %228, %cst_87 [1] : vector<2x128xf32> to vector<2xf32>
      %230 = vector.shape_cast %229 : vector<2xf32> to vector<2x1xf32>
      %cst_88 = arith.constant 1.280000e+02 : f32
      %231 = vector.broadcast %cst_88 : f32 to vector<2x1xf32>
      %232 = arith.divf %230, %231 : vector<2x1xf32>
      %233 = vector.broadcast %225 : vector<2x1xf32> to vector<2x128xf32>
      %234 = arith.subf %219, %233 : vector<2x128xf32>
      %cst_89 = arith.constant 9.99999974E-6 : f32
      %235 = vector.broadcast %cst_89 : f32 to vector<2x1xf32>
      %236 = arith.addf %232, %235 : vector<2x1xf32>
      %237 = math.rsqrt %236 : vector<2x1xf32>
      %238 = vector.broadcast %237 : vector<2x1xf32> to vector<2x128xf32>
      %239 = arith.mulf %234, %238 : vector<2x128xf32>
      %240 = vector.broadcast %220 : vector<1x128xf32> to vector<2x128xf32>
      %241 = arith.mulf %239, %240 : vector<2x128xf32>
      %242 = vector.broadcast %221 : vector<1x128xf32> to vector<2x128xf32>
      %243 = arith.addf %241, %242 : vector<2x128xf32>
      %244 = arith.truncf %243 : vector<2x128xf32> to vector<2x128xbf16>
      %c0_90 = arith.constant 0 : index
      %c0_91 = arith.constant 0 : index
      %245 = vector.load %arg19[%c0_90, %c0_91] : memref<128x128xbf16, #tpu.memory_space<vmem>>, vector<128x128xbf16>
      %cst_92 = arith.constant dense<0.000000e+00> : vector<2x128xf32>
      %246 = tpu.matmul %244, %245, %cst_92 {dimension_numbers = #tpu.dot_dimension_numbers<[1], [0], [0], [1], [0, 0, 1, 1], [], []>} : vector<2x128xbf16>, vector<128x128xbf16>, vector<2x128xf32> -> vector<2x128xf32>
      %c0_93 = arith.constant 0 : index
      %c0_94 = arith.constant 0 : index
      %247 = vector.load %arg20[%c0_93, %c0_94] : memref<1x128xf32, #tpu.memory_space<vmem>>, vector<1x128xf32>
      %248 = vector.broadcast %247 : vector<1x128xf32> to vector<2x128xf32>
      %249 = arith.addf %246, %248 : vector<2x128xf32>
      %c0_95 = arith.constant 0 : index
      %c0_96 = arith.constant 0 : index
      %250 = vector.load %arg21[%c0_95, %c0_96] : memref<2x128xf32, #tpu.memory_space<vmem>>, vector<2x128xf32>
      tpu.vector_store %arg21[%c0_95, %c0_96], %249 {strides = array<i32>} : memref<2x128xf32, #tpu.memory_space<vmem>>, vector<2x128xf32>,
    } else {
    }
    return
  }
  func.func @transform_0(%arg0: i32) -> (i32, i32, i32) {
    %c0_i32 = arith.constant 0 : i32
    %c0_i32_0 = arith.constant 0 : i32
    %c0_i32_1 = arith.constant 0 : i32
    %c0_i32_2 = arith.constant 0 : i32
    return %c0_i32, %c0_i32_0, %c0_i32_1 : i32, i32, i32
  }
  func.func @transform_1(%arg0: i32) -> (i32, i32) {
    %c0_i32 = arith.constant 0 : i32
    %c0_i32_0 = arith.constant 0 : i32
    %c0_i32_1 = arith.constant 0 : i32
    return %c0_i32, %c0_i32_0 : i32, i32
  }
  func.func @transform_2(%arg0: i32) -> (i32, i32) {
    %c0_i32 = arith.constant 0 : i32
    %c0_i32_0 = arith.constant 0 : i32
    %c0_i32_1 = arith.constant 0 : i32
    return %c0_i32, %c0_i32_0 : i32, i32
  }
  func.func @transform_3(%arg0: i32) -> (i32, i32) {
    %c0_i32 = arith.constant 0 : i32
    %c0_i32_0 = arith.constant 0 : i32
    %c0_i32_1 = arith.constant 0 : i32
    return %c0_i32, %c0_i32_0 : i32, i32
  }
  func.func @transform_4(%arg0: i32) -> (i32, i32, i32) {
    %c0_i32 = arith.constant 0 : i32
    %c0_i32_0 = arith.constant 0 : i32
    %c0_i32_1 = arith.constant 0 : i32
    return %arg0, %c0_i32, %c0_i32_0 : i32, i32, i32
  }
  func.func @transform_5(%arg0: i32) -> (i32, i32, i32) {
    %c0_i32 = arith.constant 0 : i32
    %c0_i32_0 = arith.constant 0 : i32
    %c0_i32_1 = arith.constant 0 : i32
    return %arg0, %c0_i32, %c0_i32_0 : i32, i32, i32
  }
  func.func @transform_6(%arg0: i32) -> (i32, i32, i32) {
    %c0_i32 = arith.constant 0 : i32
    %c0_i32_0 = arith.constant 0 : i32
    %c0_i32_1 = arith.constant 0 : i32
    return %arg0, %c0_i32, %c0_i32_0 : i32, i32, i32
  }
  func.func @transform_7(%arg0: i32) -> (i32, i32, i32) {
    %c0_i32 = arith.constant 0 : i32
    %c0_i32_0 = arith.constant 0 : i32
    %c0_i32_1 = arith.constant 0 : i32
    return %arg0, %c0_i32, %c0_i32_0 : i32, i32, i32
  }
  func.func @transform_8(%arg0: i32) -> (i32, i32, i32) {
    %c0_i32 = arith.constant 0 : i32
    %c0_i32_0 = arith.constant 0 : i32
    %c0_i32_1 = arith.constant 0 : i32
    return %arg0, %c0_i32, %c0_i32_0 : i32, i32, i32
  }
  func.func @transform_9(%arg0: i32) -> (i32, i32, i32) {
    %c0_i32 = arith.constant 0 : i32
    %c0_i32_0 = arith.constant 0 : i32
    %c0_i32_1 = arith.constant 0 : i32
    return %arg0, %c0_i32, %c0_i32_0 : i32, i32, i32
  }
  func.func @transform_10(%arg0: i32) -> (i32, i32, i32) {
    %c0_i32 = arith.constant 0 : i32
    %c0_i32_0 = arith.constant 0 : i32
    %c0_i32_1 = arith.constant 0 : i32
    return %arg0, %c0_i32, %c0_i32_0 : i32, i32, i32
  }
  func.func @transform_11(%arg0: i32) -> (i32, i32, i32) {
    %c0_i32 = arith.constant 0 : i32
    %c0_i32_0 = arith.constant 0 : i32
    %c0_i32_1 = arith.constant 0 : i32
    return %arg0, %c0_i32, %c0_i32_0 : i32, i32, i32
  }
  func.func @transform_12(%arg0: i32) -> (i32, i32, i32) {
    %c0_i32 = arith.constant 0 : i32
    %c0_i32_0 = arith.constant 0 : i32
    %c0_i32_1 = arith.constant 0 : i32
    return %arg0, %c0_i32, %c0_i32_0 : i32, i32, i32
  }
  func.func @transform_13(%arg0: i32) -> (i32, i32, i32) {
    %c0_i32 = arith.constant 0 : i32
    %c0_i32_0 = arith.constant 0 : i32
    %c0_i32_1 = arith.constant 0 : i32
    return %arg0, %c0_i32, %c0_i32_0 : i32, i32, i32
  }
  func.func @transform_14(%arg0: i32) -> (i32, i32, i32) {
    %c0_i32 = arith.constant 0 : i32
    %c0_i32_0 = arith.constant 0 : i32
    %c0_i32_1 = arith.constant 0 : i32
    return %arg0, %c0_i32, %c0_i32_0 : i32, i32, i32
  }
  func.func @transform_15(%arg0: i32) -> (i32, i32, i32) {
    %c0_i32 = arith.constant 0 : i32
    %c0_i32_0 = arith.constant 0 : i32
    %c0_i32_1 = arith.constant 0 : i32
    return %arg0, %c0_i32, %c0_i32_0 : i32, i32, i32
  }
  func.func @transform_16(%arg0: i32) -> (i32, i32) {
    %c0_i32 = arith.constant 0 : i32
    %c0_i32_0 = arith.constant 0 : i32
    %c0_i32_1 = arith.constant 0 : i32
    return %c0_i32, %c0_i32_0 : i32, i32
  }
  func.func @transform_17(%arg0: i32) -> (i32, i32) {
    %c0_i32 = arith.constant 0 : i32
    %c0_i32_0 = arith.constant 0 : i32
    %c0_i32_1 = arith.constant 0 : i32
    return %c0_i32, %c0_i32_0 : i32, i32
  }
  func.func @transform_18(%arg0: i32) -> (i32, i32) {
    %c0_i32 = arith.constant 0 : i32
    %c0_i32_0 = arith.constant 0 : i32
    %c0_i32_1 = arith.constant 0 : i32
    return %c0_i32, %c0_i32_0 : i32, i32
  }
  func.func @transform_19(%arg0: i32) -> (i32, i32) {
    %c0_i32 = arith.constant 0 : i32
    %c0_i32_0 = arith.constant 0 : i32
    %c0_i32_1 = arith.constant 0 : i32
    return %c0_i32, %c0_i32_0 : i32, i32
  }
  func.func @transform_20(%arg0: i32) -> (i32, i32) {
    %c0_i32 = arith.constant 0 : i32
    %c0_i32_0 = arith.constant 0 : i32
    %c0_i32_1 = arith.constant 0 : i32
    return %c0_i32, %c0_i32_0 : i32, i32
  }
}

</mosaic_0001>

<llo_original>
// kernel: tpu_custom_call.1
$region0: #{tpu_custom_call.1}
  #allocation0 [shape = 'u32[]', space=smem, size = 0x4, offset = 0x4, fixed_abs, tag = 'smem constant byte address 0x4 - core index']
  #allocation1 [shape = 'u32[144,128]{1,0:T(1,128)}', space=vmem, size = 0x12000, scoped, tag = 'internal scratch']
  #allocation2 [shape = 'f32[2,17,128]{2,1,0:T(8,128)}', space=vmem, size = 0x6000, scoped, tag = 'scratch operand']
  %s0 = inlined_call_operand.hbm [shape: f32[2,16,48], index: 0, kind: input, shape index: {}]
  %s1 = inlined_call_operand.hbm [shape: bf16[48,128], index: 1, kind: input, shape index: {}]
  %s2 = inlined_call_operand.hbm [shape: f32[1,128], index: 2, kind: input, shape index: {}]
  %s3 = inlined_call_operand.hbm [shape: f32[17,128], index: 3, kind: input, shape index: {}]
  %s4 = inlined_call_operand.hbm [shape: f32[2,1,128], index: 4, kind: input, shape index: {}]
  %s5 = inlined_call_operand.hbm [shape: f32[2,1,128], index: 5, kind: input, shape index: {}]
  %s6 = inlined_call_operand.hbm [shape: bf16[2,128,384], index: 6, kind: input, shape index: {}]
  %s7 = inlined_call_operand.hbm [shape: f32[2,1,384], index: 7, kind: input, shape index: {}]
  %s8 = inlined_call_operand.hbm [shape: bf16[2,128,128], index: 8, kind: input, shape index: {}]
  %s9 = inlined_call_operand.hbm [shape: f32[2,1,128], index: 9, kind: input, shape index: {}]
  %s10 = inlined_call_operand.hbm [shape: f32[2,1,128], index: 10, kind: input, shape index: {}]
  %s11 = inlined_call_operand.hbm [shape: f32[2,1,128], index: 11, kind: input, shape index: {}]
  %s12 = inlined_call_operand.hbm [shape: bf16[2,128,256], index: 12, kind: input, shape index: {}]
  %s13 = inlined_call_operand.vmem [shape: f32[2,1,256], index: 13, kind: input, shape index: {}]
  %s14 = inlined_call_operand.hbm [shape: bf16[2,256,128], index: 14, kind: input, shape index: {}]
  %s15 = inlined_call_operand.hbm [shape: f32[2,1,128], index: 15, kind: input, shape index: {}]
  %s16 = inlined_call_operand.hbm [shape: f32[1,128], index: 16, kind: input, shape index: {}]
  %s17 = inlined_call_operand.hbm [shape: f32[1,128], index: 17, kind: input, shape index: {}]
  %s18 = inlined_call_operand.vmem [shape: bf16[128,128], index: 18, kind: input, shape index: {}]
  %s19 = inlined_call_operand.vmem [shape: f32[1,128], index: 19, kind: input, shape index: {}]
  %s20 = inlined_call_operand.hbm [shape: f32[2,128], index: 20, kind: output, shape index: {}]
  %s21 = sld [smem:[#allocation0]]
  $region189: #{tpu_custom_call.1} parent=0
    _
  %s23 = ssub.s32 1, %s21
  %s24 = scalar_select 0, %s23, %s21
  $region1: #{tpu_custom_call.1} parent=0
    #allocation3 [shape = 'u8[16384]{0}', space=vmem, size = 0x4000, scoped, tag = 'input window, operand 0, single buffered']
    #allocation4 [shape = 's32[2]{0}', space=sflag, size = 0x8, scoped, tag = 'scoped memory for tpu_custom_call.1']
    #allocation5 [shape = 's32[2]{0}', space=sflag, size = 0x8, scoped, tag = 'scoped memory for tpu_custom_call.1']
    #allocation6 [shape = 'u8[12288]{0}', space=vmem, size = 0x3000, scoped, tag = 'input window, operand 1, single buffered']
    #allocation7 [shape = 's32[1]{0}', space=sflag, size = 0x4, scoped, tag = 'scoped memory for tpu_custom_call.1']
    #allocation8 [shape = 'u8[512]{0}', space=vmem, size = 0x400, scoped, tag = 'input window, operand 2, single buffered']
    #allocation9 [shape = 'u8[12288]{0}', space=vmem, size = 0x3000, scoped, tag = 'input window, operand 3, single buffered']
    #allocation10 [shape = 's32[1]{0}', space=sflag, size = 0x4, scoped, tag = 'scoped memory for tpu_custom_call.1']
    #allocation11 [shape = 'u8[1024]{0}', space=vmem, size = 0x400, scoped, tag = 'input window, operand 4']
    #allocation12 [shape = 'u8[1024]{0}', space=vmem, size = 0x400, scoped, tag = 'input window, operand 5']
    #allocation13 [shape = 'u8[196608]{0}', space=vmem, size = 0x30000, scoped, tag = 'input window, operand 6']
    #allocation14 [shape = 'u8[3072]{0}', space=vmem, size = 0xc00, scoped, tag = 'input window, operand 7']
    #allocation15 [shape = 'u8[65536]{0}', space=vmem, size = 0x10000, scoped, tag = 'input window, operand 8']
    #allocation16 [shape = 'u8[1024]{0}', space=vmem, size = 0x400, scoped, tag = 'input window, operand 9']
    #allocation17 [shape = 'u8[1024]{0}', space=vmem, size = 0x400, scoped, tag = 'input window, operand 10']
    #allocation18 [shape = 'u8[1024]{0}', space=vmem, size = 0x400, scoped, tag = 'input window, operand 11']
    #allocation19 [shape = 'u8[131072]{0}', space=vmem, size = 0x20000, scoped, tag = 'input window, operand 12']
    #allocation20 [shape = 'u8[131072]{0}', space=vmem, size = 0x20000, scoped, tag = 'input window, operand 14']
    #allocation21 [shape = 'u8[1024]{0}', space=vmem, size = 0x400, scoped, tag = 'input window, operand 15']
    #allocation22 [shape = 'u8[512]{0}', space=vmem, size = 0x400, scoped, tag = 'input window, operand 16, single buffered']
    #allocation23 [shape = 'u8[512]{0}', space=vmem, size = 0x400, scoped, tag = 'input window, operand 17, single buffered']
    #allocation24 [shape = 'u8[1024]{0}', space=vmem, size = 0x400, scoped, tag = 'output window, operand 0, single buffered']
    %25 = vsyncpa [#allocation4], 0
    %26 = vsyncpa [#allocation7], 0
    %27 = vsyncpa [#allocation10], 0
    %28 = vsyncpa [#allocation5], 0
    loop: start=0, step=1, limit=4
    $region2: #{tpu_custom_call.1} parent=1 // loop_pre_header
      _
    $region3: #{tpu_custom_call.1} parent=1 // loop_header
      %s30 = sphi 0, %s34
      %p31 = scmp.ge.s32.totalorder %s30, 4
      %s38 = sphi 0, %s38
      %s40 = sphi 0, %s38
      %s41 = sphi 0, %s40
      %s55 = sphi 0, %s41
      %s59 = sphi 0, %s59
      %s61 = sphi 0, %s59
      %s62 = sphi 0, %s61
      %s76 = sphi 0, %s62
      %s80 = sphi 0, %s80
      %s82 = sphi 0, %s80
      %s83 = sphi 0, %s82
      %s97 = sphi 0, %s83
      %s101 = sphi 0, %s101
      %s103 = sphi 0, %s101
      %s104 = sphi 0, %s103
      %s118 = sphi 0, %s104
      %s124 = sphi 0, %s126
      %s127 = sphi 0, %s124
      %s128 = sphi 0, %s127
      %s144 = sphi 0, %s128
      %s150 = sphi 0, %s152
      %s153 = sphi 0, %s150
      %s154 = sphi 0, %s153
      %s170 = sphi 0, %s154
      %s176 = sphi 0, %s178
      %s179 = sphi 0, %s176
      %s180 = sphi 0, %s179
      %s196 = sphi 0, %s180
      %s202 = sphi 0, %s204
      %s205 = sphi 0, %s202
      %s206 = sphi 0, %s205
      %s222 = sphi 0, %s206
      %s228 = sphi 0, %s230
      %s231 = sphi 0, %s228
      %s232 = sphi 0, %s231
      %s248 = sphi 0, %s232
      %s254 = sphi 0, %s256
      %s257 = sphi 0, %s254
      %s258 = sphi 0, %s257
      %s274 = sphi 0, %s258
      %s280 = sphi 0, %s282
      %s283 = sphi 0, %s280
      %s284 = sphi 0, %s283
      %s300 = sphi 0, %s284
      %s306 = sphi 0, %s308
      %s309 = sphi 0, %s306
      %s310 = sphi 0, %s309
      %s326 = sphi 0, %s310
      %s332 = sphi 0, %s334
      %s335 = sphi 0, %s332
      %s336 = sphi 0, %s335
      %s352 = sphi 0, %s336
      %s358 = sphi 0, %s360
      %s361 = sphi 0, %s358
      %s362 = sphi 0, %s361
      %s378 = sphi 0, %s362
      %s384 = sphi 0, %s386
      %s387 = sphi 0, %s384
      %s388 = sphi 0, %s387
      %s404 = sphi 0, %s388
      %s410 = sphi 0, %s412
      %s413 = sphi 0, %s410
      %s414 = sphi 0, %s413
      %s430 = sphi 0, %s414
      %s434 = sphi 0, %s434
      %s436 = sphi 0, %s434
      %s437 = sphi 0, %s436
      %s451 = sphi 0, %s437
      %s455 = sphi 0, %s455
      %s457 = sphi 0, %s455
      %s458 = sphi 0, %s457
      %s472 = sphi 0, %s458
      %s476 = sphi 0, %s476
      %s478 = sphi 0, %s476
      %s479 = sphi 0, %s478
      %s493 = sphi 0, %s479
      %s497 = sphi 0, %s497
      %s499 = sphi 0, %s497
      %s500 = sphi 0, %s499
      %s514 = sphi 0, %s500
      %s518 = sphi 0, %s518
      %s520 = sphi 0, %s518
      %s521 = sphi 0, %s520
      %s535 = sphi 0, %s521
    $region4: #{tpu_custom_call.1} parent=1 // loop_header_branch
      %33 = sbr.rel (%p31) target = $region8
    $region5: #{tpu_custom_call.1} parent=1 // loop_body
      %s35 = ssub.s32 %s30, 1
      %s36 = ssub.s32 %s30, 2
      %s37 = sadd.s32 %s30, 1
      %s39 = sadd.s32 %s38, 1
      %p42 = scmp.eq.s32.totalorder %s30, 1
      %p43 = scmp.ne.s32.totalorder %s38, %s40
      %p44 = scmp.eq.s32.totalorder %s30, 0
      %p45 = por %p43, %p44
      %p46 = scmp.ne.s32.totalorder %s38, %s40
      %p47 = scmp.eq.s32.totalorder %s35, 1
      %p48 = por %p46, %p47
      %p49 = scmp.ne.s32.totalorder %s40, %s41
      %p50 = scmp.eq.s32.totalorder %s35, 0
      %p51 = por %p49, %p50
      %p52 = scmp.ne.s32.totalorder %s40, %s41
      %p53 = scmp.eq.s32.totalorder %s36, 1
      %p54 = por %p52, %p53
      %p56 = scmp.ne.s32.totalorder %s41, %s55
      %p57 = scmp.eq.s32.totalorder %s36, 0
      %p58 = por %p56, %p57
      %s60 = sadd.s32 %s59, 1
      %p63 = scmp.eq.s32.totalorder %s30, 1
      %p64 = scmp.ne.s32.totalorder %s59, %s61
      %p65 = scmp.eq.s32.totalorder %s30, 0
      %p66 = por %p64, %p65
      %p67 = scmp.ne.s32.totalorder %s59, %s61
      %p68 = scmp.eq.s32.totalorder %s35, 1
      %p69 = por %p67, %p68
      %p70 = scmp.ne.s32.totalorder %s61, %s62
      %p71 = scmp.eq.s32.totalorder %s35, 0
      %p72 = por %p70, %p71
      %p73 = scmp.ne.s32.totalorder %s61, %s62
      %p74 = scmp.eq.s32.totalorder %s36, 1
      %p75 = por %p73, %p74
      %p77 = scmp.ne.s32.totalorder %s62, %s76
      %p78 = scmp.eq.s32.totalorder %s36, 0
      %p79 = por %p77, %p78
      %s81 = sadd.s32 %s80, 1
      %p84 = scmp.eq.s32.totalorder %s30, 1
      %p85 = scmp.ne.s32.totalorder %s80, %s82
      %p86 = scmp.eq.s32.totalorder %s30, 0
      %p87 = por %p85, %p86
      %p88 = scmp.ne.s32.totalorder %s80, %s82
      %p89 = scmp.eq.s32.totalorder %s35, 1
      %p90 = por %p88, %p89
      %p91 = scmp.ne.s32.totalorder %s82, %s83
      %p92 = scmp.eq.s32.totalorder %s35, 0
      %p93 = por %p91, %p92
      %p94 = scmp.ne.s32.totalorder %s82, %s83
      %p95 = scmp.eq.s32.totalorder %s36, 1
      %p96 = por %p94, %p95
      %p98 = scmp.ne.s32.totalorder %s83, %s97
      %p99 = scmp.eq.s32.totalorder %s36, 0
      %p100 = por %p98, %p99
      %s102 = sadd.s32 %s101, 1
      %p105 = scmp.eq.s32.totalorder %s30, 1
      %p106 = scmp.ne.s32.totalorder %s101, %s103
      %p107 = scmp.eq.s32.totalorder %s30, 0
      %p108 = por %p106, %p107
      %p109 = scmp.ne.s32.totalorder %s101, %s103
      %p110 = scmp.eq.s32.totalorder %s35, 1
      %p111 = por %p109, %p110
      %p112 = scmp.ne.s32.totalorder %s103, %s104
      %p113 = scmp.eq.s32.totalorder %s35, 0
      %p114 = por %p112, %p113
      %p115 = scmp.ne.s32.totalorder %s103, %s104
      %p116 = scmp.eq.s32.totalorder %s36, 1
      %p117 = por %p115, %p116
      %p119 = scmp.ne.s32.totalorder %s104, %s118
      %p120 = scmp.eq.s32.totalorder %s36, 0
      %p121 = por %p119, %p120
      %s122 = ssub.s32 %s30, %s37
      %p123 = scmp.eq.s32.totalorder %s122, 0
      %s125 = sadd.s32 %s124, 1
      %s126 = scalar_select %p123, %s124, %s125
      %p129 = pneg %p123
      %p130 = scmp.eq.s32.totalorder %s30, 1
      %p131 = por %p129, %p130
      %p132 = scmp.ne.s32.totalorder %s124, %s127
      %p133 = scmp.eq.s32.totalorder %s30, 0
      %p134 = por %p132, %p133
      %p135 = scmp.ne.s32.totalorder %s124, %s127
      %p136 = scmp.eq.s32.totalorder %s35, 1
      %p137 = por %p135, %p136
      %p138 = scmp.ne.s32.totalorder %s127, %s128
      %p139 = scmp.eq.s32.totalorder %s35, 0
      %p140 = por %p138, %p139
      %p141 = scmp.ne.s32.totalorder %s127, %s128
      %p142 = scmp.eq.s32.totalorder %s36, 1
      %p143 = por %p141, %p142
      %p145 = scmp.ne.s32.totalorder %s128, %s144
      %p146 = scmp.eq.s32.totalorder %s36, 0
      %p147 = por %p145, %p146
      %s148 = ssub.s32 %s30, %s37
      %p149 = scmp.eq.s32.totalorder %s148, 0
      %s151 = sadd.s32 %s150, 1
      %s152 = scalar_select %p149, %s150, %s151
      %p155 = pneg %p149
      %p156 = scmp.eq.s32.totalorder %s30, 1
      %p157 = por %p155, %p156
      %p158 = scmp.ne.s32.totalorder %s150, %s153
      %p159 = scmp.eq.s32.totalorder %s30, 0
      %p160 = por %p158, %p159
      %p161 = scmp.ne.s32.totalorder %s150, %s153
      %p162 = scmp.eq.s32.totalorder %s35, 1
      %p163 = por %p161, %p162
      %p164 = scmp.ne.s32.totalorder %s153, %s154
      %p165 = scmp.eq.s32.totalorder %s35, 0
      %p166 = por %p164, %p165
      %p167 = scmp.ne.s32.totalorder %s153, %s154
      %p168 = scmp.eq.s32.totalorder %s36, 1
      %p169 = por %p167, %p168
      %p171 = scmp.ne.s32.totalorder %s154, %s170
      %p172 = scmp.eq.s32.totalorder %s36, 0
      %p173 = por %p171, %p172
      %s174 = ssub.s32 %s30, %s37
      %p175 = scmp.eq.s32.totalorder %s174, 0
      %s177 = sadd.s32 %s176, 1
      %s178 = scalar_select %p175, %s176, %s177
      %p181 = pneg %p175
      %p182 = scmp.eq.s32.totalorder %s30, 1
      %p183 = por %p181, %p182
      %p184 = scmp.ne.s32.totalorder %s176, %s179
      %p185 = scmp.eq.s32.totalorder %s30, 0
      %p186 = por %p184, %p185
      %p187 = scmp.ne.s32.totalorder %s176, %s179
      %p188 = scmp.eq.s32.totalorder %s35, 1
      %p189 = por %p187, %p188
      %p190 = scmp.ne.s32.totalorder %s179, %s180
      %p191 = scmp.eq.s32.totalorder %s35, 0
      %p192 = por %p190, %p191
      %p193 = scmp.ne.s32.totalorder %s179, %s180
      %p194 = scmp.eq.s32.totalorder %s36, 1
      %p195 = por %p193, %p194
      %p197 = scmp.ne.s32.totalorder %s180, %s196
      %p198 = scmp.eq.s32.totalorder %s36, 0
      %p199 = por %p197, %p198
      %s200 = ssub.s32 %s30, %s37
      %p201 = scmp.eq.s32.totalorder %s200, 0
      %s203 = sadd.s32 %s202, 1
      %s204 = scalar_select %p201, %s202, %s203
      %p207 = pneg %p201
      %p208 = scmp.eq.s32.totalorder %s30, 1
      %p209 = por %p207, %p208
      %p210 = scmp.ne.s32.totalorder %s202, %s205
      %p211 = scmp.eq.s32.totalorder %s30, 0
      %p212 = por %p210, %p211
      %p213 = scmp.ne.s32.totalorder %s202, %s205
      %p214 = scmp.eq.s32.totalorder %s35, 1
      %p215 = por %p213, %p214
      %p216 = scmp.ne.s32.totalorder %s205, %s206
      %p217 = scmp.eq.s32.totalorder %s35, 0
      %p218 = por %p216, %p217
      %p219 = scmp.ne.s32.totalorder %s205, %s206
      %p220 = scmp.eq.s32.totalorder %s36, 1
      %p221 = por %p219, %p220
      %p223 = scmp.ne.s32.totalorder %s206, %s222
      %p224 = scmp.eq.s32.totalorder %s36, 0
      %p225 = por %p223, %p224
      %s226 = ssub.s32 %s30, %s37
      %p227 = scmp.eq.s32.totalorder %s226, 0
      %s229 = sadd.s32 %s228, 1
      %s230 = scalar_select %p227, %s228, %s229
      %p233 = pneg %p227
      %p234 = scmp.eq.s32.totalorder %s30, 1
      %p235 = por %p233, %p234
      %p236 = scmp.ne.s32.totalorder %s228, %s231
      %p237 = scmp.eq.s32.totalorder %s30, 0
      %p238 = por %p236, %p237
      %p239 = scmp.ne.s32.totalorder %s228, %s231
      %p240 = scmp.eq.s32.totalorder %s35, 1
      %p241 = por %p239, %p240
      %p242 = scmp.ne.s32.totalorder %s231, %s232
      %p243 = scmp.eq.s32.totalorder %s35, 0
      %p244 = por %p242, %p243
      %p245 = scmp.ne.s32.totalorder %s231, %s232
      %p246 = scmp.eq.s32.totalorder %s36, 1
      %p247 = por %p245, %p246
      %p249 = scmp.ne.s32.totalorder %s232, %s248
      %p250 = scmp.eq.s32.totalorder %s36, 0
      %p251 = por %p249, %p250
      %s252 = ssub.s32 %s30, %s37
      %p253 = scmp.eq.s32.totalorder %s252, 0
      %s255 = sadd.s32 %s254, 1
      %s256 = scalar_select %p253, %s254, %s255
      %p259 = pneg %p253
      %p260 = scmp.eq.s32.totalorder %s30, 1
      %p261 = por %p259, %p260
      %p262 = scmp.ne.s32.totalorder %s254, %s257
      %p263 = scmp.eq.s32.totalorder %s30, 0
      %p264 = por %p262, %p263
      %p265 = scmp.ne.s32.totalorder %s254, %s257
      %p266 = scmp.eq.s32.totalorder %s35, 1
      %p267 = por %p265, %p266
      %p268 = scmp.ne.s32.totalorder %s257, %s258
      %p269 = scmp.eq.s32.totalorder %s35, 0
      %p270 = por %p268, %p269
      %p271 = scmp.ne.s32.totalorder %s257, %s258
      %p272 = scmp.eq.s32.totalorder %s36, 1
      %p273 = por %p271, %p272
      %p275 = scmp.ne.s32.totalorder %s258, %s274
      %p276 = scmp.eq.s32.totalorder %s36, 0
      %p277 = por %p275, %p276
      %s278 = ssub.s32 %s30, %s37
      %p279 = scmp.eq.s32.totalorder %s278, 0
      %s281 = sadd.s32 %s280, 1
      %s282 = scalar_select %p279, %s280, %s281
      %p285 = pneg %p279
      %p286 = scmp.eq.s32.totalorder %s30, 1
      %p287 = por %p285, %p286
      %p288 = scmp.ne.s32.totalorder %s280, %s283
      %p289 = scmp.eq.s32.totalorder %s30, 0
      %p290 = por %p288, %p289
      %p291 = scmp.ne.s32.totalorder %s280, %s283
      %p292 = scmp.eq.s32.totalorder %s35, 1
      %p293 = por %p291, %p292
      %p294 = scmp.ne.s32.totalorder %s283, %s284
      %p295 = scmp.eq.s32.totalorder %s35, 0
      %p296 = por %p294, %p295
      %p297 = scmp.ne.s32.totalorder %s283, %s284
      %p298 = scmp.eq.s32.totalorder %s36, 1
      %p299 = por %p297, %p298
      %p301 = scmp.ne.s32.totalorder %s284, %s300
      %p302 = scmp.eq.s32.totalorder %s36, 0
      %p303 = por %p301, %p302
      %s304 = ssub.s32 %s30, %s37
      %p305 = scmp.eq.s32.totalorder %s304, 0
      %s307 = sadd.s32 %s306, 1
      %s308 = scalar_select %p305, %s306, %s307
      %p311 = pneg %p305
      %p312 = scmp.eq.s32.totalorder %s30, 1
      %p313 = por %p311, %p312
      %p314 = scmp.ne.s32.totalorder %s306, %s309
      %p315 = scmp.eq.s32.totalorder %s30, 0
      %p316 = por %p314, %p315
      %p317 = scmp.ne.s32.totalorder %s306, %s309
      %p318 = scmp.eq.s32.totalorder %s35, 1
      %p319 = por %p317, %p318
      %p320 = scmp.ne.s32.totalorder %s309, %s310
      %p321 = scmp.eq.s32.totalorder %s35, 0
      %p322 = por %p320, %p321
      %p323 = scmp.ne.s32.totalorder %s309, %s310
      %p324 = scmp.eq.s32.totalorder %s36, 1
      %p325 = por %p323, %p324
      %p327 = scmp.ne.s32.totalorder %s310, %s326
      %p328 = scmp.eq.s32.totalorder %s36, 0
      %p329 = por %p327, %p328
      %s330 = ssub.s32 %s30, %s37
      %p331 = scmp.eq.s32.totalorder %s330, 0
      %s333 = sadd.s32 %s332, 1
      %s334 = scalar_select %p331, %s332, %s333
      %p337 = pneg %p331
      %p338 = scmp.eq.s32.totalorder %s30, 1
      %p339 = por %p337, %p338
      %p340 = scmp.ne.s32.totalorder %s332, %s335
      %p341 = scmp.eq.s32.totalorder %s30, 0
      %p342 = por %p340, %p341
      %p343 = scmp.ne.s32.totalorder %s332, %s335
      %p344 = scmp.eq.s32.totalorder %s35, 1
      %p345 = por %p343, %p344
      %p346 = scmp.ne.s32.totalorder %s335, %s336
      %p347 = scmp.eq.s32.totalorder %s35, 0
      %p348 = por %p346, %p347
      %p349 = scmp.ne.s32.totalorder %s335, %s336
      %p350 = scmp.eq.s32.totalorder %s36, 1
      %p351 = por %p349, %p350
      %p353 = scmp.ne.s32.totalorder %s336, %s352
      %p354 = scmp.eq.s32.totalorder %s36, 0
      %p355 = por %p353, %p354
      %s356 = ssub.s32 %s30, %s37
      %p357 = scmp.eq.s32.totalorder %s356, 0
      %s359 = sadd.s32 %s358, 1
      %s360 = scalar_select %p357, %s358, %s359
      %p363 = pneg %p357
      %p364 = scmp.eq.s32.totalorder %s30, 1
      %p365 = por %p363, %p364
      %p366 = scmp.ne.s32.totalorder %s358, %s361
      %p367 = scmp.eq.s32.totalorder %s30, 0
      %p368 = por %p366, %p367
      %p369 = scmp.ne.s32.totalorder %s358, %s361
      %p370 = scmp.eq.s32.totalorder %s35, 1
      %p371 = por %p369, %p370
      %p372 = scmp.ne.s32.totalorder %s361, %s362
      %p373 = scmp.eq.s32.totalorder %s35, 0
      %p374 = por %p372, %p373
      %p375 = scmp.ne.s32.totalorder %s361, %s362
      %p376 = scmp.eq.s32.totalorder %s36, 1
      %p377 = por %p375, %p376
      %p379 = scmp.ne.s32.totalorder %s362, %s378
      %p380 = scmp.eq.s32.totalorder %s36, 0
      %p381 = por %p379, %p380
      %s382 = ssub.s32 %s30, %s37
      %p383 = scmp.eq.s32.totalorder %s382, 0
      %s385 = sadd.s32 %s384, 1
      %s386 = scalar_select %p383, %s384, %s385
      %p389 = pneg %p383
      %p390 = scmp.eq.s32.totalorder %s30, 1
      %p391 = por %p389, %p390
      %p392 = scmp.ne.s32.totalorder %s384, %s387
      %p393 = scmp.eq.s32.totalorder %s30, 0
      %p394 = por %p392, %p393
      %p395 = scmp.ne.s32.totalorder %s384, %s387
      %p396 = scmp.eq.s32.totalorder %s35, 1
      %p397 = por %p395, %p396
      %p398 = scmp.ne.s32.totalorder %s387, %s388
      %p399 = scmp.eq.s32.totalorder %s35, 0
      %p400 = por %p398, %p399
      %p401 = scmp.ne.s32.totalorder %s387, %s388
      %p402 = scmp.eq.s32.totalorder %s36, 1
      %p403 = por %p401, %p402
      %p405 = scmp.ne.s32.totalorder %s388, %s404
      %p406 = scmp.eq.s32.totalorder %s36, 0
      %p407 = por %p405, %p406
      %s408 = ssub.s32 %s30, %s37
      %p409 = scmp.eq.s32.totalorder %s408, 0
      %s411 = sadd.s32 %s410, 1
      %s412 = scalar_select %p409, %s410, %s411
      %p415 = pneg %p409
      %p416 = scmp.eq.s32.totalorder %s30, 1
      %p417 = por %p415, %p416
      %p418 = scmp.ne.s32.totalorder %s410, %s413
      %p419 = scmp.eq.s32.totalorder %s30, 0
      %p420 = por %p418, %p419
      %p421 = scmp.ne.s32.totalorder %s410, %s413
      %p422 = scmp.eq.s32.totalorder %s35, 1
      %p423 = por %p421, %p422
      %p424 = scmp.ne.s32.totalorder %s413, %s414
      %p425 = scmp.eq.s32.totalorder %s35, 0
      %p426 = por %p424, %p425
      %p427 = scmp.ne.s32.totalorder %s413, %s414
      %p428 = scmp.eq.s32.totalorder %s36, 1
      %p429 = por %p427, %p428
      %p431 = scmp.ne.s32.totalorder %s414, %s430
      %p432 = scmp.eq.s32.totalorder %s36, 0
      %p433 = por %p431, %p432
      %s435 = sadd.s32 %s434, 1
      %p438 = scmp.eq.s32.totalorder %s30, 1
      %p439 = scmp.ne.s32.totalorder %s434, %s436
      %p440 = scmp.eq.s32.totalorder %s30, 0
      %p441 = por %p439, %p440
      %p442 = scmp.ne.s32.totalorder %s434, %s436
      %p443 = scmp.eq.s32.totalorder %s35, 1
      %p444 = por %p442, %p443
      %p445 = scmp.ne.s32.totalorder %s436, %s437
      %p446 = scmp.eq.s32.totalorder %s35, 0
      %p447 = por %p445, %p446
      %p448 = scmp.ne.s32.totalorder %s436, %s437
      %p449 = scmp.eq.s32.totalorder %s36, 1
      %p450 = por %p448, %p449
      %p452 = scmp.ne.s32.totalorder %s437, %s451
      %p453 = scmp.eq.s32.totalorder %s36, 0
      %p454 = por %p452, %p453
      %s456 = sadd.s32 %s455, 1
      %p459 = scmp.eq.s32.totalorder %s30, 1
      %p460 = scmp.ne.s32.totalorder %s455, %s457
      %p461 = scmp.eq.s32.totalorder %s30, 0
      %p462 = por %p460, %p461
      %p463 = scmp.ne.s32.totalorder %s455, %s457
      %p464 = scmp.eq.s32.totalorder %s35, 1
      %p465 = por %p463, %p464
      %p466 = scmp.ne.s32.totalorder %s457, %s458
      %p467 = scmp.eq.s32.totalorder %s35, 0
      %p468 = por %p466, %p467
      %p469 = scmp.ne.s32.totalorder %s457, %s458
      %p470 = scmp.eq.s32.totalorder %s36, 1
      %p471 = por %p469, %p470
      %p473 = scmp.ne.s32.totalorder %s458, %s472
      %p474 = scmp.eq.s32.totalorder %s36, 0
      %p475 = por %p473, %p474
      %s477 = sadd.s32 %s476, 1
      %p480 = scmp.eq.s32.totalorder %s30, 1
      %p481 = scmp.ne.s32.totalorder %s476, %s478
      %p482 = scmp.eq.s32.totalorder %s30, 0
      %p483 = por %p481, %p482
      %p484 = scmp.ne.s32.totalorder %s476, %s478
      %p485 = scmp.eq.s32.totalorder %s35, 1
      %p486 = por %p484, %p485
      %p487 = scmp.ne.s32.totalorder %s478, %s479
      %p488 = scmp.eq.s32.totalorder %s35, 0
      %p489 = por %p487, %p488
      %p490 = scmp.ne.s32.totalorder %s478, %s479
      %p491 = scmp.eq.s32.totalorder %s36, 1
      %p492 = por %p490, %p491
      %p494 = scmp.ne.s32.totalorder %s479, %s493
      %p495 = scmp.eq.s32.totalorder %s36, 0
      %p496 = por %p494, %p495
      %s498 = sadd.s32 %s497, 1
      %p501 = scmp.eq.s32.totalorder %s30, 1
      %p502 = scmp.ne.s32.totalorder %s497, %s499
      %p503 = scmp.eq.s32.totalorder %s30, 0
      %p504 = por %p502, %p503
      %p505 = scmp.ne.s32.totalorder %s497, %s499
      %p506 = scmp.eq.s32.totalorder %s35, 1
      %p507 = por %p505, %p506
      %p508 = scmp.ne.s32.totalorder %s499, %s500
      %p509 = scmp.eq.s32.totalorder %s35, 0
      %p510 = por %p508, %p509
      %p511 = scmp.ne.s32.totalorder %s499, %s500
      %p512 = scmp.eq.s32.totalorder %s36, 1
      %p513 = por %p511, %p512
      %p515 = scmp.ne.s32.totalorder %s500, %s514
      %p516 = scmp.eq.s32.totalorder %s36, 0
      %p517 = por %p515, %p516
      %s519 = sadd.s32 %s518, 1
      %p522 = scmp.eq.s32.totalorder %s30, 1
      %p523 = scmp.ne.s32.totalorder %s518, %s520
      %p524 = scmp.eq.s32.totalorder %s30, 0
      %p525 = por %p523, %p524
      %p526 = scmp.ne.s32.totalorder %s518, %s520
      %p527 = scmp.eq.s32.totalorder %s35, 1
      %p528 = por %p526, %p527
      %p529 = scmp.ne.s32.totalorder %s520, %s521
      %p530 = scmp.eq.s32.totalorder %s35, 0
      %p531 = por %p529, %p530
      %p532 = scmp.ne.s32.totalorder %s520, %s521
      %p533 = scmp.eq.s32.totalorder %s36, 1
      %p534 = por %p532, %p533
      %p536 = scmp.ne.s32.totalorder %s521, %s535
      %p537 = scmp.eq.s32.totalorder %s36, 0
      %p538 = por %p536, %p537
      %p539 = scmp.le.s32.totalorder 1, %s30
      %p540 = scmp.lt.s32.totalorder %s30, 3
      %p541 = pnand %p539, %p540
      %p542 = pneg %p541
      // Predicated region
      $region9: #{tpu_custom_call.1} parent=5 // pred_check
        _
      $region10: #{tpu_custom_call.1} parent=5 // pred_check_branch
        %544 = sbr.rel (%p541) target = $region12
      $region11: #{tpu_custom_call.1} parent=5 // pred_region
        %s545 = ssub.s32 %s30, 1
        // Predicated region
        $region13: #{tpu_custom_call.1} parent=11 // pred_check
          %p546 = pneg %p51
        $region14: #{tpu_custom_call.1} parent=11 // pred_check_branch
          %548 = sbr.rel (%p546) target = $region16
        $region15: #{tpu_custom_call.1} parent=11 // pred_region
          %s550 = ssub.s32 512, 512
          %551 = vsyncadd [#allocation4], %s550
          %s552 = sshll.u32 [#allocation3], 4
          %s553 = int_to_ptr.vmem [resolvable:$true] %s552
          %558 = dma.hbm_to_vmem [thread:$0]  %s0, 512, %s553, [#allocation4], 128, 128, 8
        $region16: #{tpu_custom_call.1} parent=11 // pred_fallthru
          _
        // Predicated region
        $region17: #{tpu_custom_call.1} parent=11 // pred_check
          %p559 = pneg %p72
        $region18: #{tpu_custom_call.1} parent=11 // pred_check_branch
          %561 = sbr.rel (%p559) target = $region20
        $region19: #{tpu_custom_call.1} parent=11 // pred_region
          %s563 = ssub.s32 384, 384
          %564 = vsyncadd [#allocation7], %s563
          %s565 = sshll.u32 [#allocation6], 4
          %s566 = int_to_ptr.vmem [resolvable:$true] %s565
          %571 = dma.hbm_to_vmem [thread:$0]  %s1, 384, %s566, [#allocation7], 64, 64, 4
        $region20: #{tpu_custom_call.1} parent=11 // pred_fallthru
          _
        // Predicated region
        $region21: #{tpu_custom_call.1} parent=11 // pred_check
          %p572 = pneg %p93
        $region22: #{tpu_custom_call.1} parent=11 // pred_check_branch
          %574 = sbr.rel (%p572) target = $region24
        $region23: #{tpu_custom_call.1} parent=11 // pred_region
          %s576 = ssub.s32 16, 16
          %577 = vsyncadd [#allocation7], %s576
          %s579 = sshll.u32 [#allocation8], 4
          %s580 = int_to_ptr.vmem [resolvable:$true] %s579
          %582 = dma.hbm_to_vmem [thread:$0]  %s2, 16, %s580, [#allocation7]
        $region24: #{tpu_custom_call.1} parent=11 // pred_fallthru
          _
        // Predicated region
        $region25: #{tpu_custom_call.1} parent=11 // pred_check
          %p583 = pneg %p114
        $region26: #{tpu_custom_call.1} parent=11 // pred_check_branch
          %585 = sbr.rel (%p583) target = $region28
        $region27: #{tpu_custom_call.1} parent=11 // pred_region
          %s587 = ssub.s32 384, 384
          %588 = vsyncadd [#allocation10], %s587
          %s589 = sshll.u32 [#allocation9], 4
          %s590 = int_to_ptr.vmem [resolvable:$true] %s589
          %595 = dma.hbm_to_vmem [thread:$0]  %s3, 384, %s590, [#allocation10], 128, 128, 8
        $region28: #{tpu_custom_call.1} parent=11 // pred_fallthru
          _
        // Predicated region
        $region29: #{tpu_custom_call.1} parent=11 // pred_check
          %p596 = pneg %p447
        $region30: #{tpu_custom_call.1} parent=11 // pred_check_branch
          %598 = sbr.rel (%p596) target = $region32
        $region31: #{tpu_custom_call.1} parent=11 // pred_region
          %s600 = ssub.s32 16, 16
          %601 = vsyncadd [#allocation7], %s600
          %s603 = sshll.u32 [#allocation22], 4
          %s604 = int_to_ptr.vmem [resolvable:$true] %s603
          %606 = dma.hbm_to_vmem [thread:$0]  %s16, 16, %s604, [#allocation7]
        $region32: #{tpu_custom_call.1} parent=11 // pred_fallthru
          _
        // Predicated region
        $region33: #{tpu_custom_call.1} parent=11 // pred_check
          %p607 = pneg %p468
        $region34: #{tpu_custom_call.1} parent=11 // pred_check_branch
          %609 = sbr.rel (%p607) target = $region36
        $region35: #{tpu_custom_call.1} parent=11 // pred_region
          %s611 = ssub.s32 16, 16
          %612 = vsyncadd [#allocation10], %s611
          %s614 = sshll.u32 [#allocation23], 4
          %s615 = int_to_ptr.vmem [resolvable:$true] %s614
          %617 = dma.hbm_to_vmem [thread:$0]  %s17, 16, %s615, [#allocation10]
        $region36: #{tpu_custom_call.1} parent=11 // pred_fallthru
          _
        // Predicated region
        $region37: #{tpu_custom_call.1} parent=11 // pred_check
          %p618 = pneg %p489
        $region38: #{tpu_custom_call.1} parent=11 // pred_check_branch
          %620 = sbr.rel (%p618) target = $region40
        $region39: #{tpu_custom_call.1} parent=11 // pred_region
          _
        $region40: #{tpu_custom_call.1} parent=11 // pred_fallthru
          _
        // Predicated region
        $region41: #{tpu_custom_call.1} parent=11 // pred_check
          %p621 = pneg %p510
        $region42: #{tpu_custom_call.1} parent=11 // pred_check_branch
          %623 = sbr.rel (%p621) target = $region44
        $region43: #{tpu_custom_call.1} parent=11 // pred_region
          _
        $region44: #{tpu_custom_call.1} parent=11 // pred_fallthru
          _
      $region12: #{tpu_custom_call.1} parent=5 // pred_fallthru
        _
      %p624 = scmp.lt.s32.totalorder %s30, 2
      // Predicated region
      $region45: #{tpu_custom_call.1} parent=5 // pred_check
        %p625 = pneg %p624
      $region46: #{tpu_custom_call.1} parent=5 // pred_check_branch
        %627 = sbr.rel (%p625) target = $region48
      $region47: #{tpu_custom_call.1} parent=5 // pred_region
        // Predicated region
        $region49: #{tpu_custom_call.1} parent=47 // pred_check
          %p628 = pneg %p134
        $region50: #{tpu_custom_call.1} parent=47 // pred_check_branch
          %630 = sbr.rel (%p628) target = $region52
        $region51: #{tpu_custom_call.1} parent=47 // pred_region
          %s631 = sand.u32 %s30, 1
          %s632 = scalar_lea.sflag [#allocation4], %s631
          %s633 = sand.u32 %s124, 1
          %s634 = scalar_lea.vmem [#allocation11], %s633
          %s636 = ssub.s32 16, 16
          %637 = vsyncadd %s632, %s636
          %s638 = smul.addr %s30, 16
          %s639 = scalar_lea.hbm %s4, %s638
          %s641 = sshll.u32 %s634, 4
          %s642 = int_to_ptr.vmem [resolvable:$true] %s641
          %644 = dma.hbm_to_vmem [thread:$0]  %s639, 16, %s642, %s632
        $region52: #{tpu_custom_call.1} parent=47 // pred_fallthru
          _
        // Predicated region
        $region53: #{tpu_custom_call.1} parent=47 // pred_check
          %p645 = pneg %p160
        $region54: #{tpu_custom_call.1} parent=47 // pred_check_branch
          %647 = sbr.rel (%p645) target = $region56
        $region55: #{tpu_custom_call.1} parent=47 // pred_region
          %s648 = sand.u32 %s30, 1
          %s649 = scalar_lea.sflag [#allocation4], %s648
          %s650 = sand.u32 %s150, 1
          %s651 = scalar_lea.vmem [#allocation12], %s650
          %s653 = ssub.s32 16, 16
          %654 = vsyncadd %s649, %s653
          %s655 = smul.addr %s30, 16
          %s656 = scalar_lea.hbm %s5, %s655
          %s658 = sshll.u32 %s651, 4
          %s659 = int_to_ptr.vmem [resolvable:$true] %s658
          %661 = dma.hbm_to_vmem [thread:$0]  %s656, 16, %s659, %s649
        $region56: #{tpu_custom_call.1} parent=47 // pred_fallthru
          _
        // Predicated region
        $region57: #{tpu_custom_call.1} parent=47 // pred_check
          %p662 = pneg %p186
        $region58: #{tpu_custom_call.1} parent=47 // pred_check_branch
          %664 = sbr.rel (%p662) target = $region60
        $region59: #{tpu_custom_call.1} parent=47 // pred_region
          %s665 = sand.u32 %s30, 1
          %s666 = scalar_lea.sflag [#allocation4], %s665
          %s667 = sand.u32 %s176, 1
          %s668 = smul.addr %s667, 192
          %s669 = scalar_lea.vmem [#allocation13], %s668
          %s671 = ssub.s32 3072, 3072
          %672 = vsyncadd %s666, %s671
          %s673 = smul.addr %s30, 48
          %s674 = smul.addr %s673, 64
          %s675 = scalar_lea.hbm %s6, %s674
          %s676 = sshll.u32 %s669, 4
          %s677 = int_to_ptr.vmem [resolvable:$true] %s676
          %682 = dma.hbm_to_vmem [thread:$0]  %s675, 3072, %s677, %s666, 192, 192, 12
        $region60: #{tpu_custom_call.1} parent=47 // pred_fallthru
          _
        // Predicated region
        $region61: #{tpu_custom_call.1} parent=47 // pred_check
          %p683 = pneg %p212
        $region62: #{tpu_custom_call.1} parent=47 // pred_check_branch
          %685 = sbr.rel (%p683) target = $region64
        $region63: #{tpu_custom_call.1} parent=47 // pred_region
          %s686 = sand.u32 %s30, 1
          %s687 = scalar_lea.sflag [#allocation4], %s686
          %s688 = sand.u32 %s202, 1
          %s689 = smul.addr %s688, 3
          %s690 = scalar_lea.vmem [#allocation14], %s689
          %s692 = ssub.s32 48, 48
          %693 = vsyncadd %s687, %s692
          %s694 = smul.addr %s30, 3
          %s695 = smul.addr %s694, 16
          %s696 = scalar_lea.hbm %s7, %s695
          %s698 = sshll.u32 %s690, 4
          %s699 = int_to_ptr.vmem [resolvable:$true] %s698
          %701 = dma.hbm_to_vmem [thread:$0]  %s696, 48, %s699, %s687
        $region64: #{tpu_custom_call.1} parent=47 // pred_fallthru
          _
        // Predicated region
        $region65: #{tpu_custom_call.1} parent=47 // pred_check
          %p702 = pneg %p238
        $region66: #{tpu_custom_call.1} parent=47 // pred_check_branch
          %704 = sbr.rel (%p702) target = $region68
        $region67: #{tpu_custom_call.1} parent=47 // pred_region
          %s705 = sand.u32 %s30, 1
          %s706 = scalar_lea.sflag [#allocation4], %s705
          %s707 = sand.u32 %s228, 1
          %s708 = smul.addr %s707, 64
          %s709 = scalar_lea.vmem [#allocation15], %s708
          %s711 = ssub.s32 1024, 1024
          %712 = vsyncadd %s706, %s711
          %s713 = smul.addr %s30, 16
          %s714 = smul.addr %s713, 64
          %s715 = scalar_lea.hbm %s8, %s714
          %s716 = sshll.u32 %s709, 4
          %s717 = int_to_ptr.vmem [resolvable:$true] %s716
          %722 = dma.hbm_to_vmem [thread:$0]  %s715, 1024, %s717, %s706, 64, 64, 4
        $region68: #{tpu_custom_call.1} parent=47 // pred_fallthru
          _
        // Predicated region
        $region69: #{tpu_custom_call.1} parent=47 // pred_check
          %p723 = pneg %p264
        $region70: #{tpu_custom_call.1} parent=47 // pred_check_branch
          %725 = sbr.rel (%p723) target = $region72
        $region71: #{tpu_custom_call.1} parent=47 // pred_region
          %s726 = sand.u32 %s30, 1
          %s727 = scalar_lea.sflag [#allocation4], %s726
          %s728 = sand.u32 %s254, 1
          %s729 = scalar_lea.vmem [#allocation16], %s728
          %s731 = ssub.s32 16, 16
          %732 = vsyncadd %s727, %s731
          %s733 = smul.addr %s30, 16
          %s734 = scalar_lea.hbm %s9, %s733
          %s736 = sshll.u32 %s729, 4
          %s737 = int_to_ptr.vmem [resolvable:$true] %s736
          %739 = dma.hbm_to_vmem [thread:$0]  %s734, 16, %s737, %s727
        $region72: #{tpu_custom_call.1} parent=47 // pred_fallthru
          _
        // Predicated region
        $region73: #{tpu_custom_call.1} parent=47 // pred_check
          %p740 = pneg %p290
        $region74: #{tpu_custom_call.1} parent=47 // pred_check_branch
          %742 = sbr.rel (%p740) target = $region76
        $region75: #{tpu_custom_call.1} parent=47 // pred_region
          %s743 = sand.u32 %s30, 1
          %s744 = scalar_lea.sflag [#allocation4], %s743
          %s745 = sand.u32 %s280, 1
          %s746 = scalar_lea.vmem [#allocation17], %s745
          %s748 = ssub.s32 16, 16
          %749 = vsyncadd %s744, %s748
          %s750 = smul.addr %s30, 16
          %s751 = scalar_lea.hbm %s10, %s750
          %s753 = sshll.u32 %s746, 4
          %s754 = int_to_ptr.vmem [resolvable:$true] %s753
          %756 = dma.hbm_to_vmem [thread:$0]  %s751, 16, %s754, %s744
        $region76: #{tpu_custom_call.1} parent=47 // pred_fallthru
          _
        // Predicated region
        $region77: #{tpu_custom_call.1} parent=47 // pred_check
          %p757 = pneg %p316
        $region78: #{tpu_custom_call.1} parent=47 // pred_check_branch
          %759 = sbr.rel (%p757) target = $region80
        $region79: #{tpu_custom_call.1} parent=47 // pred_region
          %s760 = sand.u32 %s30, 1
          %s761 = scalar_lea.sflag [#allocation4], %s760
          %s762 = sand.u32 %s306, 1
          %s763 = scalar_lea.vmem [#allocation18], %s762
          %s765 = ssub.s32 16, 16
          %766 = vsyncadd %s761, %s765
          %s767 = smul.addr %s30, 16
          %s768 = scalar_lea.hbm %s11, %s767
          %s770 = sshll.u32 %s763, 4
          %s771 = int_to_ptr.vmem [resolvable:$true] %s770
          %773 = dma.hbm_to_vmem [thread:$0]  %s768, 16, %s771, %s761
        $region80: #{tpu_custom_call.1} parent=47 // pred_fallthru
          _
        // Predicated region
        $region81: #{tpu_custom_call.1} parent=47 // pred_check
          %p774 = pneg %p342
        $region82: #{tpu_custom_call.1} parent=47 // pred_check_branch
          %776 = sbr.rel (%p774) target = $region84
        $region83: #{tpu_custom_call.1} parent=47 // pred_region
          %s777 = sand.u32 %s30, 1
          %s778 = scalar_lea.sflag [#allocation4], %s777
          %s779 = sand.u32 %s332, 1
          %s780 = smul.addr %s779, 128
          %s781 = scalar_lea.vmem [#allocation19], %s780
          %s783 = ssub.s32 2048, 2048
          %784 = vsyncadd %s778, %s783
          %s785 = smul.addr %s30, 32
          %s786 = smul.addr %s785, 64
          %s787 = scalar_lea.hbm %s12, %s786
          %s788 = sshll.u32 %s781, 4
          %s789 = int_to_ptr.vmem [resolvable:$true] %s788
          %794 = dma.hbm_to_vmem [thread:$0]  %s787, 2048, %s789, %s778, 128, 128, 8
        $region84: #{tpu_custom_call.1} parent=47 // pred_fallthru
          _
        // Predicated region
        $region85: #{tpu_custom_call.1} parent=47 // pred_check
          %p795 = pneg %p368
        $region86: #{tpu_custom_call.1} parent=47 // pred_check_branch
          %797 = sbr.rel (%p795) target = $region88
        $region87: #{tpu_custom_call.1} parent=47 // pred_region
          %p798 = scmp.lt.s32.totalorder %s30, 1
          %s799 = scalar_select %p798, %s30, 1
          %s800 = smul.addr %s799, 2
          %s801 = scalar_lea.vmem %s13, %s800
        $region88: #{tpu_custom_call.1} parent=47 // pred_fallthru
          _
        // Predicated region
        $region89: #{tpu_custom_call.1} parent=47 // pred_check
          %p802 = pneg %p394
        $region90: #{tpu_custom_call.1} parent=47 // pred_check_branch
          %804 = sbr.rel (%p802) target = $region92
        $region91: #{tpu_custom_call.1} parent=47 // pred_region
          %s805 = sand.u32 %s30, 1
          %s806 = scalar_lea.sflag [#allocation4], %s805
          %s807 = sand.u32 %s384, 1
          %s808 = smul.addr %s807, 128
          %s809 = scalar_lea.vmem [#allocation20], %s808
          %s811 = ssub.s32 2048, 2048
          %812 = vsyncadd %s806, %s811
          %s813 = smul.addr %s30, 32
          %s814 = smul.addr %s813, 64
          %s815 = scalar_lea.hbm %s14, %s814
          %s816 = sshll.u32 %s809, 4
          %s817 = int_to_ptr.vmem [resolvable:$true] %s816
          %822 = dma.hbm_to_vmem [thread:$0]  %s815, 2048, %s817, %s806, 64, 64, 4
        $region92: #{tpu_custom_call.1} parent=47 // pred_fallthru
          _
        // Predicated region
        $region93: #{tpu_custom_call.1} parent=47 // pred_check
          %p823 = pneg %p420
        $region94: #{tpu_custom_call.1} parent=47 // pred_check_branch
          %825 = sbr.rel (%p823) target = $region96
        $region95: #{tpu_custom_call.1} parent=47 // pred_region
          %s826 = sand.u32 %s30, 1
          %s827 = scalar_lea.sflag [#allocation4], %s826
          %s828 = sand.u32 %s410, 1
          %s829 = scalar_lea.vmem [#allocation21], %s828
          %s831 = ssub.s32 16, 16
          %832 = vsyncadd %s827, %s831
          %s833 = smul.addr %s30, 16
          %s834 = scalar_lea.hbm %s15, %s833
          %s836 = sshll.u32 %s829, 4
          %s837 = int_to_ptr.vmem [resolvable:$true] %s836
          %839 = dma.hbm_to_vmem [thread:$0]  %s834, 16, %s837, %s827
        $region96: #{tpu_custom_call.1} parent=47 // pred_fallthru
          _
      $region48: #{tpu_custom_call.1} parent=5 // pred_fallthru
        _
      %p840 = scmp.le.s32.totalorder 1, %s30
      %p841 = scmp.lt.s32.totalorder %s30, 3
      %p842 = pnand %p840, %p841
      %p843 = pneg %p842
      // Predicated region
      $region97: #{tpu_custom_call.1} parent=5 // pred_check
        _
      $region98: #{tpu_custom_call.1} parent=5 // pred_check_branch
        %845 = sbr.rel (%p842) target = $region100
      $region99: #{tpu_custom_call.1} parent=5 // pred_region
        %s846 = ssub.s32 %s30, 1
        // Predicated region
        $region101: #{tpu_custom_call.1} parent=99 // pred_check
          %p847 = pneg %p51
        $region102: #{tpu_custom_call.1} parent=99 // pred_check_branch
          %849 = sbr.rel (%p847) target = $region104
        $region103: #{tpu_custom_call.1} parent=99 // pred_region
          %850 = dma.done [#allocation4], 512
        $region104: #{tpu_custom_call.1} parent=99 // pred_fallthru
          _
        // Predicated region
        $region105: #{tpu_custom_call.1} parent=99 // pred_check
          %p851 = pneg %p72
        $region106: #{tpu_custom_call.1} parent=99 // pred_check_branch
          %853 = sbr.rel (%p851) target = $region108
        $region107: #{tpu_custom_call.1} parent=99 // pred_region
          %854 = dma.done [#allocation7], 384
        $region108: #{tpu_custom_call.1} parent=99 // pred_fallthru
          _
        // Predicated region
        $region109: #{tpu_custom_call.1} parent=99 // pred_check
          %p855 = pneg %p93
        $region110: #{tpu_custom_call.1} parent=99 // pred_check_branch
          %857 = sbr.rel (%p855) target = $region112
        $region111: #{tpu_custom_call.1} parent=99 // pred_region
          %858 = dma.done [#allocation7], 16
        $region112: #{tpu_custom_call.1} parent=99 // pred_fallthru
          _
        // Predicated region
        $region113: #{tpu_custom_call.1} parent=99 // pred_check
          %p859 = pneg %p114
        $region114: #{tpu_custom_call.1} parent=99 // pred_check_branch
          %861 = sbr.rel (%p859) target = $region116
        $region115: #{tpu_custom_call.1} parent=99 // pred_region
          %862 = dma.done [#allocation10], 384
        $region116: #{tpu_custom_call.1} parent=99 // pred_fallthru
          _
        %s863 = sand.u32 %s35, 1
        %s864 = scalar_lea.sflag [#allocation4], %s863
        %s865 = sand.u32 %s127, 1
        %s866 = scalar_lea.vmem [#allocation11], %s865
        // Predicated region
        $region117: #{tpu_custom_call.1} parent=99 // pred_check
          %p867 = pneg %p140
        $region118: #{tpu_custom_call.1} parent=99 // pred_check_branch
          %869 = sbr.rel (%p867) target = $region120
        $region119: #{tpu_custom_call.1} parent=99 // pred_region
          %870 = dma.done %s864, 16
        $region120: #{tpu_custom_call.1} parent=99 // pred_fallthru
          _
        %s871 = sand.u32 %s35, 1
        %s872 = scalar_lea.sflag [#allocation4], %s871
        %s873 = sand.u32 %s153, 1
        %s874 = scalar_lea.vmem [#allocation12], %s873
        // Predicated region
        $region121: #{tpu_custom_call.1} parent=99 // pred_check
          %p875 = pneg %p166
        $region122: #{tpu_custom_call.1} parent=99 // pred_check_branch
          %877 = sbr.rel (%p875) target = $region124
        $region123: #{tpu_custom_call.1} parent=99 // pred_region
          %878 = dma.done %s872, 16
        $region124: #{tpu_custom_call.1} parent=99 // pred_fallthru
          _
        %s879 = sand.u32 %s35, 1
        %s880 = scalar_lea.sflag [#allocation4], %s879
        %s881 = sand.u32 %s179, 1
        %s882 = smul.addr %s881, 192
        %s883 = scalar_lea.vmem [#allocation13], %s882
        // Predicated region
        $region125: #{tpu_custom_call.1} parent=99 // pred_check
          %p884 = pneg %p192
        $region126: #{tpu_custom_call.1} parent=99 // pred_check_branch
          %886 = sbr.rel (%p884) target = $region128
        $region127: #{tpu_custom_call.1} parent=99 // pred_region
          %887 = dma.done %s880, 3072
        $region128: #{tpu_custom_call.1} parent=99 // pred_fallthru
          _
        %s888 = sand.u32 %s35, 1
        %s889 = scalar_lea.sflag [#allocation4], %s888
        %s890 = sand.u32 %s205, 1
        %s891 = smul.addr %s890, 3
        %s892 = scalar_lea.vmem [#allocation14], %s891
        // Predicated region
        $region129: #{tpu_custom_call.1} parent=99 // pred_check
          %p893 = pneg %p218
        $region130: #{tpu_custom_call.1} parent=99 // pred_check_branch
          %895 = sbr.rel (%p893) target = $region132
        $region131: #{tpu_custom_call.1} parent=99 // pred_region
          %896 = dma.done %s889, 48
        $region132: #{tpu_custom_call.1} parent=99 // pred_fallthru
          _
        %s897 = sand.u32 %s35, 1
        %s898 = scalar_lea.sflag [#allocation4], %s897
        %s899 = sand.u32 %s231, 1
        %s900 = smul.addr %s899, 64
        %s901 = scalar_lea.vmem [#allocation15], %s900
        // Predicated region
        $region133: #{tpu_custom_call.1} parent=99 // pred_check
          %p902 = pneg %p244
        $region134: #{tpu_custom_call.1} parent=99 // pred_check_branch
          %904 = sbr.rel (%p902) target = $region136
        $region135: #{tpu_custom_call.1} parent=99 // pred_region
          %905 = dma.done %s898, 1024
        $region136: #{tpu_custom_call.1} parent=99 // pred_fallthru
          _
        %s906 = sand.u32 %s35, 1
        %s907 = scalar_lea.sflag [#allocation4], %s906
        %s908 = sand.u32 %s257, 1
        %s909 = scalar_lea.vmem [#allocation16], %s908
        // Predicated region
        $region137: #{tpu_custom_call.1} parent=99 // pred_check
          %p910 = pneg %p270
        $region138: #{tpu_custom_call.1} parent=99 // pred_check_branch
          %912 = sbr.rel (%p910) target = $region140
        $region139: #{tpu_custom_call.1} parent=99 // pred_region
          %913 = dma.done %s907, 16
        $region140: #{tpu_custom_call.1} parent=99 // pred_fallthru
          _
        %s914 = sand.u32 %s35, 1
        %s915 = scalar_lea.sflag [#allocation4], %s914
        %s916 = sand.u32 %s283, 1
        %s917 = scalar_lea.vmem [#allocation17], %s916
        // Predicated region
        $region141: #{tpu_custom_call.1} parent=99 // pred_check
          %p918 = pneg %p296
        $region142: #{tpu_custom_call.1} parent=99 // pred_check_branch
          %920 = sbr.rel (%p918) target = $region144
        $region143: #{tpu_custom_call.1} parent=99 // pred_region
          %921 = dma.done %s915, 16
        $region144: #{tpu_custom_call.1} parent=99 // pred_fallthru
          _
        %s922 = sand.u32 %s35, 1
        %s923 = scalar_lea.sflag [#allocation4], %s922
        %s924 = sand.u32 %s309, 1
        %s925 = scalar_lea.vmem [#allocation18], %s924
        // Predicated region
        $region145: #{tpu_custom_call.1} parent=99 // pred_check
          %p926 = pneg %p322
        $region146: #{tpu_custom_call.1} parent=99 // pred_check_branch
          %928 = sbr.rel (%p926) target = $region148
        $region147: #{tpu_custom_call.1} parent=99 // pred_region
          %929 = dma.done %s923, 16
        $region148: #{tpu_custom_call.1} parent=99 // pred_fallthru
          _
        %s930 = sand.u32 %s35, 1
        %s931 = scalar_lea.sflag [#allocation4], %s930
        %s932 = sand.u32 %s335, 1
        %s933 = smul.addr %s932, 128
        %s934 = scalar_lea.vmem [#allocation19], %s933
        // Predicated region
        $region149: #{tpu_custom_call.1} parent=99 // pred_check
          %p935 = pneg %p348
        $region150: #{tpu_custom_call.1} parent=99 // pred_check_branch
          %937 = sbr.rel (%p935) target = $region152
        $region151: #{tpu_custom_call.1} parent=99 // pred_region
          %938 = dma.done %s931, 2048
        $region152: #{tpu_custom_call.1} parent=99 // pred_fallthru
          _
        %s939 = sand.u32 %s35, 1
        %s940 = scalar_lea.sflag [#allocation4], %s939
        %s941 = sand.u32 %s387, 1
        %s942 = smul.addr %s941, 128
        %s943 = scalar_lea.vmem [#allocation20], %s942
        // Predicated region
        $region153: #{tpu_custom_call.1} parent=99 // pred_check
          %p944 = pneg %p400
        $region154: #{tpu_custom_call.1} parent=99 // pred_check_branch
          %946 = sbr.rel (%p944) target = $region156
        $region155: #{tpu_custom_call.1} parent=99 // pred_region
          %947 = dma.done %s940, 2048
        $region156: #{tpu_custom_call.1} parent=99 // pred_fallthru
          _
        %s948 = sand.u32 %s35, 1
        %s949 = scalar_lea.sflag [#allocation4], %s948
        %s950 = sand.u32 %s413, 1
        %s951 = scalar_lea.vmem [#allocation21], %s950
        // Predicated region
        $region157: #{tpu_custom_call.1} parent=99 // pred_check
          %p952 = pneg %p426
        $region158: #{tpu_custom_call.1} parent=99 // pred_check_branch
          %954 = sbr.rel (%p952) target = $region160
        $region159: #{tpu_custom_call.1} parent=99 // pred_region
          %955 = dma.done %s949, 16
        $region160: #{tpu_custom_call.1} parent=99 // pred_fallthru
          _
        // Predicated region
        $region161: #{tpu_custom_call.1} parent=99 // pred_check
          %p956 = pneg %p447
        $region162: #{tpu_custom_call.1} parent=99 // pred_check_branch
          %958 = sbr.rel (%p956) target = $region164
        $region163: #{tpu_custom_call.1} parent=99 // pred_region
          %959 = dma.done [#allocation7], 16
        $region164: #{tpu_custom_call.1} parent=99 // pred_fallthru
          _
        // Predicated region
        $region165: #{tpu_custom_call.1} parent=99 // pred_check
          %p960 = pneg %p468
        $region166: #{tpu_custom_call.1} parent=99 // pred_check_branch
          %962 = sbr.rel (%p960) target = $region168
        $region167: #{tpu_custom_call.1} parent=99 // pred_region
          %963 = dma.done [#allocation10], 16
        $region168: #{tpu_custom_call.1} parent=99 // pred_fallthru
          _
        %p964 = pneg %p51
        %p965 = pneg %p48
        %p966 = pneg %p72
        %p967 = pneg %p69
        %p968 = pneg %p93
        %p969 = pneg %p90
        %p970 = pneg %p114
        %p971 = pneg %p111
        %s972 = sand.u32 %s35, 1
        %s973 = scalar_lea.sflag [#allocation4], %s972
        %s974 = sand.u32 %s127, 1
        %s975 = scalar_lea.vmem [#allocation11], %s974
        %p976 = pneg %p140
        %p977 = pneg %p137
        %s978 = sand.u32 %s35, 1
        %s979 = scalar_lea.sflag [#allocation4], %s978
        %s980 = sand.u32 %s153, 1
        %s981 = scalar_lea.vmem [#allocation12], %s980
        %p982 = pneg %p166
        %p983 = pneg %p163
        %s984 = sand.u32 %s35, 1
        %s985 = scalar_lea.sflag [#allocation4], %s984
        %s986 = sand.u32 %s179, 1
        %s987 = smul.addr %s986, 192
        %s988 = scalar_lea.vmem [#allocation13], %s987
        %p989 = pneg %p192
        %p990 = pneg %p189
        %s991 = sand.u32 %s35, 1
        %s992 = scalar_lea.sflag [#allocation4], %s991
        %s993 = sand.u32 %s205, 1
        %s994 = smul.addr %s993, 3
        %s995 = scalar_lea.vmem [#allocation14], %s994
        %p996 = pneg %p218
        %p997 = pneg %p215
        %s998 = sand.u32 %s35, 1
        %s999 = scalar_lea.sflag [#allocation4], %s998
        %s1000 = sand.u32 %s231, 1
        %s1001 = smul.addr %s1000, 64
        %s1002 = scalar_lea.vmem [#allocation15], %s1001
        %p1003 = pneg %p244
        %p1004 = pneg %p241
        %s1005 = sand.u32 %s35, 1
        %s1006 = scalar_lea.sflag [#allocation4], %s1005
        %s1007 = sand.u32 %s257, 1
        %s1008 = scalar_lea.vmem [#allocation16], %s1007
        %p1009 = pneg %p270
        %p1010 = pneg %p267
        %s1011 = sand.u32 %s35, 1
        %s1012 = scalar_lea.sflag [#allocation4], %s1011
        %s1013 = sand.u32 %s283, 1
        %s1014 = scalar_lea.vmem [#allocation17], %s1013
        %p1015 = pneg %p296
        %p1016 = pneg %p293
        %s1017 = sand.u32 %s35, 1
        %s1018 = scalar_lea.sflag [#allocation4], %s1017
        %s1019 = sand.u32 %s309, 1
        %s1020 = scalar_lea.vmem [#allocation18], %s1019
        %p1021 = pneg %p322
        %p1022 = pneg %p319
        %s1023 = sand.u32 %s35, 1
        %s1024 = scalar_lea.sflag [#allocation4], %s1023
        %s1025 = sand.u32 %s335, 1
        %s1026 = smul.addr %s1025, 128
        %s1027 = scalar_lea.vmem [#allocation19], %s1026
        %p1028 = pneg %p348
        %p1029 = pneg %p345
        %p1030 = scmp.lt.s32.totalorder %s35, 1
        %s1031 = scalar_select %p1030, %s35, 1
        %s1032 = smul.addr %s1031, 2
        %s1033 = scalar_lea.vmem %s13, %s1032
        %p1034 = pneg %p374
        %p1035 = pneg %p371
        %s1036 = sand.u32 %s35, 1
        %s1037 = scalar_lea.sflag [#allocation4], %s1036
        %s1038 = sand.u32 %s387, 1
        %s1039 = smul.addr %s1038, 128
        %s1040 = scalar_lea.vmem [#allocation20], %s1039
        %p1041 = pneg %p400
        %p1042 = pneg %p397
        %s1043 = sand.u32 %s35, 1
        %s1044 = scalar_lea.sflag [#allocation4], %s1043
        %s1045 = sand.u32 %s413, 1
        %s1046 = scalar_lea.vmem [#allocation21], %s1045
        %p1047 = pneg %p426
        %p1048 = pneg %p423
        %p1049 = pneg %p447
        %p1050 = pneg %p444
        %p1051 = pneg %p468
        %p1052 = pneg %p465
        %p1053 = pneg %p489
        %p1054 = pneg %p486
        %p1055 = pneg %p510
        %p1056 = pneg %p507
        %p1057 = pneg %p531
        %p1058 = pneg %p528
        %p1059 = scmp.lt.s32.totalorder %s35, 1
        %s1060 = scalar_select %p1059, %s35, 1
        %s1061 = smul.addr %s1060, 2
        %s1062 = scalar_lea.vmem %s13, %s1061
        %p1064 = scmp.eq.s32.totalorder %s35, 0
        // Predicated region
        $region169: #{tpu_custom_call.1} parent=99 // pred_check
          %p1065 = pneg %p1064
        $region170: #{tpu_custom_call.1} parent=99 // pred_check_branch
          %1067 = sbr.rel (%p1065) target = $region172
        $region171: #{tpu_custom_call.1} parent=99 // pred_region
          %v1068 = vld [vmem:[#allocation3] sm:$0xff]
          %v1069 = vld [vmem:[#allocation3 + $0x8] sm:$0xff]
          %v1070 = vld [vmem:[#allocation3 + $0x10] sm:$0xff]
          %v1071 = vld [vmem:[#allocation3 + $0x18] sm:$0xff]
          %v1072 = vpack.c.bf16 %v1069, %v1068
          %v1073 = vpack.c.bf16 %v1071, %v1070
          %v1074 = vld [vmem:[#allocation6] sm:$0xf]
          %v1075 = vld [vmem:[#allocation6 + $0x4] sm:$0xf]
          %v1076 = vld [vmem:[#allocation6 + $0x8] sm:$0xf]
          %v1077 = vld [vmem:[#allocation6 + $0xc] sm:$0xf]
          %v1078 = vld [vmem:[#allocation6 + $0x10] sm:$0xf]
          %v1079 = vld [vmem:[#allocation6 + $0x14] sm:$0xf]
          %v1086 = vunpack.c.l.b16 %v1074
          %v1087 = vunpack.c.l.b16 %v1075
          %v1088 = vunpack.c.l.b16 %v1076
          %v1089 = vunpack.c.l.b16 %v1077
          %v1090 = vunpack.c.l.b16 %v1078
          %v1091 = vunpack.c.l.b16 %v1079
          %v1092 = vpack.c.b16 %v1087, %v1086
          %v1093 = vpack.c.b16 %v1089, %v1088
          %v1094 = vpack.c.b16 %v1091, %v1090
          %vm1098 = vcmask 392192
          %v1100 = vsel %vm1098, %v1072, 0
          %v1103 = vsel %vm1098, %v1073, 0
          %1105 = vmatprep.subr.bf16.mxu0 0
          %1106 = vmatpush1.bf16.msra.mxu0 %v1092
          %1107 = vmatprep.subr.bf16.mxu0 0
          %1108 = vmatpush1.bf16.msra.mxu0 %v1093
          %1109 = vmatprep.subr.bf16.mxu0 0
          %1110 = vmatpush1.bf16.msra.mxu0 %v1094
          %1111 = vmatprep.subr.bf16.mxu0 0
          %1112 = vmatpush1.bf16.msra.mxu0 0
          %1113 = vmatprep.subr.bf16.mxu0 0
          %1114 = vmatpush1.bf16.msra.mxu0 0
          %1115 = vmatprep.subr.bf16.mxu0 0
          %1116 = vmatpush1.bf16.msra.mxu0 0
          %1117 = vmatprep.subr.bf16.mxu0 0
          %1118 = vmatpush1.bf16.msra.mxu0 0
          %1119 = vmatprep.subr.bf16.mxu0 0
          %1120 = vmatpush1.bf16.msra.mxu0 0
          %1121 = vmatprep.subr.bf16.mxu0 0
          %1122 = vmatpush1.bf16.msra.mxu0 0
          %1123 = vmatprep.subr.bf16.mxu0 0
          %1124 = vmatpush1.bf16.msra.mxu0 0
          %1125 = vmatprep.subr.bf16.mxu0 0
          %1126 = vmatpush1.bf16.msra.mxu0 0
          %1127 = vmatprep.subr.bf16.mxu0 0
          %1128 = vmatpush1.bf16.msra.mxu0 0
          %1129 = vmatprep.subr.bf16.mxu0 0
          %1130 = vmatpush1.bf16.msra.mxu0 0
          %1131 = vmatprep.subr.bf16.mxu0 0
          %1132 = vmatpush1.bf16.msra.mxu0 0
          %1133 = vmatprep.subr.bf16.mxu0 0
          %1134 = vmatpush1.bf16.msra.mxu0 0
          %1135 = vmatprep.subr.bf16.mxu0 0
          %1136 = vmatpush1.bf16.msra.mxu0 0
          %1137 = vmatprep.mubr.bf16.mxu0 0
          %1138 = vmatmul.mubr.bf16.gmra.mrb[0].mxu0 %v1100
          %v1139 = vpop.f32.mrb[0].mxu0
          %v1140 = vadd.f32 0.0, %v1139
          %v1141 = vpop.f32.mrb[0].mxu0
          %v1142 = vpop.f32.mrb[0].mxu0
          %v1143 = vadd.f32 0.0, %v1142
          %v1144 = vpop.f32.mrb[0].mxu0
          %1145 = vmatprep.mubr.bf16.mxu0 0
          %1146 = vmatmul.mubr.bf16.gmra.mrb[0].mxu0 %v1103
          %v1147 = vpop.f32.mrb[0].mxu0
          %v1148 = vadd.f32 0.0, %v1147
          %v1149 = vpop.f32.mrb[0].mxu0
          %v1150 = vpop.f32.mrb[0].mxu0
          %v1151 = vadd.f32 0.0, %v1150
          %v1152 = vpop.f32.mrb[0].mxu0
          %1153 = vdwg.mxu0
          %v1154 = vld [vmem:[#allocation9 + $0x1] sm:$0xff]
          %v1155 = vld [vmem:[#allocation9 + $0x9] sm:$0xff]
          %v1156 = vadd.f32 %v1140, %v1154
          %v1157 = vadd.f32 %v1143, %v1155
          %v1158 = vadd.f32 %v1148, %v1154
          %v1159 = vadd.f32 %v1151, %v1155
          %v1160 = vld [vmem:[#allocation8] sm:$0x1]
          %v1161 = vld [vmem:[#allocation9] sm:$0x1]
          %v1162 = vadd.f32 %v1160, %v1161
          %1163 = vst [vmem:[#allocation2] sm:$0x1] %v1162
          %1164 = vst [vmem:[#allocation2 + $0x18] sm:$0x1] %v1162
          %1165 = vst [vmem:[#allocation2 + $0x1] sm:$0xff] %v1156
          %1166 = vst [vmem:[#allocation2 + $0x9] sm:$0xff] %v1157
          %1167 = vst [vmem:[#allocation2 + $0x19] sm:$0xff] %v1158
          %1168 = vst [vmem:[#allocation2 + $0x21] sm:$0xff] %v1159
        $region172: #{tpu_custom_call.1} parent=99 // pred_fallthru
          _
        %v1169 = vld [vmem:[#allocation2] sm:$0xff]
        %v1170 = vld [vmem:[#allocation2 + $0x8] sm:$0xff]
        %v1171 = vld [vmem:[#allocation2 + $0x10] sm:$0x1]
        %v1172 = vld [vmem:[#allocation2 + $0x18] sm:$0xff]
        %v1173 = vld [vmem:[#allocation2 + $0x20] sm:$0xff]
        %v1174 = vld [vmem:[#allocation2 + $0x28] sm:$0x1]
        %v1175 = vld [vmem:[%s866] sm:$0x1]
        %v1176 = vld [vmem:[%s874] sm:$0x1]
        %1177 = vadd.xlane.f32.xlu0 %v1169
        %v1178 = vpop.xlane.xlu0 %1177
        %1179 = vadd.xlane.f32.xlu0 %v1170
        %v1180 = vpop.xlane.xlu0 %1179
        %vm1181 = vcmask 1040384
        %v1182 = vsel %vm1181, %v1171, 0.0
        %1183 = vadd.xlane.f32.xlu0 %v1182
        %v1184 = vpop.xlane.xlu0 %1183
        %1185 = vadd.xlane.f32.xlu0 %v1172
        %v1186 = vpop.xlane.xlu0 %1185
        %1187 = vadd.xlane.f32.xlu0 %v1173
        %v1188 = vpop.xlane.xlu0 %1187
        %v1189 = vsel %vm1181, %v1174, 0.0
        %1190 = vadd.xlane.f32.xlu0 %v1189
        %v1191 = vpop.xlane.xlu0 %1190
        %v1192 = vrcp.pop 128.0
        %v1193 = vmul.f32 %v1178, %v1192
        %v1194 = vmul.f32 %v1180, %v1192
        %v1195 = vmul.f32 %v1184, %v1192
        %v1196 = vmul.f32 %v1186, %v1192
        %v1197 = vmul.f32 %v1188, %v1192
        %v1198 = vmul.f32 %v1191, %v1192
        %v1199 = vsub.f32 %v1169, %v1193
        %v1200 = vsub.f32 %v1170, %v1194
        %v1201 = vsub.f32 %v1171, %v1195
        %v1202 = vsub.f32 %v1172, %v1196
        %v1203 = vsub.f32 %v1173, %v1197
        %v1204 = vsub.f32 %v1174, %v1198
        %v1205 = vmul.f32 %v1199, %v1199
        %v1206 = vmul.f32 %v1200, %v1200
        %v1207 = vmul.f32 %v1201, %v1201
        %v1208 = vmul.f32 %v1202, %v1202
        %v1209 = vmul.f32 %v1203, %v1203
        %v1210 = vmul.f32 %v1204, %v1204
        %1211 = vadd.xlane.f32.xlu0 %v1205
        %v1212 = vpop.xlane.xlu0 %1211
        %1213 = vadd.xlane.f32.xlu0 %v1206
        %v1214 = vpop.xlane.xlu0 %1213
        %v1215 = vsel %vm1181, %v1207, 0.0
        %1216 = vadd.xlane.f32.xlu0 %v1215
        %v1217 = vpop.xlane.xlu0 %1216
        %1218 = vadd.xlane.f32.xlu0 %v1208
        %v1219 = vpop.xlane.xlu0 %1218
        %1220 = vadd.xlane.f32.xlu0 %v1209
        %v1221 = vpop.xlane.xlu0 %1220
        %v1222 = vsel %vm1181, %v1210, 0.0
        %1223 = vadd.xlane.f32.xlu0 %v1222
        %v1224 = vpop.xlane.xlu0 %1223
        %v1225 = vmul.f32 %v1212, %v1192
        %v1226 = vmul.f32 %v1214, %v1192
        %v1227 = vmul.f32 %v1217, %v1192
        %v1228 = vmul.f32 %v1219, %v1192
        %v1229 = vmul.f32 %v1221, %v1192
        %v1230 = vmul.f32 %v1224, %v1192
        %v1231 = vadd.f32 %v1225, 1e-05
        %v1232 = vadd.f32 %v1226, 1e-05
        %v1233 = vadd.f32 %v1227, 1e-05
        %v1234 = vadd.f32 %v1228, 1e-05
        %v1235 = vadd.f32 %v1229, 1e-05
        %v1236 = vadd.f32 %v1230, 1e-05
        %v1237 = vrsqrt.pop %v1231
        %v1238 = vrsqrt.pop %v1232
        %v1239 = vrsqrt.pop %v1233
        %v1240 = vrsqrt.pop %v1234
        %v1241 = vrsqrt.pop %v1235
        %v1242 = vrsqrt.pop %v1236
        %v1243 = vmul.f32 %v1199, %v1237
        %v1244 = vmul.f32 %v1200, %v1238
        %v1245 = vmul.f32 %v1201, %v1239
        %v1246 = vmul.f32 %v1202, %v1240
        %v1247 = vmul.f32 %v1203, %v1241
        %v1248 = vmul.f32 %v1204, %v1242
        %v1250 = vlaneseq
        %v1251 = vshrl.u32 %v1250, 7
        %v1252 = vsub.s32 0, %v1251
        %v1253 = vrot.slane %v1175, %v1252
        %v1255 = vmul.f32 %v1243, %v1253
        %v1256 = vmul.f32 %v1244, %v1253
        %v1257 = vmul.f32 %v1245, %v1253
        %v1258 = vmul.f32 %v1246, %v1253
        %v1259 = vmul.f32 %v1247, %v1253
        %v1260 = vmul.f32 %v1248, %v1253
        %v1262 = vlaneseq
        %v1263 = vshrl.u32 %v1262, 7
        %v1264 = vsub.s32 0, %v1263
        %v1265 = vrot.slane %v1176, %v1264
        %v1267 = vadd.f32 %v1255, %v1265
        %v1268 = vadd.f32 %v1256, %v1265
        %v1269 = vadd.f32 %v1257, %v1265
        %v1270 = vadd.f32 %v1258, %v1265
        %v1271 = vadd.f32 %v1259, %v1265
        %v1272 = vadd.f32 %v1260, %v1265
        %v1279 = vcombine.high %v1267, %v1267
        %v1281 = vunpack.c.l.s4 1966171168
        %v1282 = vunpack.c.0.s8 %v1281
        %v1283 = vlaneseq
        %v1284 = vshrl.u32 %v1283, 7
        %v1285 = vsub.s32 %v1282, %v1284
        %v1286 = vrot.slane %v1267, %v1285
        %v1288 = vunpack.c.l.s4 1966171168
        %v1289 = vunpack.c.0.s8 %v1288
        %v1290 = vlaneseq
        %v1291 = vshrl.u32 %v1290, 7
        %v1292 = vsub.s32 %v1289, %v1291
        %v1293 = vrot.slane %v1279, %v1292
        %v1294 = vcombine.high %v1286, %v1286
        %v1295 = vcombine.high %v1293, %v1293
        %v1297 = vunpack.c.l.s4 1966171168
        %v1298 = vunpack.c.0.s8 %v1297
        %v1299 = vlaneseq
        %v1300 = vshrl.u32 %v1299, 7
        %v1301 = vsub.s32 %v1298, %v1300
        %v1302 = vrot.slane %v1286, %v1301
        %v1304 = vunpack.c.l.s4 1966171168
        %v1305 = vunpack.c.0.s8 %v1304
        %v1306 = vlaneseq
        %v1307 = vshrl.u32 %v1306, 7
        %v1308 = vsub.s32 %v1305, %v1307
        %v1309 = vrot.slane %v1293, %v1308
        %v1311 = vunpack.c.l.s4 1966171168
        %v1312 = vunpack.c.0.s8 %v1311
        %v1313 = vlaneseq
        %v1314 = vshrl.u32 %v1313, 7
        %v1315 = vsub.s32 %v1312, %v1314
        %v1316 = vrot.slane %v1294, %v1315
        %v1318 = vunpack.c.l.s4 1966171168
        %v1319 = vunpack.c.0.s8 %v1318
        %v1320 = vlaneseq
        %v1321 = vshrl.u32 %v1320, 7
        %v1322 = vsub.s32 %v1319, %v1321
        %v1323 = vrot.slane %v1295, %v1322
        %v1324 = vcombine.high %v1302, %v1302
        %v1325 = vcombine.high %v1309, %v1309
        %v1326 = vcombine.high %v1316, %v1316
        %v1327 = vcombine.high %v1323, %v1323
        %v1328 = vcombine.high %v1268, %v1268
        %v1330 = vunpack.c.l.s4 1966171168
        %v1331 = vunpack.c.0.s8 %v1330
        %v1332 = vlaneseq
        %v1333 = vshrl.u32 %v1332, 7
        %v1334 = vsub.s32 %v1331, %v1333
        %v1335 = vrot.slane %v1268, %v1334
        %v1337 = vunpack.c.l.s4 1966171168
        %v1338 = vunpack.c.0.s8 %v1337
        %v1339 = vlaneseq
        %v1340 = vshrl.u32 %v1339, 7
        %v1341 = vsub.s32 %v1338, %v1340
        %v1342 = vrot.slane %v1328, %v1341
        %v1343 = vcombine.high %v1335, %v1335
        %v1344 = vcombine.high %v1342, %v1342
        %v1346 = vunpack.c.l.s4 1966171168
        %v1347 = vunpack.c.0.s8 %v1346
        %v1348 = vlaneseq
        %v1349 = vshrl.u32 %v1348, 7
        %v1350 = vsub.s32 %v1347, %v1349
        %v1351 = vrot.slane %v1335, %v1350
        %v1353 = vunpack.c.l.s4 1966171168
        %v1354 = vunpack.c.0.s8 %v1353
        %v1355 = vlaneseq
        %v1356 = vshrl.u32 %v1355, 7
        %v1357 = vsub.s32 %v1354, %v1356
        %v1358 = vrot.slane %v1342, %v1357
        %v1360 = vunpack.c.l.s4 1966171168
        %v1361 = vunpack.c.0.s8 %v1360
        %v1362 = vlaneseq
        %v1363 = vshrl.u32 %v1362, 7
        %v1364 = vsub.s32 %v1361, %v1363
        %v1365 = vrot.slane %v1343, %v1364
        %v1367 = vunpack.c.l.s4 1966171168
        %v1368 = vunpack.c.0.s8 %v1367
        %v1369 = vlaneseq
        %v1370 = vshrl.u32 %v1369, 7
        %v1371 = vsub.s32 %v1368, %v1370
        %v1372 = vrot.slane %v1344, %v1371
        %v1373 = vcombine.high %v1351, %v1351
        %v1374 = vcombine.high %v1358, %v1358
        %v1375 = vcombine.high %v1365, %v1365
        %v1376 = vcombine.high %v1372, %v1372
        %v1378 = vunpack.c.l.s4 1966171168
        %v1379 = vunpack.c.0.s8 %v1378
        %v1380 = vlaneseq
        %v1381 = vshrl.u32 %v1380, 7
        %v1382 = vsub.s32 %v1379, %v1381
        %v1383 = vrot.slane %v1269, %v1382
        %v1385 = vunpack.c.l.s4 1966171168
        %v1386 = vunpack.c.0.s8 %v1385
        %v1387 = vlaneseq
        %v1388 = vshrl.u32 %v1387, 7
        %v1389 = vsub.s32 %v1386, %v1388
        %v1390 = vrot.slane %v1383, %v1389
        %v1391 = vcombine.high %v1270, %v1270
        %v1393 = vunpack.c.l.s4 1966171168
        %v1394 = vunpack.c.0.s8 %v1393
        %v1395 = vlaneseq
        %v1396 = vshrl.u32 %v1395, 7
        %v1397 = vsub.s32 %v1394, %v1396
        %v1398 = vrot.slane %v1270, %v1397
        %v1400 = vunpack.c.l.s4 1966171168
        %v1401 = vunpack.c.0.s8 %v1400
        %v1402 = vlaneseq
        %v1403 = vshrl.u32 %v1402, 7
        %v1404 = vsub.s32 %v1401, %v1403
        %v1405 = vrot.slane %v1391, %v1404
        %v1406 = vcombine.high %v1398, %v1398
        %v1407 = vcombine.high %v1405, %v1405
        %v1409 = vunpack.c.l.s4 1966171168
        %v1410 = vunpack.c.0.s8 %v1409
        %v1411 = vlaneseq
        %v1412 = vshrl.u32 %v1411, 7
        %v1413 = vsub.s32 %v1410, %v1412
        %v1414 = vrot.slane %v1398, %v1413
        %v1416 = vunpack.c.l.s4 1966171168
        %v1417 = vunpack.c.0.s8 %v1416
        %v1418 = vlaneseq
        %v1419 = vshrl.u32 %v1418, 7
        %v1420 = vsub.s32 %v1417, %v1419
        %v1421 = vrot.slane %v1405, %v1420
        %v1423 = vunpack.c.l.s4 1966171168
        %v1424 = vunpack.c.0.s8 %v1423
        %v1425 = vlaneseq
        %v1426 = vshrl.u32 %v1425, 7
        %v1427 = vsub.s32 %v1424, %v1426
        %v1428 = vrot.slane %v1406, %v1427
        %v1430 = vunpack.c.l.s4 1966171168
        %v1431 = vunpack.c.0.s8 %v1430
        %v1432 = vlaneseq
        %v1433 = vshrl.u32 %v1432, 7
        %v1434 = vsub.s32 %v1431, %v1433
        %v1435 = vrot.slane %v1407, %v1434
        %v1436 = vcombine.high %v1414, %v1414
        %v1437 = vcombine.high %v1421, %v1421
        %v1438 = vcombine.high %v1428, %v1428
        %v1439 = vcombine.high %v1435, %v1435
        %v1440 = vcombine.high %v1271, %v1271
        %v1442 = vunpack.c.l.s4 1966171168
        %v1443 = vunpack.c.0.s8 %v1442
        %v1444 = vlaneseq
        %v1445 = vshrl.u32 %v1444, 7
        %v1446 = vsub.s32 %v1443, %v1445
        %v1447 = vrot.slane %v1271, %v1446
        %v1449 = vunpack.c.l.s4 1966171168
        %v1450 = vunpack.c.0.s8 %v1449
        %v1451 = vlaneseq
        %v1452 = vshrl.u32 %v1451, 7
        %v1453 = vsub.s32 %v1450, %v1452
        %v1454 = vrot.slane %v1440, %v1453
        %v1455 = vcombine.high %v1447, %v1447
        %v1456 = vcombine.high %v1454, %v1454
        %v1458 = vunpack.c.l.s4 1966171168
        %v1459 = vunpack.c.0.s8 %v1458
        %v1460 = vlaneseq
        %v1461 = vshrl.u32 %v1460, 7
        %v1462 = vsub.s32 %v1459, %v1461
        %v1463 = vrot.slane %v1447, %v1462
        %v1465 = vunpack.c.l.s4 1966171168
        %v1466 = vunpack.c.0.s8 %v1465
        %v1467 = vlaneseq
        %v1468 = vshrl.u32 %v1467, 7
        %v1469 = vsub.s32 %v1466, %v1468
        %v1470 = vrot.slane %v1454, %v1469
        %v1472 = vunpack.c.l.s4 1966171168
        %v1473 = vunpack.c.0.s8 %v1472
        %v1474 = vlaneseq
        %v1475 = vshrl.u32 %v1474, 7
        %v1476 = vsub.s32 %v1473, %v1475
        %v1477 = vrot.slane %v1455, %v1476
        %v1479 = vunpack.c.l.s4 1966171168
        %v1480 = vunpack.c.0.s8 %v1479
        %v1481 = vlaneseq
        %v1482 = vshrl.u32 %v1481, 7
        %v1483 = vsub.s32 %v1480, %v1482
        %v1484 = vrot.slane %v1456, %v1483
        %v1485 = vcombine.high %v1463, %v1463
        %v1486 = vcombine.high %v1470, %v1470
        %v1487 = vcombine.high %v1477, %v1477
        %v1488 = vcombine.high %v1484, %v1484
        %v1490 = vunpack.c.l.s4 1966171168
        %v1491 = vunpack.c.0.s8 %v1490
        %v1492 = vlaneseq
        %v1493 = vshrl.u32 %v1492, 7
        %v1494 = vsub.s32 %v1491, %v1493
        %v1495 = vrot.slane %v1272, %v1494
        %v1497 = vunpack.c.l.s4 1966171168
        %v1498 = vunpack.c.0.s8 %v1497
        %v1499 = vlaneseq
        %v1500 = vshrl.u32 %v1499, 7
        %v1501 = vsub.s32 %v1498, %v1500
        %v1502 = vrot.slane %v1495, %v1501
        %v1503 = vcombine.low %v1302, %v1316
        %v1504 = vcombine.low %v1324, %v1326
        %v1505 = vcombine.low %v1309, %v1323
        %v1506 = vcombine.low %v1325, %v1327
        %v1508 = vunpack.c.l.s4 1966171168
        %v1509 = vunpack.c.0.s8 %v1508
        %v1510 = vlaneseq
        %v1511 = vshrl.u32 %v1510, 7
        %v1512 = vsub.s32 %v1509, %v1511
        %v1513 = vrot.slane %v1503, %v1512
        %v1515 = vunpack.c.l.s4 1966171168
        %v1516 = vunpack.c.0.s8 %v1515
        %v1517 = vlaneseq
        %v1518 = vshrl.u32 %v1517, 7
        %v1519 = vsub.s32 %v1516, %v1518
        %v1520 = vrot.slane %v1504, %v1519
        %v1522 = vunpack.c.l.s4 1966171168
        %v1523 = vunpack.c.0.s8 %v1522
        %v1524 = vlaneseq
        %v1525 = vshrl.u32 %v1524, 7
        %v1526 = vsub.s32 %v1523, %v1525
        %v1527 = vrot.slane %v1505, %v1526
        %v1529 = vunpack.c.l.s4 1966171168
        %v1530 = vunpack.c.0.s8 %v1529
        %v1531 = vlaneseq
        %v1532 = vshrl.u32 %v1531, 7
        %v1533 = vsub.s32 %v1530, %v1532
        %v1534 = vrot.slane %v1506, %v1533
        %v1535 = vcombine.low %v1513, %v1520
        %v1536 = vcombine.low %v1527, %v1534
        %v1538 = vunpack.c.l.s4 1966171168
        %v1539 = vunpack.c.0.s8 %v1538
        %v1540 = vlaneseq
        %v1541 = vshrl.u32 %v1540, 7
        %v1542 = vsub.s32 %v1539, %v1541
        %v1543 = vrot.slane %v1535, %v1542
        %v1545 = vunpack.c.l.s4 1966171168
        %v1546 = vunpack.c.0.s8 %v1545
        %v1547 = vlaneseq
        %v1548 = vshrl.u32 %v1547, 7
        %v1549 = vsub.s32 %v1546, %v1548
        %v1550 = vrot.slane %v1536, %v1549
        %v1551 = vcombine.low %v1543, %v1550
        %v1552 = vcombine.low %v1351, %v1365
        %v1553 = vcombine.low %v1373, %v1375
        %v1554 = vcombine.low %v1358, %v1372
        %v1555 = vcombine.low %v1374, %v1376
        %v1557 = vunpack.c.l.s4 1966171168
        %v1558 = vunpack.c.0.s8 %v1557
        %v1559 = vlaneseq
        %v1560 = vshrl.u32 %v1559, 7
        %v1561 = vsub.s32 %v1558, %v1560
        %v1562 = vrot.slane %v1552, %v1561
        %v1564 = vunpack.c.l.s4 1966171168
        %v1565 = vunpack.c.0.s8 %v1564
        %v1566 = vlaneseq
        %v1567 = vshrl.u32 %v1566, 7
        %v1568 = vsub.s32 %v1565, %v1567
        %v1569 = vrot.slane %v1553, %v1568
        %v1571 = vunpack.c.l.s4 1966171168
        %v1572 = vunpack.c.0.s8 %v1571
        %v1573 = vlaneseq
        %v1574 = vshrl.u32 %v1573, 7
        %v1575 = vsub.s32 %v1572, %v1574
        %v1576 = vrot.slane %v1554, %v1575
        %v1578 = vunpack.c.l.s4 1966171168
        %v1579 = vunpack.c.0.s8 %v1578
        %v1580 = vlaneseq
        %v1581 = vshrl.u32 %v1580, 7
        %v1582 = vsub.s32 %v1579, %v1581
        %v1583 = vrot.slane %v1555, %v1582
        %v1584 = vcombine.low %v1562, %v1569
        %v1585 = vcombine.low %v1576, %v1583
        %v1587 = vunpack.c.l.s4 1966171168
        %v1588 = vunpack.c.0.s8 %v1587
        %v1589 = vlaneseq
        %v1590 = vshrl.u32 %v1589, 7
        %v1591 = vsub.s32 %v1588, %v1590
        %v1592 = vrot.slane %v1584, %v1591
        %v1594 = vunpack.c.l.s4 1966171168
        %v1595 = vunpack.c.0.s8 %v1594
        %v1596 = vlaneseq
        %v1597 = vshrl.u32 %v1596, 7
        %v1598 = vsub.s32 %v1595, %v1597
        %v1599 = vrot.slane %v1585, %v1598
        %v1600 = vcombine.low %v1592, %v1599
        %v1601 = vcombine.low %v1390, %v1414
        %v1602 = vcombine.low %v1428, %v1436
        %v1603 = vcombine.low %v1438, %v1421
        %v1604 = vcombine.low %v1435, %v1437
        %v1606 = vunpack.c.l.s4 1966171168
        %v1607 = vunpack.c.0.s8 %v1606
        %v1608 = vlaneseq
        %v1609 = vshrl.u32 %v1608, 7
        %v1610 = vsub.s32 %v1607, %v1609
        %v1611 = vrot.slane %v1601, %v1610
        %v1613 = vunpack.c.l.s4 1966171168
        %v1614 = vunpack.c.0.s8 %v1613
        %v1615 = vlaneseq
        %v1616 = vshrl.u32 %v1615, 7
        %v1617 = vsub.s32 %v1614, %v1616
        %v1618 = vrot.slane %v1602, %v1617
        %v1620 = vunpack.c.l.s4 1966171168
        %v1621 = vunpack.c.0.s8 %v1620
        %v1622 = vlaneseq
        %v1623 = vshrl.u32 %v1622, 7
        %v1624 = vsub.s32 %v1621, %v1623
        %v1625 = vrot.slane %v1603, %v1624
        %v1627 = vunpack.c.l.s4 1966171168
        %v1628 = vunpack.c.0.s8 %v1627
        %v1629 = vlaneseq
        %v1630 = vshrl.u32 %v1629, 7
        %v1631 = vsub.s32 %v1628, %v1630
        %v1632 = vrot.slane %v1604, %v1631
        %v1633 = vcombine.low %v1611, %v1618
        %v1634 = vcombine.low %v1625, %v1632
        %v1636 = vunpack.c.l.s4 1966171168
        %v1637 = vunpack.c.0.s8 %v1636
        %v1638 = vlaneseq
        %v1639 = vshrl.u32 %v1638, 7
        %v1640 = vsub.s32 %v1637, %v1639
        %v1641 = vrot.slane %v1633, %v1640
        %v1643 = vunpack.c.l.s4 1966171168
        %v1644 = vunpack.c.0.s8 %v1643
        %v1645 = vlaneseq
        %v1646 = vshrl.u32 %v1645, 7
        %v1647 = vsub.s32 %v1644, %v1646
        %v1648 = vrot.slane %v1634, %v1647
        %v1649 = vcombine.low %v1641, %v1648
        %v1650 = vcombine.low %v1439, %v1463
        %v1651 = vcombine.low %v1477, %v1485
        %v1652 = vcombine.low %v1487, %v1470
        %v1653 = vcombine.low %v1484, %v1486
        %v1655 = vunpack.c.l.s4 1966171168
        %v1656 = vunpack.c.0.s8 %v1655
        %v1657 = vlaneseq
        %v1658 = vshrl.u32 %v1657, 7
        %v1659 = vsub.s32 %v1656, %v1658
        %v1660 = vrot.slane %v1650, %v1659
        %v1662 = vunpack.c.l.s4 1966171168
        %v1663 = vunpack.c.0.s8 %v1662
        %v1664 = vlaneseq
        %v1665 = vshrl.u32 %v1664, 7
        %v1666 = vsub.s32 %v1663, %v1665
        %v1667 = vrot.slane %v1651, %v1666
        %v1669 = vunpack.c.l.s4 1966171168
        %v1670 = vunpack.c.0.s8 %v1669
        %v1671 = vlaneseq
        %v1672 = vshrl.u32 %v1671, 7
        %v1673 = vsub.s32 %v1670, %v1672
        %v1674 = vrot.slane %v1652, %v1673
        %v1676 = vunpack.c.l.s4 1966171168
        %v1677 = vunpack.c.0.s8 %v1676
        %v1678 = vlaneseq
        %v1679 = vshrl.u32 %v1678, 7
        %v1680 = vsub.s32 %v1677, %v1679
        %v1681 = vrot.slane %v1653, %v1680
        %v1682 = vcombine.low %v1660, %v1667
        %v1683 = vcombine.low %v1674, %v1681
        %v1685 = vunpack.c.l.s4 1966171168
        %v1686 = vunpack.c.0.s8 %v1685
        %v1687 = vlaneseq
        %v1688 = vshrl.u32 %v1687, 7
        %v1689 = vsub.s32 %v1686, %v1688
        %v1690 = vrot.slane %v1682, %v1689
        %v1692 = vunpack.c.l.s4 1966171168
        %v1693 = vunpack.c.0.s8 %v1692
        %v1694 = vlaneseq
        %v1695 = vshrl.u32 %v1694, 7
        %v1696 = vsub.s32 %v1693, %v1695
        %v1697 = vrot.slane %v1683, %v1696
        %v1698 = vcombine.low %v1690, %v1697
        %v1699 = vcombine.low %v1488, %v1502
        %v1701 = vunpack.c.l.s4 1966171168
        %v1702 = vunpack.c.0.s8 %v1701
        %v1703 = vlaneseq
        %v1704 = vshrl.u32 %v1703, 7
        %v1705 = vsub.s32 %v1702, %v1704
        %v1706 = vrot.slane %v1699, %v1705
        %v1708 = vunpack.c.l.s4 1966171168
        %v1709 = vunpack.c.0.s8 %v1708
        %v1710 = vlaneseq
        %v1711 = vshrl.u32 %v1710, 7
        %v1712 = vsub.s32 %v1709, %v1711
        %v1713 = vrot.slane %v1706, %v1712
        %v1719 = vpack.c.bf16 %v1600, %v1551
        %v1720 = vpack.c.bf16 %v1698, %v1649
        %v1721 = vpack.c.bf16 %v1713, %v1713
        %v1722 = vld [vmem:[%s883] sm:$0xff]
        %v1723 = vld [vmem:[%s883 + $0x8] sm:$0xf]
        %v1724 = vld [vmem:[%s883 + $0xc] sm:$0xff]
        %v1725 = vld [vmem:[%s883 + $0x14] sm:$0xf]
        %v1726 = vld [vmem:[%s883 + $0x18] sm:$0xff]
        %v1727 = vld [vmem:[%s883 + $0x20] sm:$0xf]
        %v1728 = vld [vmem:[%s883 + $0x24] sm:$0xff]
        %v1729 = vld [vmem:[%s883 + $0x2c] sm:$0xf]
        %v1730 = vld [vmem:[%s883 + $0x30] sm:$0xff]
        %v1731 = vld [vmem:[%s883 + $0x38] sm:$0xf]
        %v1732 = vld [vmem:[%s883 + $0x3c] sm:$0xff]
        %v1733 = vld [vmem:[%s883 + $0x44] sm:$0xf]
        %v1734 = vld [vmem:[%s883 + $0x48] sm:$0xff]
        %v1735 = vld [vmem:[%s883 + $0x50] sm:$0xf]
        %v1736 = vld [vmem:[%s883 + $0x54] sm:$0xff]
        %v1737 = vld [vmem:[%s883 + $0x5c] sm:$0xf]
        %v1738 = vld [vmem:[%s883 + $0x60] sm:$0xff]
        %v1739 = vld [vmem:[%s883 + $0x68] sm:$0xf]
        %v1740 = vld [vmem:[%s883 + $0x6c] sm:$0xff]
        %v1741 = vld [vmem:[%s883 + $0x74] sm:$0xf]
        %v1742 = vld [vmem:[%s883 + $0x78] sm:$0xff]
        %v1743 = vld [vmem:[%s883 + $0x80] sm:$0xf]
        %v1744 = vld [vmem:[%s883 + $0x84] sm:$0xff]
        %v1745 = vld [vmem:[%s883 + $0x8c] sm:$0xf]
        %v1746 = vld [vmem:[%s883 + $0x90] sm:$0xff]
        %v1747 = vld [vmem:[%s883 + $0x98] sm:$0xf]
        %v1748 = vld [vmem:[%s883 + $0x9c] sm:$0xff]
        %v1749 = vld [vmem:[%s883 + $0xa4] sm:$0xf]
        %v1750 = vld [vmem:[%s883 + $0xa8] sm:$0xff]
        %v1751 = vld [vmem:[%s883 + $0xb0] sm:$0xf]
        %v1752 = vld [vmem:[%s883 + $0xb4] sm:$0xff]
        %v1753 = vld [vmem:[%s883 + $0xbc] sm:$0xf]
        %v1754 = vld [vmem:[%s892] sm:$0x7]
        %v1756 = vlaneseq
        %v1757 = vshrl.u32 %v1756, 7
        %v1758 = vsub.s32 0, %v1757
        %v1759 = vrot.slane %v1754, %v1758
        %v1760 = vlaneseq
        %v1761 = vshrl.u32 %v1760, 7
        %v1762 = vsub.s32 1, %v1761
        %v1763 = vrot.slane %v1754, %v1762
        %v1764 = vlaneseq
        %v1765 = vshrl.u32 %v1764, 7
        %v1766 = vsub.s32 2, %v1765
        %v1767 = vrot.slane %v1754, %v1766
        %v1803 = vunpack.c.l.b16 %v1722
        %v1804 = vunpack.c.h.b16 %v1722
        %v1805 = vunpack.c.l.b16 %v1723
        %v1806 = vunpack.c.l.b16 %v1724
        %v1807 = vunpack.c.h.b16 %v1724
        %v1808 = vunpack.c.l.b16 %v1725
        %v1809 = vunpack.c.l.b16 %v1726
        %v1810 = vunpack.c.h.b16 %v1726
        %v1811 = vunpack.c.l.b16 %v1727
        %v1812 = vunpack.c.l.b16 %v1728
        %v1813 = vunpack.c.h.b16 %v1728
        %v1814 = vunpack.c.l.b16 %v1729
        %v1815 = vunpack.c.l.b16 %v1730
        %v1816 = vunpack.c.h.b16 %v1730
        %v1817 = vunpack.c.l.b16 %v1731
        %v1818 = vunpack.c.l.b16 %v1732
        %v1819 = vunpack.c.h.b16 %v1732
        %v1820 = vunpack.c.l.b16 %v1733
        %v1821 = vunpack.c.l.b16 %v1734
        %v1822 = vunpack.c.h.b16 %v1734
        %v1823 = vunpack.c.l.b16 %v1735
        %v1824 = vunpack.c.l.b16 %v1736
        %v1825 = vunpack.c.h.b16 %v1736
        %v1826 = vunpack.c.l.b16 %v1737
        %v1827 = vunpack.c.l.b16 %v1738
        %v1828 = vunpack.c.h.b16 %v1738
        %v1829 = vunpack.c.l.b16 %v1739
        %v1830 = vunpack.c.l.b16 %v1740
        %v1831 = vunpack.c.h.b16 %v1740
        %v1832 = vunpack.c.l.b16 %v1741
        %v1833 = vunpack.c.l.b16 %v1742
        %v1834 = vunpack.c.h.b16 %v1742
        %v1835 = vunpack.c.l.b16 %v1743
        %v1836 = vunpack.c.l.b16 %v1744
        %v1837 = vunpack.c.h.b16 %v1744
        %v1838 = vunpack.c.l.b16 %v1745
        %v1839 = vunpack.c.l.b16 %v1746
        %v1840 = vunpack.c.h.b16 %v1746
        %v1841 = vunpack.c.l.b16 %v1747
        %v1842 = vunpack.c.l.b16 %v1748
        %v1843 = vunpack.c.h.b16 %v1748
        %v1844 = vunpack.c.l.b16 %v1749
        %v1845 = vunpack.c.l.b16 %v1750
        %v1846 = vunpack.c.h.b16 %v1750
        %v1847 = vunpack.c.l.b16 %v1751
        %v1848 = vunpack.c.l.b16 %v1752
        %v1849 = vunpack.c.h.b16 %v1752
        %v1850 = vunpack.c.l.b16 %v1753
        %v1851 = vpack.c.b16 %v1806, %v1803
        %v1852 = vpack.c.b16 %v1807, %v1804
        %v1853 = vpack.c.b16 %v1808, %v1805
        %v1854 = vpack.c.b16 %v1812, %v1809
        %v1855 = vpack.c.b16 %v1813, %v1810
        %v1856 = vpack.c.b16 %v1814, %v1811
        %v1857 = vpack.c.b16 %v1818, %v1815
        %v1858 = vpack.c.b16 %v1819, %v1816
        %v1859 = vpack.c.b16 %v1820, %v1817
        %v1860 = vpack.c.b16 %v1824, %v1821
        %v1861 = vpack.c.b16 %v1825, %v1822
        %v1862 = vpack.c.b16 %v1826, %v1823
        %v1863 = vpack.c.b16 %v1830, %v1827
        %v1864 = vpack.c.b16 %v1831, %v1828
        %v1865 = vpack.c.b16 %v1832, %v1829
        %v1866 = vpack.c.b16 %v1836, %v1833
        %v1867 = vpack.c.b16 %v1837, %v1834
        %v1868 = vpack.c.b16 %v1838, %v1835
        %v1869 = vpack.c.b16 %v1842, %v1839
        %v1870 = vpack.c.b16 %v1843, %v1840
        %v1871 = vpack.c.b16 %v1844, %v1841
        %v1872 = vpack.c.b16 %v1848, %v1845
        %v1873 = vpack.c.b16 %v1849, %v1846
        %v1874 = vpack.c.b16 %v1850, %v1847
        %1899 = vmatprep.subr.bf16.mxu0 %v1852
        %1900 = vmatpush1.bf16.msra.mxu0 %v1851
        %1901 = vmatprep.subr.bf16.mxu0 %v1855
        %1902 = vmatpush1.bf16.msra.mxu0 %v1854
        %1903 = vmatprep.subr.bf16.mxu0 %v1858
        %1904 = vmatpush1.bf16.msra.mxu0 %v1857
        %1905 = vmatprep.subr.bf16.mxu0 %v1861
        %1906 = vmatpush1.bf16.msra.mxu0 %v1860
        %1907 = vmatprep.subr.bf16.mxu0 %v1864
        %1908 = vmatpush1.bf16.msra.mxu0 %v1863
        %1909 = vmatprep.subr.bf16.mxu0 %v1867
        %1910 = vmatpush1.bf16.msra.mxu0 %v1866
        %1911 = vmatprep.subr.bf16.mxu0 %v1870
        %1912 = vmatpush1.bf16.msra.mxu0 %v1869
        %1913 = vmatprep.subr.bf16.mxu0 %v1873
        %1914 = vmatpush1.bf16.msra.mxu0 %v1872
        %1915 = vmatprep.subr.bf16.mxu0 0
        %1916 = vmatpush1.bf16.msra.mxu0 0
        %1917 = vmatprep.subr.bf16.mxu0 0
        %1918 = vmatpush1.bf16.msra.mxu0 0
        %1919 = vmatprep.subr.bf16.mxu0 0
        %1920 = vmatpush1.bf16.msra.mxu0 0
        %1921 = vmatprep.subr.bf16.mxu0 0
        %1922 = vmatpush1.bf16.msra.mxu0 0
        %1923 = vmatprep.subr.bf16.mxu0 0
        %1924 = vmatpush1.bf16.msra.mxu0 0
        %1925 = vmatprep.subr.bf16.mxu0 0
        %1926 = vmatpush1.bf16.msra.mxu0 0
        %1927 = vmatprep.subr.bf16.mxu0 0
        %1928 = vmatpush1.bf16.msra.mxu0 0
        %1929 = vmatprep.subr.bf16.mxu0 0
        %1930 = vmatpush1.bf16.msra.mxu0 0
        %1931 = vmatprep.mubr.bf16.mxu0 0
        %1932 = vmatmul.mubr.bf16.gmra.mrb[0].mxu0 %v1719
        %v1933 = vpop.f32.mrb[0].mxu0
        %v1934 = vadd.f32 %v1759, %v1933
        %v1935 = vpop.f32.mrb[0].mxu0
        %v1936 = vadd.f32 %v1763, %v1935
        %v1937 = vpop.f32.mrb[0].mxu0
        %v1938 = vadd.f32 %v1759, %v1937
        %v1939 = vpop.f32.mrb[0].mxu0
        %v1940 = vadd.f32 %v1763, %v1939
        %1941 = vmatprep.mubr.bf16.mxu0 0
        %1942 = vmatmul.mubr.bf16.gmra.mrb[0].mxu0 %v1720
        %v1943 = vpop.f32.mrb[0].mxu0
        %v1944 = vadd.f32 %v1759, %v1943
        %v1945 = vpop.f32.mrb[0].mxu0
        %v1946 = vadd.f32 %v1763, %v1945
        %v1947 = vpop.f32.mrb[0].mxu0
        %v1948 = vadd.f32 %v1759, %v1947
        %v1949 = vpop.f32.mrb[0].mxu0
        %v1950 = vadd.f32 %v1763, %v1949
        %1951 = vmatprep.mubr.bf16.mxu0 0
        %1952 = vmatmul.mubr.bf16.gmra.mrb[0].mxu0 %v1721
        %v1953 = vpop.f32.mrb[0].mxu0
        %v1954 = vadd.f32 %v1759, %v1953
        %v1955 = vpop.f32.mrb[0].mxu0
        %v1956 = vadd.f32 %v1763, %v1955
        %v1957 = vpop.f32.mrb[0].mxu0
        %v1958 = vpop.f32.mrb[0].mxu0
        %1959 = vdwg.mxu0
        %1960 = vmatprep.subr.bf16.mxu0 0
        %1961 = vmatpush1.bf16.msra.mxu0 %v1853
        %1962 = vmatprep.subr.bf16.mxu0 0
        %1963 = vmatpush1.bf16.msra.mxu0 %v1856
        %1964 = vmatprep.subr.bf16.mxu0 0
        %1965 = vmatpush1.bf16.msra.mxu0 %v1859
        %1966 = vmatprep.subr.bf16.mxu0 0
        %1967 = vmatpush1.bf16.msra.mxu0 %v1862
        %1968 = vmatprep.subr.bf16.mxu0 0
        %1969 = vmatpush1.bf16.msra.mxu0 %v1865
        %1970 = vmatprep.subr.bf16.mxu0 0
        %1971 = vmatpush1.bf16.msra.mxu0 %v1868
        %1972 = vmatprep.subr.bf16.mxu0 0
        %1973 = vmatpush1.bf16.msra.mxu0 %v1871
        %1974 = vmatprep.subr.bf16.mxu0 0
        %1975 = vmatpush1.bf16.msra.mxu0 %v1874
        %1976 = vmatprep.subr.bf16.mxu0 0
        %1977 = vmatpush1.bf16.msra.mxu0 0
        %1978 = vmatprep.subr.bf16.mxu0 0
        %1979 = vmatpush1.bf16.msra.mxu0 0
        %1980 = vmatprep.subr.bf16.mxu0 0
        %1981 = vmatpush1.bf16.msra.mxu0 0
        %1982 = vmatprep.subr.bf16.mxu0 0
        %1983 = vmatpush1.bf16.msra.mxu0 0
        %1984 = vmatprep.subr.bf16.mxu0 0
        %1985 = vmatpush1.bf16.msra.mxu0 0
        %1986 = vmatprep.subr.bf16.mxu0 0
        %1987 = vmatpush1.bf16.msra.mxu0 0
        %1988 = vmatprep.subr.bf16.mxu0 0
        %1989 = vmatpush1.bf16.msra.mxu0 0
        %1990 = vmatprep.subr.bf16.mxu0 0
        %1991 = vmatpush1.bf16.msra.mxu0 0
        %1992 = vmatprep.mubr.bf16.mxu0 0
        %1993 = vmatmul.mubr.bf16.gmra.mrb[0].mxu0 %v1719
        %v1994 = vpop.f32.mrb[0].mxu0
        %v1995 = vadd.f32 %v1767, %v1994
        %v1996 = vpop.f32.mrb[0].mxu0
        %v1997 = vpop.f32.mrb[0].mxu0
        %v1998 = vadd.f32 %v1767, %v1997
        %v1999 = vpop.f32.mrb[0].mxu0
        %2000 = vmatprep.mubr.bf16.mxu0 0
        %2001 = vmatmul.mubr.bf16.gmra.mrb[0].mxu0 %v1720
        %v2002 = vpop.f32.mrb[0].mxu0
        %v2003 = vadd.f32 %v1767, %v2002
        %v2004 = vpop.f32.mrb[0].mxu0
        %v2005 = vpop.f32.mrb[0].mxu0
        %v2006 = vadd.f32 %v1767, %v2005
        %v2007 = vpop.f32.mrb[0].mxu0
        %2008 = vmatprep.mubr.bf16.mxu0 0
        %2009 = vmatmul.mubr.bf16.gmra.mrb[0].mxu0 %v1721
        %v2010 = vpop.f32.mrb[0].mxu0
        %v2011 = vadd.f32 %v1767, %v2010
        %v2012 = vpop.f32.mrb[0].mxu0
        %v2013 = vpop.f32.mrb[0].mxu0
        %v2014 = vpop.f32.mrb[0].mxu0
        %2015 = vdwg.mxu0
        %v2016 = vmul.f32 %v1934, 0.17677669
        %v2017 = vmul.f32 %v1938, 0.17677669
        %v2018 = vmul.f32 %v1944, 0.17677669
        %v2019 = vmul.f32 %v1948, 0.17677669
        %v2020 = vmul.f32 %v1954, 0.17677669
        %v2026 = vcombine.high %v2016, %v2016
        %v2028 = vunpack.c.l.s4 1966171168
        %v2029 = vunpack.c.0.s8 %v2028
        %v2030 = vlaneseq
        %v2031 = vshrl.u32 %v2030, 7
        %v2032 = vsub.s32 %v2029, %v2031
        %v2033 = vrot.slane %v2016, %v2032
        %v2035 = vunpack.c.l.s4 1966171168
        %v2036 = vunpack.c.0.s8 %v2035
        %v2037 = vlaneseq
        %v2038 = vshrl.u32 %v2037, 7
        %v2039 = vsub.s32 %v2036, %v2038
        %v2040 = vrot.slane %v2026, %v2039
        %v2041 = vcombine.high %v2033, %v2033
        %v2042 = vcombine.high %v2040, %v2040
        %v2044 = vunpack.c.l.s4 1966171168
        %v2045 = vunpack.c.0.s8 %v2044
        %v2046 = vlaneseq
        %v2047 = vshrl.u32 %v2046, 7
        %v2048 = vsub.s32 %v2045, %v2047
        %v2049 = vrot.slane %v2033, %v2048
        %v2051 = vunpack.c.l.s4 1966171168
        %v2052 = vunpack.c.0.s8 %v2051
        %v2053 = vlaneseq
        %v2054 = vshrl.u32 %v2053, 7
        %v2055 = vsub.s32 %v2052, %v2054
        %v2056 = vrot.slane %v2040, %v2055
        %v2058 = vunpack.c.l.s4 1966171168
        %v2059 = vunpack.c.0.s8 %v2058
        %v2060 = vlaneseq
        %v2061 = vshrl.u32 %v2060, 7
        %v2062 = vsub.s32 %v2059, %v2061
        %v2063 = vrot.slane %v2041, %v2062
        %v2065 = vunpack.c.l.s4 1966171168
        %v2066 = vunpack.c.0.s8 %v2065
        %v2067 = vlaneseq
        %v2068 = vshrl.u32 %v2067, 7
        %v2069 = vsub.s32 %v2066, %v2068
        %v2070 = vrot.slane %v2042, %v2069
        %v2071 = vcombine.high %v2049, %v2049
        %v2072 = vcombine.high %v2056, %v2056
        %v2073 = vcombine.high %v2063, %v2063
        %v2074 = vcombine.high %v2070, %v2070
        %v2075 = vcombine.high %v2017, %v2017
        %v2077 = vunpack.c.l.s4 1966171168
        %v2078 = vunpack.c.0.s8 %v2077
        %v2079 = vlaneseq
        %v2080 = vshrl.u32 %v2079, 7
        %v2081 = vsub.s32 %v2078, %v2080
        %v2082 = vrot.slane %v2017, %v2081
        %v2084 = vunpack.c.l.s4 1966171168
        %v2085 = vunpack.c.0.s8 %v2084
        %v2086 = vlaneseq
        %v2087 = vshrl.u32 %v2086, 7
        %v2088 = vsub.s32 %v2085, %v2087
        %v2089 = vrot.slane %v2075, %v2088
        %v2090 = vcombine.high %v2082, %v2082
        %v2091 = vcombine.high %v2089, %v2089
        %v2093 = vunpack.c.l.s4 1966171168
        %v2094 = vunpack.c.0.s8 %v2093
        %v2095 = vlaneseq
        %v2096 = vshrl.u32 %v2095, 7
        %v2097 = vsub.s32 %v2094, %v2096
        %v2098 = vrot.slane %v2082, %v2097
        %v2100 = vunpack.c.l.s4 1966171168
        %v2101 = vunpack.c.0.s8 %v2100
        %v2102 = vlaneseq
        %v2103 = vshrl.u32 %v2102, 7
        %v2104 = vsub.s32 %v2101, %v2103
        %v2105 = vrot.slane %v2089, %v2104
        %v2107 = vunpack.c.l.s4 1966171168
        %v2108 = vunpack.c.0.s8 %v2107
        %v2109 = vlaneseq
        %v2110 = vshrl.u32 %v2109, 7
        %v2111 = vsub.s32 %v2108, %v2110
        %v2112 = vrot.slane %v2090, %v2111
        %v2114 = vunpack.c.l.s4 1966171168
        %v2115 = vunpack.c.0.s8 %v2114
        %v2116 = vlaneseq
        %v2117 = vshrl.u32 %v2116, 7
        %v2118 = vsub.s32 %v2115, %v2117
        %v2119 = vrot.slane %v2091, %v2118
        %v2120 = vcombine.high %v2098, %v2098
        %v2121 = vcombine.high %v2105, %v2105
        %v2122 = vcombine.high %v2112, %v2112
        %v2123 = vcombine.high %v2119, %v2119
        %v2124 = vcombine.high %v2018, %v2018
        %v2126 = vunpack.c.l.s4 1966171168
        %v2127 = vunpack.c.0.s8 %v2126
        %v2128 = vlaneseq
        %v2129 = vshrl.u32 %v2128, 7
        %v2130 = vsub.s32 %v2127, %v2129
        %v2131 = vrot.slane %v2018, %v2130
        %v2133 = vunpack.c.l.s4 1966171168
        %v2134 = vunpack.c.0.s8 %v2133
        %v2135 = vlaneseq
        %v2136 = vshrl.u32 %v2135, 7
        %v2137 = vsub.s32 %v2134, %v2136
        %v2138 = vrot.slane %v2124, %v2137
        %v2139 = vcombine.high %v2131, %v2131
        %v2140 = vcombine.high %v2138, %v2138
        %v2142 = vunpack.c.l.s4 1966171168
        %v2143 = vunpack.c.0.s8 %v2142
        %v2144 = vlaneseq
        %v2145 = vshrl.u32 %v2144, 7
        %v2146 = vsub.s32 %v2143, %v2145
        %v2147 = vrot.slane %v2131, %v2146
        %v2149 = vunpack.c.l.s4 1966171168
        %v2150 = vunpack.c.0.s8 %v2149
        %v2151 = vlaneseq
        %v2152 = vshrl.u32 %v2151, 7
        %v2153 = vsub.s32 %v2150, %v2152
        %v2154 = vrot.slane %v2138, %v2153
        %v2156 = vunpack.c.l.s4 1966171168
        %v2157 = vunpack.c.0.s8 %v2156
        %v2158 = vlaneseq
        %v2159 = vshrl.u32 %v2158, 7
        %v2160 = vsub.s32 %v2157, %v2159
        %v2161 = vrot.slane %v2139, %v2160
        %v2163 = vunpack.c.l.s4 1966171168
        %v2164 = vunpack.c.0.s8 %v2163
        %v2165 = vlaneseq
        %v2166 = vshrl.u32 %v2165, 7
        %v2167 = vsub.s32 %v2164, %v2166
        %v2168 = vrot.slane %v2140, %v2167
        %v2169 = vcombine.high %v2147, %v2147
        %v2170 = vcombine.high %v2154, %v2154
        %v2171 = vcombine.high %v2161, %v2161
        %v2172 = vcombine.high %v2168, %v2168
        %v2173 = vcombine.high %v2019, %v2019
        %v2175 = vunpack.c.l.s4 1966171168
        %v2176 = vunpack.c.0.s8 %v2175
        %v2177 = vlaneseq
        %v2178 = vshrl.u32 %v2177, 7
        %v2179 = vsub.s32 %v2176, %v2178
        %v2180 = vrot.slane %v2019, %v2179
        %v2182 = vunpack.c.l.s4 1966171168
        %v2183 = vunpack.c.0.s8 %v2182
        %v2184 = vlaneseq
        %v2185 = vshrl.u32 %v2184, 7
        %v2186 = vsub.s32 %v2183, %v2185
        %v2187 = vrot.slane %v2173, %v2186
        %v2188 = vcombine.high %v2180, %v2180
        %v2189 = vcombine.high %v2187, %v2187
        %v2191 = vunpack.c.l.s4 1966171168
        %v2192 = vunpack.c.0.s8 %v2191
        %v2193 = vlaneseq
        %v2194 = vshrl.u32 %v2193, 7
        %v2195 = vsub.s32 %v2192, %v2194
        %v2196 = vrot.slane %v2180, %v2195
        %v2198 = vunpack.c.l.s4 1966171168
        %v2199 = vunpack.c.0.s8 %v2198
        %v2200 = vlaneseq
        %v2201 = vshrl.u32 %v2200, 7
        %v2202 = vsub.s32 %v2199, %v2201
        %v2203 = vrot.slane %v2187, %v2202
        %v2205 = vunpack.c.l.s4 1966171168
        %v2206 = vunpack.c.0.s8 %v2205
        %v2207 = vlaneseq
        %v2208 = vshrl.u32 %v2207, 7
        %v2209 = vsub.s32 %v2206, %v2208
        %v2210 = vrot.slane %v2188, %v2209
        %v2212 = vunpack.c.l.s4 1966171168
        %v2213 = vunpack.c.0.s8 %v2212
        %v2214 = vlaneseq
        %v2215 = vshrl.u32 %v2214, 7
        %v2216 = vsub.s32 %v2213, %v2215
        %v2217 = vrot.slane %v2189, %v2216
        %v2218 = vcombine.high %v2196, %v2196
        %v2219 = vcombine.high %v2203, %v2203
        %v2220 = vcombine.high %v2210, %v2210
        %v2221 = vcombine.high %v2217, %v2217
        %v2223 = vunpack.c.l.s4 1966171168
        %v2224 = vunpack.c.0.s8 %v2223
        %v2225 = vlaneseq
        %v2226 = vshrl.u32 %v2225, 7
        %v2227 = vsub.s32 %v2224, %v2226
        %v2228 = vrot.slane %v2020, %v2227
        %v2229 = vcombine.high %v2228, %v2228
        %v2231 = vunpack.c.l.s4 1966171168
        %v2232 = vunpack.c.0.s8 %v2231
        %v2233 = vlaneseq
        %v2234 = vshrl.u32 %v2233, 7
        %v2235 = vsub.s32 %v2232, %v2234
        %v2236 = vrot.slane %v2228, %v2235
        %v2238 = vunpack.c.l.s4 1966171168
        %v2239 = vunpack.c.0.s8 %v2238
        %v2240 = vlaneseq
        %v2241 = vshrl.u32 %v2240, 7
        %v2242 = vsub.s32 %v2239, %v2241
        %v2243 = vrot.slane %v2229, %v2242
        %v2249 = vcombine.high %v1936, %v1936
        %v2251 = vunpack.c.l.s4 1966171168
        %v2252 = vunpack.c.0.s8 %v2251
        %v2253 = vlaneseq
        %v2254 = vshrl.u32 %v2253, 7
        %v2255 = vsub.s32 %v2252, %v2254
        %v2256 = vrot.slane %v1936, %v2255
        %v2258 = vunpack.c.l.s4 1966171168
        %v2259 = vunpack.c.0.s8 %v2258
        %v2260 = vlaneseq
        %v2261 = vshrl.u32 %v2260, 7
        %v2262 = vsub.s32 %v2259, %v2261
        %v2263 = vrot.slane %v2249, %v2262
        %v2264 = vcombine.high %v2256, %v2256
        %v2265 = vcombine.high %v2263, %v2263
        %v2267 = vunpack.c.l.s4 1966171168
        %v2268 = vunpack.c.0.s8 %v2267
        %v2269 = vlaneseq
        %v2270 = vshrl.u32 %v2269, 7
        %v2271 = vsub.s32 %v2268, %v2270
        %v2272 = vrot.slane %v2256, %v2271
        %v2274 = vunpack.c.l.s4 1966171168
        %v2275 = vunpack.c.0.s8 %v2274
        %v2276 = vlaneseq
        %v2277 = vshrl.u32 %v2276, 7
        %v2278 = vsub.s32 %v2275, %v2277
        %v2279 = vrot.slane %v2263, %v2278
        %v2281 = vunpack.c.l.s4 1966171168
        %v2282 = vunpack.c.0.s8 %v2281
        %v2283 = vlaneseq
        %v2284 = vshrl.u32 %v2283, 7
        %v2285 = vsub.s32 %v2282, %v2284
        %v2286 = vrot.slane %v2264, %v2285
        %v2288 = vunpack.c.l.s4 1966171168
        %v2289 = vunpack.c.0.s8 %v2288
        %v2290 = vlaneseq
        %v2291 = vshrl.u32 %v2290, 7
        %v2292 = vsub.s32 %v2289, %v2291
        %v2293 = vrot.slane %v2265, %v2292
        %v2294 = vcombine.high %v2272, %v2272
        %v2295 = vcombine.high %v2279, %v2279
        %v2296 = vcombine.high %v2286, %v2286
        %v2297 = vcombine.high %v2293, %v2293
        %v2298 = vcombine.high %v1940, %v1940
        %v2300 = vunpack.c.l.s4 1966171168
        %v2301 = vunpack.c.0.s8 %v2300
        %v2302 = vlaneseq
        %v2303 = vshrl.u32 %v2302, 7
        %v2304 = vsub.s32 %v2301, %v2303
        %v2305 = vrot.slane %v1940, %v2304
        %v2307 = vunpack.c.l.s4 1966171168
        %v2308 = vunpack.c.0.s8 %v2307
        %v2309 = vlaneseq
        %v2310 = vshrl.u32 %v2309, 7
        %v2311 = vsub.s32 %v2308, %v2310
        %v2312 = vrot.slane %v2298, %v2311
        %v2313 = vcombine.high %v2305, %v2305
        %v2314 = vcombine.high %v2312, %v2312
        %v2316 = vunpack.c.l.s4 1966171168
        %v2317 = vunpack.c.0.s8 %v2316
        %v2318 = vlaneseq
        %v2319 = vshrl.u32 %v2318, 7
        %v2320 = vsub.s32 %v2317, %v2319
        %v2321 = vrot.slane %v2305, %v2320
        %v2323 = vunpack.c.l.s4 1966171168
        %v2324 = vunpack.c.0.s8 %v2323
        %v2325 = vlaneseq
        %v2326 = vshrl.u32 %v2325, 7
        %v2327 = vsub.s32 %v2324, %v2326
        %v2328 = vrot.slane %v2312, %v2327
        %v2330 = vunpack.c.l.s4 1966171168
        %v2331 = vunpack.c.0.s8 %v2330
        %v2332 = vlaneseq
        %v2333 = vshrl.u32 %v2332, 7
        %v2334 = vsub.s32 %v2331, %v2333
        %v2335 = vrot.slane %v2313, %v2334
        %v2337 = vunpack.c.l.s4 1966171168
        %v2338 = vunpack.c.0.s8 %v2337
        %v2339 = vlaneseq
        %v2340 = vshrl.u32 %v2339, 7
        %v2341 = vsub.s32 %v2338, %v2340
        %v2342 = vrot.slane %v2314, %v2341
        %v2343 = vcombine.high %v2321, %v2321
        %v2344 = vcombine.high %v2328, %v2328
        %v2345 = vcombine.high %v2335, %v2335
        %v2346 = vcombine.high %v2342, %v2342
        %v2347 = vcombine.high %v1946, %v1946
        %v2349 = vunpack.c.l.s4 1966171168
        %v2350 = vunpack.c.0.s8 %v2349
        %v2351 = vlaneseq
        %v2352 = vshrl.u32 %v2351, 7
        %v2353 = vsub.s32 %v2350, %v2352
        %v2354 = vrot.slane %v1946, %v2353
        %v2356 = vunpack.c.l.s4 1966171168
        %v2357 = vunpack.c.0.s8 %v2356
        %v2358 = vlaneseq
        %v2359 = vshrl.u32 %v2358, 7
        %v2360 = vsub.s32 %v2357, %v2359
        %v2361 = vrot.slane %v2347, %v2360
        %v2362 = vcombine.high %v2354, %v2354
        %v2363 = vcombine.high %v2361, %v2361
        %v2365 = vunpack.c.l.s4 1966171168
        %v2366 = vunpack.c.0.s8 %v2365
        %v2367 = vlaneseq
        %v2368 = vshrl.u32 %v2367, 7
        %v2369 = vsub.s32 %v2366, %v2368
        %v2370 = vrot.slane %v2354, %v2369
        %v2372 = vunpack.c.l.s4 1966171168
        %v2373 = vunpack.c.0.s8 %v2372
        %v2374 = vlaneseq
        %v2375 = vshrl.u32 %v2374, 7
        %v2376 = vsub.s32 %v2373, %v2375
        %v2377 = vrot.slane %v2361, %v2376
        %v2379 = vunpack.c.l.s4 1966171168
        %v2380 = vunpack.c.0.s8 %v2379
        %v2381 = vlaneseq
        %v2382 = vshrl.u32 %v2381, 7
        %v2383 = vsub.s32 %v2380, %v2382
        %v2384 = vrot.slane %v2362, %v2383
        %v2386 = vunpack.c.l.s4 1966171168
        %v2387 = vunpack.c.0.s8 %v2386
        %v2388 = vlaneseq
        %v2389 = vshrl.u32 %v2388, 7
        %v2390 = vsub.s32 %v2387, %v2389
        %v2391 = vrot.slane %v2363, %v2390
        %v2392 = vcombine.high %v2370, %v2370
        %v2393 = vcombine.high %v2377, %v2377
        %v2394 = vcombine.high %v2384, %v2384
        %v2395 = vcombine.high %v2391, %v2391
        %v2396 = vcombine.high %v1950, %v1950
        %v2398 = vunpack.c.l.s4 1966171168
        %v2399 = vunpack.c.0.s8 %v2398
        %v2400 = vlaneseq
        %v2401 = vshrl.u32 %v2400, 7
        %v2402 = vsub.s32 %v2399, %v2401
        %v2403 = vrot.slane %v1950, %v2402
        %v2405 = vunpack.c.l.s4 1966171168
        %v2406 = vunpack.c.0.s8 %v2405
        %v2407 = vlaneseq
        %v2408 = vshrl.u32 %v2407, 7
        %v2409 = vsub.s32 %v2406, %v2408
        %v2410 = vrot.slane %v2396, %v2409
        %v2411 = vcombine.high %v2403, %v2403
        %v2412 = vcombine.high %v2410, %v2410
        %v2414 = vunpack.c.l.s4 1966171168
        %v2415 = vunpack.c.0.s8 %v2414
        %v2416 = vlaneseq
        %v2417 = vshrl.u32 %v2416, 7
        %v2418 = vsub.s32 %v2415, %v2417
        %v2419 = vrot.slane %v2403, %v2418
        %v2421 = vunpack.c.l.s4 1966171168
        %v2422 = vunpack.c.0.s8 %v2421
        %v2423 = vlaneseq
        %v2424 = vshrl.u32 %v2423, 7
        %v2425 = vsub.s32 %v2422, %v2424
        %v2426 = vrot.slane %v2410, %v2425
        %v2428 = vunpack.c.l.s4 1966171168
        %v2429 = vunpack.c.0.s8 %v2428
        %v2430 = vlaneseq
        %v2431 = vshrl.u32 %v2430, 7
        %v2432 = vsub.s32 %v2429, %v2431
        %v2433 = vrot.slane %v2411, %v2432
        %v2435 = vunpack.c.l.s4 1966171168
        %v2436 = vunpack.c.0.s8 %v2435
        %v2437 = vlaneseq
        %v2438 = vshrl.u32 %v2437, 7
        %v2439 = vsub.s32 %v2436, %v2438
        %v2440 = vrot.slane %v2412, %v2439
        %v2441 = vcombine.high %v2419, %v2419
        %v2442 = vcombine.high %v2426, %v2426
        %v2443 = vcombine.high %v2433, %v2433
        %v2444 = vcombine.high %v2440, %v2440
        %v2446 = vunpack.c.l.s4 1966171168
        %v2447 = vunpack.c.0.s8 %v2446
        %v2448 = vlaneseq
        %v2449 = vshrl.u32 %v2448, 7
        %v2450 = vsub.s32 %v2447, %v2449
        %v2451 = vrot.slane %v1956, %v2450
        %v2452 = vcombine.high %v2451, %v2451
        %v2454 = vunpack.c.l.s4 1966171168
        %v2455 = vunpack.c.0.s8 %v2454
        %v2456 = vlaneseq
        %v2457 = vshrl.u32 %v2456, 7
        %v2458 = vsub.s32 %v2455, %v2457
        %v2459 = vrot.slane %v2451, %v2458
        %v2461 = vunpack.c.l.s4 1966171168
        %v2462 = vunpack.c.0.s8 %v2461
        %v2463 = vlaneseq
        %v2464 = vshrl.u32 %v2463, 7
        %v2465 = vsub.s32 %v2462, %v2464
        %v2466 = vrot.slane %v2452, %v2465
        %v2472 = vcombine.high %v1995, %v1995
        %v2474 = vunpack.c.l.s4 1966171168
        %v2475 = vunpack.c.0.s8 %v2474
        %v2476 = vlaneseq
        %v2477 = vshrl.u32 %v2476, 7
        %v2478 = vsub.s32 %v2475, %v2477
        %v2479 = vrot.slane %v1995, %v2478
        %v2481 = vunpack.c.l.s4 1966171168
        %v2482 = vunpack.c.0.s8 %v2481
        %v2483 = vlaneseq
        %v2484 = vshrl.u32 %v2483, 7
        %v2485 = vsub.s32 %v2482, %v2484
        %v2486 = vrot.slane %v2472, %v2485
        %v2487 = vcombine.high %v2479, %v2479
        %v2488 = vcombine.high %v2486, %v2486
        %v2490 = vunpack.c.l.s4 1966171168
        %v2491 = vunpack.c.0.s8 %v2490
        %v2492 = vlaneseq
        %v2493 = vshrl.u32 %v2492, 7
        %v2494 = vsub.s32 %v2491, %v2493
        %v2495 = vrot.slane %v2479, %v2494
        %v2497 = vunpack.c.l.s4 1966171168
        %v2498 = vunpack.c.0.s8 %v2497
        %v2499 = vlaneseq
        %v2500 = vshrl.u32 %v2499, 7
        %v2501 = vsub.s32 %v2498, %v2500
        %v2502 = vrot.slane %v2486, %v2501
        %v2504 = vunpack.c.l.s4 1966171168
        %v2505 = vunpack.c.0.s8 %v2504
        %v2506 = vlaneseq
        %v2507 = vshrl.u32 %v2506, 7
        %v2508 = vsub.s32 %v2505, %v2507
        %v2509 = vrot.slane %v2487, %v2508
        %v2511 = vunpack.c.l.s4 1966171168
        %v2512 = vunpack.c.0.s8 %v2511
        %v2513 = vlaneseq
        %v2514 = vshrl.u32 %v2513, 7
        %v2515 = vsub.s32 %v2512, %v2514
        %v2516 = vrot.slane %v2488, %v2515
        %v2517 = vcombine.high %v2495, %v2495
        %v2518 = vcombine.high %v2502, %v2502
        %v2519 = vcombine.high %v2509, %v2509
        %v2520 = vcombine.high %v2516, %v2516
        %v2521 = vcombine.high %v1998, %v1998
        %v2523 = vunpack.c.l.s4 1966171168
        %v2524 = vunpack.c.0.s8 %v2523
        %v2525 = vlaneseq
        %v2526 = vshrl.u32 %v2525, 7
        %v2527 = vsub.s32 %v2524, %v2526
        %v2528 = vrot.slane %v1998, %v2527
        %v2530 = vunpack.c.l.s4 1966171168
        %v2531 = vunpack.c.0.s8 %v2530
        %v2532 = vlaneseq
        %v2533 = vshrl.u32 %v2532, 7
        %v2534 = vsub.s32 %v2531, %v2533
        %v2535 = vrot.slane %v2521, %v2534
        %v2536 = vcombine.high %v2528, %v2528
        %v2537 = vcombine.high %v2535, %v2535
        %v2539 = vunpack.c.l.s4 1966171168
        %v2540 = vunpack.c.0.s8 %v2539
        %v2541 = vlaneseq
        %v2542 = vshrl.u32 %v2541, 7
        %v2543 = vsub.s32 %v2540, %v2542
        %v2544 = vrot.slane %v2528, %v2543
        %v2546 = vunpack.c.l.s4 1966171168
        %v2547 = vunpack.c.0.s8 %v2546
        %v2548 = vlaneseq
        %v2549 = vshrl.u32 %v2548, 7
        %v2550 = vsub.s32 %v2547, %v2549
        %v2551 = vrot.slane %v2535, %v2550
        %v2553 = vunpack.c.l.s4 1966171168
        %v2554 = vunpack.c.0.s8 %v2553
        %v2555 = vlaneseq
        %v2556 = vshrl.u32 %v2555, 7
        %v2557 = vsub.s32 %v2554, %v2556
        %v2558 = vrot.slane %v2536, %v2557
        %v2560 = vunpack.c.l.s4 1966171168
        %v2561 = vunpack.c.0.s8 %v2560
        %v2562 = vlaneseq
        %v2563 = vshrl.u32 %v2562, 7
        %v2564 = vsub.s32 %v2561, %v2563
        %v2565 = vrot.slane %v2537, %v2564
        %v2566 = vcombine.high %v2544, %v2544
        %v2567 = vcombine.high %v2551, %v2551
        %v2568 = vcombine.high %v2558, %v2558
        %v2569 = vcombine.high %v2565, %v2565
        %v2570 = vcombine.high %v2003, %v2003
        %v2572 = vunpack.c.l.s4 1966171168
        %v2573 = vunpack.c.0.s8 %v2572
        %v2574 = vlaneseq
        %v2575 = vshrl.u32 %v2574, 7
        %v2576 = vsub.s32 %v2573, %v2575
        %v2577 = vrot.slane %v2003, %v2576
        %v2579 = vunpack.c.l.s4 1966171168
        %v2580 = vunpack.c.0.s8 %v2579
        %v2581 = vlaneseq
        %v2582 = vshrl.u32 %v2581, 7
        %v2583 = vsub.s32 %v2580, %v2582
        %v2584 = vrot.slane %v2570, %v2583
        %v2585 = vcombine.high %v2577, %v2577
        %v2586 = vcombine.high %v2584, %v2584
        %v2588 = vunpack.c.l.s4 1966171168
        %v2589 = vunpack.c.0.s8 %v2588
        %v2590 = vlaneseq
        %v2591 = vshrl.u32 %v2590, 7
        %v2592 = vsub.s32 %v2589, %v2591
        %v2593 = vrot.slane %v2577, %v2592
        %v2595 = vunpack.c.l.s4 1966171168
        %v2596 = vunpack.c.0.s8 %v2595
        %v2597 = vlaneseq
        %v2598 = vshrl.u32 %v2597, 7
        %v2599 = vsub.s32 %v2596, %v2598
        %v2600 = vrot.slane %v2584, %v2599
        %v2602 = vunpack.c.l.s4 1966171168
        %v2603 = vunpack.c.0.s8 %v2602
        %v2604 = vlaneseq
        %v2605 = vshrl.u32 %v2604, 7
        %v2606 = vsub.s32 %v2603, %v2605
        %v2607 = vrot.slane %v2585, %v2606
        %v2609 = vunpack.c.l.s4 1966171168
        %v2610 = vunpack.c.0.s8 %v2609
        %v2611 = vlaneseq
        %v2612 = vshrl.u32 %v2611, 7
        %v2613 = vsub.s32 %v2610, %v2612
        %v2614 = vrot.slane %v2586, %v2613
        %v2615 = vcombine.high %v2593, %v2593
        %v2616 = vcombine.high %v2600, %v2600
        %v2617 = vcombine.high %v2607, %v2607
        %v2618 = vcombine.high %v2614, %v2614
        %v2619 = vcombine.high %v2006, %v2006
        %v2621 = vunpack.c.l.s4 1966171168
        %v2622 = vunpack.c.0.s8 %v2621
        %v2623 = vlaneseq
        %v2624 = vshrl.u32 %v2623, 7
        %v2625 = vsub.s32 %v2622, %v2624
        %v2626 = vrot.slane %v2006, %v2625
        %v2628 = vunpack.c.l.s4 1966171168
        %v2629 = vunpack.c.0.s8 %v2628
        %v2630 = vlaneseq
        %v2631 = vshrl.u32 %v2630, 7
        %v2632 = vsub.s32 %v2629, %v2631
        %v2633 = vrot.slane %v2619, %v2632
        %v2634 = vcombine.high %v2626, %v2626
        %v2635 = vcombine.high %v2633, %v2633
        %v2637 = vunpack.c.l.s4 1966171168
        %v2638 = vunpack.c.0.s8 %v2637
        %v2639 = vlaneseq
        %v2640 = vshrl.u32 %v2639, 7
        %v2641 = vsub.s32 %v2638, %v2640
        %v2642 = vrot.slane %v2626, %v2641
        %v2644 = vunpack.c.l.s4 1966171168
        %v2645 = vunpack.c.0.s8 %v2644
        %v2646 = vlaneseq
        %v2647 = vshrl.u32 %v2646, 7
        %v2648 = vsub.s32 %v2645, %v2647
        %v2649 = vrot.slane %v2633, %v2648
        %v2651 = vunpack.c.l.s4 1966171168
        %v2652 = vunpack.c.0.s8 %v2651
        %v2653 = vlaneseq
        %v2654 = vshrl.u32 %v2653, 7
        %v2655 = vsub.s32 %v2652, %v2654
        %v2656 = vrot.slane %v2634, %v2655
        %v2658 = vunpack.c.l.s4 1966171168
        %v2659 = vunpack.c.0.s8 %v2658
        %v2660 = vlaneseq
        %v2661 = vshrl.u32 %v2660, 7
        %v2662 = vsub.s32 %v2659, %v2661
        %v2663 = vrot.slane %v2635, %v2662
        %v2664 = vcombine.high %v2642, %v2642
        %v2665 = vcombine.high %v2649, %v2649
        %v2666 = vcombine.high %v2656, %v2656
        %v2667 = vcombine.high %v2663, %v2663
        %v2669 = vunpack.c.l.s4 1966171168
        %v2670 = vunpack.c.0.s8 %v2669
        %v2671 = vlaneseq
        %v2672 = vshrl.u32 %v2671, 7
        %v2673 = vsub.s32 %v2670, %v2672
        %v2674 = vrot.slane %v2011, %v2673
        %v2675 = vcombine.high %v2674, %v2674
        %v2677 = vunpack.c.l.s4 1966171168
        %v2678 = vunpack.c.0.s8 %v2677
        %v2679 = vlaneseq
        %v2680 = vshrl.u32 %v2679, 7
        %v2681 = vsub.s32 %v2678, %v2680
        %v2682 = vrot.slane %v2674, %v2681
        %v2684 = vunpack.c.l.s4 1966171168
        %v2685 = vunpack.c.0.s8 %v2684
        %v2686 = vlaneseq
        %v2687 = vshrl.u32 %v2686, 7
        %v2688 = vsub.s32 %v2685, %v2687
        %v2689 = vrot.slane %v2675, %v2688
        %v2690 = vld [vmem:[%s901] sm:$0xf]
        %v2691 = vld [vmem:[%s901 + $0x4] sm:$0xf]
        %v2692 = vld [vmem:[%s901 + $0x8] sm:$0xf]
        %v2693 = vld [vmem:[%s901 + $0xc] sm:$0xf]
        %v2694 = vld [vmem:[%s901 + $0x10] sm:$0xf]
        %v2695 = vld [vmem:[%s901 + $0x14] sm:$0xf]
        %v2696 = vld [vmem:[%s901 + $0x18] sm:$0xf]
        %v2697 = vld [vmem:[%s901 + $0x1c] sm:$0xf]
        %v2698 = vld [vmem:[%s901 + $0x20] sm:$0xf]
        %v2699 = vld [vmem:[%s901 + $0x24] sm:$0xf]
        %v2700 = vld [vmem:[%s901 + $0x28] sm:$0xf]
        %v2701 = vld [vmem:[%s901 + $0x2c] sm:$0xf]
        %v2702 = vld [vmem:[%s901 + $0x30] sm:$0xf]
        %v2703 = vld [vmem:[%s901 + $0x34] sm:$0xf]
        %v2704 = vld [vmem:[%s901 + $0x38] sm:$0xf]
        %v2705 = vld [vmem:[%s901 + $0x3c] sm:$0xf]
        %v2706 = vcombine.low %v2049, %v2063
        %v2707 = vcombine.low %v2071, %v2073
        %v2708 = vcombine.low %v2056, %v2070
        %v2709 = vcombine.low %v2072, %v2074
        %v2711 = vunpack.c.l.s4 1966171168
        %v2712 = vunpack.c.0.s8 %v2711
        %v2713 = vlaneseq
        %v2714 = vshrl.u32 %v2713, 7
        %v2715 = vsub.s32 %v2712, %v2714
        %v2716 = vrot.slane %v2706, %v2715
        %v2718 = vunpack.c.l.s4 1966171168
        %v2719 = vunpack.c.0.s8 %v2718
        %v2720 = vlaneseq
        %v2721 = vshrl.u32 %v2720, 7
        %v2722 = vsub.s32 %v2719, %v2721
        %v2723 = vrot.slane %v2707, %v2722
        %v2725 = vunpack.c.l.s4 1966171168
        %v2726 = vunpack.c.0.s8 %v2725
        %v2727 = vlaneseq
        %v2728 = vshrl.u32 %v2727, 7
        %v2729 = vsub.s32 %v2726, %v2728
        %v2730 = vrot.slane %v2708, %v2729
        %v2732 = vunpack.c.l.s4 1966171168
        %v2733 = vunpack.c.0.s8 %v2732
        %v2734 = vlaneseq
        %v2735 = vshrl.u32 %v2734, 7
        %v2736 = vsub.s32 %v2733, %v2735
        %v2737 = vrot.slane %v2709, %v2736
        %v2738 = vcombine.low %v2716, %v2723
        %v2739 = vcombine.low %v2730, %v2737
        %v2741 = vunpack.c.l.s4 1966171168
        %v2742 = vunpack.c.0.s8 %v2741
        %v2743 = vlaneseq
        %v2744 = vshrl.u32 %v2743, 7
        %v2745 = vsub.s32 %v2742, %v2744
        %v2746 = vrot.slane %v2738, %v2745
        %v2748 = vunpack.c.l.s4 1966171168
        %v2749 = vunpack.c.0.s8 %v2748
        %v2750 = vlaneseq
        %v2751 = vshrl.u32 %v2750, 7
        %v2752 = vsub.s32 %v2749, %v2751
        %v2753 = vrot.slane %v2739, %v2752
        %v2754 = vcombine.low %v2746, %v2753
        %v2755 = vcombine.low %v2098, %v2112
        %v2756 = vcombine.low %v2120, %v2122
        %v2757 = vcombine.low %v2105, %v2119
        %v2758 = vcombine.low %v2121, %v2123
        %v2760 = vunpack.c.l.s4 1966171168
        %v2761 = vunpack.c.0.s8 %v2760
        %v2762 = vlaneseq
        %v2763 = vshrl.u32 %v2762, 7
        %v2764 = vsub.s32 %v2761, %v2763
        %v2765 = vrot.slane %v2755, %v2764
        %v2767 = vunpack.c.l.s4 1966171168
        %v2768 = vunpack.c.0.s8 %v2767
        %v2769 = vlaneseq
        %v2770 = vshrl.u32 %v2769, 7
        %v2771 = vsub.s32 %v2768, %v2770
        %v2772 = vrot.slane %v2756, %v2771
        %v2774 = vunpack.c.l.s4 1966171168
        %v2775 = vunpack.c.0.s8 %v2774
        %v2776 = vlaneseq
        %v2777 = vshrl.u32 %v2776, 7
        %v2778 = vsub.s32 %v2775, %v2777
        %v2779 = vrot.slane %v2757, %v2778
        %v2781 = vunpack.c.l.s4 1966171168
        %v2782 = vunpack.c.0.s8 %v2781
        %v2783 = vlaneseq
        %v2784 = vshrl.u32 %v2783, 7
        %v2785 = vsub.s32 %v2782, %v2784
        %v2786 = vrot.slane %v2758, %v2785
        %v2787 = vcombine.low %v2765, %v2772
        %v2788 = vcombine.low %v2779, %v2786
        %v2790 = vunpack.c.l.s4 1966171168
        %v2791 = vunpack.c.0.s8 %v2790
        %v2792 = vlaneseq
        %v2793 = vshrl.u32 %v2792, 7
        %v2794 = vsub.s32 %v2791, %v2793
        %v2795 = vrot.slane %v2787, %v2794
        %v2797 = vunpack.c.l.s4 1966171168
        %v2798 = vunpack.c.0.s8 %v2797
        %v2799 = vlaneseq
        %v2800 = vshrl.u32 %v2799, 7
        %v2801 = vsub.s32 %v2798, %v2800
        %v2802 = vrot.slane %v2788, %v2801
        %v2803 = vcombine.low %v2795, %v2802
        %v2805 = vunpack.c.l.s4 1966171168
        %v2806 = vunpack.c.0.s8 %v2805
        %v2807 = vlaneseq
        %v2808 = vshrl.u32 %v2807, 7
        %v2809 = vsub.s32 %v2806, %v2808
        %v2810 = vrot.slane %v2147, %v2809
        %v2812 = vunpack.c.l.s4 1966171168
        %v2813 = vunpack.c.0.s8 %v2812
        %v2814 = vlaneseq
        %v2815 = vshrl.u32 %v2814, 7
        %v2816 = vsub.s32 %v2813, %v2815
        %v2817 = vrot.slane %v2810, %v2816
        %v2818 = vcombine.low %v2161, %v2169
        %v2819 = vcombine.low %v2171, %v2154
        %v2820 = vcombine.low %v2168, %v2170
        %v2821 = vcombine.low %v2172, %v2196
        %v2823 = vunpack.c.l.s4 1966171168
        %v2824 = vunpack.c.0.s8 %v2823
        %v2825 = vlaneseq
        %v2826 = vshrl.u32 %v2825, 7
        %v2827 = vsub.s32 %v2824, %v2826
        %v2828 = vrot.slane %v2818, %v2827
        %v2830 = vunpack.c.l.s4 1966171168
        %v2831 = vunpack.c.0.s8 %v2830
        %v2832 = vlaneseq
        %v2833 = vshrl.u32 %v2832, 7
        %v2834 = vsub.s32 %v2831, %v2833
        %v2835 = vrot.slane %v2819, %v2834
        %v2837 = vunpack.c.l.s4 1966171168
        %v2838 = vunpack.c.0.s8 %v2837
        %v2839 = vlaneseq
        %v2840 = vshrl.u32 %v2839, 7
        %v2841 = vsub.s32 %v2838, %v2840
        %v2842 = vrot.slane %v2820, %v2841
        %v2844 = vunpack.c.l.s4 1966171168
        %v2845 = vunpack.c.0.s8 %v2844
        %v2846 = vlaneseq
        %v2847 = vshrl.u32 %v2846, 7
        %v2848 = vsub.s32 %v2845, %v2847
        %v2849 = vrot.slane %v2821, %v2848
        %v2850 = vcombine.low %v2828, %v2835
        %v2851 = vcombine.low %v2842, %v2849
        %v2853 = vunpack.c.l.s4 1966171168
        %v2854 = vunpack.c.0.s8 %v2853
        %v2855 = vlaneseq
        %v2856 = vshrl.u32 %v2855, 7
        %v2857 = vsub.s32 %v2854, %v2856
        %v2858 = vrot.slane %v2850, %v2857
        %v2860 = vunpack.c.l.s4 1966171168
        %v2861 = vunpack.c.0.s8 %v2860
        %v2862 = vlaneseq
        %v2863 = vshrl.u32 %v2862, 7
        %v2864 = vsub.s32 %v2861, %v2863
        %v2865 = vrot.slane %v2851, %v2864
        %v2866 = vcombine.low %v2858, %v2865
        %v2867 = vcombine.low %v2210, %v2218
        %v2868 = vcombine.low %v2220, %v2203
        %v2869 = vcombine.low %v2217, %v2219
        %v2870 = vcombine.low %v2221, %v2236
        %v2872 = vunpack.c.l.s4 1966171168
        %v2873 = vunpack.c.0.s8 %v2872
        %v2874 = vlaneseq
        %v2875 = vshrl.u32 %v2874, 7
        %v2876 = vsub.s32 %v2873, %v2875
        %v2877 = vrot.slane %v2867, %v2876
        %v2879 = vunpack.c.l.s4 1966171168
        %v2880 = vunpack.c.0.s8 %v2879
        %v2881 = vlaneseq
        %v2882 = vshrl.u32 %v2881, 7
        %v2883 = vsub.s32 %v2880, %v2882
        %v2884 = vrot.slane %v2868, %v2883
        %v2886 = vunpack.c.l.s4 1966171168
        %v2887 = vunpack.c.0.s8 %v2886
        %v2888 = vlaneseq
        %v2889 = vshrl.u32 %v2888, 7
        %v2890 = vsub.s32 %v2887, %v2889
        %v2891 = vrot.slane %v2869, %v2890
        %v2893 = vunpack.c.l.s4 1966171168
        %v2894 = vunpack.c.0.s8 %v2893
        %v2895 = vlaneseq
        %v2896 = vshrl.u32 %v2895, 7
        %v2897 = vsub.s32 %v2894, %v2896
        %v2898 = vrot.slane %v2870, %v2897
        %v2899 = vcombine.low %v2877, %v2884
        %v2900 = vcombine.low %v2891, %v2898
        %v2902 = vunpack.c.l.s4 1966171168
        %v2903 = vunpack.c.0.s8 %v2902
        %v2904 = vlaneseq
        %v2905 = vshrl.u32 %v2904, 7
        %v2906 = vsub.s32 %v2903, %v2905
        %v2907 = vrot.slane %v2899, %v2906
        %v2909 = vunpack.c.l.s4 1966171168
        %v2910 = vunpack.c.0.s8 %v2909
        %v2911 = vlaneseq
        %v2912 = vshrl.u32 %v2911, 7
        %v2913 = vsub.s32 %v2910, %v2912
        %v2914 = vrot.slane %v2900, %v2913
        %v2915 = vcombine.low %v2907, %v2914
        %v2917 = vunpack.c.l.s4 1966171168
        %v2918 = vunpack.c.0.s8 %v2917
        %v2919 = vlaneseq
        %v2920 = vshrl.u32 %v2919, 7
        %v2921 = vsub.s32 %v2918, %v2920
        %v2922 = vrot.slane %v2243, %v2921
        %v2924 = vunpack.c.l.s4 1966171168
        %v2925 = vunpack.c.0.s8 %v2924
        %v2926 = vlaneseq
        %v2927 = vshrl.u32 %v2926, 7
        %v2928 = vsub.s32 %v2925, %v2927
        %v2929 = vrot.slane %v2922, %v2928
        %v2936 = vpack.c.bf16 %v2803, %v2754
        %v2937 = vpack.c.bf16 %v2817, %v2817
        %v2938 = vpack.c.bf16 %v2915, %v2866
        %v2939 = vpack.c.bf16 %v2929, %v2929
        %v2940 = vcombine.low %v2272, %v2286
        %v2941 = vcombine.low %v2294, %v2296
        %v2942 = vcombine.low %v2279, %v2293
        %v2943 = vcombine.low %v2295, %v2297
        %v2945 = vunpack.c.l.s4 1966171168
        %v2946 = vunpack.c.0.s8 %v2945
        %v2947 = vlaneseq
        %v2948 = vshrl.u32 %v2947, 7
        %v2949 = vsub.s32 %v2946, %v2948
        %v2950 = vrot.slane %v2940, %v2949
        %v2952 = vunpack.c.l.s4 1966171168
        %v2953 = vunpack.c.0.s8 %v2952
        %v2954 = vlaneseq
        %v2955 = vshrl.u32 %v2954, 7
        %v2956 = vsub.s32 %v2953, %v2955
        %v2957 = vrot.slane %v2941, %v2956
        %v2959 = vunpack.c.l.s4 1966171168
        %v2960 = vunpack.c.0.s8 %v2959
        %v2961 = vlaneseq
        %v2962 = vshrl.u32 %v2961, 7
        %v2963 = vsub.s32 %v2960, %v2962
        %v2964 = vrot.slane %v2942, %v2963
        %v2966 = vunpack.c.l.s4 1966171168
        %v2967 = vunpack.c.0.s8 %v2966
        %v2968 = vlaneseq
        %v2969 = vshrl.u32 %v2968, 7
        %v2970 = vsub.s32 %v2967, %v2969
        %v2971 = vrot.slane %v2943, %v2970
        %v2972 = vcombine.low %v2950, %v2957
        %v2973 = vcombine.low %v2964, %v2971
        %v2975 = vunpack.c.l.s4 1966171168
        %v2976 = vunpack.c.0.s8 %v2975
        %v2977 = vlaneseq
        %v2978 = vshrl.u32 %v2977, 7
        %v2979 = vsub.s32 %v2976, %v2978
        %v2980 = vrot.slane %v2972, %v2979
        %v2982 = vunpack.c.l.s4 1966171168
        %v2983 = vunpack.c.0.s8 %v2982
        %v2984 = vlaneseq
        %v2985 = vshrl.u32 %v2984, 7
        %v2986 = vsub.s32 %v2983, %v2985
        %v2987 = vrot.slane %v2973, %v2986
        %v2988 = vcombine.low %v2980, %v2987
        %v2989 = vcombine.low %v2321, %v2335
        %v2990 = vcombine.low %v2343, %v2345
        %v2991 = vcombine.low %v2328, %v2342
        %v2992 = vcombine.low %v2344, %v2346
        %v2994 = vunpack.c.l.s4 1966171168
        %v2995 = vunpack.c.0.s8 %v2994
        %v2996 = vlaneseq
        %v2997 = vshrl.u32 %v2996, 7
        %v2998 = vsub.s32 %v2995, %v2997
        %v2999 = vrot.slane %v2989, %v2998
        %v3001 = vunpack.c.l.s4 1966171168
        %v3002 = vunpack.c.0.s8 %v3001
        %v3003 = vlaneseq
        %v3004 = vshrl.u32 %v3003, 7
        %v3005 = vsub.s32 %v3002, %v3004
        %v3006 = vrot.slane %v2990, %v3005
        %v3008 = vunpack.c.l.s4 1966171168
        %v3009 = vunpack.c.0.s8 %v3008
        %v3010 = vlaneseq
        %v3011 = vshrl.u32 %v3010, 7
        %v3012 = vsub.s32 %v3009, %v3011
        %v3013 = vrot.slane %v2991, %v3012
        %v3015 = vunpack.c.l.s4 1966171168
        %v3016 = vunpack.c.0.s8 %v3015
        %v3017 = vlaneseq
        %v3018 = vshrl.u32 %v3017, 7
        %v3019 = vsub.s32 %v3016, %v3018
        %v3020 = vrot.slane %v2992, %v3019
        %v3021 = vcombine.low %v2999, %v3006
        %v3022 = vcombine.low %v3013, %v3020
        %v3024 = vunpack.c.l.s4 1966171168
        %v3025 = vunpack.c.0.s8 %v3024
        %v3026 = vlaneseq
        %v3027 = vshrl.u32 %v3026, 7
        %v3028 = vsub.s32 %v3025, %v3027
        %v3029 = vrot.slane %v3021, %v3028
        %v3031 = vunpack.c.l.s4 1966171168
        %v3032 = vunpack.c.0.s8 %v3031
        %v3033 = vlaneseq
        %v3034 = vshrl.u32 %v3033, 7
        %v3035 = vsub.s32 %v3032, %v3034
        %v3036 = vrot.slane %v3022, %v3035
        %v3037 = vcombine.low %v3029, %v3036
        %v3039 = vunpack.c.l.s4 1966171168
        %v3040 = vunpack.c.0.s8 %v3039
        %v3041 = vlaneseq
        %v3042 = vshrl.u32 %v3041, 7
        %v3043 = vsub.s32 %v3040, %v3042
        %v3044 = vrot.slane %v2370, %v3043
        %v3046 = vunpack.c.l.s4 1966171168
        %v3047 = vunpack.c.0.s8 %v3046
        %v3048 = vlaneseq
        %v3049 = vshrl.u32 %v3048, 7
        %v3050 = vsub.s32 %v3047, %v3049
        %v3051 = vrot.slane %v3044, %v3050
        %v3052 = vcombine.low %v2384, %v2392
        %v3053 = vcombine.low %v2394, %v2377
        %v3054 = vcombine.low %v2391, %v2393
        %v3055 = vcombine.low %v2395, %v2419
        %v3057 = vunpack.c.l.s4 1966171168
        %v3058 = vunpack.c.0.s8 %v3057
        %v3059 = vlaneseq
        %v3060 = vshrl.u32 %v3059, 7
        %v3061 = vsub.s32 %v3058, %v3060
        %v3062 = vrot.slane %v3052, %v3061
        %v3064 = vunpack.c.l.s4 1966171168
        %v3065 = vunpack.c.0.s8 %v3064
        %v3066 = vlaneseq
        %v3067 = vshrl.u32 %v3066, 7
        %v3068 = vsub.s32 %v3065, %v3067
        %v3069 = vrot.slane %v3053, %v3068
        %v3071 = vunpack.c.l.s4 1966171168
        %v3072 = vunpack.c.0.s8 %v3071
        %v3073 = vlaneseq
        %v3074 = vshrl.u32 %v3073, 7
        %v3075 = vsub.s32 %v3072, %v3074
        %v3076 = vrot.slane %v3054, %v3075
        %v3078 = vunpack.c.l.s4 1966171168
        %v3079 = vunpack.c.0.s8 %v3078
        %v3080 = vlaneseq
        %v3081 = vshrl.u32 %v3080, 7
        %v3082 = vsub.s32 %v3079, %v3081
        %v3083 = vrot.slane %v3055, %v3082
        %v3084 = vcombine.low %v3062, %v3069
        %v3085 = vcombine.low %v3076, %v3083
        %v3087 = vunpack.c.l.s4 1966171168
        %v3088 = vunpack.c.0.s8 %v3087
        %v3089 = vlaneseq
        %v3090 = vshrl.u32 %v3089, 7
        %v3091 = vsub.s32 %v3088, %v3090
        %v3092 = vrot.slane %v3084, %v3091
        %v3094 = vunpack.c.l.s4 1966171168
        %v3095 = vunpack.c.0.s8 %v3094
        %v3096 = vlaneseq
        %v3097 = vshrl.u32 %v3096, 7
        %v3098 = vsub.s32 %v3095, %v3097
        %v3099 = vrot.slane %v3085, %v3098
        %v3100 = vcombine.low %v3092, %v3099
        %v3101 = vcombine.low %v2433, %v2441
        %v3102 = vcombine.low %v2443, %v2426
        %v3103 = vcombine.low %v2440, %v2442
        %v3104 = vcombine.low %v2444, %v2459
        %v3106 = vunpack.c.l.s4 1966171168
        %v3107 = vunpack.c.0.s8 %v3106
        %v3108 = vlaneseq
        %v3109 = vshrl.u32 %v3108, 7
        %v3110 = vsub.s32 %v3107, %v3109
        %v3111 = vrot.slane %v3101, %v3110
        %v3113 = vunpack.c.l.s4 1966171168
        %v3114 = vunpack.c.0.s8 %v3113
        %v3115 = vlaneseq
        %v3116 = vshrl.u32 %v3115, 7
        %v3117 = vsub.s32 %v3114, %v3116
        %v3118 = vrot.slane %v3102, %v3117
        %v3120 = vunpack.c.l.s4 1966171168
        %v3121 = vunpack.c.0.s8 %v3120
        %v3122 = vlaneseq
        %v3123 = vshrl.u32 %v3122, 7
        %v3124 = vsub.s32 %v3121, %v3123
        %v3125 = vrot.slane %v3103, %v3124
        %v3127 = vunpack.c.l.s4 1966171168
        %v3128 = vunpack.c.0.s8 %v3127
        %v3129 = vlaneseq
        %v3130 = vshrl.u32 %v3129, 7
        %v3131 = vsub.s32 %v3128, %v3130
        %v3132 = vrot.slane %v3104, %v3131
        %v3133 = vcombine.low %v3111, %v3118
        %v3134 = vcombine.low %v3125, %v3132
        %v3136 = vunpack.c.l.s4 1966171168
        %v3137 = vunpack.c.0.s8 %v3136
        %v3138 = vlaneseq
        %v3139 = vshrl.u32 %v3138, 7
        %v3140 = vsub.s32 %v3137, %v3139
        %v3141 = vrot.slane %v3133, %v3140
        %v3143 = vunpack.c.l.s4 1966171168
        %v3144 = vunpack.c.0.s8 %v3143
        %v3145 = vlaneseq
        %v3146 = vshrl.u32 %v3145, 7
        %v3147 = vsub.s32 %v3144, %v3146
        %v3148 = vrot.slane %v3134, %v3147
        %v3149 = vcombine.low %v3141, %v3148
        %v3151 = vunpack.c.l.s4 1966171168
        %v3152 = vunpack.c.0.s8 %v3151
        %v3153 = vlaneseq
        %v3154 = vshrl.u32 %v3153, 7
        %v3155 = vsub.s32 %v3152, %v3154
        %v3156 = vrot.slane %v2466, %v3155
        %v3158 = vunpack.c.l.s4 1966171168
        %v3159 = vunpack.c.0.s8 %v3158
        %v3160 = vlaneseq
        %v3161 = vshrl.u32 %v3160, 7
        %v3162 = vsub.s32 %v3159, %v3161
        %v3163 = vrot.slane %v3156, %v3162
        %v3170 = vpack.c.bf16 %v3037, %v2988
        %v3171 = vpack.c.bf16 %v3051, %v3051
        %v3172 = vpack.c.bf16 %v3149, %v3100
        %v3173 = vpack.c.bf16 %v3163, %v3163
        %v3174 = vcombine.low %v2495, %v2509
        %v3175 = vcombine.low %v2517, %v2519
        %v3176 = vcombine.low %v2502, %v2516
        %v3177 = vcombine.low %v2518, %v2520
        %v3179 = vunpack.c.l.s4 1966171168
        %v3180 = vunpack.c.0.s8 %v3179
        %v3181 = vlaneseq
        %v3182 = vshrl.u32 %v3181, 7
        %v3183 = vsub.s32 %v3180, %v3182
        %v3184 = vrot.slane %v3174, %v3183
        %v3186 = vunpack.c.l.s4 1966171168
        %v3187 = vunpack.c.0.s8 %v3186
        %v3188 = vlaneseq
        %v3189 = vshrl.u32 %v3188, 7
        %v3190 = vsub.s32 %v3187, %v3189
        %v3191 = vrot.slane %v3175, %v3190
        %v3193 = vunpack.c.l.s4 1966171168
        %v3194 = vunpack.c.0.s8 %v3193
        %v3195 = vlaneseq
        %v3196 = vshrl.u32 %v3195, 7
        %v3197 = vsub.s32 %v3194, %v3196
        %v3198 = vrot.slane %v3176, %v3197
        %v3200 = vunpack.c.l.s4 1966171168
        %v3201 = vunpack.c.0.s8 %v3200
        %v3202 = vlaneseq
        %v3203 = vshrl.u32 %v3202, 7
        %v3204 = vsub.s32 %v3201, %v3203
        %v3205 = vrot.slane %v3177, %v3204
        %v3206 = vcombine.low %v3184, %v3191
        %v3207 = vcombine.low %v3198, %v3205
        %v3209 = vunpack.c.l.s4 1966171168
        %v3210 = vunpack.c.0.s8 %v3209
        %v3211 = vlaneseq
        %v3212 = vshrl.u32 %v3211, 7
        %v3213 = vsub.s32 %v3210, %v3212
        %v3214 = vrot.slane %v3206, %v3213
        %v3216 = vunpack.c.l.s4 1966171168
        %v3217 = vunpack.c.0.s8 %v3216
        %v3218 = vlaneseq
        %v3219 = vshrl.u32 %v3218, 7
        %v3220 = vsub.s32 %v3217, %v3219
        %v3221 = vrot.slane %v3207, %v3220
        %v3222 = vcombine.low %v3214, %v3221
        %v3223 = vcombine.low %v2544, %v2558
        %v3224 = vcombine.low %v2566, %v2568
        %v3225 = vcombine.low %v2551, %v2565
        %v3226 = vcombine.low %v2567, %v2569
        %v3228 = vunpack.c.l.s4 1966171168
        %v3229 = vunpack.c.0.s8 %v3228
        %v3230 = vlaneseq
        %v3231 = vshrl.u32 %v3230, 7
        %v3232 = vsub.s32 %v3229, %v3231
        %v3233 = vrot.slane %v3223, %v3232
        %v3235 = vunpack.c.l.s4 1966171168
        %v3236 = vunpack.c.0.s8 %v3235
        %v3237 = vlaneseq
        %v3238 = vshrl.u32 %v3237, 7
        %v3239 = vsub.s32 %v3236, %v3238
        %v3240 = vrot.slane %v3224, %v3239
        %v3242 = vunpack.c.l.s4 1966171168
        %v3243 = vunpack.c.0.s8 %v3242
        %v3244 = vlaneseq
        %v3245 = vshrl.u32 %v3244, 7
        %v3246 = vsub.s32 %v3243, %v3245
        %v3247 = vrot.slane %v3225, %v3246
        %v3249 = vunpack.c.l.s4 1966171168
        %v3250 = vunpack.c.0.s8 %v3249
        %v3251 = vlaneseq
        %v3252 = vshrl.u32 %v3251, 7
        %v3253 = vsub.s32 %v3250, %v3252
        %v3254 = vrot.slane %v3226, %v3253
        %v3255 = vcombine.low %v3233, %v3240
        %v3256 = vcombine.low %v3247, %v3254
        %v3258 = vunpack.c.l.s4 1966171168
        %v3259 = vunpack.c.0.s8 %v3258
        %v3260 = vlaneseq
        %v3261 = vshrl.u32 %v3260, 7
        %v3262 = vsub.s32 %v3259, %v3261
        %v3263 = vrot.slane %v3255, %v3262
        %v3265 = vunpack.c.l.s4 1966171168
        %v3266 = vunpack.c.0.s8 %v3265
        %v3267 = vlaneseq
        %v3268 = vshrl.u32 %v3267, 7
        %v3269 = vsub.s32 %v3266, %v3268
        %v3270 = vrot.slane %v3256, %v3269
        %v3271 = vcombine.low %v3263, %v3270
        %v3273 = vunpack.c.l.s4 1966171168
        %v3274 = vunpack.c.0.s8 %v3273
        %v3275 = vlaneseq
        %v3276 = vshrl.u32 %v3275, 7
        %v3277 = vsub.s32 %v3274, %v3276
        %v3278 = vrot.slane %v2593, %v3277
        %v3280 = vunpack.c.l.s4 1966171168
        %v3281 = vunpack.c.0.s8 %v3280
        %v3282 = vlaneseq
        %v3283 = vshrl.u32 %v3282, 7
        %v3284 = vsub.s32 %v3281, %v3283
        %v3285 = vrot.slane %v3278, %v3284
        %v3286 = vcombine.low %v2607, %v2615
        %v3287 = vcombine.low %v2617, %v2600
        %v3288 = vcombine.low %v2614, %v2616
        %v3289 = vcombine.low %v2618, %v2642
        %v3291 = vunpack.c.l.s4 1966171168
        %v3292 = vunpack.c.0.s8 %v3291
        %v3293 = vlaneseq
        %v3294 = vshrl.u32 %v3293, 7
        %v3295 = vsub.s32 %v3292, %v3294
        %v3296 = vrot.slane %v3286, %v3295
        %v3298 = vunpack.c.l.s4 1966171168
        %v3299 = vunpack.c.0.s8 %v3298
        %v3300 = vlaneseq
        %v3301 = vshrl.u32 %v3300, 7
        %v3302 = vsub.s32 %v3299, %v3301
        %v3303 = vrot.slane %v3287, %v3302
        %v3305 = vunpack.c.l.s4 1966171168
        %v3306 = vunpack.c.0.s8 %v3305
        %v3307 = vlaneseq
        %v3308 = vshrl.u32 %v3307, 7
        %v3309 = vsub.s32 %v3306, %v3308
        %v3310 = vrot.slane %v3288, %v3309
        %v3312 = vunpack.c.l.s4 1966171168
        %v3313 = vunpack.c.0.s8 %v3312
        %v3314 = vlaneseq
        %v3315 = vshrl.u32 %v3314, 7
        %v3316 = vsub.s32 %v3313, %v3315
        %v3317 = vrot.slane %v3289, %v3316
        %v3318 = vcombine.low %v3296, %v3303
        %v3319 = vcombine.low %v3310, %v3317
        %v3321 = vunpack.c.l.s4 1966171168
        %v3322 = vunpack.c.0.s8 %v3321
        %v3323 = vlaneseq
        %v3324 = vshrl.u32 %v3323, 7
        %v3325 = vsub.s32 %v3322, %v3324
        %v3326 = vrot.slane %v3318, %v3325
        %v3328 = vunpack.c.l.s4 1966171168
        %v3329 = vunpack.c.0.s8 %v3328
        %v3330 = vlaneseq
        %v3331 = vshrl.u32 %v3330, 7
        %v3332 = vsub.s32 %v3329, %v3331
        %v3333 = vrot.slane %v3319, %v3332
        %v3334 = vcombine.low %v3326, %v3333
        %v3335 = vcombine.low %v2656, %v2664
        %v3336 = vcombine.low %v2666, %v2649
        %v3337 = vcombine.low %v2663, %v2665
        %v3338 = vcombine.low %v2667, %v2682
        %v3340 = vunpack.c.l.s4 1966171168
        %v3341 = vunpack.c.0.s8 %v3340
        %v3342 = vlaneseq
        %v3343 = vshrl.u32 %v3342, 7
        %v3344 = vsub.s32 %v3341, %v3343
        %v3345 = vrot.slane %v3335, %v3344
        %v3347 = vunpack.c.l.s4 1966171168
        %v3348 = vunpack.c.0.s8 %v3347
        %v3349 = vlaneseq
        %v3350 = vshrl.u32 %v3349, 7
        %v3351 = vsub.s32 %v3348, %v3350
        %v3352 = vrot.slane %v3336, %v3351
        %v3354 = vunpack.c.l.s4 1966171168
        %v3355 = vunpack.c.0.s8 %v3354
        %v3356 = vlaneseq
        %v3357 = vshrl.u32 %v3356, 7
        %v3358 = vsub.s32 %v3355, %v3357
        %v3359 = vrot.slane %v3337, %v3358
        %v3361 = vunpack.c.l.s4 1966171168
        %v3362 = vunpack.c.0.s8 %v3361
        %v3363 = vlaneseq
        %v3364 = vshrl.u32 %v3363, 7
        %v3365 = vsub.s32 %v3362, %v3364
        %v3366 = vrot.slane %v3338, %v3365
        %v3367 = vcombine.low %v3345, %v3352
        %v3368 = vcombine.low %v3359, %v3366
        %v3370 = vunpack.c.l.s4 1966171168
        %v3371 = vunpack.c.0.s8 %v3370
        %v3372 = vlaneseq
        %v3373 = vshrl.u32 %v3372, 7
        %v3374 = vsub.s32 %v3371, %v3373
        %v3375 = vrot.slane %v3367, %v3374
        %v3377 = vunpack.c.l.s4 1966171168
        %v3378 = vunpack.c.0.s8 %v3377
        %v3379 = vlaneseq
        %v3380 = vshrl.u32 %v3379, 7
        %v3381 = vsub.s32 %v3378, %v3380
        %v3382 = vrot.slane %v3368, %v3381
        %v3383 = vcombine.low %v3375, %v3382
        %v3385 = vunpack.c.l.s4 1966171168
        %v3386 = vunpack.c.0.s8 %v3385
        %v3387 = vlaneseq
        %v3388 = vshrl.u32 %v3387, 7
        %v3389 = vsub.s32 %v3386, %v3388
        %v3390 = vrot.slane %v2689, %v3389
        %v3392 = vunpack.c.l.s4 1966171168
        %v3393 = vunpack.c.0.s8 %v3392
        %v3394 = vlaneseq
        %v3395 = vshrl.u32 %v3394, 7
        %v3396 = vsub.s32 %v3393, %v3395
        %v3397 = vrot.slane %v3390, %v3396
        %v3404 = vpack.c.bf16 %v3271, %v3222
        %v3405 = vpack.c.bf16 %v3285, %v3285
        %v3406 = vpack.c.bf16 %v3383, %v3334
        %v3407 = vpack.c.bf16 %v3397, %v3397
        %vm3408 = vcmask 261120
        %v3410 = vsel %vm3408, %v2936, 0
        %v3413 = vsel %vm3408, %v2937, 0
        %v3416 = vsel %vm3408, %v3170, 0
        %v3419 = vsel %vm3408, %v3171, 0
        %3421 = vmatprep.subr.bf16.mxu0 0
        %3422 = vmatpush1.bf16.xpose.msra.mxu0 %v3416
        %3423 = vmatprep.subr.bf16.mxu0 0
        %3424 = vmatpush1.bf16.xpose.msra.mxu0 %v3419
        %3425 = vmatprep.subr.bf16.mxu0 0
        %3426 = vmatpush1.bf16.xpose.msra.mxu0 0
        %3427 = vmatprep.subr.bf16.mxu0 0
        %3428 = vmatpush1.bf16.xpose.msra.mxu0 0
        %3429 = vmatprep.subr.bf16.mxu0 0
        %3430 = vmatpush1.bf16.xpose.msra.mxu0 0
        %3431 = vmatprep.subr.bf16.mxu0 0
        %3432 = vmatpush1.bf16.xpose.msra.mxu0 0
        %3433 = vmatprep.subr.bf16.mxu0 0
        %3434 = vmatpush1.bf16.xpose.msra.mxu0 0
        %3435 = vmatprep.subr.bf16.mxu0 0
        %3436 = vmatpush1.bf16.xpose.msra.mxu0 0
        %3437 = vmatprep.subr.bf16.mxu0 0
        %3438 = vmatpush1.bf16.xpose.msra.mxu0 0
        %3439 = vmatprep.subr.bf16.mxu0 0
        %3440 = vmatpush1.bf16.xpose.msra.mxu0 0
        %3441 = vmatprep.subr.bf16.mxu0 0
        %3442 = vmatpush1.bf16.xpose.msra.mxu0 0
        %3443 = vmatprep.subr.bf16.mxu0 0
        %3444 = vmatpush1.bf16.xpose.msra.mxu0 0
        %3445 = vmatprep.subr.bf16.mxu0 0
        %3446 = vmatpush1.bf16.xpose.msra.mxu0 0
        %3447 = vmatprep.subr.bf16.mxu0 0
        %3448 = vmatpush1.bf16.xpose.msra.mxu0 0
        %3449 = vmatprep.subr.bf16.mxu0 0
        %3450 = vmatpush1.bf16.xpose.msra.mxu0 0
        %3451 = vmatprep.subr.bf16.mxu0 0
        %3452 = vmatpush1.bf16.xpose.msra.mxu0 0
        %3453 = vmatprep.mubr.bf16.mxu0 0
        %3454 = vmatmul.mubr.bf16.gmra.mrb[0].mxu0 %v3410
        %v3455 = vpop.f32.mrb[0].mxu0
        %v3456 = vadd.f32 0.0, %v3455
        %v3457 = vpop.f32.mrb[0].mxu0
        %v3458 = vpop.f32.mrb[0].mxu0
        %v3459 = vadd.f32 0.0, %v3458
        %v3460 = vpop.f32.mrb[0].mxu0
        %3461 = vmatprep.mubr.bf16.mxu0 0
        %3462 = vmatmul.mubr.bf16.gmra.mrb[0].mxu0 %v3413
        %v3463 = vpop.f32.mrb[0].mxu0
        %v3464 = vadd.f32 0.0, %v3463
        %v3465 = vpop.f32.mrb[0].mxu0
        %v3466 = vpop.f32.mrb[0].mxu0
        %v3467 = vpop.f32.mrb[0].mxu0
        %3468 = vdwg.mxu0
        %v3470 = vsel %vm3408, %v2938, 0
        %v3473 = vsel %vm3408, %v2939, 0
        %v3476 = vsel %vm3408, %v3172, 0
        %v3479 = vsel %vm3408, %v3173, 0
        %3481 = vmatprep.subr.bf16.mxu0 0
        %3482 = vmatpush1.bf16.xpose.msra.mxu0 %v3476
        %3483 = vmatprep.subr.bf16.mxu0 0
        %3484 = vmatpush1.bf16.xpose.msra.mxu0 %v3479
        %3485 = vmatprep.subr.bf16.mxu0 0
        %3486 = vmatpush1.bf16.xpose.msra.mxu0 0
        %3487 = vmatprep.subr.bf16.mxu0 0
        %3488 = vmatpush1.bf16.xpose.msra.mxu0 0
        %3489 = vmatprep.subr.bf16.mxu0 0
        %3490 = vmatpush1.bf16.xpose.msra.mxu0 0
        %3491 = vmatprep.subr.bf16.mxu0 0
        %3492 = vmatpush1.bf16.xpose.msra.mxu0 0
        %3493 = vmatprep.subr.bf16.mxu0 0
        %3494 = vmatpush1.bf16.xpose.msra.mxu0 0
        %3495 = vmatprep.subr.bf16.mxu0 0
        %3496 = vmatpush1.bf16.xpose.msra.mxu0 0
        %3497 = vmatprep.subr.bf16.mxu0 0
        %3498 = vmatpush1.bf16.xpose.msra.mxu0 0
        %3499 = vmatprep.subr.bf16.mxu0 0
        %3500 = vmatpush1.bf16.xpose.msra.mxu0 0
        %3501 = vmatprep.subr.bf16.mxu0 0
        %3502 = vmatpush1.bf16.xpose.msra.mxu0 0
        %3503 = vmatprep.subr.bf16.mxu0 0
        %3504 = vmatpush1.bf16.xpose.msra.mxu0 0
        %3505 = vmatprep.subr.bf16.mxu0 0
        %3506 = vmatpush1.bf16.xpose.msra.mxu0 0
        %3507 = vmatprep.subr.bf16.mxu0 0
        %3508 = vmatpush1.bf16.xpose.msra.mxu0 0
        %3509 = vmatprep.subr.bf16.mxu0 0
        %3510 = vmatpush1.bf16.xpose.msra.mxu0 0
        %3511 = vmatprep.subr.bf16.mxu0 0
        %3512 = vmatpush1.bf16.xpose.msra.mxu0 0
        %3513 = vmatprep.mubr.bf16.mxu0 0
        %3514 = vmatmul.mubr.bf16.gmra.mrb[0].mxu0 %v3470
        %v3515 = vpop.f32.mrb[0].mxu0
        %v3516 = vadd.f32 0.0, %v3515
        %v3517 = vpop.f32.mrb[0].mxu0
        %v3518 = vpop.f32.mrb[0].mxu0
        %v3519 = vadd.f32 0.0, %v3518
        %v3520 = vpop.f32.mrb[0].mxu0
        %3521 = vmatprep.mubr.bf16.mxu0 0
        %3522 = vmatmul.mubr.bf16.gmra.mrb[0].mxu0 %v3473
        %v3523 = vpop.f32.mrb[0].mxu0
        %v3524 = vadd.f32 0.0, %v3523
        %v3525 = vpop.f32.mrb[0].mxu0
        %v3526 = vpop.f32.mrb[0].mxu0
        %v3527 = vpop.f32.mrb[0].mxu0
        %3528 = vdwg.mxu0
        %vm3529 = vcmask 138240
        %v3530 = vsel %vm3529, %v3456, -inf
        %3531 = vmax.xlane.f32.xlu0 %v3530
        %v3532 = vpop.xlane.xlu0 %3531
        %v3533 = vsel %vm3529, %v3459, -inf
        %3534 = vmax.xlane.f32.xlu0 %v3533
        %v3535 = vpop.xlane.xlu0 %3534
        %vm3536 = vcmask 131072
        %v3537 = vsel %vm3536, %v3464, -inf
        %3538 = vmax.xlane.f32.xlu0 %v3537
        %v3539 = vpop.xlane.xlu0 %3538
        %v3540 = vsel %vm3529, %v3516, -inf
        %3541 = vmax.xlane.f32.xlu0 %v3540
        %v3542 = vpop.xlane.xlu0 %3541
        %v3543 = vsel %vm3529, %v3519, -inf
        %3544 = vmax.xlane.f32.xlu0 %v3543
        %v3545 = vpop.xlane.xlu0 %3544
        %v3546 = vsel %vm3536, %v3524, -inf
        %3547 = vmax.xlane.f32.xlu0 %v3546
        %v3548 = vpop.xlane.xlu0 %3547
        %v3549 = vsub.f32 %v3456, %v3532
        %v3550 = vsub.f32 %v3459, %v3535
        %v3551 = vsub.f32 %v3464, %v3539
        %v3552 = vsub.f32 %v3516, %v3542
        %v3553 = vsub.f32 %v3519, %v3545
        %v3554 = vsub.f32 %v3524, %v3548
        %v3555 = vmul.f32 %v3549, 1.442695
        %v3556 = vpow.pop %v3555
        %v3557 = vmul.f32 %v3550, 1.442695
        %v3558 = vpow.pop %v3557
        %v3559 = vmul.f32 %v3551, 1.442695
        %v3560 = vpow.pop %v3559
        %v3561 = vmul.f32 %v3552, 1.442695
        %v3562 = vpow.pop %v3561
        %v3563 = vmul.f32 %v3553, 1.442695
        %v3564 = vpow.pop %v3563
        %v3565 = vmul.f32 %v3554, 1.442695
        %v3566 = vpow.pop %v3565
        %v3567 = vsel %vm3529, %v3556, 0.0
        %3568 = vadd.xlane.f32.xlu0 %v3567
        %v3569 = vpop.xlane.xlu0 %3568
        %v3570 = vsel %vm3529, %v3558, 0.0
        %3571 = vadd.xlane.f32.xlu0 %v3570
        %v3572 = vpop.xlane.xlu0 %3571
        %v3573 = vsel %vm3536, %v3560, 0.0
        %3574 = vadd.xlane.f32.xlu0 %v3573
        %v3575 = vpop.xlane.xlu0 %3574
        %v3576 = vsel %vm3529, %v3562, 0.0
        %3577 = vadd.xlane.f32.xlu0 %v3576
        %v3578 = vpop.xlane.xlu0 %3577
        %v3579 = vsel %vm3529, %v3564, 0.0
        %3580 = vadd.xlane.f32.xlu0 %v3579
        %v3581 = vpop.xlane.xlu0 %3580
        %v3582 = vsel %vm3536, %v3566, 0.0
        %3583 = vadd.xlane.f32.xlu0 %v3582
        %v3584 = vpop.xlane.xlu0 %3583
        %v3585 = vrcp.pop %v3569
        %v3586 = vrcp.pop %v3572
        %v3587 = vrcp.pop %v3575
        %v3588 = vrcp.pop %v3578
        %v3589 = vrcp.pop %v3581
        %v3590 = vrcp.pop %v3584
        %v3591 = vmul.f32 %v3556, %v3585
        %v3592 = vmul.f32 %v3558, %v3586
        %v3593 = vmul.f32 %v3560, %v3587
        %v3594 = vmul.f32 %v3562, %v3588
        %v3595 = vmul.f32 %v3564, %v3589
        %v3596 = vmul.f32 %v3566, %v3590
        %v3597 = vpack.c.bf16 %v3592, %v3591
        %v3598 = vpack.c.bf16 %v3593, %v3593
        %v3599 = vpack.c.bf16 %v3595, %v3594
        %v3600 = vpack.c.bf16 %v3596, %v3596
        %v3602 = vsel %vm3529, %v3597, 0
        %v3605 = vsel %vm3529, %v3598, 0
        %v3607 = vsel 0, 4294967295, 65535
        %v3608 = vsel %vm1181, %v3607, 0
        %v3610 = vand.u32 %v3405, %v3608
        %3612 = vmatprep.subr.bf16.mxu0 0
        %3613 = vmatpush1.bf16.msra.mxu0 %v3404
        %3614 = vmatprep.subr.bf16.mxu0 0
        %3615 = vmatpush1.bf16.msra.mxu0 %v3610
        %3616 = vmatprep.subr.bf16.mxu0 0
        %3617 = vmatpush1.bf16.msra.mxu0 0
        %3618 = vmatprep.subr.bf16.mxu0 0
        %3619 = vmatpush1.bf16.msra.mxu0 0
        %3620 = vmatprep.subr.bf16.mxu0 0
        %3621 = vmatpush1.bf16.msra.mxu0 0
        %3622 = vmatprep.subr.bf16.mxu0 0
        %3623 = vmatpush1.bf16.msra.mxu0 0
        %3624 = vmatprep.subr.bf16.mxu0 0
        %3625 = vmatpush1.bf16.msra.mxu0 0
        %3626 = vmatprep.subr.bf16.mxu0 0
        %3627 = vmatpush1.bf16.msra.mxu0 0
        %3628 = vmatprep.subr.bf16.mxu0 0
        %3629 = vmatpush1.bf16.msra.mxu0 0
        %3630 = vmatprep.subr.bf16.mxu0 0
        %3631 = vmatpush1.bf16.msra.mxu0 0
        %3632 = vmatprep.subr.bf16.mxu0 0
        %3633 = vmatpush1.bf16.msra.mxu0 0
        %3634 = vmatprep.subr.bf16.mxu0 0
        %3635 = vmatpush1.bf16.msra.mxu0 0
        %3636 = vmatprep.subr.bf16.mxu0 0
        %3637 = vmatpush1.bf16.msra.mxu0 0
        %3638 = vmatprep.subr.bf16.mxu0 0
        %3639 = vmatpush1.bf16.msra.mxu0 0
        %3640 = vmatprep.subr.bf16.mxu0 0
        %3641 = vmatpush1.bf16.msra.mxu0 0
        %3642 = vmatprep.subr.bf16.mxu0 0
        %3643 = vmatpush1.bf16.msra.mxu0 0
        %3644 = vmatprep.mubr.bf16.mxu0 0
        %3645 = vmatmul.mubr.bf16.gmra.mrb[0].mxu0 %v3602
        %v3646 = vpop.f32.mrb[0].mxu0
        %v3647 = vadd.f32 0.0, %v3646
        %v3648 = vpop.f32.mrb[0].mxu0
        %v3649 = vpop.f32.mrb[0].mxu0
        %v3650 = vadd.f32 0.0, %v3649
        %v3651 = vpop.f32.mrb[0].mxu0
        %3652 = vmatprep.mubr.bf16.mxu0 0
        %3653 = vmatmul.mubr.bf16.gmra.mrb[0].mxu0 %v3605
        %v3654 = vpop.f32.mrb[0].mxu0
        %v3655 = vadd.f32 0.0, %v3654
        %v3656 = vpop.f32.mrb[0].mxu0
        %v3657 = vpop.f32.mrb[0].mxu0
        %v3658 = vpop.f32.mrb[0].mxu0
        %3659 = vdwg.mxu0
        %v3661 = vsel %vm3529, %v3599, 0
        %v3664 = vsel %vm3529, %v3600, 0
        %v3667 = vand.u32 %v3407, %v3608
        %3669 = vmatprep.subr.bf16.mxu0 0
        %3670 = vmatpush1.bf16.msra.mxu0 %v3406
        %3671 = vmatprep.subr.bf16.mxu0 0
        %3672 = vmatpush1.bf16.msra.mxu0 %v3667
        %3673 = vmatprep.subr.bf16.mxu0 0
        %3674 = vmatpush1.bf16.msra.mxu0 0
        %3675 = vmatprep.subr.bf16.mxu0 0
        %3676 = vmatpush1.bf16.msra.mxu0 0
        %3677 = vmatprep.subr.bf16.mxu0 0
        %3678 = vmatpush1.bf16.msra.mxu0 0
        %3679 = vmatprep.subr.bf16.mxu0 0
        %3680 = vmatpush1.bf16.msra.mxu0 0
        %3681 = vmatprep.subr.bf16.mxu0 0
        %3682 = vmatpush1.bf16.msra.mxu0 0
        %3683 = vmatprep.subr.bf16.mxu0 0
        %3684 = vmatpush1.bf16.msra.mxu0 0
        %3685 = vmatprep.subr.bf16.mxu0 0
        %3686 = vmatpush1.bf16.msra.mxu0 0
        %3687 = vmatprep.subr.bf16.mxu0 0
        %3688 = vmatpush1.bf16.msra.mxu0 0
        %3689 = vmatprep.subr.bf16.mxu0 0
        %3690 = vmatpush1.bf16.msra.mxu0 0
        %3691 = vmatprep.subr.bf16.mxu0 0
        %3692 = vmatpush1.bf16.msra.mxu0 0
        %3693 = vmatprep.subr.bf16.mxu0 0
        %3694 = vmatpush1.bf16.msra.mxu0 0
        %3695 = vmatprep.subr.bf16.mxu0 0
        %3696 = vmatpush1.bf16.msra.mxu0 0
        %3697 = vmatprep.subr.bf16.mxu0 0
        %3698 = vmatpush1.bf16.msra.mxu0 0
        %3699 = vmatprep.subr.bf16.mxu0 0
        %3700 = vmatpush1.bf16.msra.mxu0 0
        %3701 = vmatprep.mubr.bf16.mxu0 0
        %3702 = vmatmul.mubr.bf16.gmra.mrb[0].mxu0 %v3661
        %v3703 = vpop.f32.mrb[0].mxu0
        %v3704 = vadd.f32 0.0, %v3703
        %v3705 = vpop.f32.mrb[0].mxu0
        %v3706 = vpop.f32.mrb[0].mxu0
        %v3707 = vadd.f32 0.0, %v3706
        %v3708 = vpop.f32.mrb[0].mxu0
        %3709 = vmatprep.mubr.bf16.mxu0 0
        %3710 = vmatmul.mubr.bf16.gmra.mrb[0].mxu0 %v3664
        %v3711 = vpop.f32.mrb[0].mxu0
        %v3712 = vadd.f32 0.0, %v3711
        %v3713 = vpop.f32.mrb[0].mxu0
        %v3714 = vpop.f32.mrb[0].mxu0
        %v3715 = vpop.f32.mrb[0].mxu0
        %3716 = vdwg.mxu0
        %v3723 = vcombine.high %v3647, %v3647
        %v3725 = vunpack.c.l.s4 1966171168
        %v3726 = vunpack.c.0.s8 %v3725
        %v3727 = vlaneseq
        %v3728 = vshrl.u32 %v3727, 7
        %v3729 = vsub.s32 %v3726, %v3728
        %v3730 = vrot.slane %v3647, %v3729
        %v3732 = vunpack.c.l.s4 1966171168
        %v3733 = vunpack.c.0.s8 %v3732
        %v3734 = vlaneseq
        %v3735 = vshrl.u32 %v3734, 7
        %v3736 = vsub.s32 %v3733, %v3735
        %v3737 = vrot.slane %v3723, %v3736
        %v3738 = vcombine.high %v3730, %v3730
        %v3739 = vcombine.high %v3737, %v3737
        %v3741 = vunpack.c.l.s4 1966171168
        %v3742 = vunpack.c.0.s8 %v3741
        %v3743 = vlaneseq
        %v3744 = vshrl.u32 %v3743, 7
        %v3745 = vsub.s32 %v3742, %v3744
        %v3746 = vrot.slane %v3730, %v3745
        %v3748 = vunpack.c.l.s4 1966171168
        %v3749 = vunpack.c.0.s8 %v3748
        %v3750 = vlaneseq
        %v3751 = vshrl.u32 %v3750, 7
        %v3752 = vsub.s32 %v3749, %v3751
        %v3753 = vrot.slane %v3737, %v3752
        %v3755 = vunpack.c.l.s4 1966171168
        %v3756 = vunpack.c.0.s8 %v3755
        %v3757 = vlaneseq
        %v3758 = vshrl.u32 %v3757, 7
        %v3759 = vsub.s32 %v3756, %v3758
        %v3760 = vrot.slane %v3738, %v3759
        %v3762 = vunpack.c.l.s4 1966171168
        %v3763 = vunpack.c.0.s8 %v3762
        %v3764 = vlaneseq
        %v3765 = vshrl.u32 %v3764, 7
        %v3766 = vsub.s32 %v3763, %v3765
        %v3767 = vrot.slane %v3739, %v3766
        %v3768 = vcombine.high %v3746, %v3746
        %v3769 = vcombine.high %v3753, %v3753
        %v3770 = vcombine.high %v3760, %v3760
        %v3771 = vcombine.high %v3767, %v3767
        %v3772 = vcombine.high %v3650, %v3650
        %v3774 = vunpack.c.l.s4 1966171168
        %v3775 = vunpack.c.0.s8 %v3774
        %v3776 = vlaneseq
        %v3777 = vshrl.u32 %v3776, 7
        %v3778 = vsub.s32 %v3775, %v3777
        %v3779 = vrot.slane %v3650, %v3778
        %v3781 = vunpack.c.l.s4 1966171168
        %v3782 = vunpack.c.0.s8 %v3781
        %v3783 = vlaneseq
        %v3784 = vshrl.u32 %v3783, 7
        %v3785 = vsub.s32 %v3782, %v3784
        %v3786 = vrot.slane %v3772, %v3785
        %v3787 = vcombine.high %v3779, %v3779
        %v3788 = vcombine.high %v3786, %v3786
        %v3790 = vunpack.c.l.s4 1966171168
        %v3791 = vunpack.c.0.s8 %v3790
        %v3792 = vlaneseq
        %v3793 = vshrl.u32 %v3792, 7
        %v3794 = vsub.s32 %v3791, %v3793
        %v3795 = vrot.slane %v3779, %v3794
        %v3797 = vunpack.c.l.s4 1966171168
        %v3798 = vunpack.c.0.s8 %v3797
        %v3799 = vlaneseq
        %v3800 = vshrl.u32 %v3799, 7
        %v3801 = vsub.s32 %v3798, %v3800
        %v3802 = vrot.slane %v3786, %v3801
        %v3804 = vunpack.c.l.s4 1966171168
        %v3805 = vunpack.c.0.s8 %v3804
        %v3806 = vlaneseq
        %v3807 = vshrl.u32 %v3806, 7
        %v3808 = vsub.s32 %v3805, %v3807
        %v3809 = vrot.slane %v3787, %v3808
        %v3811 = vunpack.c.l.s4 1966171168
        %v3812 = vunpack.c.0.s8 %v3811
        %v3813 = vlaneseq
        %v3814 = vshrl.u32 %v3813, 7
        %v3815 = vsub.s32 %v3812, %v3814
        %v3816 = vrot.slane %v3788, %v3815
        %v3817 = vcombine.high %v3795, %v3795
        %v3818 = vcombine.high %v3802, %v3802
        %v3819 = vcombine.high %v3809, %v3809
        %v3820 = vcombine.high %v3816, %v3816
        %v3822 = vunpack.c.l.s4 1966171168
        %v3823 = vunpack.c.0.s8 %v3822
        %v3824 = vlaneseq
        %v3825 = vshrl.u32 %v3824, 7
        %v3826 = vsub.s32 %v3823, %v3825
        %v3827 = vrot.slane %v3655, %v3826
        %v3829 = vunpack.c.l.s4 1966171168
        %v3830 = vunpack.c.0.s8 %v3829
        %v3831 = vlaneseq
        %v3832 = vshrl.u32 %v3831, 7
        %v3833 = vsub.s32 %v3830, %v3832
        %v3834 = vrot.slane %v3827, %v3833
        %v3835 = vcombine.high %v3704, %v3704
        %v3837 = vunpack.c.l.s4 1966171168
        %v3838 = vunpack.c.0.s8 %v3837
        %v3839 = vlaneseq
        %v3840 = vshrl.u32 %v3839, 7
        %v3841 = vsub.s32 %v3838, %v3840
        %v3842 = vrot.slane %v3704, %v3841
        %v3844 = vunpack.c.l.s4 1966171168
        %v3845 = vunpack.c.0.s8 %v3844
        %v3846 = vlaneseq
        %v3847 = vshrl.u32 %v3846, 7
        %v3848 = vsub.s32 %v3845, %v3847
        %v3849 = vrot.slane %v3835, %v3848
        %v3850 = vcombine.high %v3842, %v3842
        %v3851 = vcombine.high %v3849, %v3849
        %v3853 = vunpack.c.l.s4 1966171168
        %v3854 = vunpack.c.0.s8 %v3853
        %v3855 = vlaneseq
        %v3856 = vshrl.u32 %v3855, 7
        %v3857 = vsub.s32 %v3854, %v3856
        %v3858 = vrot.slane %v3842, %v3857
        %v3860 = vunpack.c.l.s4 1966171168
        %v3861 = vunpack.c.0.s8 %v3860
        %v3862 = vlaneseq
        %v3863 = vshrl.u32 %v3862, 7
        %v3864 = vsub.s32 %v3861, %v3863
        %v3865 = vrot.slane %v3849, %v3864
        %v3867 = vunpack.c.l.s4 1966171168
        %v3868 = vunpack.c.0.s8 %v3867
        %v3869 = vlaneseq
        %v3870 = vshrl.u32 %v3869, 7
        %v3871 = vsub.s32 %v3868, %v3870
        %v3872 = vrot.slane %v3850, %v3871
        %v3874 = vunpack.c.l.s4 1966171168
        %v3875 = vunpack.c.0.s8 %v3874
        %v3876 = vlaneseq
        %v3877 = vshrl.u32 %v3876, 7
        %v3878 = vsub.s32 %v3875, %v3877
        %v3879 = vrot.slane %v3851, %v3878
        %v3880 = vcombine.high %v3858, %v3858
        %v3881 = vcombine.high %v3865, %v3865
        %v3882 = vcombine.high %v3872, %v3872
        %v3883 = vcombine.high %v3879, %v3879
        %v3884 = vcombine.high %v3707, %v3707
        %v3886 = vunpack.c.l.s4 1966171168
        %v3887 = vunpack.c.0.s8 %v3886
        %v3888 = vlaneseq
        %v3889 = vshrl.u32 %v3888, 7
        %v3890 = vsub.s32 %v3887, %v3889
        %v3891 = vrot.slane %v3707, %v3890
        %v3893 = vunpack.c.l.s4 1966171168
        %v3894 = vunpack.c.0.s8 %v3893
        %v3895 = vlaneseq
        %v3896 = vshrl.u32 %v3895, 7
        %v3897 = vsub.s32 %v3894, %v3896
        %v3898 = vrot.slane %v3884, %v3897
        %v3899 = vcombine.high %v3891, %v3891
        %v3900 = vcombine.high %v3898, %v3898
        %v3902 = vunpack.c.l.s4 1966171168
        %v3903 = vunpack.c.0.s8 %v3902
        %v3904 = vlaneseq
        %v3905 = vshrl.u32 %v3904, 7
        %v3906 = vsub.s32 %v3903, %v3905
        %v3907 = vrot.slane %v3891, %v3906
        %v3909 = vunpack.c.l.s4 1966171168
        %v3910 = vunpack.c.0.s8 %v3909
        %v3911 = vlaneseq
        %v3912 = vshrl.u32 %v3911, 7
        %v3913 = vsub.s32 %v3910, %v3912
        %v3914 = vrot.slane %v3898, %v3913
        %v3916 = vunpack.c.l.s4 1966171168
        %v3917 = vunpack.c.0.s8 %v3916
        %v3918 = vlaneseq
        %v3919 = vshrl.u32 %v3918, 7
        %v3920 = vsub.s32 %v3917, %v3919
        %v3921 = vrot.slane %v3899, %v3920
        %v3923 = vunpack.c.l.s4 1966171168
        %v3924 = vunpack.c.0.s8 %v3923
        %v3925 = vlaneseq
        %v3926 = vshrl.u32 %v3925, 7
        %v3927 = vsub.s32 %v3924, %v3926
        %v3928 = vrot.slane %v3900, %v3927
        %v3929 = vcombine.high %v3907, %v3907
        %v3930 = vcombine.high %v3914, %v3914
        %v3931 = vcombine.high %v3921, %v3921
        %v3932 = vcombine.high %v3928, %v3928
        %v3934 = vunpack.c.l.s4 1966171168
        %v3935 = vunpack.c.0.s8 %v3934
        %v3936 = vlaneseq
        %v3937 = vshrl.u32 %v3936, 7
        %v3938 = vsub.s32 %v3935, %v3937
        %v3939 = vrot.slane %v3712, %v3938
        %v3941 = vunpack.c.l.s4 1966171168
        %v3942 = vunpack.c.0.s8 %v3941
        %v3943 = vlaneseq
        %v3944 = vshrl.u32 %v3943, 7
        %v3945 = vsub.s32 %v3942, %v3944
        %v3946 = vrot.slane %v3939, %v3945
        %v3947 = vcombine.low %v3746, %v3760
        %v3948 = vcombine.low %v3768, %v3770
        %v3949 = vcombine.low %v3753, %v3767
        %v3950 = vcombine.low %v3769, %v3771
        %v3952 = vunpack.c.l.s4 1966171168
        %v3953 = vunpack.c.0.s8 %v3952
        %v3954 = vlaneseq
        %v3955 = vshrl.u32 %v3954, 7
        %v3956 = vsub.s32 %v3953, %v3955
        %v3957 = vrot.slane %v3947, %v3956
        %v3959 = vunpack.c.l.s4 1966171168
        %v3960 = vunpack.c.0.s8 %v3959
        %v3961 = vlaneseq
        %v3962 = vshrl.u32 %v3961, 7
        %v3963 = vsub.s32 %v3960, %v3962
        %v3964 = vrot.slane %v3948, %v3963
        %v3966 = vunpack.c.l.s4 1966171168
        %v3967 = vunpack.c.0.s8 %v3966
        %v3968 = vlaneseq
        %v3969 = vshrl.u32 %v3968, 7
        %v3970 = vsub.s32 %v3967, %v3969
        %v3971 = vrot.slane %v3949, %v3970
        %v3973 = vunpack.c.l.s4 1966171168
        %v3974 = vunpack.c.0.s8 %v3973
        %v3975 = vlaneseq
        %v3976 = vshrl.u32 %v3975, 7
        %v3977 = vsub.s32 %v3974, %v3976
        %v3978 = vrot.slane %v3950, %v3977
        %v3979 = vcombine.low %v3957, %v3964
        %v3980 = vcombine.low %v3971, %v3978
        %v3982 = vunpack.c.l.s4 1966171168
        %v3983 = vunpack.c.0.s8 %v3982
        %v3984 = vlaneseq
        %v3985 = vshrl.u32 %v3984, 7
        %v3986 = vsub.s32 %v3983, %v3985
        %v3987 = vrot.slane %v3979, %v3986
        %v3989 = vunpack.c.l.s4 1966171168
        %v3990 = vunpack.c.0.s8 %v3989
        %v3991 = vlaneseq
        %v3992 = vshrl.u32 %v3991, 7
        %v3993 = vsub.s32 %v3990, %v3992
        %v3994 = vrot.slane %v3980, %v3993
        %v3995 = vcombine.low %v3987, %v3994
        %v3996 = vcombine.low %v3795, %v3809
        %v3997 = vcombine.low %v3817, %v3819
        %v3998 = vcombine.low %v3802, %v3816
        %v3999 = vcombine.low %v3818, %v3820
        %v4001 = vunpack.c.l.s4 1966171168
        %v4002 = vunpack.c.0.s8 %v4001
        %v4003 = vlaneseq
        %v4004 = vshrl.u32 %v4003, 7
        %v4005 = vsub.s32 %v4002, %v4004
        %v4006 = vrot.slane %v3996, %v4005
        %v4008 = vunpack.c.l.s4 1966171168
        %v4009 = vunpack.c.0.s8 %v4008
        %v4010 = vlaneseq
        %v4011 = vshrl.u32 %v4010, 7
        %v4012 = vsub.s32 %v4009, %v4011
        %v4013 = vrot.slane %v3997, %v4012
        %v4015 = vunpack.c.l.s4 1966171168
        %v4016 = vunpack.c.0.s8 %v4015
        %v4017 = vlaneseq
        %v4018 = vshrl.u32 %v4017, 7
        %v4019 = vsub.s32 %v4016, %v4018
        %v4020 = vrot.slane %v3998, %v4019
        %v4022 = vunpack.c.l.s4 1966171168
        %v4023 = vunpack.c.0.s8 %v4022
        %v4024 = vlaneseq
        %v4025 = vshrl.u32 %v4024, 7
        %v4026 = vsub.s32 %v4023, %v4025
        %v4027 = vrot.slane %v3999, %v4026
        %v4028 = vcombine.low %v4006, %v4013
        %v4029 = vcombine.low %v4020, %v4027
        %v4031 = vunpack.c.l.s4 1966171168
        %v4032 = vunpack.c.0.s8 %v4031
        %v4033 = vlaneseq
        %v4034 = vshrl.u32 %v4033, 7
        %v4035 = vsub.s32 %v4032, %v4034
        %v4036 = vrot.slane %v4028, %v4035
        %v4038 = vunpack.c.l.s4 1966171168
        %v4039 = vunpack.c.0.s8 %v4038
        %v4040 = vlaneseq
        %v4041 = vshrl.u32 %v4040, 7
        %v4042 = vsub.s32 %v4039, %v4041
        %v4043 = vrot.slane %v4029, %v4042
        %v4044 = vcombine.low %v4036, %v4043
        %v4045 = vcombine.low %v3834, %v3858
        %v4046 = vcombine.low %v3872, %v3880
        %v4047 = vcombine.low %v3882, %v3865
        %v4048 = vcombine.low %v3879, %v3881
        %v4050 = vunpack.c.l.s4 1966171168
        %v4051 = vunpack.c.0.s8 %v4050
        %v4052 = vlaneseq
        %v4053 = vshrl.u32 %v4052, 7
        %v4054 = vsub.s32 %v4051, %v4053
        %v4055 = vrot.slane %v4045, %v4054
        %v4057 = vunpack.c.l.s4 1966171168
        %v4058 = vunpack.c.0.s8 %v4057
        %v4059 = vlaneseq
        %v4060 = vshrl.u32 %v4059, 7
        %v4061 = vsub.s32 %v4058, %v4060
        %v4062 = vrot.slane %v4046, %v4061
        %v4064 = vunpack.c.l.s4 1966171168
        %v4065 = vunpack.c.0.s8 %v4064
        %v4066 = vlaneseq
        %v4067 = vshrl.u32 %v4066, 7
        %v4068 = vsub.s32 %v4065, %v4067
        %v4069 = vrot.slane %v4047, %v4068
        %v4071 = vunpack.c.l.s4 1966171168
        %v4072 = vunpack.c.0.s8 %v4071
        %v4073 = vlaneseq
        %v4074 = vshrl.u32 %v4073, 7
        %v4075 = vsub.s32 %v4072, %v4074
        %v4076 = vrot.slane %v4048, %v4075
        %v4077 = vcombine.low %v4055, %v4062
        %v4078 = vcombine.low %v4069, %v4076
        %v4080 = vunpack.c.l.s4 1966171168
        %v4081 = vunpack.c.0.s8 %v4080
        %v4082 = vlaneseq
        %v4083 = vshrl.u32 %v4082, 7
        %v4084 = vsub.s32 %v4081, %v4083
        %v4085 = vrot.slane %v4077, %v4084
        %v4087 = vunpack.c.l.s4 1966171168
        %v4088 = vunpack.c.0.s8 %v4087
        %v4089 = vlaneseq
        %v4090 = vshrl.u32 %v4089, 7
        %v4091 = vsub.s32 %v4088, %v4090
        %v4092 = vrot.slane %v4078, %v4091
        %v4093 = vcombine.low %v4085, %v4092
        %v4094 = vcombine.low %v3883, %v3907
        %v4095 = vcombine.low %v3921, %v3929
        %v4096 = vcombine.low %v3931, %v3914
        %v4097 = vcombine.low %v3928, %v3930
        %v4099 = vunpack.c.l.s4 1966171168
        %v4100 = vunpack.c.0.s8 %v4099
        %v4101 = vlaneseq
        %v4102 = vshrl.u32 %v4101, 7
        %v4103 = vsub.s32 %v4100, %v4102
        %v4104 = vrot.slane %v4094, %v4103
        %v4106 = vunpack.c.l.s4 1966171168
        %v4107 = vunpack.c.0.s8 %v4106
        %v4108 = vlaneseq
        %v4109 = vshrl.u32 %v4108, 7
        %v4110 = vsub.s32 %v4107, %v4109
        %v4111 = vrot.slane %v4095, %v4110
        %v4113 = vunpack.c.l.s4 1966171168
        %v4114 = vunpack.c.0.s8 %v4113
        %v4115 = vlaneseq
        %v4116 = vshrl.u32 %v4115, 7
        %v4117 = vsub.s32 %v4114, %v4116
        %v4118 = vrot.slane %v4096, %v4117
        %v4120 = vunpack.c.l.s4 1966171168
        %v4121 = vunpack.c.0.s8 %v4120
        %v4122 = vlaneseq
        %v4123 = vshrl.u32 %v4122, 7
        %v4124 = vsub.s32 %v4121, %v4123
        %v4125 = vrot.slane %v4097, %v4124
        %v4126 = vcombine.low %v4104, %v4111
        %v4127 = vcombine.low %v4118, %v4125
        %v4129 = vunpack.c.l.s4 1966171168
        %v4130 = vunpack.c.0.s8 %v4129
        %v4131 = vlaneseq
        %v4132 = vshrl.u32 %v4131, 7
        %v4133 = vsub.s32 %v4130, %v4132
        %v4134 = vrot.slane %v4126, %v4133
        %v4136 = vunpack.c.l.s4 1966171168
        %v4137 = vunpack.c.0.s8 %v4136
        %v4138 = vlaneseq
        %v4139 = vshrl.u32 %v4138, 7
        %v4140 = vsub.s32 %v4137, %v4139
        %v4141 = vrot.slane %v4127, %v4140
        %v4142 = vcombine.low %v4134, %v4141
        %v4143 = vcombine.low %v3932, %v3946
        %v4145 = vunpack.c.l.s4 1966171168
        %v4146 = vunpack.c.0.s8 %v4145
        %v4147 = vlaneseq
        %v4148 = vshrl.u32 %v4147, 7
        %v4149 = vsub.s32 %v4146, %v4148
        %v4150 = vrot.slane %v4143, %v4149
        %v4152 = vunpack.c.l.s4 1966171168
        %v4153 = vunpack.c.0.s8 %v4152
        %v4154 = vlaneseq
        %v4155 = vshrl.u32 %v4154, 7
        %v4156 = vsub.s32 %v4153, %v4155
        %v4157 = vrot.slane %v4150, %v4156
        %v4163 = vpack.c.bf16 %v4044, %v3995
        %v4164 = vpack.c.bf16 %v4142, %v4093
        %v4165 = vpack.c.bf16 %v4157, %v4157
        %4168 = vrot.lane.b32.xlu0 %v2936, 96
        %v4169 = vpop.permute.xlu0 %4168
        %4170 = vrot.lane.b32.xlu0 %v2937, 96
        %v4171 = vpop.permute.xlu0 %4170
        %4174 = vrot.lane.b32.xlu0 %v3170, 96
        %v4175 = vpop.permute.xlu0 %4174
        %4176 = vrot.lane.b32.xlu0 %v3171, 96
        %v4177 = vpop.permute.xlu0 %4176
        %v4179 = vsel %vm3408, %v4169, 0
        %v4182 = vsel %vm3408, %v4171, 0
        %v4185 = vsel %vm3408, %v4175, 0
        %v4188 = vsel %vm3408, %v4177, 0
        %4190 = vmatprep.subr.bf16.mxu0 0
        %4191 = vmatpush1.bf16.xpose.msra.mxu0 %v4185
        %4192 = vmatprep.subr.bf16.mxu0 0
        %4193 = vmatpush1.bf16.xpose.msra.mxu0 %v4188
        %4194 = vmatprep.subr.bf16.mxu0 0
        %4195 = vmatpush1.bf16.xpose.msra.mxu0 0
        %4196 = vmatprep.subr.bf16.mxu0 0
        %4197 = vmatpush1.bf16.xpose.msra.mxu0 0
        %4198 = vmatprep.subr.bf16.mxu0 0
        %4199 = vmatpush1.bf16.xpose.msra.mxu0 0
        %4200 = vmatprep.subr.bf16.mxu0 0
        %4201 = vmatpush1.bf16.xpose.msra.mxu0 0
        %4202 = vmatprep.subr.bf16.mxu0 0
        %4203 = vmatpush1.bf16.xpose.msra.mxu0 0
        %4204 = vmatprep.subr.bf16.mxu0 0
        %4205 = vmatpush1.bf16.xpose.msra.mxu0 0
        %4206 = vmatprep.subr.bf16.mxu0 0
        %4207 = vmatpush1.bf16.xpose.msra.mxu0 0
        %4208 = vmatprep.subr.bf16.mxu0 0
        %4209 = vmatpush1.bf16.xpose.msra.mxu0 0
        %4210 = vmatprep.subr.bf16.mxu0 0
        %4211 = vmatpush1.bf16.xpose.msra.mxu0 0
        %4212 = vmatprep.subr.bf16.mxu0 0
        %4213 = vmatpush1.bf16.xpose.msra.mxu0 0
        %4214 = vmatprep.subr.bf16.mxu0 0
        %4215 = vmatpush1.bf16.xpose.msra.mxu0 0
        %4216 = vmatprep.subr.bf16.mxu0 0
        %4217 = vmatpush1.bf16.xpose.msra.mxu0 0
        %4218 = vmatprep.subr.bf16.mxu0 0
        %4219 = vmatpush1.bf16.xpose.msra.mxu0 0
        %4220 = vmatprep.subr.bf16.mxu0 0
        %4221 = vmatpush1.bf16.xpose.msra.mxu0 0
        %4222 = vmatprep.mubr.bf16.mxu0 0
        %4223 = vmatmul.mubr.bf16.gmra.mrb[0].mxu0 %v4179
        %v4224 = vpop.f32.mrb[0].mxu0
        %v4225 = vadd.f32 0.0, %v4224
        %v4226 = vpop.f32.mrb[0].mxu0
        %v4227 = vpop.f32.mrb[0].mxu0
        %v4228 = vadd.f32 0.0, %v4227
        %v4229 = vpop.f32.mrb[0].mxu0
        %4230 = vmatprep.mubr.bf16.mxu0 0
        %4231 = vmatmul.mubr.bf16.gmra.mrb[0].mxu0 %v4182
        %v4232 = vpop.f32.mrb[0].mxu0
        %v4233 = vadd.f32 0.0, %v4232
        %v4234 = vpop.f32.mrb[0].mxu0
        %v4235 = vpop.f32.mrb[0].mxu0
        %v4236 = vpop.f32.mrb[0].mxu0
        %4237 = vdwg.mxu0
        %4240 = vrot.lane.b32.xlu0 %v2938, 96
        %v4241 = vpop.permute.xlu0 %4240
        %4242 = vrot.lane.b32.xlu0 %v2939, 96
        %v4243 = vpop.permute.xlu0 %4242
        %4246 = vrot.lane.b32.xlu0 %v3172, 96
        %v4247 = vpop.permute.xlu0 %4246
        %4248 = vrot.lane.b32.xlu0 %v3173, 96
        %v4249 = vpop.permute.xlu0 %4248
        %v4251 = vsel %vm3408, %v4241, 0
        %v4254 = vsel %vm3408, %v4243, 0
        %v4257 = vsel %vm3408, %v4247, 0
        %v4260 = vsel %vm3408, %v4249, 0
        %4262 = vmatprep.subr.bf16.mxu0 0
        %4263 = vmatpush1.bf16.xpose.msra.mxu0 %v4257
        %4264 = vmatprep.subr.bf16.mxu0 0
        %4265 = vmatpush1.bf16.xpose.msra.mxu0 %v4260
        %4266 = vmatprep.subr.bf16.mxu0 0
        %4267 = vmatpush1.bf16.xpose.msra.mxu0 0
        %4268 = vmatprep.subr.bf16.mxu0 0
        %4269 = vmatpush1.bf16.xpose.msra.mxu0 0
        %4270 = vmatprep.subr.bf16.mxu0 0
        %4271 = vmatpush1.bf16.xpose.msra.mxu0 0
        %4272 = vmatprep.subr.bf16.mxu0 0
        %4273 = vmatpush1.bf16.xpose.msra.mxu0 0
        %4274 = vmatprep.subr.bf16.mxu0 0
        %4275 = vmatpush1.bf16.xpose.msra.mxu0 0
        %4276 = vmatprep.subr.bf16.mxu0 0
        %4277 = vmatpush1.bf16.xpose.msra.mxu0 0
        %4278 = vmatprep.subr.bf16.mxu0 0
        %4279 = vmatpush1.bf16.xpose.msra.mxu0 0
        %4280 = vmatprep.subr.bf16.mxu0 0
        %4281 = vmatpush1.bf16.xpose.msra.mxu0 0
        %4282 = vmatprep.subr.bf16.mxu0 0
        %4283 = vmatpush1.bf16.xpose.msra.mxu0 0
        %4284 = vmatprep.subr.bf16.mxu0 0
        %4285 = vmatpush1.bf16.xpose.msra.mxu0 0
        %4286 = vmatprep.subr.bf16.mxu0 0
        %4287 = vmatpush1.bf16.xpose.msra.mxu0 0
        %4288 = vmatprep.subr.bf16.mxu0 0
        %4289 = vmatpush1.bf16.xpose.msra.mxu0 0
        %4290 = vmatprep.subr.bf16.mxu0 0
        %4291 = vmatpush1.bf16.xpose.msra.mxu0 0
        %4292 = vmatprep.subr.bf16.mxu0 0
        %4293 = vmatpush1.bf16.xpose.msra.mxu0 0
        %4294 = vmatprep.mubr.bf16.mxu0 0
        %4295 = vmatmul.mubr.bf16.gmra.mrb[0].mxu0 %v4251
        %v4296 = vpop.f32.mrb[0].mxu0
        %v4297 = vadd.f32 0.0, %v4296
        %v4298 = vpop.f32.mrb[0].mxu0
        %v4299 = vpop.f32.mrb[0].mxu0
        %v4300 = vadd.f32 0.0, %v4299
        %v4301 = vpop.f32.mrb[0].mxu0
        %4302 = vmatprep.mubr.bf16.mxu0 0
        %4303 = vmatmul.mubr.bf16.gmra.mrb[0].mxu0 %v4254
        %v4304 = vpop.f32.mrb[0].mxu0
        %v4305 = vadd.f32 0.0, %v4304
        %v4306 = vpop.f32.mrb[0].mxu0
        %v4307 = vpop.f32.mrb[0].mxu0
        %v4308 = vpop.f32.mrb[0].mxu0
        %4309 = vdwg.mxu0
        %v4310 = vsel %vm3529, %v4225, -inf
        %4311 = vmax.xlane.f32.xlu0 %v4310
        %v4312 = vpop.xlane.xlu0 %4311
        %v4313 = vsel %vm3529, %v4228, -inf
        %4314 = vmax.xlane.f32.xlu0 %v4313
        %v4315 = vpop.xlane.xlu0 %4314
        %v4316 = vsel %vm3536, %v4233, -inf
        %4317 = vmax.xlane.f32.xlu0 %v4316
        %v4318 = vpop.xlane.xlu0 %4317
        %v4319 = vsel %vm3529, %v4297, -inf
        %4320 = vmax.xlane.f32.xlu0 %v4319
        %v4321 = vpop.xlane.xlu0 %4320
        %v4322 = vsel %vm3529, %v4300, -inf
        %4323 = vmax.xlane.f32.xlu0 %v4322
        %v4324 = vpop.xlane.xlu0 %4323
        %v4325 = vsel %vm3536, %v4305, -inf
        %4326 = vmax.xlane.f32.xlu0 %v4325
        %v4327 = vpop.xlane.xlu0 %4326
        %v4328 = vsub.f32 %v4225, %v4312
        %v4329 = vsub.f32 %v4228, %v4315
        %v4330 = vsub.f32 %v4233, %v4318
        %v4331 = vsub.f32 %v4297, %v4321
        %v4332 = vsub.f32 %v4300, %v4324
        %v4333 = vsub.f32 %v4305, %v4327
        %v4334 = vmul.f32 %v4328, 1.442695
        %v4335 = vpow.pop %v4334
        %v4336 = vmul.f32 %v4329, 1.442695
        %v4337 = vpow.pop %v4336
        %v4338 = vmul.f32 %v4330, 1.442695
        %v4339 = vpow.pop %v4338
        %v4340 = vmul.f32 %v4331, 1.442695
        %v4341 = vpow.pop %v4340
        %v4342 = vmul.f32 %v4332, 1.442695
        %v4343 = vpow.pop %v4342
        %v4344 = vmul.f32 %v4333, 1.442695
        %v4345 = vpow.pop %v4344
        %v4346 = vsel %vm3529, %v4335, 0.0
        %4347 = vadd.xlane.f32.xlu0 %v4346
        %v4348 = vpop.xlane.xlu0 %4347
        %v4349 = vsel %vm3529, %v4337, 0.0
        %4350 = vadd.xlane.f32.xlu0 %v4349
        %v4351 = vpop.xlane.xlu0 %4350
        %v4352 = vsel %vm3536, %v4339, 0.0
        %4353 = vadd.xlane.f32.xlu0 %v4352
        %v4354 = vpop.xlane.xlu0 %4353
        %v4355 = vsel %vm3529, %v4341, 0.0
        %4356 = vadd.xlane.f32.xlu0 %v4355
        %v4357 = vpop.xlane.xlu0 %4356
        %v4358 = vsel %vm3529, %v4343, 0.0
        %4359 = vadd.xlane.f32.xlu0 %v4358
        %v4360 = vpop.xlane.xlu0 %4359
        %v4361 = vsel %vm3536, %v4345, 0.0
        %4362 = vadd.xlane.f32.xlu0 %v4361
        %v4363 = vpop.xlane.xlu0 %4362
        %v4364 = vrcp.pop %v4348
        %v4365 = vrcp.pop %v4351
        %v4366 = vrcp.pop %v4354
        %v4367 = vrcp.pop %v4357
        %v4368 = vrcp.pop %v4360
        %v4369 = vrcp.pop %v4363
        %v4370 = vmul.f32 %v4335, %v4364
        %v4371 = vmul.f32 %v4337, %v4365
        %v4372 = vmul.f32 %v4339, %v4366
        %v4373 = vmul.f32 %v4341, %v4367
        %v4374 = vmul.f32 %v4343, %v4368
        %v4375 = vmul.f32 %v4345, %v4369
        %v4376 = vpack.c.bf16 %v4371, %v4370
        %v4377 = vpack.c.bf16 %v4372, %v4372
        %v4378 = vpack.c.bf16 %v4374, %v4373
        %v4379 = vpack.c.bf16 %v4375, %v4375
        %4382 = vrot.lane.b32.xlu0 %v3404, 96
        %v4383 = vpop.permute.xlu0 %4382
        %4384 = vrot.lane.b32.xlu0 %v3405, 96
        %v4385 = vpop.permute.xlu0 %4384
        %v4388 = vsel %vm3529, %v4376, 0
        %v4391 = vsel %vm3529, %v4377, 0
        %v4394 = vand.u32 %v4385, %v3608
        %4396 = vmatprep.subr.bf16.mxu0 0
        %4397 = vmatpush1.bf16.msra.mxu0 %v4383
        %4398 = vmatprep.subr.bf16.mxu0 0
        %4399 = vmatpush1.bf16.msra.mxu0 %v4394
        %4400 = vmatprep.subr.bf16.mxu0 0
        %4401 = vmatpush1.bf16.msra.mxu0 0
        %4402 = vmatprep.subr.bf16.mxu0 0
        %4403 = vmatpush1.bf16.msra.mxu0 0
        %4404 = vmatprep.subr.bf16.mxu0 0
        %4405 = vmatpush1.bf16.msra.mxu0 0
        %4406 = vmatprep.subr.bf16.mxu0 0
        %4407 = vmatpush1.bf16.msra.mxu0 0
        %4408 = vmatprep.subr.bf16.mxu0 0
        %4409 = vmatpush1.bf16.msra.mxu0 0
        %4410 = vmatprep.subr.bf16.mxu0 0
        %4411 = vmatpush1.bf16.msra.mxu0 0
        %4412 = vmatprep.subr.bf16.mxu0 0
        %4413 = vmatpush1.bf16.msra.mxu0 0
        %4414 = vmatprep.subr.bf16.mxu0 0
        %4415 = vmatpush1.bf16.msra.mxu0 0
        %4416 = vmatprep.subr.bf16.mxu0 0
        %4417 = vmatpush1.bf16.msra.mxu0 0
        %4418 = vmatprep.subr.bf16.mxu0 0
        %4419 = vmatpush1.bf16.msra.mxu0 0
        %4420 = vmatprep.subr.bf16.mxu0 0
        %4421 = vmatpush1.bf16.msra.mxu0 0
        %4422 = vmatprep.subr.bf16.mxu0 0
        %4423 = vmatpush1.bf16.msra.mxu0 0
        %4424 = vmatprep.subr.bf16.mxu0 0
        %4425 = vmatpush1.bf16.msra.mxu0 0
        %4426 = vmatprep.subr.bf16.mxu0 0
        %4427 = vmatpush1.bf16.msra.mxu0 0
        %4428 = vmatprep.mubr.bf16.mxu0 0
        %4429 = vmatmul.mubr.bf16.gmra.mrb[0].mxu0 %v4388
        %v4430 = vpop.f32.mrb[0].mxu0
        %v4431 = vadd.f32 0.0, %v4430
        %v4432 = vpop.f32.mrb[0].mxu0
        %v4433 = vpop.f32.mrb[0].mxu0
        %v4434 = vadd.f32 0.0, %v4433
        %v4435 = vpop.f32.mrb[0].mxu0
        %4436 = vmatprep.mubr.bf16.mxu0 0
        %4437 = vmatmul.mubr.bf16.gmra.mrb[0].mxu0 %v4391
        %v4438 = vpop.f32.mrb[0].mxu0
        %v4439 = vadd.f32 0.0, %v4438
        %v4440 = vpop.f32.mrb[0].mxu0
        %v4441 = vpop.f32.mrb[0].mxu0
        %v4442 = vpop.f32.mrb[0].mxu0
        %4443 = vdwg.mxu0
        %4446 = vrot.lane.b32.xlu0 %v3406, 96
        %v4447 = vpop.permute.xlu0 %4446
        %4448 = vrot.lane.b32.xlu0 %v3407, 96
        %v4449 = vpop.permute.xlu0 %4448
        %v4452 = vsel %vm3529, %v4378, 0
        %v4455 = vsel %vm3529, %v4379, 0
        %v4458 = vand.u32 %v4449, %v3608
        %4460 = vmatprep.subr.bf16.mxu0 0
        %4461 = vmatpush1.bf16.msra.mxu0 %v4447
        %4462 = vmatprep.subr.bf16.mxu0 0
        %4463 = vmatpush1.bf16.msra.mxu0 %v4458
        %4464 = vmatprep.subr.bf16.mxu0 0
        %4465 = vmatpush1.bf16.msra.mxu0 0
        %4466 = vmatprep.subr.bf16.mxu0 0
        %4467 = vmatpush1.bf16.msra.mxu0 0
        %4468 = vmatprep.subr.bf16.mxu0 0
        %4469 = vmatpush1.bf16.msra.mxu0 0
        %4470 = vmatprep.subr.bf16.mxu0 0
        %4471 = vmatpush1.bf16.msra.mxu0 0
        %4472 = vmatprep.subr.bf16.mxu0 0
        %4473 = vmatpush1.bf16.msra.mxu0 0
        %4474 = vmatprep.subr.bf16.mxu0 0
        %4475 = vmatpush1.bf16.msra.mxu0 0
        %4476 = vmatprep.subr.bf16.mxu0 0
        %4477 = vmatpush1.bf16.msra.mxu0 0
        %4478 = vmatprep.subr.bf16.mxu0 0
        %4479 = vmatpush1.bf16.msra.mxu0 0
        %4480 = vmatprep.subr.bf16.mxu0 0
        %4481 = vmatpush1.bf16.msra.mxu0 0
        %4482 = vmatprep.subr.bf16.mxu0 0
        %4483 = vmatpush1.bf16.msra.mxu0 0
        %4484 = vmatprep.subr.bf16.mxu0 0
        %4485 = vmatpush1.bf16.msra.mxu0 0
        %4486 = vmatprep.subr.bf16.mxu0 0
        %4487 = vmatpush1.bf16.msra.mxu0 0
        %4488 = vmatprep.subr.bf16.mxu0 0
        %4489 = vmatpush1.bf16.msra.mxu0 0
        %4490 = vmatprep.subr.bf16.mxu0 0
        %4491 = vmatpush1.bf16.msra.mxu0 0
        %4492 = vmatprep.mubr.bf16.mxu0 0
        %4493 = vmatmul.mubr.bf16.gmra.mrb[0].mxu0 %v4452
        %v4494 = vpop.f32.mrb[0].mxu0
        %v4495 = vadd.f32 0.0, %v4494
        %v4496 = vpop.f32.mrb[0].mxu0
        %v4497 = vpop.f32.mrb[0].mxu0
        %v4498 = vadd.f32 0.0, %v4497
        %v4499 = vpop.f32.mrb[0].mxu0
        %4500 = vmatprep.mubr.bf16.mxu0 0
        %4501 = vmatmul.mubr.bf16.gmra.mrb[0].mxu0 %v4455
        %v4502 = vpop.f32.mrb[0].mxu0
        %v4503 = vadd.f32 0.0, %v4502
        %v4504 = vpop.f32.mrb[0].mxu0
        %v4505 = vpop.f32.mrb[0].mxu0
        %v4506 = vpop.f32.mrb[0].mxu0
        %4507 = vdwg.mxu0
        %v4514 = vcombine.high %v4431, %v4431
        %v4516 = vunpack.c.l.s4 1966171168
        %v4517 = vunpack.c.0.s8 %v4516
        %v4518 = vlaneseq
        %v4519 = vshrl.u32 %v4518, 7
        %v4520 = vsub.s32 %v4517, %v4519
        %v4521 = vrot.slane %v4431, %v4520
        %v4523 = vunpack.c.l.s4 1966171168
        %v4524 = vunpack.c.0.s8 %v4523
        %v4525 = vlaneseq
        %v4526 = vshrl.u32 %v4525, 7
        %v4527 = vsub.s32 %v4524, %v4526
        %v4528 = vrot.slane %v4514, %v4527
        %v4529 = vcombine.high %v4521, %v4521
        %v4530 = vcombine.high %v4528, %v4528
        %v4532 = vunpack.c.l.s4 1966171168
        %v4533 = vunpack.c.0.s8 %v4532
        %v4534 = vlaneseq
        %v4535 = vshrl.u32 %v4534, 7
        %v4536 = vsub.s32 %v4533, %v4535
        %v4537 = vrot.slane %v4521, %v4536
        %v4539 = vunpack.c.l.s4 1966171168
        %v4540 = vunpack.c.0.s8 %v4539
        %v4541 = vlaneseq
        %v4542 = vshrl.u32 %v4541, 7
        %v4543 = vsub.s32 %v4540, %v4542
        %v4544 = vrot.slane %v4528, %v4543
        %v4546 = vunpack.c.l.s4 1966171168
        %v4547 = vunpack.c.0.s8 %v4546
        %v4548 = vlaneseq
        %v4549 = vshrl.u32 %v4548, 7
        %v4550 = vsub.s32 %v4547, %v4549
        %v4551 = vrot.slane %v4529, %v4550
        %v4553 = vunpack.c.l.s4 1966171168
        %v4554 = vunpack.c.0.s8 %v4553
        %v4555 = vlaneseq
        %v4556 = vshrl.u32 %v4555, 7
        %v4557 = vsub.s32 %v4554, %v4556
        %v4558 = vrot.slane %v4530, %v4557
        %v4559 = vcombine.high %v4537, %v4537
        %v4560 = vcombine.high %v4544, %v4544
        %v4561 = vcombine.high %v4551, %v4551
        %v4562 = vcombine.high %v4558, %v4558
        %v4563 = vcombine.high %v4434, %v4434
        %v4565 = vunpack.c.l.s4 1966171168
        %v4566 = vunpack.c.0.s8 %v4565
        %v4567 = vlaneseq
        %v4568 = vshrl.u32 %v4567, 7
        %v4569 = vsub.s32 %v4566, %v4568
        %v4570 = vrot.slane %v4434, %v4569
        %v4572 = vunpack.c.l.s4 1966171168
        %v4573 = vunpack.c.0.s8 %v4572
        %v4574 = vlaneseq
        %v4575 = vshrl.u32 %v4574, 7
        %v4576 = vsub.s32 %v4573, %v4575
        %v4577 = vrot.slane %v4563, %v4576
        %v4578 = vcombine.high %v4570, %v4570
        %v4579 = vcombine.high %v4577, %v4577
        %v4581 = vunpack.c.l.s4 1966171168
        %v4582 = vunpack.c.0.s8 %v4581
        %v4583 = vlaneseq
        %v4584 = vshrl.u32 %v4583, 7
        %v4585 = vsub.s32 %v4582, %v4584
        %v4586 = vrot.slane %v4570, %v4585
        %v4588 = vunpack.c.l.s4 1966171168
        %v4589 = vunpack.c.0.s8 %v4588
        %v4590 = vlaneseq
        %v4591 = vshrl.u32 %v4590, 7
        %v4592 = vsub.s32 %v4589, %v4591
        %v4593 = vrot.slane %v4577, %v4592
        %v4595 = vunpack.c.l.s4 1966171168
        %v4596 = vunpack.c.0.s8 %v4595
        %v4597 = vlaneseq
        %v4598 = vshrl.u32 %v4597, 7
        %v4599 = vsub.s32 %v4596, %v4598
        %v4600 = vrot.slane %v4578, %v4599
        %v4602 = vunpack.c.l.s4 1966171168
        %v4603 = vunpack.c.0.s8 %v4602
        %v4604 = vlaneseq
        %v4605 = vshrl.u32 %v4604, 7
        %v4606 = vsub.s32 %v4603, %v4605
        %v4607 = vrot.slane %v4579, %v4606
        %v4608 = vcombine.high %v4586, %v4586
        %v4609 = vcombine.high %v4593, %v4593
        %v4610 = vcombine.high %v4600, %v4600
        %v4611 = vcombine.high %v4607, %v4607
        %v4613 = vunpack.c.l.s4 1966171168
        %v4614 = vunpack.c.0.s8 %v4613
        %v4615 = vlaneseq
        %v4616 = vshrl.u32 %v4615, 7
        %v4617 = vsub.s32 %v4614, %v4616
        %v4618 = vrot.slane %v4439, %v4617
        %v4620 = vunpack.c.l.s4 1966171168
        %v4621 = vunpack.c.0.s8 %v4620
        %v4622 = vlaneseq
        %v4623 = vshrl.u32 %v4622, 7
        %v4624 = vsub.s32 %v4621, %v4623
        %v4625 = vrot.slane %v4618, %v4624
        %v4626 = vcombine.high %v4495, %v4495
        %v4628 = vunpack.c.l.s4 1966171168
        %v4629 = vunpack.c.0.s8 %v4628
        %v4630 = vlaneseq
        %v4631 = vshrl.u32 %v4630, 7
        %v4632 = vsub.s32 %v4629, %v4631
        %v4633 = vrot.slane %v4495, %v4632
        %v4635 = vunpack.c.l.s4 1966171168
        %v4636 = vunpack.c.0.s8 %v4635
        %v4637 = vlaneseq
        %v4638 = vshrl.u32 %v4637, 7
        %v4639 = vsub.s32 %v4636, %v4638
        %v4640 = vrot.slane %v4626, %v4639
        %v4641 = vcombine.high %v4633, %v4633
        %v4642 = vcombine.high %v4640, %v4640
        %v4644 = vunpack.c.l.s4 1966171168
        %v4645 = vunpack.c.0.s8 %v4644
        %v4646 = vlaneseq
        %v4647 = vshrl.u32 %v4646, 7
        %v4648 = vsub.s32 %v4645, %v4647
        %v4649 = vrot.slane %v4633, %v4648
        %v4651 = vunpack.c.l.s4 1966171168
        %v4652 = vunpack.c.0.s8 %v4651
        %v4653 = vlaneseq
        %v4654 = vshrl.u32 %v4653, 7
        %v4655 = vsub.s32 %v4652, %v4654
        %v4656 = vrot.slane %v4640, %v4655
        %v4658 = vunpack.c.l.s4 1966171168
        %v4659 = vunpack.c.0.s8 %v4658
        %v4660 = vlaneseq
        %v4661 = vshrl.u32 %v4660, 7
        %v4662 = vsub.s32 %v4659, %v4661
        %v4663 = vrot.slane %v4641, %v4662
        %v4665 = vunpack.c.l.s4 1966171168
        %v4666 = vunpack.c.0.s8 %v4665
        %v4667 = vlaneseq
        %v4668 = vshrl.u32 %v4667, 7
        %v4669 = vsub.s32 %v4666, %v4668
        %v4670 = vrot.slane %v4642, %v4669
        %v4671 = vcombine.high %v4649, %v4649
        %v4672 = vcombine.high %v4656, %v4656
        %v4673 = vcombine.high %v4663, %v4663
        %v4674 = vcombine.high %v4670, %v4670
        %v4675 = vcombine.high %v4498, %v4498
        %v4677 = vunpack.c.l.s4 1966171168
        %v4678 = vunpack.c.0.s8 %v4677
        %v4679 = vlaneseq
        %v4680 = vshrl.u32 %v4679, 7
        %v4681 = vsub.s32 %v4678, %v4680
        %v4682 = vrot.slane %v4498, %v4681
        %v4684 = vunpack.c.l.s4 1966171168
        %v4685 = vunpack.c.0.s8 %v4684
        %v4686 = vlaneseq
        %v4687 = vshrl.u32 %v4686, 7
        %v4688 = vsub.s32 %v4685, %v4687
        %v4689 = vrot.slane %v4675, %v4688
        %v4690 = vcombine.high %v4682, %v4682
        %v4691 = vcombine.high %v4689, %v4689
        %v4693 = vunpack.c.l.s4 1966171168
        %v4694 = vunpack.c.0.s8 %v4693
        %v4695 = vlaneseq
        %v4696 = vshrl.u32 %v4695, 7
        %v4697 = vsub.s32 %v4694, %v4696
        %v4698 = vrot.slane %v4682, %v4697
        %v4700 = vunpack.c.l.s4 1966171168
        %v4701 = vunpack.c.0.s8 %v4700
        %v4702 = vlaneseq
        %v4703 = vshrl.u32 %v4702, 7
        %v4704 = vsub.s32 %v4701, %v4703
        %v4705 = vrot.slane %v4689, %v4704
        %v4707 = vunpack.c.l.s4 1966171168
        %v4708 = vunpack.c.0.s8 %v4707
        %v4709 = vlaneseq
        %v4710 = vshrl.u32 %v4709, 7
        %v4711 = vsub.s32 %v4708, %v4710
        %v4712 = vrot.slane %v4690, %v4711
        %v4714 = vunpack.c.l.s4 1966171168
        %v4715 = vunpack.c.0.s8 %v4714
        %v4716 = vlaneseq
        %v4717 = vshrl.u32 %v4716, 7
        %v4718 = vsub.s32 %v4715, %v4717
        %v4719 = vrot.slane %v4691, %v4718
        %v4720 = vcombine.high %v4698, %v4698
        %v4721 = vcombine.high %v4705, %v4705
        %v4722 = vcombine.high %v4712, %v4712
        %v4723 = vcombine.high %v4719, %v4719
        %v4725 = vunpack.c.l.s4 1966171168
        %v4726 = vunpack.c.0.s8 %v4725
        %v4727 = vlaneseq
        %v4728 = vshrl.u32 %v4727, 7
        %v4729 = vsub.s32 %v4726, %v4728
        %v4730 = vrot.slane %v4503, %v4729
        %v4732 = vunpack.c.l.s4 1966171168
        %v4733 = vunpack.c.0.s8 %v4732
        %v4734 = vlaneseq
        %v4735 = vshrl.u32 %v4734, 7
        %v4736 = vsub.s32 %v4733, %v4735
        %v4737 = vrot.slane %v4730, %v4736
        %v4738 = vcombine.low %v4537, %v4551
        %v4739 = vcombine.low %v4559, %v4561
        %v4740 = vcombine.low %v4544, %v4558
        %v4741 = vcombine.low %v4560, %v4562
        %v4743 = vunpack.c.l.s4 1966171168
        %v4744 = vunpack.c.0.s8 %v4743
        %v4745 = vlaneseq
        %v4746 = vshrl.u32 %v4745, 7
        %v4747 = vsub.s32 %v4744, %v4746
        %v4748 = vrot.slane %v4738, %v4747
        %v4750 = vunpack.c.l.s4 1966171168
        %v4751 = vunpack.c.0.s8 %v4750
        %v4752 = vlaneseq
        %v4753 = vshrl.u32 %v4752, 7
        %v4754 = vsub.s32 %v4751, %v4753
        %v4755 = vrot.slane %v4739, %v4754
        %v4757 = vunpack.c.l.s4 1966171168
        %v4758 = vunpack.c.0.s8 %v4757
        %v4759 = vlaneseq
        %v4760 = vshrl.u32 %v4759, 7
        %v4761 = vsub.s32 %v4758, %v4760
        %v4762 = vrot.slane %v4740, %v4761
        %v4764 = vunpack.c.l.s4 1966171168
        %v4765 = vunpack.c.0.s8 %v4764
        %v4766 = vlaneseq
        %v4767 = vshrl.u32 %v4766, 7
        %v4768 = vsub.s32 %v4765, %v4767
        %v4769 = vrot.slane %v4741, %v4768
        %v4770 = vcombine.low %v4748, %v4755
        %v4771 = vcombine.low %v4762, %v4769
        %v4773 = vunpack.c.l.s4 1966171168
        %v4774 = vunpack.c.0.s8 %v4773
        %v4775 = vlaneseq
        %v4776 = vshrl.u32 %v4775, 7
        %v4777 = vsub.s32 %v4774, %v4776
        %v4778 = vrot.slane %v4770, %v4777
        %v4780 = vunpack.c.l.s4 1966171168
        %v4781 = vunpack.c.0.s8 %v4780
        %v4782 = vlaneseq
        %v4783 = vshrl.u32 %v4782, 7
        %v4784 = vsub.s32 %v4781, %v4783
        %v4785 = vrot.slane %v4771, %v4784
        %v4786 = vcombine.low %v4778, %v4785
        %v4787 = vcombine.low %v4586, %v4600
        %v4788 = vcombine.low %v4608, %v4610
        %v4789 = vcombine.low %v4593, %v4607
        %v4790 = vcombine.low %v4609, %v4611
        %v4792 = vunpack.c.l.s4 1966171168
        %v4793 = vunpack.c.0.s8 %v4792
        %v4794 = vlaneseq
        %v4795 = vshrl.u32 %v4794, 7
        %v4796 = vsub.s32 %v4793, %v4795
        %v4797 = vrot.slane %v4787, %v4796
        %v4799 = vunpack.c.l.s4 1966171168
        %v4800 = vunpack.c.0.s8 %v4799
        %v4801 = vlaneseq
        %v4802 = vshrl.u32 %v4801, 7
        %v4803 = vsub.s32 %v4800, %v4802
        %v4804 = vrot.slane %v4788, %v4803
        %v4806 = vunpack.c.l.s4 1966171168
        %v4807 = vunpack.c.0.s8 %v4806
        %v4808 = vlaneseq
        %v4809 = vshrl.u32 %v4808, 7
        %v4810 = vsub.s32 %v4807, %v4809
        %v4811 = vrot.slane %v4789, %v4810
        %v4813 = vunpack.c.l.s4 1966171168
        %v4814 = vunpack.c.0.s8 %v4813
        %v4815 = vlaneseq
        %v4816 = vshrl.u32 %v4815, 7
        %v4817 = vsub.s32 %v4814, %v4816
        %v4818 = vrot.slane %v4790, %v4817
        %v4819 = vcombine.low %v4797, %v4804
        %v4820 = vcombine.low %v4811, %v4818
        %v4822 = vunpack.c.l.s4 1966171168
        %v4823 = vunpack.c.0.s8 %v4822
        %v4824 = vlaneseq
        %v4825 = vshrl.u32 %v4824, 7
        %v4826 = vsub.s32 %v4823, %v4825
        %v4827 = vrot.slane %v4819, %v4826
        %v4829 = vunpack.c.l.s4 1966171168
        %v4830 = vunpack.c.0.s8 %v4829
        %v4831 = vlaneseq
        %v4832 = vshrl.u32 %v4831, 7
        %v4833 = vsub.s32 %v4830, %v4832
        %v4834 = vrot.slane %v4820, %v4833
        %v4835 = vcombine.low %v4827, %v4834
        %v4836 = vcombine.low %v4625, %v4649
        %v4837 = vcombine.low %v4663, %v4671
        %v4838 = vcombine.low %v4673, %v4656
        %v4839 = vcombine.low %v4670, %v4672
        %v4841 = vunpack.c.l.s4 1966171168
        %v4842 = vunpack.c.0.s8 %v4841
        %v4843 = vlaneseq
        %v4844 = vshrl.u32 %v4843, 7
        %v4845 = vsub.s32 %v4842, %v4844
        %v4846 = vrot.slane %v4836, %v4845
        %v4848 = vunpack.c.l.s4 1966171168
        %v4849 = vunpack.c.0.s8 %v4848
        %v4850 = vlaneseq
        %v4851 = vshrl.u32 %v4850, 7
        %v4852 = vsub.s32 %v4849, %v4851
        %v4853 = vrot.slane %v4837, %v4852
        %v4855 = vunpack.c.l.s4 1966171168
        %v4856 = vunpack.c.0.s8 %v4855
        %v4857 = vlaneseq
        %v4858 = vshrl.u32 %v4857, 7
        %v4859 = vsub.s32 %v4856, %v4858
        %v4860 = vrot.slane %v4838, %v4859
        %v4862 = vunpack.c.l.s4 1966171168
        %v4863 = vunpack.c.0.s8 %v4862
        %v4864 = vlaneseq
        %v4865 = vshrl.u32 %v4864, 7
        %v4866 = vsub.s32 %v4863, %v4865
        %v4867 = vrot.slane %v4839, %v4866
        %v4868 = vcombine.low %v4846, %v4853
        %v4869 = vcombine.low %v4860, %v4867
        %v4871 = vunpack.c.l.s4 1966171168
        %v4872 = vunpack.c.0.s8 %v4871
        %v4873 = vlaneseq
        %v4874 = vshrl.u32 %v4873, 7
        %v4875 = vsub.s32 %v4872, %v4874
        %v4876 = vrot.slane %v4868, %v4875
        %v4878 = vunpack.c.l.s4 1966171168
        %v4879 = vunpack.c.0.s8 %v4878
        %v4880 = vlaneseq
        %v4881 = vshrl.u32 %v4880, 7
        %v4882 = vsub.s32 %v4879, %v4881
        %v4883 = vrot.slane %v4869, %v4882
        %v4884 = vcombine.low %v4876, %v4883
        %v4885 = vcombine.low %v4674, %v4698
        %v4886 = vcombine.low %v4712, %v4720
        %v4887 = vcombine.low %v4722, %v4705
        %v4888 = vcombine.low %v4719, %v4721
        %v4890 = vunpack.c.l.s4 1966171168
        %v4891 = vunpack.c.0.s8 %v4890
        %v4892 = vlaneseq
        %v4893 = vshrl.u32 %v4892, 7
        %v4894 = vsub.s32 %v4891, %v4893
        %v4895 = vrot.slane %v4885, %v4894
        %v4897 = vunpack.c.l.s4 1966171168
        %v4898 = vunpack.c.0.s8 %v4897
        %v4899 = vlaneseq
        %v4900 = vshrl.u32 %v4899, 7
        %v4901 = vsub.s32 %v4898, %v4900
        %v4902 = vrot.slane %v4886, %v4901
        %v4904 = vunpack.c.l.s4 1966171168
        %v4905 = vunpack.c.0.s8 %v4904
        %v4906 = vlaneseq
        %v4907 = vshrl.u32 %v4906, 7
        %v4908 = vsub.s32 %v4905, %v4907
        %v4909 = vrot.slane %v4887, %v4908
        %v4911 = vunpack.c.l.s4 1966171168
        %v4912 = vunpack.c.0.s8 %v4911
        %v4913 = vlaneseq
        %v4914 = vshrl.u32 %v4913, 7
        %v4915 = vsub.s32 %v4912, %v4914
        %v4916 = vrot.slane %v4888, %v4915
        %v4917 = vcombine.low %v4895, %v4902
        %v4918 = vcombine.low %v4909, %v4916
        %v4920 = vunpack.c.l.s4 1966171168
        %v4921 = vunpack.c.0.s8 %v4920
        %v4922 = vlaneseq
        %v4923 = vshrl.u32 %v4922, 7
        %v4924 = vsub.s32 %v4921, %v4923
        %v4925 = vrot.slane %v4917, %v4924
        %v4927 = vunpack.c.l.s4 1966171168
        %v4928 = vunpack.c.0.s8 %v4927
        %v4929 = vlaneseq
        %v4930 = vshrl.u32 %v4929, 7
        %v4931 = vsub.s32 %v4928, %v4930
        %v4932 = vrot.slane %v4918, %v4931
        %v4933 = vcombine.low %v4925, %v4932
        %v4934 = vcombine.low %v4723, %v4737
        %v4936 = vunpack.c.l.s4 1966171168
        %v4937 = vunpack.c.0.s8 %v4936
        %v4938 = vlaneseq
        %v4939 = vshrl.u32 %v4938, 7
        %v4940 = vsub.s32 %v4937, %v4939
        %v4941 = vrot.slane %v4934, %v4940
        %v4943 = vunpack.c.l.s4 1966171168
        %v4944 = vunpack.c.0.s8 %v4943
        %v4945 = vlaneseq
        %v4946 = vshrl.u32 %v4945, 7
        %v4947 = vsub.s32 %v4944, %v4946
        %v4948 = vrot.slane %v4941, %v4947
        %v4954 = vpack.c.bf16 %v4835, %v4786
        %v4955 = vpack.c.bf16 %v4933, %v4884
        %v4956 = vpack.c.bf16 %v4948, %v4948
        %v4961 = vunpack.c.l.b16 %v2694
        %v4962 = vunpack.c.l.b16 %v2695
        %v4963 = vunpack.c.l.b16 %v2696
        %v4964 = vunpack.c.l.b16 %v2697
        %v4965 = vpack.c.b16 %v4962, %v4961
        %v4966 = vpack.c.b16 %v4964, %v4963
        %v4970 = vsel %vm3408, %v4954, 0
        %v4973 = vsel %vm3408, %v4955, 0
        %v4976 = vsel %vm3408, %v4956, 0
        %4978 = vmatprep.subr.bf16.mxu0 0
        %4979 = vmatpush1.bf16.msra.mxu0 %v4965
        %4980 = vmatprep.subr.bf16.mxu0 0
        %4981 = vmatpush1.bf16.msra.mxu0 %v4966
        %4982 = vmatprep.subr.bf16.mxu0 0
        %4983 = vmatpush1.bf16.msra.mxu0 0
        %4984 = vmatprep.subr.bf16.mxu0 0
        %4985 = vmatpush1.bf16.msra.mxu0 0
        %4986 = vmatprep.subr.bf16.mxu0 0
        %4987 = vmatpush1.bf16.msra.mxu0 0
        %4988 = vmatprep.subr.bf16.mxu0 0
        %4989 = vmatpush1.bf16.msra.mxu0 0
        %4990 = vmatprep.subr.bf16.mxu0 0
        %4991 = vmatpush1.bf16.msra.mxu0 0
        %4992 = vmatprep.subr.bf16.mxu0 0
        %4993 = vmatpush1.bf16.msra.mxu0 0
        %4994 = vmatprep.subr.bf16.mxu0 0
        %4995 = vmatpush1.bf16.msra.mxu0 0
        %4996 = vmatprep.subr.bf16.mxu0 0
        %4997 = vmatpush1.bf16.msra.mxu0 0
        %4998 = vmatprep.subr.bf16.mxu0 0
        %4999 = vmatpush1.bf16.msra.mxu0 0
        %5000 = vmatprep.subr.bf16.mxu0 0
        %5001 = vmatpush1.bf16.msra.mxu0 0
        %5002 = vmatprep.subr.bf16.mxu0 0
        %5003 = vmatpush1.bf16.msra.mxu0 0
        %5004 = vmatprep.subr.bf16.mxu0 0
        %5005 = vmatpush1.bf16.msra.mxu0 0
        %5006 = vmatprep.subr.bf16.mxu0 0
        %5007 = vmatpush1.bf16.msra.mxu0 0
        %5008 = vmatprep.subr.bf16.mxu0 0
        %5009 = vmatpush1.bf16.msra.mxu0 0
        %5010 = vmatprep.mubr.bf16.mxu0 0
        %5011 = vmatmul.mubr.bf16.gmra.mrb[0].mxu0 %v4970
        %v5012 = vpop.f32.mrb[0].mxu0
        %v5013 = vadd.f32 0.0, %v5012
        %v5014 = vpop.f32.mrb[0].mxu0
        %v5015 = vpop.f32.mrb[0].mxu0
        %v5016 = vadd.f32 0.0, %v5015
        %v5017 = vpop.f32.mrb[0].mxu0
        %5018 = vmatprep.mubr.bf16.mxu0 0
        %5019 = vmatmul.mubr.bf16.gmra.mrb[0].mxu0 %v4973
        %v5020 = vpop.f32.mrb[0].mxu0
        %v5021 = vadd.f32 0.0, %v5020
        %v5022 = vpop.f32.mrb[0].mxu0
        %v5023 = vpop.f32.mrb[0].mxu0
        %v5024 = vadd.f32 0.0, %v5023
        %v5025 = vpop.f32.mrb[0].mxu0
        %5026 = vmatprep.mubr.bf16.mxu0 0
        %5027 = vmatmul.mubr.bf16.gmra.mrb[0].mxu0 %v4976
        %v5028 = vpop.f32.mrb[0].mxu0
        %v5029 = vadd.f32 0.0, %v5028
        %v5030 = vpop.f32.mrb[0].mxu0
        %v5031 = vpop.f32.mrb[0].mxu0
        %v5032 = vpop.f32.mrb[0].mxu0
        %5033 = vdwg.mxu0
        %v5038 = vunpack.c.l.b16 %v2690
        %v5039 = vunpack.c.l.b16 %v2691
        %v5040 = vunpack.c.l.b16 %v2692
        %v5041 = vunpack.c.l.b16 %v2693
        %v5042 = vpack.c.b16 %v5039, %v5038
        %v5043 = vpack.c.b16 %v5041, %v5040
        %v5047 = vsel %vm3408, %v4163, 0
        %v5050 = vsel %vm3408, %v4164, 0
        %v5053 = vsel %vm3408, %v4165, 0
        %5055 = vmatprep.subr.bf16.mxu0 0
        %5056 = vmatpush1.bf16.msra.mxu0 %v5042
        %5057 = vmatprep.subr.bf16.mxu0 0
        %5058 = vmatpush1.bf16.msra.mxu0 %v5043
        %5059 = vmatprep.subr.bf16.mxu0 0
        %5060 = vmatpush1.bf16.msra.mxu0 0
        %5061 = vmatprep.subr.bf16.mxu0 0
        %5062 = vmatpush1.bf16.msra.mxu0 0
        %5063 = vmatprep.subr.bf16.mxu0 0
        %5064 = vmatpush1.bf16.msra.mxu0 0
        %5065 = vmatprep.subr.bf16.mxu0 0
        %5066 = vmatpush1.bf16.msra.mxu0 0
        %5067 = vmatprep.subr.bf16.mxu0 0
        %5068 = vmatpush1.bf16.msra.mxu0 0
        %5069 = vmatprep.subr.bf16.mxu0 0
        %5070 = vmatpush1.bf16.msra.mxu0 0
        %5071 = vmatprep.subr.bf16.mxu0 0
        %5072 = vmatpush1.bf16.msra.mxu0 0
        %5073 = vmatprep.subr.bf16.mxu0 0
        %5074 = vmatpush1.bf16.msra.mxu0 0
        %5075 = vmatprep.subr.bf16.mxu0 0
        %5076 = vmatpush1.bf16.msra.mxu0 0
        %5077 = vmatprep.subr.bf16.mxu0 0
        %5078 = vmatpush1.bf16.msra.mxu0 0
        %5079 = vmatprep.subr.bf16.mxu0 0
        %5080 = vmatpush1.bf16.msra.mxu0 0
        %5081 = vmatprep.subr.bf16.mxu0 0
        %5082 = vmatpush1.bf16.msra.mxu0 0
        %5083 = vmatprep.subr.bf16.mxu0 0
        %5084 = vmatpush1.bf16.msra.mxu0 0
        %5085 = vmatprep.subr.bf16.mxu0 0
        %5086 = vmatpush1.bf16.msra.mxu0 0
        %5087 = vmatprep.mubr.bf16.mxu0 0
        %5088 = vmatmul.mubr.bf16.gmra.mrb[0].mxu0 %v5047
        %v5089 = vpop.f32.mrb[0].mxu0
        %v5090 = vadd.f32 %v5013, %v5089
        %v5091 = vpop.f32.mrb[0].mxu0
        %v5092 = vpop.f32.mrb[0].mxu0
        %v5093 = vadd.f32 %v5016, %v5092
        %v5094 = vpop.f32.mrb[0].mxu0
        %5095 = vmatprep.mubr.bf16.mxu0 0
        %5096 = vmatmul.mubr.bf16.gmra.mrb[0].mxu0 %v5050
        %v5097 = vpop.f32.mrb[0].mxu0
        %v5098 = vadd.f32 %v5021, %v5097
        %v5099 = vpop.f32.mrb[0].mxu0
        %v5100 = vpop.f32.mrb[0].mxu0
        %v5101 = vadd.f32 %v5024, %v5100
        %v5102 = vpop.f32.mrb[0].mxu0
        %5103 = vmatprep.mubr.bf16.mxu0 0
        %5104 = vmatmul.mubr.bf16.gmra.mrb[0].mxu0 %v5053
        %v5105 = vpop.f32.mrb[0].mxu0
        %v5106 = vadd.f32 %v5029, %v5105
        %v5107 = vpop.f32.mrb[0].mxu0
        %v5108 = vpop.f32.mrb[0].mxu0
        %v5109 = vpop.f32.mrb[0].mxu0
        %5110 = vdwg.mxu0
        %5111 = vrot.lane.b32.xlu0 %v2936, 64
        %v5112 = vpop.permute.xlu0 %5111
        %5113 = vrot.lane.b32.xlu0 %v2937, 64
        %v5114 = vpop.permute.xlu0 %5113
        %5115 = vrot.lane.b32.xlu0 %v3170, 64
        %v5116 = vpop.permute.xlu0 %5115
        %5117 = vrot.lane.b32.xlu0 %v3171, 64
        %v5118 = vpop.permute.xlu0 %5117
        %v5120 = vsel %vm3408, %v5112, 0
        %v5123 = vsel %vm3408, %v5114, 0
        %v5126 = vsel %vm3408, %v5116, 0
        %v5129 = vsel %vm3408, %v5118, 0
        %5131 = vmatprep.subr.bf16.mxu0 0
        %5132 = vmatpush1.bf16.xpose.msra.mxu0 %v5126
        %5133 = vmatprep.subr.bf16.mxu0 0
        %5134 = vmatpush1.bf16.xpose.msra.mxu0 %v5129
        %5135 = vmatprep.subr.bf16.mxu0 0
        %5136 = vmatpush1.bf16.xpose.msra.mxu0 0
        %5137 = vmatprep.subr.bf16.mxu0 0
        %5138 = vmatpush1.bf16.xpose.msra.mxu0 0
        %5139 = vmatprep.subr.bf16.mxu0 0
        %5140 = vmatpush1.bf16.xpose.msra.mxu0 0
        %5141 = vmatprep.subr.bf16.mxu0 0
        %5142 = vmatpush1.bf16.xpose.msra.mxu0 0
        %5143 = vmatprep.subr.bf16.mxu0 0
        %5144 = vmatpush1.bf16.xpose.msra.mxu0 0
        %5145 = vmatprep.subr.bf16.mxu0 0
        %5146 = vmatpush1.bf16.xpose.msra.mxu0 0
        %5147 = vmatprep.subr.bf16.mxu0 0
        %5148 = vmatpush1.bf16.xpose.msra.mxu0 0
        %5149 = vmatprep.subr.bf16.mxu0 0
        %5150 = vmatpush1.bf16.xpose.msra.mxu0 0
        %5151 = vmatprep.subr.bf16.mxu0 0
        %5152 = vmatpush1.bf16.xpose.msra.mxu0 0
        %5153 = vmatprep.subr.bf16.mxu0 0
        %5154 = vmatpush1.bf16.xpose.msra.mxu0 0
        %5155 = vmatprep.subr.bf16.mxu0 0
        %5156 = vmatpush1.bf16.xpose.msra.mxu0 0
        %5157 = vmatprep.subr.bf16.mxu0 0
        %5158 = vmatpush1.bf16.xpose.msra.mxu0 0
        %5159 = vmatprep.subr.bf16.mxu0 0
        %5160 = vmatpush1.bf16.xpose.msra.mxu0 0
        %5161 = vmatprep.subr.bf16.mxu0 0
        %5162 = vmatpush1.bf16.xpose.msra.mxu0 0
        %5163 = vmatprep.mubr.bf16.mxu0 0
        %5164 = vmatmul.mubr.bf16.gmra.mrb[0].mxu0 %v5120
        %v5165 = vpop.f32.mrb[0].mxu0
        %v5166 = vadd.f32 0.0, %v5165
        %v5167 = vpop.f32.mrb[0].mxu0
        %v5168 = vpop.f32.mrb[0].mxu0
        %v5169 = vadd.f32 0.0, %v5168
        %v5170 = vpop.f32.mrb[0].mxu0
        %5171 = vmatprep.mubr.bf16.mxu0 0
        %5172 = vmatmul.mubr.bf16.gmra.mrb[0].mxu0 %v5123
        %v5173 = vpop.f32.mrb[0].mxu0
        %v5174 = vadd.f32 0.0, %v5173
        %v5175 = vpop.f32.mrb[0].mxu0
        %v5176 = vpop.f32.mrb[0].mxu0
        %v5177 = vpop.f32.mrb[0].mxu0
        %5178 = vdwg.mxu0
        %5179 = vrot.lane.b32.xlu0 %v2938, 64
        %v5180 = vpop.permute.xlu0 %5179
        %5181 = vrot.lane.b32.xlu0 %v2939, 64
        %v5182 = vpop.permute.xlu0 %5181
        %5183 = vrot.lane.b32.xlu0 %v3172, 64
        %v5184 = vpop.permute.xlu0 %5183
        %5185 = vrot.lane.b32.xlu0 %v3173, 64
        %v5186 = vpop.permute.xlu0 %5185
        %v5188 = vsel %vm3408, %v5180, 0
        %v5191 = vsel %vm3408, %v5182, 0
        %v5194 = vsel %vm3408, %v5184, 0
        %v5197 = vsel %vm3408, %v5186, 0
        %5199 = vmatprep.subr.bf16.mxu0 0
        %5200 = vmatpush1.bf16.xpose.msra.mxu0 %v5194
        %5201 = vmatprep.subr.bf16.mxu0 0
        %5202 = vmatpush1.bf16.xpose.msra.mxu0 %v5197
        %5203 = vmatprep.subr.bf16.mxu0 0
        %5204 = vmatpush1.bf16.xpose.msra.mxu0 0
        %5205 = vmatprep.subr.bf16.mxu0 0
        %5206 = vmatpush1.bf16.xpose.msra.mxu0 0
        %5207 = vmatprep.subr.bf16.mxu0 0
        %5208 = vmatpush1.bf16.xpose.msra.mxu0 0
        %5209 = vmatprep.subr.bf16.mxu0 0
        %5210 = vmatpush1.bf16.xpose.msra.mxu0 0
        %5211 = vmatprep.subr.bf16.mxu0 0
        %5212 = vmatpush1.bf16.xpose.msra.mxu0 0
        %5213 = vmatprep.subr.bf16.mxu0 0
        %5214 = vmatpush1.bf16.xpose.msra.mxu0 0
        %5215 = vmatprep.subr.bf16.mxu0 0
        %5216 = vmatpush1.bf16.xpose.msra.mxu0 0
        %5217 = vmatprep.subr.bf16.mxu0 0
        %5218 = vmatpush1.bf16.xpose.msra.mxu0 0
        %5219 = vmatprep.subr.bf16.mxu0 0
        %5220 = vmatpush1.bf16.xpose.msra.mxu0 0
        %5221 = vmatprep.subr.bf16.mxu0 0
        %5222 = vmatpush1.bf16.xpose.msra.mxu0 0
        %5223 = vmatprep.subr.bf16.mxu0 0
        %5224 = vmatpush1.bf16.xpose.msra.mxu0 0
        %5225 = vmatprep.subr.bf16.mxu0 0
        %5226 = vmatpush1.bf16.xpose.msra.mxu0 0
        %5227 = vmatprep.subr.bf16.mxu0 0
        %5228 = vmatpush1.bf16.xpose.msra.mxu0 0
        %5229 = vmatprep.subr.bf16.mxu0 0
        %5230 = vmatpush1.bf16.xpose.msra.mxu0 0
        %5231 = vmatprep.mubr.bf16.mxu0 0
        %5232 = vmatmul.mubr.bf16.gmra.mrb[0].mxu0 %v5188
        %v5233 = vpop.f32.mrb[0].mxu0
        %v5234 = vadd.f32 0.0, %v5233
        %v5235 = vpop.f32.mrb[0].mxu0
        %v5236 = vpop.f32.mrb[0].mxu0
        %v5237 = vadd.f32 0.0, %v5236
        %v5238 = vpop.f32.mrb[0].mxu0
        %5239 = vmatprep.mubr.bf16.mxu0 0
        %5240 = vmatmul.mubr.bf16.gmra.mrb[0].mxu0 %v5191
        %v5241 = vpop.f32.mrb[0].mxu0
        %v5242 = vadd.f32 0.0, %v5241
        %v5243 = vpop.f32.mrb[0].mxu0
        %v5244 = vpop.f32.mrb[0].mxu0
        %v5245 = vpop.f32.mrb[0].mxu0
        %5246 = vdwg.mxu0
        %v5247 = vsel %vm3529, %v5166, -inf
        %5248 = vmax.xlane.f32.xlu0 %v5247
        %v5249 = vpop.xlane.xlu0 %5248
        %v5250 = vsel %vm3529, %v5169, -inf
        %5251 = vmax.xlane.f32.xlu0 %v5250
        %v5252 = vpop.xlane.xlu0 %5251
        %v5253 = vsel %vm3536, %v5174, -inf
        %5254 = vmax.xlane.f32.xlu0 %v5253
        %v5255 = vpop.xlane.xlu0 %5254
        %v5256 = vsel %vm3529, %v5234, -inf
        %5257 = vmax.xlane.f32.xlu0 %v5256
        %v5258 = vpop.xlane.xlu0 %5257
        %v5259 = vsel %vm3529, %v5237, -inf
        %5260 = vmax.xlane.f32.xlu0 %v5259
        %v5261 = vpop.xlane.xlu0 %5260
        %v5262 = vsel %vm3536, %v5242, -inf
        %5263 = vmax.xlane.f32.xlu0 %v5262
        %v5264 = vpop.xlane.xlu0 %5263
        %v5265 = vsub.f32 %v5166, %v5249
        %v5266 = vsub.f32 %v5169, %v5252
        %v5267 = vsub.f32 %v5174, %v5255
        %v5268 = vsub.f32 %v5234, %v5258
        %v5269 = vsub.f32 %v5237, %v5261
        %v5270 = vsub.f32 %v5242, %v5264
        %v5271 = vmul.f32 %v5265, 1.442695
        %v5272 = vpow.pop %v5271
        %v5273 = vmul.f32 %v5266, 1.442695
        %v5274 = vpow.pop %v5273
        %v5275 = vmul.f32 %v5267, 1.442695
        %v5276 = vpow.pop %v5275
        %v5277 = vmul.f32 %v5268, 1.442695
        %v5278 = vpow.pop %v5277
        %v5279 = vmul.f32 %v5269, 1.442695
        %v5280 = vpow.pop %v5279
        %v5281 = vmul.f32 %v5270, 1.442695
        %v5282 = vpow.pop %v5281
        %v5283 = vsel %vm3529, %v5272, 0.0
        %5284 = vadd.xlane.f32.xlu0 %v5283
        %v5285 = vpop.xlane.xlu0 %5284
        %v5286 = vsel %vm3529, %v5274, 0.0
        %5287 = vadd.xlane.f32.xlu0 %v5286
        %v5288 = vpop.xlane.xlu0 %5287
        %v5289 = vsel %vm3536, %v5276, 0.0
        %5290 = vadd.xlane.f32.xlu0 %v5289
        %v5291 = vpop.xlane.xlu0 %5290
        %v5292 = vsel %vm3529, %v5278, 0.0
        %5293 = vadd.xlane.f32.xlu0 %v5292
        %v5294 = vpop.xlane.xlu0 %5293
        %v5295 = vsel %vm3529, %v5280, 0.0
        %5296 = vadd.xlane.f32.xlu0 %v5295
        %v5297 = vpop.xlane.xlu0 %5296
        %v5298 = vsel %vm3536, %v5282, 0.0
        %5299 = vadd.xlane.f32.xlu0 %v5298
        %v5300 = vpop.xlane.xlu0 %5299
        %v5301 = vrcp.pop %v5285
        %v5302 = vrcp.pop %v5288
        %v5303 = vrcp.pop %v5291
        %v5304 = vrcp.pop %v5294
        %v5305 = vrcp.pop %v5297
        %v5306 = vrcp.pop %v5300
        %v5307 = vmul.f32 %v5272, %v5301
        %v5308 = vmul.f32 %v5274, %v5302
        %v5309 = vmul.f32 %v5276, %v5303
        %v5310 = vmul.f32 %v5278, %v5304
        %v5311 = vmul.f32 %v5280, %v5305
        %v5312 = vmul.f32 %v5282, %v5306
        %v5313 = vpack.c.bf16 %v5308, %v5307
        %v5314 = vpack.c.bf16 %v5309, %v5309
        %v5315 = vpack.c.bf16 %v5311, %v5310
        %v5316 = vpack.c.bf16 %v5312, %v5312
        %5317 = vrot.lane.b32.xlu0 %v3404, 64
        %v5318 = vpop.permute.xlu0 %5317
        %5319 = vrot.lane.b32.xlu0 %v3405, 64
        %v5320 = vpop.permute.xlu0 %5319
        %v5323 = vsel %vm3529, %v5313, 0
        %v5326 = vsel %vm3529, %v5314, 0
        %v5329 = vand.u32 %v5320, %v3608
        %5331 = vmatprep.subr.bf16.mxu0 0
        %5332 = vmatpush1.bf16.msra.mxu0 %v5318
        %5333 = vmatprep.subr.bf16.mxu0 0
        %5334 = vmatpush1.bf16.msra.mxu0 %v5329
        %5335 = vmatprep.subr.bf16.mxu0 0
        %5336 = vmatpush1.bf16.msra.mxu0 0
        %5337 = vmatprep.subr.bf16.mxu0 0
        %5338 = vmatpush1.bf16.msra.mxu0 0
        %5339 = vmatprep.subr.bf16.mxu0 0
        %5340 = vmatpush1.bf16.msra.mxu0 0
        %5341 = vmatprep.subr.bf16.mxu0 0
        %5342 = vmatpush1.bf16.msra.mxu0 0
        %5343 = vmatprep.subr.bf16.mxu0 0
        %5344 = vmatpush1.bf16.msra.mxu0 0
        %5345 = vmatprep.subr.bf16.mxu0 0
        %5346 = vmatpush1.bf16.msra.mxu0 0
        %5347 = vmatprep.subr.bf16.mxu0 0
        %5348 = vmatpush1.bf16.msra.mxu0 0
        %5349 = vmatprep.subr.bf16.mxu0 0
        %5350 = vmatpush1.bf16.msra.mxu0 0
        %5351 = vmatprep.subr.bf16.mxu0 0
        %5352 = vmatpush1.bf16.msra.mxu0 0
        %5353 = vmatprep.subr.bf16.mxu0 0
        %5354 = vmatpush1.bf16.msra.mxu0 0
        %5355 = vmatprep.subr.bf16.mxu0 0
        %5356 = vmatpush1.bf16.msra.mxu0 0
        %5357 = vmatprep.subr.bf16.mxu0 0
        %5358 = vmatpush1.bf16.msra.mxu0 0
        %5359 = vmatprep.subr.bf16.mxu0 0
        %5360 = vmatpush1.bf16.msra.mxu0 0
        %5361 = vmatprep.subr.bf16.mxu0 0
        %5362 = vmatpush1.bf16.msra.mxu0 0
        %5363 = vmatprep.mubr.bf16.mxu0 0
        %5364 = vmatmul.mubr.bf16.gmra.mrb[0].mxu0 %v5323
        %v5365 = vpop.f32.mrb[0].mxu0
        %v5366 = vadd.f32 0.0, %v5365
        %v5367 = vpop.f32.mrb[0].mxu0
        %v5368 = vpop.f32.mrb[0].mxu0
        %v5369 = vadd.f32 0.0, %v5368
        %v5370 = vpop.f32.mrb[0].mxu0
        %5371 = vmatprep.mubr.bf16.mxu0 0
        %5372 = vmatmul.mubr.bf16.gmra.mrb[0].mxu0 %v5326
        %v5373 = vpop.f32.mrb[0].mxu0
        %v5374 = vadd.f32 0.0, %v5373
        %v5375 = vpop.f32.mrb[0].mxu0
        %v5376 = vpop.f32.mrb[0].mxu0
        %v5377 = vpop.f32.mrb[0].mxu0
        %5378 = vdwg.mxu0
        %5379 = vrot.lane.b32.xlu0 %v3406, 64
        %v5380 = vpop.permute.xlu0 %5379
        %5381 = vrot.lane.b32.xlu0 %v3407, 64
        %v5382 = vpop.permute.xlu0 %5381
        %v5385 = vsel %vm3529, %v5315, 0
        %v5388 = vsel %vm3529, %v5316, 0
        %v5391 = vand.u32 %v5382, %v3608
        %5393 = vmatprep.subr.bf16.mxu0 0
        %5394 = vmatpush1.bf16.msra.mxu0 %v5380
        %5395 = vmatprep.subr.bf16.mxu0 0
        %5396 = vmatpush1.bf16.msra.mxu0 %v5391
        %5397 = vmatprep.subr.bf16.mxu0 0
        %5398 = vmatpush1.bf16.msra.mxu0 0
        %5399 = vmatprep.subr.bf16.mxu0 0
        %5400 = vmatpush1.bf16.msra.mxu0 0
        %5401 = vmatprep.subr.bf16.mxu0 0
        %5402 = vmatpush1.bf16.msra.mxu0 0
        %5403 = vmatprep.subr.bf16.mxu0 0
        %5404 = vmatpush1.bf16.msra.mxu0 0
        %5405 = vmatprep.subr.bf16.mxu0 0
        %5406 = vmatpush1.bf16.msra.mxu0 0
        %5407 = vmatprep.subr.bf16.mxu0 0
        %5408 = vmatpush1.bf16.msra.mxu0 0
        %5409 = vmatprep.subr.bf16.mxu0 0
        %5410 = vmatpush1.bf16.msra.mxu0 0
        %5411 = vmatprep.subr.bf16.mxu0 0
        %5412 = vmatpush1.bf16.msra.mxu0 0
        %5413 = vmatprep.subr.bf16.mxu0 0
        %5414 = vmatpush1.bf16.msra.mxu0 0
        %5415 = vmatprep.subr.bf16.mxu0 0
        %5416 = vmatpush1.bf16.msra.mxu0 0
        %5417 = vmatprep.subr.bf16.mxu0 0
        %5418 = vmatpush1.bf16.msra.mxu0 0
        %5419 = vmatprep.subr.bf16.mxu0 0
        %5420 = vmatpush1.bf16.msra.mxu0 0
        %5421 = vmatprep.subr.bf16.mxu0 0
        %5422 = vmatpush1.bf16.msra.mxu0 0
        %5423 = vmatprep.subr.bf16.mxu0 0
        %5424 = vmatpush1.bf16.msra.mxu0 0
        %5425 = vmatprep.mubr.bf16.mxu0 0
        %5426 = vmatmul.mubr.bf16.gmra.mrb[0].mxu0 %v5385
        %v5427 = vpop.f32.mrb[0].mxu0
        %v5428 = vadd.f32 0.0, %v5427
        %v5429 = vpop.f32.mrb[0].mxu0
        %v5430 = vpop.f32.mrb[0].mxu0
        %v5431 = vadd.f32 0.0, %v5430
        %v5432 = vpop.f32.mrb[0].mxu0
        %5433 = vmatprep.mubr.bf16.mxu0 0
        %5434 = vmatmul.mubr.bf16.gmra.mrb[0].mxu0 %v5388
        %v5435 = vpop.f32.mrb[0].mxu0
        %v5436 = vadd.f32 0.0, %v5435
        %v5437 = vpop.f32.mrb[0].mxu0
        %v5438 = vpop.f32.mrb[0].mxu0
        %v5439 = vpop.f32.mrb[0].mxu0
        %5440 = vdwg.mxu0
        %v5447 = vcombine.high %v5366, %v5366
        %v5449 = vunpack.c.l.s4 1966171168
        %v5450 = vunpack.c.0.s8 %v5449
        %v5451 = vlaneseq
        %v5452 = vshrl.u32 %v5451, 7
        %v5453 = vsub.s32 %v5450, %v5452
        %v5454 = vrot.slane %v5366, %v5453
        %v5456 = vunpack.c.l.s4 1966171168
        %v5457 = vunpack.c.0.s8 %v5456
        %v5458 = vlaneseq
        %v5459 = vshrl.u32 %v5458, 7
        %v5460 = vsub.s32 %v5457, %v5459
        %v5461 = vrot.slane %v5447, %v5460
        %v5462 = vcombine.high %v5454, %v5454
        %v5463 = vcombine.high %v5461, %v5461
        %v5465 = vunpack.c.l.s4 1966171168
        %v5466 = vunpack.c.0.s8 %v5465
        %v5467 = vlaneseq
        %v5468 = vshrl.u32 %v5467, 7
        %v5469 = vsub.s32 %v5466, %v5468
        %v5470 = vrot.slane %v5454, %v5469
        %v5472 = vunpack.c.l.s4 1966171168
        %v5473 = vunpack.c.0.s8 %v5472
        %v5474 = vlaneseq
        %v5475 = vshrl.u32 %v5474, 7
        %v5476 = vsub.s32 %v5473, %v5475
        %v5477 = vrot.slane %v5461, %v5476
        %v5479 = vunpack.c.l.s4 1966171168
        %v5480 = vunpack.c.0.s8 %v5479
        %v5481 = vlaneseq
        %v5482 = vshrl.u32 %v5481, 7
        %v5483 = vsub.s32 %v5480, %v5482
        %v5484 = vrot.slane %v5462, %v5483
        %v5486 = vunpack.c.l.s4 1966171168
        %v5487 = vunpack.c.0.s8 %v5486
        %v5488 = vlaneseq
        %v5489 = vshrl.u32 %v5488, 7
        %v5490 = vsub.s32 %v5487, %v5489
        %v5491 = vrot.slane %v5463, %v5490
        %v5492 = vcombine.high %v5470, %v5470
        %v5493 = vcombine.high %v5477, %v5477
        %v5494 = vcombine.high %v5484, %v5484
        %v5495 = vcombine.high %v5491, %v5491
        %v5496 = vcombine.high %v5369, %v5369
        %v5498 = vunpack.c.l.s4 1966171168
        %v5499 = vunpack.c.0.s8 %v5498
        %v5500 = vlaneseq
        %v5501 = vshrl.u32 %v5500, 7
        %v5502 = vsub.s32 %v5499, %v5501
        %v5503 = vrot.slane %v5369, %v5502
        %v5505 = vunpack.c.l.s4 1966171168
        %v5506 = vunpack.c.0.s8 %v5505
        %v5507 = vlaneseq
        %v5508 = vshrl.u32 %v5507, 7
        %v5509 = vsub.s32 %v5506, %v5508
        %v5510 = vrot.slane %v5496, %v5509
        %v5511 = vcombine.high %v5503, %v5503
        %v5512 = vcombine.high %v5510, %v5510
        %v5514 = vunpack.c.l.s4 1966171168
        %v5515 = vunpack.c.0.s8 %v5514
        %v5516 = vlaneseq
        %v5517 = vshrl.u32 %v5516, 7
        %v5518 = vsub.s32 %v5515, %v5517
        %v5519 = vrot.slane %v5503, %v5518
        %v5521 = vunpack.c.l.s4 1966171168
        %v5522 = vunpack.c.0.s8 %v5521
        %v5523 = vlaneseq
        %v5524 = vshrl.u32 %v5523, 7
        %v5525 = vsub.s32 %v5522, %v5524
        %v5526 = vrot.slane %v5510, %v5525
        %v5528 = vunpack.c.l.s4 1966171168
        %v5529 = vunpack.c.0.s8 %v5528
        %v5530 = vlaneseq
        %v5531 = vshrl.u32 %v5530, 7
        %v5532 = vsub.s32 %v5529, %v5531
        %v5533 = vrot.slane %v5511, %v5532
        %v5535 = vunpack.c.l.s4 1966171168
        %v5536 = vunpack.c.0.s8 %v5535
        %v5537 = vlaneseq
        %v5538 = vshrl.u32 %v5537, 7
        %v5539 = vsub.s32 %v5536, %v5538
        %v5540 = vrot.slane %v5512, %v5539
        %v5541 = vcombine.high %v5519, %v5519
        %v5542 = vcombine.high %v5526, %v5526
        %v5543 = vcombine.high %v5533, %v5533
        %v5544 = vcombine.high %v5540, %v5540
        %v5546 = vunpack.c.l.s4 1966171168
        %v5547 = vunpack.c.0.s8 %v5546
        %v5548 = vlaneseq
        %v5549 = vshrl.u32 %v5548, 7
        %v5550 = vsub.s32 %v5547, %v5549
        %v5551 = vrot.slane %v5374, %v5550
        %v5553 = vunpack.c.l.s4 1966171168
        %v5554 = vunpack.c.0.s8 %v5553
        %v5555 = vlaneseq
        %v5556 = vshrl.u32 %v5555, 7
        %v5557 = vsub.s32 %v5554, %v5556
        %v5558 = vrot.slane %v5551, %v5557
        %v5559 = vcombine.high %v5428, %v5428
        %v5561 = vunpack.c.l.s4 1966171168
        %v5562 = vunpack.c.0.s8 %v5561
        %v5563 = vlaneseq
        %v5564 = vshrl.u32 %v5563, 7
        %v5565 = vsub.s32 %v5562, %v5564
        %v5566 = vrot.slane %v5428, %v5565
        %v5568 = vunpack.c.l.s4 1966171168
        %v5569 = vunpack.c.0.s8 %v5568
        %v5570 = vlaneseq
        %v5571 = vshrl.u32 %v5570, 7
        %v5572 = vsub.s32 %v5569, %v5571
        %v5573 = vrot.slane %v5559, %v5572
        %v5574 = vcombine.high %v5566, %v5566
        %v5575 = vcombine.high %v5573, %v5573
        %v5577 = vunpack.c.l.s4 1966171168
        %v5578 = vunpack.c.0.s8 %v5577
        %v5579 = vlaneseq
        %v5580 = vshrl.u32 %v5579, 7
        %v5581 = vsub.s32 %v5578, %v5580
        %v5582 = vrot.slane %v5566, %v5581
        %v5584 = vunpack.c.l.s4 1966171168
        %v5585 = vunpack.c.0.s8 %v5584
        %v5586 = vlaneseq
        %v5587 = vshrl.u32 %v5586, 7
        %v5588 = vsub.s32 %v5585, %v5587
        %v5589 = vrot.slane %v5573, %v5588
        %v5591 = vunpack.c.l.s4 1966171168
        %v5592 = vunpack.c.0.s8 %v5591
        %v5593 = vlaneseq
        %v5594 = vshrl.u32 %v5593, 7
        %v5595 = vsub.s32 %v5592, %v5594
        %v5596 = vrot.slane %v5574, %v5595
        %v5598 = vunpack.c.l.s4 1966171168
        %v5599 = vunpack.c.0.s8 %v5598
        %v5600 = vlaneseq
        %v5601 = vshrl.u32 %v5600, 7
        %v5602 = vsub.s32 %v5599, %v5601
        %v5603 = vrot.slane %v5575, %v5602
        %v5604 = vcombine.high %v5582, %v5582
        %v5605 = vcombine.high %v5589, %v5589
        %v5606 = vcombine.high %v5596, %v5596
        %v5607 = vcombine.high %v5603, %v5603
        %v5608 = vcombine.high %v5431, %v5431
        %v5610 = vunpack.c.l.s4 1966171168
        %v5611 = vunpack.c.0.s8 %v5610
        %v5612 = vlaneseq
        %v5613 = vshrl.u32 %v5612, 7
        %v5614 = vsub.s32 %v5611, %v5613
        %v5615 = vrot.slane %v5431, %v5614
        %v5617 = vunpack.c.l.s4 1966171168
        %v5618 = vunpack.c.0.s8 %v5617
        %v5619 = vlaneseq
        %v5620 = vshrl.u32 %v5619, 7
        %v5621 = vsub.s32 %v5618, %v5620
        %v5622 = vrot.slane %v5608, %v5621
        %v5623 = vcombine.high %v5615, %v5615
        %v5624 = vcombine.high %v5622, %v5622
        %v5626 = vunpack.c.l.s4 1966171168
        %v5627 = vunpack.c.0.s8 %v5626
        %v5628 = vlaneseq
        %v5629 = vshrl.u32 %v5628, 7
        %v5630 = vsub.s32 %v5627, %v5629
        %v5631 = vrot.slane %v5615, %v5630
        %v5633 = vunpack.c.l.s4 1966171168
        %v5634 = vunpack.c.0.s8 %v5633
        %v5635 = vlaneseq
        %v5636 = vshrl.u32 %v5635, 7
        %v5637 = vsub.s32 %v5634, %v5636
        %v5638 = vrot.slane %v5622, %v5637
        %v5640 = vunpack.c.l.s4 1966171168
        %v5641 = vunpack.c.0.s8 %v5640
        %v5642 = vlaneseq
        %v5643 = vshrl.u32 %v5642, 7
        %v5644 = vsub.s32 %v5641, %v5643
        %v5645 = vrot.slane %v5623, %v5644
        %v5647 = vunpack.c.l.s4 1966171168
        %v5648 = vunpack.c.0.s8 %v5647
        %v5649 = vlaneseq
        %v5650 = vshrl.u32 %v5649, 7
        %v5651 = vsub.s32 %v5648, %v5650
        %v5652 = vrot.slane %v5624, %v5651
        %v5653 = vcombine.high %v5631, %v5631
        %v5654 = vcombine.high %v5638, %v5638
        %v5655 = vcombine.high %v5645, %v5645
        %v5656 = vcombine.high %v5652, %v5652
        %v5658 = vunpack.c.l.s4 1966171168
        %v5659 = vunpack.c.0.s8 %v5658
        %v5660 = vlaneseq
        %v5661 = vshrl.u32 %v5660, 7
        %v5662 = vsub.s32 %v5659, %v5661
        %v5663 = vrot.slane %v5436, %v5662
        %v5665 = vunpack.c.l.s4 1966171168
        %v5666 = vunpack.c.0.s8 %v5665
        %v5667 = vlaneseq
        %v5668 = vshrl.u32 %v5667, 7
        %v5669 = vsub.s32 %v5666, %v5668
        %v5670 = vrot.slane %v5663, %v5669
        %v5671 = vcombine.low %v5470, %v5484
        %v5672 = vcombine.low %v5492, %v5494
        %v5673 = vcombine.low %v5477, %v5491
        %v5674 = vcombine.low %v5493, %v5495
        %v5676 = vunpack.c.l.s4 1966171168
        %v5677 = vunpack.c.0.s8 %v5676
        %v5678 = vlaneseq
        %v5679 = vshrl.u32 %v5678, 7
        %v5680 = vsub.s32 %v5677, %v5679
        %v5681 = vrot.slane %v5671, %v5680
        %v5683 = vunpack.c.l.s4 1966171168
        %v5684 = vunpack.c.0.s8 %v5683
        %v5685 = vlaneseq
        %v5686 = vshrl.u32 %v5685, 7
        %v5687 = vsub.s32 %v5684, %v5686
        %v5688 = vrot.slane %v5672, %v5687
        %v5690 = vunpack.c.l.s4 1966171168
        %v5691 = vunpack.c.0.s8 %v5690
        %v5692 = vlaneseq
        %v5693 = vshrl.u32 %v5692, 7
        %v5694 = vsub.s32 %v5691, %v5693
        %v5695 = vrot.slane %v5673, %v5694
        %v5697 = vunpack.c.l.s4 1966171168
        %v5698 = vunpack.c.0.s8 %v5697
        %v5699 = vlaneseq
        %v5700 = vshrl.u32 %v5699, 7
        %v5701 = vsub.s32 %v5698, %v5700
        %v5702 = vrot.slane %v5674, %v5701
        %v5703 = vcombine.low %v5681, %v5688
        %v5704 = vcombine.low %v5695, %v5702
        %v5706 = vunpack.c.l.s4 1966171168
        %v5707 = vunpack.c.0.s8 %v5706
        %v5708 = vlaneseq
        %v5709 = vshrl.u32 %v5708, 7
        %v5710 = vsub.s32 %v5707, %v5709
        %v5711 = vrot.slane %v5703, %v5710
        %v5713 = vunpack.c.l.s4 1966171168
        %v5714 = vunpack.c.0.s8 %v5713
        %v5715 = vlaneseq
        %v5716 = vshrl.u32 %v5715, 7
        %v5717 = vsub.s32 %v5714, %v5716
        %v5718 = vrot.slane %v5704, %v5717
        %v5719 = vcombine.low %v5711, %v5718
        %v5720 = vcombine.low %v5519, %v5533
        %v5721 = vcombine.low %v5541, %v5543
        %v5722 = vcombine.low %v5526, %v5540
        %v5723 = vcombine.low %v5542, %v5544
        %v5725 = vunpack.c.l.s4 1966171168
        %v5726 = vunpack.c.0.s8 %v5725
        %v5727 = vlaneseq
        %v5728 = vshrl.u32 %v5727, 7
        %v5729 = vsub.s32 %v5726, %v5728
        %v5730 = vrot.slane %v5720, %v5729
        %v5732 = vunpack.c.l.s4 1966171168
        %v5733 = vunpack.c.0.s8 %v5732
        %v5734 = vlaneseq
        %v5735 = vshrl.u32 %v5734, 7
        %v5736 = vsub.s32 %v5733, %v5735
        %v5737 = vrot.slane %v5721, %v5736
        %v5739 = vunpack.c.l.s4 1966171168
        %v5740 = vunpack.c.0.s8 %v5739
        %v5741 = vlaneseq
        %v5742 = vshrl.u32 %v5741, 7
        %v5743 = vsub.s32 %v5740, %v5742
        %v5744 = vrot.slane %v5722, %v5743
        %v5746 = vunpack.c.l.s4 1966171168
        %v5747 = vunpack.c.0.s8 %v5746
        %v5748 = vlaneseq
        %v5749 = vshrl.u32 %v5748, 7
        %v5750 = vsub.s32 %v5747, %v5749
        %v5751 = vrot.slane %v5723, %v5750
        %v5752 = vcombine.low %v5730, %v5737
        %v5753 = vcombine.low %v5744, %v5751
        %v5755 = vunpack.c.l.s4 1966171168
        %v5756 = vunpack.c.0.s8 %v5755
        %v5757 = vlaneseq
        %v5758 = vshrl.u32 %v5757, 7
        %v5759 = vsub.s32 %v5756, %v5758
        %v5760 = vrot.slane %v5752, %v5759
        %v5762 = vunpack.c.l.s4 1966171168
        %v5763 = vunpack.c.0.s8 %v5762
        %v5764 = vlaneseq
        %v5765 = vshrl.u32 %v5764, 7
        %v5766 = vsub.s32 %v5763, %v5765
        %v5767 = vrot.slane %v5753, %v5766
        %v5768 = vcombine.low %v5760, %v5767
        %v5769 = vcombine.low %v5558, %v5582
        %v5770 = vcombine.low %v5596, %v5604
        %v5771 = vcombine.low %v5606, %v5589
        %v5772 = vcombine.low %v5603, %v5605
        %v5774 = vunpack.c.l.s4 1966171168
        %v5775 = vunpack.c.0.s8 %v5774
        %v5776 = vlaneseq
        %v5777 = vshrl.u32 %v5776, 7
        %v5778 = vsub.s32 %v5775, %v5777
        %v5779 = vrot.slane %v5769, %v5778
        %v5781 = vunpack.c.l.s4 1966171168
        %v5782 = vunpack.c.0.s8 %v5781
        %v5783 = vlaneseq
        %v5784 = vshrl.u32 %v5783, 7
        %v5785 = vsub.s32 %v5782, %v5784
        %v5786 = vrot.slane %v5770, %v5785
        %v5788 = vunpack.c.l.s4 1966171168
        %v5789 = vunpack.c.0.s8 %v5788
        %v5790 = vlaneseq
        %v5791 = vshrl.u32 %v5790, 7
        %v5792 = vsub.s32 %v5789, %v5791
        %v5793 = vrot.slane %v5771, %v5792
        %v5795 = vunpack.c.l.s4 1966171168
        %v5796 = vunpack.c.0.s8 %v5795
        %v5797 = vlaneseq
        %v5798 = vshrl.u32 %v5797, 7
        %v5799 = vsub.s32 %v5796, %v5798
        %v5800 = vrot.slane %v5772, %v5799
        %v5801 = vcombine.low %v5779, %v5786
        %v5802 = vcombine.low %v5793, %v5800
        %v5804 = vunpack.c.l.s4 1966171168
        %v5805 = vunpack.c.0.s8 %v5804
        %v5806 = vlaneseq
        %v5807 = vshrl.u32 %v5806, 7
        %v5808 = vsub.s32 %v5805, %v5807
        %v5809 = vrot.slane %v5801, %v5808
        %v5811 = vunpack.c.l.s4 1966171168
        %v5812 = vunpack.c.0.s8 %v5811
        %v5813 = vlaneseq
        %v5814 = vshrl.u32 %v5813, 7
        %v5815 = vsub.s32 %v5812, %v5814
        %v5816 = vrot.slane %v5802, %v5815
        %v5817 = vcombine.low %v5809, %v5816
        %v5818 = vcombine.low %v5607, %v5631
        %v5819 = vcombine.low %v5645, %v5653
        %v5820 = vcombine.low %v5655, %v5638
        %v5821 = vcombine.low %v5652, %v5654
        %v5823 = vunpack.c.l.s4 1966171168
        %v5824 = vunpack.c.0.s8 %v5823
        %v5825 = vlaneseq
        %v5826 = vshrl.u32 %v5825, 7
        %v5827 = vsub.s32 %v5824, %v5826
        %v5828 = vrot.slane %v5818, %v5827
        %v5830 = vunpack.c.l.s4 1966171168
        %v5831 = vunpack.c.0.s8 %v5830
        %v5832 = vlaneseq
        %v5833 = vshrl.u32 %v5832, 7
        %v5834 = vsub.s32 %v5831, %v5833
        %v5835 = vrot.slane %v5819, %v5834
        %v5837 = vunpack.c.l.s4 1966171168
        %v5838 = vunpack.c.0.s8 %v5837
        %v5839 = vlaneseq
        %v5840 = vshrl.u32 %v5839, 7
        %v5841 = vsub.s32 %v5838, %v5840
        %v5842 = vrot.slane %v5820, %v5841
        %v5844 = vunpack.c.l.s4 1966171168
        %v5845 = vunpack.c.0.s8 %v5844
        %v5846 = vlaneseq
        %v5847 = vshrl.u32 %v5846, 7
        %v5848 = vsub.s32 %v5845, %v5847
        %v5849 = vrot.slane %v5821, %v5848
        %v5850 = vcombine.low %v5828, %v5835
        %v5851 = vcombine.low %v5842, %v5849
        %v5853 = vunpack.c.l.s4 1966171168
        %v5854 = vunpack.c.0.s8 %v5853
        %v5855 = vlaneseq
        %v5856 = vshrl.u32 %v5855, 7
        %v5857 = vsub.s32 %v5854, %v5856
        %v5858 = vrot.slane %v5850, %v5857
        %v5860 = vunpack.c.l.s4 1966171168
        %v5861 = vunpack.c.0.s8 %v5860
        %v5862 = vlaneseq
        %v5863 = vshrl.u32 %v5862, 7
        %v5864 = vsub.s32 %v5861, %v5863
        %v5865 = vrot.slane %v5851, %v5864
        %v5866 = vcombine.low %v5858, %v5865
        %v5867 = vcombine.low %v5656, %v5670
        %v5869 = vunpack.c.l.s4 1966171168
        %v5870 = vunpack.c.0.s8 %v5869
        %v5871 = vlaneseq
        %v5872 = vshrl.u32 %v5871, 7
        %v5873 = vsub.s32 %v5870, %v5872
        %v5874 = vrot.slane %v5867, %v5873
        %v5876 = vunpack.c.l.s4 1966171168
        %v5877 = vunpack.c.0.s8 %v5876
        %v5878 = vlaneseq
        %v5879 = vshrl.u32 %v5878, 7
        %v5880 = vsub.s32 %v5877, %v5879
        %v5881 = vrot.slane %v5874, %v5880
        %v5887 = vpack.c.bf16 %v5768, %v5719
        %v5888 = vpack.c.bf16 %v5866, %v5817
        %v5889 = vpack.c.bf16 %v5881, %v5881
        %v5894 = vunpack.c.l.b16 %v2698
        %v5895 = vunpack.c.l.b16 %v2699
        %v5896 = vunpack.c.l.b16 %v2700
        %v5897 = vunpack.c.l.b16 %v2701
        %v5898 = vpack.c.b16 %v5895, %v5894
        %v5899 = vpack.c.b16 %v5897, %v5896
        %v5903 = vsel %vm3408, %v5887, 0
        %v5906 = vsel %vm3408, %v5888, 0
        %v5909 = vsel %vm3408, %v5889, 0
        %5911 = vmatprep.subr.bf16.mxu0 0
        %5912 = vmatpush1.bf16.msra.mxu0 %v5898
        %5913 = vmatprep.subr.bf16.mxu0 0
        %5914 = vmatpush1.bf16.msra.mxu0 %v5899
        %5915 = vmatprep.subr.bf16.mxu0 0
        %5916 = vmatpush1.bf16.msra.mxu0 0
        %5917 = vmatprep.subr.bf16.mxu0 0
        %5918 = vmatpush1.bf16.msra.mxu0 0
        %5919 = vmatprep.subr.bf16.mxu0 0
        %5920 = vmatpush1.bf16.msra.mxu0 0
        %5921 = vmatprep.subr.bf16.mxu0 0
        %5922 = vmatpush1.bf16.msra.mxu0 0
        %5923 = vmatprep.subr.bf16.mxu0 0
        %5924 = vmatpush1.bf16.msra.mxu0 0
        %5925 = vmatprep.subr.bf16.mxu0 0
        %5926 = vmatpush1.bf16.msra.mxu0 0
        %5927 = vmatprep.subr.bf16.mxu0 0
        %5928 = vmatpush1.bf16.msra.mxu0 0
        %5929 = vmatprep.subr.bf16.mxu0 0
        %5930 = vmatpush1.bf16.msra.mxu0 0
        %5931 = vmatprep.subr.bf16.mxu0 0
        %5932 = vmatpush1.bf16.msra.mxu0 0
        %5933 = vmatprep.subr.bf16.mxu0 0
        %5934 = vmatpush1.bf16.msra.mxu0 0
        %5935 = vmatprep.subr.bf16.mxu0 0
        %5936 = vmatpush1.bf16.msra.mxu0 0
        %5937 = vmatprep.subr.bf16.mxu0 0
        %5938 = vmatpush1.bf16.msra.mxu0 0
        %5939 = vmatprep.subr.bf16.mxu0 0
        %5940 = vmatpush1.bf16.msra.mxu0 0
        %5941 = vmatprep.subr.bf16.mxu0 0
        %5942 = vmatpush1.bf16.msra.mxu0 0
        %5943 = vmatprep.mubr.bf16.mxu0 0
        %5944 = vmatmul.mubr.bf16.gmra.mrb[0].mxu0 %v5903
        %v5945 = vpop.f32.mrb[0].mxu0
        %v5946 = vadd.f32 0.0, %v5945
        %v5947 = vpop.f32.mrb[0].mxu0
        %v5948 = vpop.f32.mrb[0].mxu0
        %v5949 = vadd.f32 0.0, %v5948
        %v5950 = vpop.f32.mrb[0].mxu0
        %5951 = vmatprep.mubr.bf16.mxu0 0
        %5952 = vmatmul.mubr.bf16.gmra.mrb[0].mxu0 %v5906
        %v5953 = vpop.f32.mrb[0].mxu0
        %v5954 = vadd.f32 0.0, %v5953
        %v5955 = vpop.f32.mrb[0].mxu0
        %v5956 = vpop.f32.mrb[0].mxu0
        %v5957 = vadd.f32 0.0, %v5956
        %v5958 = vpop.f32.mrb[0].mxu0
        %5959 = vmatprep.mubr.bf16.mxu0 0
        %5960 = vmatmul.mubr.bf16.gmra.mrb[0].mxu0 %v5909
        %v5961 = vpop.f32.mrb[0].mxu0
        %v5962 = vadd.f32 0.0, %v5961
        %v5963 = vpop.f32.mrb[0].mxu0
        %v5964 = vpop.f32.mrb[0].mxu0
        %v5965 = vpop.f32.mrb[0].mxu0
        %5966 = vdwg.mxu0
        %v5967 = vadd.f32 %v5090, %v5946
        %v5968 = vadd.f32 %v5093, %v5949
        %v5969 = vadd.f32 %v5098, %v5954
        %v5970 = vadd.f32 %v5101, %v5957
        %v5971 = vadd.f32 %v5106, %v5962
        %5972 = vrot.lane.b32.xlu0 %v2936, 32
        %v5973 = vpop.permute.xlu0 %5972
        %5974 = vrot.lane.b32.xlu0 %v2937, 32
        %v5975 = vpop.permute.xlu0 %5974
        %5976 = vrot.lane.b32.xlu0 %v3170, 32
        %v5977 = vpop.permute.xlu0 %5976
        %5978 = vrot.lane.b32.xlu0 %v3171, 32
        %v5979 = vpop.permute.xlu0 %5978
        %v5981 = vsel %vm3408, %v5973, 0
        %v5984 = vsel %vm3408, %v5975, 0
        %v5987 = vsel %vm3408, %v5977, 0
        %v5990 = vsel %vm3408, %v5979, 0
        %5992 = vmatprep.subr.bf16.mxu0 0
        %5993 = vmatpush1.bf16.xpose.msra.mxu0 %v5987
        %5994 = vmatprep.subr.bf16.mxu0 0
        %5995 = vmatpush1.bf16.xpose.msra.mxu0 %v5990
        %5996 = vmatprep.subr.bf16.mxu0 0
        %5997 = vmatpush1.bf16.xpose.msra.mxu0 0
        %5998 = vmatprep.subr.bf16.mxu0 0
        %5999 = vmatpush1.bf16.xpose.msra.mxu0 0
        %6000 = vmatprep.subr.bf16.mxu0 0
        %6001 = vmatpush1.bf16.xpose.msra.mxu0 0
        %6002 = vmatprep.subr.bf16.mxu0 0
        %6003 = vmatpush1.bf16.xpose.msra.mxu0 0
        %6004 = vmatprep.subr.bf16.mxu0 0
        %6005 = vmatpush1.bf16.xpose.msra.mxu0 0
        %6006 = vmatprep.subr.bf16.mxu0 0
        %6007 = vmatpush1.bf16.xpose.msra.mxu0 0
        %6008 = vmatprep.subr.bf16.mxu0 0
        %6009 = vmatpush1.bf16.xpose.msra.mxu0 0
        %6010 = vmatprep.subr.bf16.mxu0 0
        %6011 = vmatpush1.bf16.xpose.msra.mxu0 0
        %6012 = vmatprep.subr.bf16.mxu0 0
        %6013 = vmatpush1.bf16.xpose.msra.mxu0 0
        %6014 = vmatprep.subr.bf16.mxu0 0
        %6015 = vmatpush1.bf16.xpose.msra.mxu0 0
        %6016 = vmatprep.subr.bf16.mxu0 0
        %6017 = vmatpush1.bf16.xpose.msra.mxu0 0
        %6018 = vmatprep.subr.bf16.mxu0 0
        %6019 = vmatpush1.bf16.xpose.msra.mxu0 0
        %6020 = vmatprep.subr.bf16.mxu0 0
        %6021 = vmatpush1.bf16.xpose.msra.mxu0 0
        %6022 = vmatprep.subr.bf16.mxu0 0
        %6023 = vmatpush1.bf16.xpose.msra.mxu0 0
        %6024 = vmatprep.mubr.bf16.mxu0 0
        %6025 = vmatmul.mubr.bf16.gmra.mrb[0].mxu0 %v5981
        %v6026 = vpop.f32.mrb[0].mxu0
        %v6027 = vadd.f32 0.0, %v6026
        %v6028 = vpop.f32.mrb[0].mxu0
        %v6029 = vpop.f32.mrb[0].mxu0
        %v6030 = vadd.f32 0.0, %v6029
        %v6031 = vpop.f32.mrb[0].mxu0
        %6032 = vmatprep.mubr.bf16.mxu0 0
        %6033 = vmatmul.mubr.bf16.gmra.mrb[0].mxu0 %v5984
        %v6034 = vpop.f32.mrb[0].mxu0
        %v6035 = vadd.f32 0.0, %v6034
        %v6036 = vpop.f32.mrb[0].mxu0
        %v6037 = vpop.f32.mrb[0].mxu0
        %v6038 = vpop.f32.mrb[0].mxu0
        %6039 = vdwg.mxu0
        %6040 = vrot.lane.b32.xlu0 %v2938, 32
        %v6041 = vpop.permute.xlu0 %6040
        %6042 = vrot.lane.b32.xlu0 %v2939, 32
        %v6043 = vpop.permute.xlu0 %6042
        %6044 = vrot.lane.b32.xlu0 %v3172, 32
        %v6045 = vpop.permute.xlu0 %6044
        %6046 = vrot.lane.b32.xlu0 %v3173, 32
        %v6047 = vpop.permute.xlu0 %6046
        %v6049 = vsel %vm3408, %v6041, 0
        %v6052 = vsel %vm3408, %v6043, 0
        %v6055 = vsel %vm3408, %v6045, 0
        %v6058 = vsel %vm3408, %v6047, 0
        %6060 = vmatprep.subr.bf16.mxu0 0
        %6061 = vmatpush1.bf16.xpose.msra.mxu0 %v6055
        %6062 = vmatprep.subr.bf16.mxu0 0
        %6063 = vmatpush1.bf16.xpose.msra.mxu0 %v6058
        %6064 = vmatprep.subr.bf16.mxu0 0
        %6065 = vmatpush1.bf16.xpose.msra.mxu0 0
        %6066 = vmatprep.subr.bf16.mxu0 0
        %6067 = vmatpush1.bf16.xpose.msra.mxu0 0
        %6068 = vmatprep.subr.bf16.mxu0 0
        %6069 = vmatpush1.bf16.xpose.msra.mxu0 0
        %6070 = vmatprep.subr.bf16.mxu0 0
        %6071 = vmatpush1.bf16.xpose.msra.mxu0 0
        %6072 = vmatprep.subr.bf16.mxu0 0
        %6073 = vmatpush1.bf16.xpose.msra.mxu0 0
        %6074 = vmatprep.subr.bf16.mxu0 0
        %6075 = vmatpush1.bf16.xpose.msra.mxu0 0
        %6076 = vmatprep.subr.bf16.mxu0 0
        %6077 = vmatpush1.bf16.xpose.msra.mxu0 0
        %6078 = vmatprep.subr.bf16.mxu0 0
        %6079 = vmatpush1.bf16.xpose.msra.mxu0 0
        %6080 = vmatprep.subr.bf16.mxu0 0
        %6081 = vmatpush1.bf16.xpose.msra.mxu0 0
        %6082 = vmatprep.subr.bf16.mxu0 0
        %6083 = vmatpush1.bf16.xpose.msra.mxu0 0
        %6084 = vmatprep.subr.bf16.mxu0 0
        %6085 = vmatpush1.bf16.xpose.msra.mxu0 0
        %6086 = vmatprep.subr.bf16.mxu0 0
        %6087 = vmatpush1.bf16.xpose.msra.mxu0 0
        %6088 = vmatprep.subr.bf16.mxu0 0
        %6089 = vmatpush1.bf16.xpose.msra.mxu0 0
        %6090 = vmatprep.subr.bf16.mxu0 0
        %6091 = vmatpush1.bf16.xpose.msra.mxu0 0
        %6092 = vmatprep.mubr.bf16.mxu0 0
        %6093 = vmatmul.mubr.bf16.gmra.mrb[0].mxu0 %v6049
        %v6094 = vpop.f32.mrb[0].mxu0
        %v6095 = vadd.f32 0.0, %v6094
        %v6096 = vpop.f32.mrb[0].mxu0
        %v6097 = vpop.f32.mrb[0].mxu0
        %v6098 = vadd.f32 0.0, %v6097
        %v6099 = vpop.f32.mrb[0].mxu0
        %6100 = vmatprep.mubr.bf16.mxu0 0
        %6101 = vmatmul.mubr.bf16.gmra.mrb[0].mxu0 %v6052
        %v6102 = vpop.f32.mrb[0].mxu0
        %v6103 = vadd.f32 0.0, %v6102
        %v6104 = vpop.f32.mrb[0].mxu0
        %v6105 = vpop.f32.mrb[0].mxu0
        %v6106 = vpop.f32.mrb[0].mxu0
        %6107 = vdwg.mxu0
        %v6108 = vsel %vm3529, %v6027, -inf
        %6109 = vmax.xlane.f32.xlu0 %v6108
        %v6110 = vpop.xlane.xlu0 %6109
        %v6111 = vsel %vm3529, %v6030, -inf
        %6112 = vmax.xlane.f32.xlu0 %v6111
        %v6113 = vpop.xlane.xlu0 %6112
        %v6114 = vsel %vm3536, %v6035, -inf
        %6115 = vmax.xlane.f32.xlu0 %v6114
        %v6116 = vpop.xlane.xlu0 %6115
        %v6117 = vsel %vm3529, %v6095, -inf
        %6118 = vmax.xlane.f32.xlu0 %v6117
        %v6119 = vpop.xlane.xlu0 %6118
        %v6120 = vsel %vm3529, %v6098, -inf
        %6121 = vmax.xlane.f32.xlu0 %v6120
        %v6122 = vpop.xlane.xlu0 %6121
        %v6123 = vsel %vm3536, %v6103, -inf
        %6124 = vmax.xlane.f32.xlu0 %v6123
        %v6125 = vpop.xlane.xlu0 %6124
        %v6126 = vsub.f32 %v6027, %v6110
        %v6127 = vsub.f32 %v6030, %v6113
        %v6128 = vsub.f32 %v6035, %v6116
        %v6129 = vsub.f32 %v6095, %v6119
        %v6130 = vsub.f32 %v6098, %v6122
        %v6131 = vsub.f32 %v6103, %v6125
        %v6132 = vmul.f32 %v6126, 1.442695
        %v6133 = vpow.pop %v6132
        %v6134 = vmul.f32 %v6127, 1.442695
        %v6135 = vpow.pop %v6134
        %v6136 = vmul.f32 %v6128, 1.442695
        %v6137 = vpow.pop %v6136
        %v6138 = vmul.f32 %v6129, 1.442695
        %v6139 = vpow.pop %v6138
        %v6140 = vmul.f32 %v6130, 1.442695
        %v6141 = vpow.pop %v6140
        %v6142 = vmul.f32 %v6131, 1.442695
        %v6143 = vpow.pop %v6142
        %v6144 = vsel %vm3529, %v6133, 0.0
        %6145 = vadd.xlane.f32.xlu0 %v6144
        %v6146 = vpop.xlane.xlu0 %6145
        %v6147 = vsel %vm3529, %v6135, 0.0
        %6148 = vadd.xlane.f32.xlu0 %v6147
        %v6149 = vpop.xlane.xlu0 %6148
        %v6150 = vsel %vm3536, %v6137, 0.0
        %6151 = vadd.xlane.f32.xlu0 %v6150
        %v6152 = vpop.xlane.xlu0 %6151
        %v6153 = vsel %vm3529, %v6139, 0.0
        %6154 = vadd.xlane.f32.xlu0 %v6153
        %v6155 = vpop.xlane.xlu0 %6154
        %v6156 = vsel %vm3529, %v6141, 0.0
        %6157 = vadd.xlane.f32.xlu0 %v6156
        %v6158 = vpop.xlane.xlu0 %6157
        %v6159 = vsel %vm3536, %v6143, 0.0
        %6160 = vadd.xlane.f32.xlu0 %v6159
        %v6161 = vpop.xlane.xlu0 %6160
        %v6162 = vrcp.pop %v6146
        %v6163 = vrcp.pop %v6149
        %v6164 = vrcp.pop %v6152
        %v6165 = vrcp.pop %v6155
        %v6166 = vrcp.pop %v6158
        %v6167 = vrcp.pop %v6161
        %v6168 = vmul.f32 %v6133, %v6162
        %v6169 = vmul.f32 %v6135, %v6163
        %v6170 = vmul.f32 %v6137, %v6164
        %v6171 = vmul.f32 %v6139, %v6165
        %v6172 = vmul.f32 %v6141, %v6166
        %v6173 = vmul.f32 %v6143, %v6167
        %v6174 = vpack.c.bf16 %v6169, %v6168
        %v6175 = vpack.c.bf16 %v6170, %v6170
        %v6176 = vpack.c.bf16 %v6172, %v6171
        %v6177 = vpack.c.bf16 %v6173, %v6173
        %6178 = vrot.lane.b32.xlu0 %v3404, 32
        %v6179 = vpop.permute.xlu0 %6178
        %6180 = vrot.lane.b32.xlu0 %v3405, 32
        %v6181 = vpop.permute.xlu0 %6180
        %v6184 = vsel %vm3529, %v6174, 0
        %v6187 = vsel %vm3529, %v6175, 0
        %v6190 = vand.u32 %v6181, %v3608
        %6192 = vmatprep.subr.bf16.mxu0 0
        %6193 = vmatpush1.bf16.msra.mxu0 %v6179
        %6194 = vmatprep.subr.bf16.mxu0 0
        %6195 = vmatpush1.bf16.msra.mxu0 %v6190
        %6196 = vmatprep.subr.bf16.mxu0 0
        %6197 = vmatpush1.bf16.msra.mxu0 0
        %6198 = vmatprep.subr.bf16.mxu0 0
        %6199 = vmatpush1.bf16.msra.mxu0 0
        %6200 = vmatprep.subr.bf16.mxu0 0
        %6201 = vmatpush1.bf16.msra.mxu0 0
        %6202 = vmatprep.subr.bf16.mxu0 0
        %6203 = vmatpush1.bf16.msra.mxu0 0
        %6204 = vmatprep.subr.bf16.mxu0 0
        %6205 = vmatpush1.bf16.msra.mxu0 0
        %6206 = vmatprep.subr.bf16.mxu0 0
        %6207 = vmatpush1.bf16.msra.mxu0 0
        %6208 = vmatprep.subr.bf16.mxu0 0
        %6209 = vmatpush1.bf16.msra.mxu0 0
        %6210 = vmatprep.subr.bf16.mxu0 0
        %6211 = vmatpush1.bf16.msra.mxu0 0
        %6212 = vmatprep.subr.bf16.mxu0 0
        %6213 = vmatpush1.bf16.msra.mxu0 0
        %6214 = vmatprep.subr.bf16.mxu0 0
        %6215 = vmatpush1.bf16.msra.mxu0 0
        %6216 = vmatprep.subr.bf16.mxu0 0
        %6217 = vmatpush1.bf16.msra.mxu0 0
        %6218 = vmatprep.subr.bf16.mxu0 0
        %6219 = vmatpush1.bf16.msra.mxu0 0
        %6220 = vmatprep.subr.bf16.mxu0 0
        %6221 = vmatpush1.bf16.msra.mxu0 0
        %6222 = vmatprep.subr.bf16.mxu0 0
        %6223 = vmatpush1.bf16.msra.mxu0 0
        %6224 = vmatprep.mubr.bf16.mxu0 0
        %6225 = vmatmul.mubr.bf16.gmra.mrb[0].mxu0 %v6184
        %v6226 = vpop.f32.mrb[0].mxu0
        %v6227 = vadd.f32 0.0, %v6226
        %v6228 = vpop.f32.mrb[0].mxu0
        %v6229 = vpop.f32.mrb[0].mxu0
        %v6230 = vadd.f32 0.0, %v6229
        %v6231 = vpop.f32.mrb[0].mxu0
        %6232 = vmatprep.mubr.bf16.mxu0 0
        %6233 = vmatmul.mubr.bf16.gmra.mrb[0].mxu0 %v6187
        %v6234 = vpop.f32.mrb[0].mxu0
        %v6235 = vadd.f32 0.0, %v6234
        %v6236 = vpop.f32.mrb[0].mxu0
        %v6237 = vpop.f32.mrb[0].mxu0
        %v6238 = vpop.f32.mrb[0].mxu0
        %6239 = vdwg.mxu0
        %6240 = vrot.lane.b32.xlu0 %v3406, 32
        %v6241 = vpop.permute.xlu0 %6240
        %6242 = vrot.lane.b32.xlu0 %v3407, 32
        %v6243 = vpop.permute.xlu0 %6242
        %v6246 = vsel %vm3529, %v6176, 0
        %v6249 = vsel %vm3529, %v6177, 0
        %v6252 = vand.u32 %v6243, %v3608
        %6254 = vmatprep.subr.bf16.mxu0 0
        %6255 = vmatpush1.bf16.msra.mxu0 %v6241
        %6256 = vmatprep.subr.bf16.mxu0 0
        %6257 = vmatpush1.bf16.msra.mxu0 %v6252
        %6258 = vmatprep.subr.bf16.mxu0 0
        %6259 = vmatpush1.bf16.msra.mxu0 0
        %6260 = vmatprep.subr.bf16.mxu0 0
        %6261 = vmatpush1.bf16.msra.mxu0 0
        %6262 = vmatprep.subr.bf16.mxu0 0
        %6263 = vmatpush1.bf16.msra.mxu0 0
        %6264 = vmatprep.subr.bf16.mxu0 0
        %6265 = vmatpush1.bf16.msra.mxu0 0
        %6266 = vmatprep.subr.bf16.mxu0 0
        %6267 = vmatpush1.bf16.msra.mxu0 0
        %6268 = vmatprep.subr.bf16.mxu0 0
        %6269 = vmatpush1.bf16.msra.mxu0 0
        %6270 = vmatprep.subr.bf16.mxu0 0
        %6271 = vmatpush1.bf16.msra.mxu0 0
        %6272 = vmatprep.subr.bf16.mxu0 0
        %6273 = vmatpush1.bf16.msra.mxu0 0
        %6274 = vmatprep.subr.bf16.mxu0 0
        %6275 = vmatpush1.bf16.msra.mxu0 0
        %6276 = vmatprep.subr.bf16.mxu0 0
        %6277 = vmatpush1.bf16.msra.mxu0 0
        %6278 = vmatprep.subr.bf16.mxu0 0
        %6279 = vmatpush1.bf16.msra.mxu0 0
        %6280 = vmatprep.subr.bf16.mxu0 0
        %6281 = vmatpush1.bf16.msra.mxu0 0
        %6282 = vmatprep.subr.bf16.mxu0 0
        %6283 = vmatpush1.bf16.msra.mxu0 0
        %6284 = vmatprep.subr.bf16.mxu0 0
        %6285 = vmatpush1.bf16.msra.mxu0 0
        %6286 = vmatprep.mubr.bf16.mxu0 0
        %6287 = vmatmul.mubr.bf16.gmra.mrb[0].mxu0 %v6246
        %v6288 = vpop.f32.mrb[0].mxu0
        %v6289 = vadd.f32 0.0, %v6288
        %v6290 = vpop.f32.mrb[0].mxu0
        %v6291 = vpop.f32.mrb[0].mxu0
        %v6292 = vadd.f32 0.0, %v6291
        %v6293 = vpop.f32.mrb[0].mxu0
        %6294 = vmatprep.mubr.bf16.mxu0 0
        %6295 = vmatmul.mubr.bf16.gmra.mrb[0].mxu0 %v6249
        %v6296 = vpop.f32.mrb[0].mxu0
        %v6297 = vadd.f32 0.0, %v6296
        %v6298 = vpop.f32.mrb[0].mxu0
        %v6299 = vpop.f32.mrb[0].mxu0
        %v6300 = vpop.f32.mrb[0].mxu0
        %6301 = vdwg.mxu0
        %v6308 = vcombine.high %v6227, %v6227
        %v6310 = vunpack.c.l.s4 1966171168
        %v6311 = vunpack.c.0.s8 %v6310
        %v6312 = vlaneseq
        %v6313 = vshrl.u32 %v6312, 7
        %v6314 = vsub.s32 %v6311, %v6313
        %v6315 = vrot.slane %v6227, %v6314
        %v6317 = vunpack.c.l.s4 1966171168
        %v6318 = vunpack.c.0.s8 %v6317
        %v6319 = vlaneseq
        %v6320 = vshrl.u32 %v6319, 7
        %v6321 = vsub.s32 %v6318, %v6320
        %v6322 = vrot.slane %v6308, %v6321
        %v6323 = vcombine.high %v6315, %v6315
        %v6324 = vcombine.high %v6322, %v6322
        %v6326 = vunpack.c.l.s4 1966171168
        %v6327 = vunpack.c.0.s8 %v6326
        %v6328 = vlaneseq
        %v6329 = vshrl.u32 %v6328, 7
        %v6330 = vsub.s32 %v6327, %v6329
        %v6331 = vrot.slane %v6315, %v6330
        %v6333 = vunpack.c.l.s4 1966171168
        %v6334 = vunpack.c.0.s8 %v6333
        %v6335 = vlaneseq
        %v6336 = vshrl.u32 %v6335, 7
        %v6337 = vsub.s32 %v6334, %v6336
        %v6338 = vrot.slane %v6322, %v6337
        %v6340 = vunpack.c.l.s4 1966171168
        %v6341 = vunpack.c.0.s8 %v6340
        %v6342 = vlaneseq
        %v6343 = vshrl.u32 %v6342, 7
        %v6344 = vsub.s32 %v6341, %v6343
        %v6345 = vrot.slane %v6323, %v6344
        %v6347 = vunpack.c.l.s4 1966171168
        %v6348 = vunpack.c.0.s8 %v6347
        %v6349 = vlaneseq
        %v6350 = vshrl.u32 %v6349, 7
        %v6351 = vsub.s32 %v6348, %v6350
        %v6352 = vrot.slane %v6324, %v6351
        %v6353 = vcombine.high %v6331, %v6331
        %v6354 = vcombine.high %v6338, %v6338
        %v6355 = vcombine.high %v6345, %v6345
        %v6356 = vcombine.high %v6352, %v6352
        %v6357 = vcombine.high %v6230, %v6230
        %v6359 = vunpack.c.l.s4 1966171168
        %v6360 = vunpack.c.0.s8 %v6359
        %v6361 = vlaneseq
        %v6362 = vshrl.u32 %v6361, 7
        %v6363 = vsub.s32 %v6360, %v6362
        %v6364 = vrot.slane %v6230, %v6363
        %v6366 = vunpack.c.l.s4 1966171168
        %v6367 = vunpack.c.0.s8 %v6366
        %v6368 = vlaneseq
        %v6369 = vshrl.u32 %v6368, 7
        %v6370 = vsub.s32 %v6367, %v6369
        %v6371 = vrot.slane %v6357, %v6370
        %v6372 = vcombine.high %v6364, %v6364
        %v6373 = vcombine.high %v6371, %v6371
        %v6375 = vunpack.c.l.s4 1966171168
        %v6376 = vunpack.c.0.s8 %v6375
        %v6377 = vlaneseq
        %v6378 = vshrl.u32 %v6377, 7
        %v6379 = vsub.s32 %v6376, %v6378
        %v6380 = vrot.slane %v6364, %v6379
        %v6382 = vunpack.c.l.s4 1966171168
        %v6383 = vunpack.c.0.s8 %v6382
        %v6384 = vlaneseq
        %v6385 = vshrl.u32 %v6384, 7
        %v6386 = vsub.s32 %v6383, %v6385
        %v6387 = vrot.slane %v6371, %v6386
        %v6389 = vunpack.c.l.s4 1966171168
        %v6390 = vunpack.c.0.s8 %v6389
        %v6391 = vlaneseq
        %v6392 = vshrl.u32 %v6391, 7
        %v6393 = vsub.s32 %v6390, %v6392
        %v6394 = vrot.slane %v6372, %v6393
        %v6396 = vunpack.c.l.s4 1966171168
        %v6397 = vunpack.c.0.s8 %v6396
        %v6398 = vlaneseq
        %v6399 = vshrl.u32 %v6398, 7
        %v6400 = vsub.s32 %v6397, %v6399
        %v6401 = vrot.slane %v6373, %v6400
        %v6402 = vcombine.high %v6380, %v6380
        %v6403 = vcombine.high %v6387, %v6387
        %v6404 = vcombine.high %v6394, %v6394
        %v6405 = vcombine.high %v6401, %v6401
        %v6407 = vunpack.c.l.s4 1966171168
        %v6408 = vunpack.c.0.s8 %v6407
        %v6409 = vlaneseq
        %v6410 = vshrl.u32 %v6409, 7
        %v6411 = vsub.s32 %v6408, %v6410
        %v6412 = vrot.slane %v6235, %v6411
        %v6414 = vunpack.c.l.s4 1966171168
        %v6415 = vunpack.c.0.s8 %v6414
        %v6416 = vlaneseq
        %v6417 = vshrl.u32 %v6416, 7
        %v6418 = vsub.s32 %v6415, %v6417
        %v6419 = vrot.slane %v6412, %v6418
        %v6420 = vcombine.high %v6289, %v6289
        %v6422 = vunpack.c.l.s4 1966171168
        %v6423 = vunpack.c.0.s8 %v6422
        %v6424 = vlaneseq
        %v6425 = vshrl.u32 %v6424, 7
        %v6426 = vsub.s32 %v6423, %v6425
        %v6427 = vrot.slane %v6289, %v6426
        %v6429 = vunpack.c.l.s4 1966171168
        %v6430 = vunpack.c.0.s8 %v6429
        %v6431 = vlaneseq
        %v6432 = vshrl.u32 %v6431, 7
        %v6433 = vsub.s32 %v6430, %v6432
        %v6434 = vrot.slane %v6420, %v6433
        %v6435 = vcombine.high %v6427, %v6427
        %v6436 = vcombine.high %v6434, %v6434
        %v6438 = vunpack.c.l.s4 1966171168
        %v6439 = vunpack.c.0.s8 %v6438
        %v6440 = vlaneseq
        %v6441 = vshrl.u32 %v6440, 7
        %v6442 = vsub.s32 %v6439, %v6441
        %v6443 = vrot.slane %v6427, %v6442
        %v6445 = vunpack.c.l.s4 1966171168
        %v6446 = vunpack.c.0.s8 %v6445
        %v6447 = vlaneseq
        %v6448 = vshrl.u32 %v6447, 7
        %v6449 = vsub.s32 %v6446, %v6448
        %v6450 = vrot.slane %v6434, %v6449
        %v6452 = vunpack.c.l.s4 1966171168
        %v6453 = vunpack.c.0.s8 %v6452
        %v6454 = vlaneseq
        %v6455 = vshrl.u32 %v6454, 7
        %v6456 = vsub.s32 %v6453, %v6455
        %v6457 = vrot.slane %v6435, %v6456
        %v6459 = vunpack.c.l.s4 1966171168
        %v6460 = vunpack.c.0.s8 %v6459
        %v6461 = vlaneseq
        %v6462 = vshrl.u32 %v6461, 7
        %v6463 = vsub.s32 %v6460, %v6462
        %v6464 = vrot.slane %v6436, %v6463
        %v6465 = vcombine.high %v6443, %v6443
        %v6466 = vcombine.high %v6450, %v6450
        %v6467 = vcombine.high %v6457, %v6457
        %v6468 = vcombine.high %v6464, %v6464
        %v6469 = vcombine.high %v6292, %v6292
        %v6471 = vunpack.c.l.s4 1966171168
        %v6472 = vunpack.c.0.s8 %v6471
        %v6473 = vlaneseq
        %v6474 = vshrl.u32 %v6473, 7
        %v6475 = vsub.s32 %v6472, %v6474
        %v6476 = vrot.slane %v6292, %v6475
        %v6478 = vunpack.c.l.s4 1966171168
        %v6479 = vunpack.c.0.s8 %v6478
        %v6480 = vlaneseq
        %v6481 = vshrl.u32 %v6480, 7
        %v6482 = vsub.s32 %v6479, %v6481
        %v6483 = vrot.slane %v6469, %v6482
        %v6484 = vcombine.high %v6476, %v6476
        %v6485 = vcombine.high %v6483, %v6483
        %v6487 = vunpack.c.l.s4 1966171168
        %v6488 = vunpack.c.0.s8 %v6487
        %v6489 = vlaneseq
        %v6490 = vshrl.u32 %v6489, 7
        %v6491 = vsub.s32 %v6488, %v6490
        %v6492 = vrot.slane %v6476, %v6491
        %v6494 = vunpack.c.l.s4 1966171168
        %v6495 = vunpack.c.0.s8 %v6494
        %v6496 = vlaneseq
        %v6497 = vshrl.u32 %v6496, 7
        %v6498 = vsub.s32 %v6495, %v6497
        %v6499 = vrot.slane %v6483, %v6498
        %v6501 = vunpack.c.l.s4 1966171168
        %v6502 = vunpack.c.0.s8 %v6501
        %v6503 = vlaneseq
        %v6504 = vshrl.u32 %v6503, 7
        %v6505 = vsub.s32 %v6502, %v6504
        %v6506 = vrot.slane %v6484, %v6505
        %v6508 = vunpack.c.l.s4 1966171168
        %v6509 = vunpack.c.0.s8 %v6508
        %v6510 = vlaneseq
        %v6511 = vshrl.u32 %v6510, 7
        %v6512 = vsub.s32 %v6509, %v6511
        %v6513 = vrot.slane %v6485, %v6512
        %v6514 = vcombine.high %v6492, %v6492
        %v6515 = vcombine.high %v6499, %v6499
        %v6516 = vcombine.high %v6506, %v6506
        %v6517 = vcombine.high %v6513, %v6513
        %v6519 = vunpack.c.l.s4 1966171168
        %v6520 = vunpack.c.0.s8 %v6519
        %v6521 = vlaneseq
        %v6522 = vshrl.u32 %v6521, 7
        %v6523 = vsub.s32 %v6520, %v6522
        %v6524 = vrot.slane %v6297, %v6523
        %v6526 = vunpack.c.l.s4 1966171168
        %v6527 = vunpack.c.0.s8 %v6526
        %v6528 = vlaneseq
        %v6529 = vshrl.u32 %v6528, 7
        %v6530 = vsub.s32 %v6527, %v6529
        %v6531 = vrot.slane %v6524, %v6530
        %v6532 = vcombine.low %v6331, %v6345
        %v6533 = vcombine.low %v6353, %v6355
        %v6534 = vcombine.low %v6338, %v6352
        %v6535 = vcombine.low %v6354, %v6356
        %v6537 = vunpack.c.l.s4 1966171168
        %v6538 = vunpack.c.0.s8 %v6537
        %v6539 = vlaneseq
        %v6540 = vshrl.u32 %v6539, 7
        %v6541 = vsub.s32 %v6538, %v6540
        %v6542 = vrot.slane %v6532, %v6541
        %v6544 = vunpack.c.l.s4 1966171168
        %v6545 = vunpack.c.0.s8 %v6544
        %v6546 = vlaneseq
        %v6547 = vshrl.u32 %v6546, 7
        %v6548 = vsub.s32 %v6545, %v6547
        %v6549 = vrot.slane %v6533, %v6548
        %v6551 = vunpack.c.l.s4 1966171168
        %v6552 = vunpack.c.0.s8 %v6551
        %v6553 = vlaneseq
        %v6554 = vshrl.u32 %v6553, 7
        %v6555 = vsub.s32 %v6552, %v6554
        %v6556 = vrot.slane %v6534, %v6555
        %v6558 = vunpack.c.l.s4 1966171168
        %v6559 = vunpack.c.0.s8 %v6558
        %v6560 = vlaneseq
        %v6561 = vshrl.u32 %v6560, 7
        %v6562 = vsub.s32 %v6559, %v6561
        %v6563 = vrot.slane %v6535, %v6562
        %v6564 = vcombine.low %v6542, %v6549
        %v6565 = vcombine.low %v6556, %v6563
        %v6567 = vunpack.c.l.s4 1966171168
        %v6568 = vunpack.c.0.s8 %v6567
        %v6569 = vlaneseq
        %v6570 = vshrl.u32 %v6569, 7
        %v6571 = vsub.s32 %v6568, %v6570
        %v6572 = vrot.slane %v6564, %v6571
        %v6574 = vunpack.c.l.s4 1966171168
        %v6575 = vunpack.c.0.s8 %v6574
        %v6576 = vlaneseq
        %v6577 = vshrl.u32 %v6576, 7
        %v6578 = vsub.s32 %v6575, %v6577
        %v6579 = vrot.slane %v6565, %v6578
        %v6580 = vcombine.low %v6572, %v6579
        %v6581 = vcombine.low %v6380, %v6394
        %v6582 = vcombine.low %v6402, %v6404
        %v6583 = vcombine.low %v6387, %v6401
        %v6584 = vcombine.low %v6403, %v6405
        %v6586 = vunpack.c.l.s4 1966171168
        %v6587 = vunpack.c.0.s8 %v6586
        %v6588 = vlaneseq
        %v6589 = vshrl.u32 %v6588, 7
        %v6590 = vsub.s32 %v6587, %v6589
        %v6591 = vrot.slane %v6581, %v6590
        %v6593 = vunpack.c.l.s4 1966171168
        %v6594 = vunpack.c.0.s8 %v6593
        %v6595 = vlaneseq
        %v6596 = vshrl.u32 %v6595, 7
        %v6597 = vsub.s32 %v6594, %v6596
        %v6598 = vrot.slane %v6582, %v6597
        %v6600 = vunpack.c.l.s4 1966171168
        %v6601 = vunpack.c.0.s8 %v6600
        %v6602 = vlaneseq
        %v6603 = vshrl.u32 %v6602, 7
        %v6604 = vsub.s32 %v6601, %v6603
        %v6605 = vrot.slane %v6583, %v6604
        %v6607 = vunpack.c.l.s4 1966171168
        %v6608 = vunpack.c.0.s8 %v6607
        %v6609 = vlaneseq
        %v6610 = vshrl.u32 %v6609, 7
        %v6611 = vsub.s32 %v6608, %v6610
        %v6612 = vrot.slane %v6584, %v6611
        %v6613 = vcombine.low %v6591, %v6598
        %v6614 = vcombine.low %v6605, %v6612
        %v6616 = vunpack.c.l.s4 1966171168
        %v6617 = vunpack.c.0.s8 %v6616
        %v6618 = vlaneseq
        %v6619 = vshrl.u32 %v6618, 7
        %v6620 = vsub.s32 %v6617, %v6619
        %v6621 = vrot.slane %v6613, %v6620
        %v6623 = vunpack.c.l.s4 1966171168
        %v6624 = vunpack.c.0.s8 %v6623
        %v6625 = vlaneseq
        %v6626 = vshrl.u32 %v6625, 7
        %v6627 = vsub.s32 %v6624, %v6626
        %v6628 = vrot.slane %v6614, %v6627
        %v6629 = vcombine.low %v6621, %v6628
        %v6630 = vcombine.low %v6419, %v6443
        %v6631 = vcombine.low %v6457, %v6465
        %v6632 = vcombine.low %v6467, %v6450
        %v6633 = vcombine.low %v6464, %v6466
        %v6635 = vunpack.c.l.s4 1966171168
        %v6636 = vunpack.c.0.s8 %v6635
        %v6637 = vlaneseq
        %v6638 = vshrl.u32 %v6637, 7
        %v6639 = vsub.s32 %v6636, %v6638
        %v6640 = vrot.slane %v6630, %v6639
        %v6642 = vunpack.c.l.s4 1966171168
        %v6643 = vunpack.c.0.s8 %v6642
        %v6644 = vlaneseq
        %v6645 = vshrl.u32 %v6644, 7
        %v6646 = vsub.s32 %v6643, %v6645
        %v6647 = vrot.slane %v6631, %v6646
        %v6649 = vunpack.c.l.s4 1966171168
        %v6650 = vunpack.c.0.s8 %v6649
        %v6651 = vlaneseq
        %v6652 = vshrl.u32 %v6651, 7
        %v6653 = vsub.s32 %v6650, %v6652
        %v6654 = vrot.slane %v6632, %v6653
        %v6656 = vunpack.c.l.s4 1966171168
        %v6657 = vunpack.c.0.s8 %v6656
        %v6658 = vlaneseq
        %v6659 = vshrl.u32 %v6658, 7
        %v6660 = vsub.s32 %v6657, %v6659
        %v6661 = vrot.slane %v6633, %v6660
        %v6662 = vcombine.low %v6640, %v6647
        %v6663 = vcombine.low %v6654, %v6661
        %v6665 = vunpack.c.l.s4 1966171168
        %v6666 = vunpack.c.0.s8 %v6665
        %v6667 = vlaneseq
        %v6668 = vshrl.u32 %v6667, 7
        %v6669 = vsub.s32 %v6666, %v6668
        %v6670 = vrot.slane %v6662, %v6669
        %v6672 = vunpack.c.l.s4 1966171168
        %v6673 = vunpack.c.0.s8 %v6672
        %v6674 = vlaneseq
        %v6675 = vshrl.u32 %v6674, 7
        %v6676 = vsub.s32 %v6673, %v6675
        %v6677 = vrot.slane %v6663, %v6676
        %v6678 = vcombine.low %v6670, %v6677
        %v6679 = vcombine.low %v6468, %v6492
        %v6680 = vcombine.low %v6506, %v6514
        %v6681 = vcombine.low %v6516, %v6499
        %v6682 = vcombine.low %v6513, %v6515
        %v6684 = vunpack.c.l.s4 1966171168
        %v6685 = vunpack.c.0.s8 %v6684
        %v6686 = vlaneseq
        %v6687 = vshrl.u32 %v6686, 7
        %v6688 = vsub.s32 %v6685, %v6687
        %v6689 = vrot.slane %v6679, %v6688
        %v6691 = vunpack.c.l.s4 1966171168
        %v6692 = vunpack.c.0.s8 %v6691
        %v6693 = vlaneseq
        %v6694 = vshrl.u32 %v6693, 7
        %v6695 = vsub.s32 %v6692, %v6694
        %v6696 = vrot.slane %v6680, %v6695
        %v6698 = vunpack.c.l.s4 1966171168
        %v6699 = vunpack.c.0.s8 %v6698
        %v6700 = vlaneseq
        %v6701 = vshrl.u32 %v6700, 7
        %v6702 = vsub.s32 %v6699, %v6701
        %v6703 = vrot.slane %v6681, %v6702
        %v6705 = vunpack.c.l.s4 1966171168
        %v6706 = vunpack.c.0.s8 %v6705
        %v6707 = vlaneseq
        %v6708 = vshrl.u32 %v6707, 7
        %v6709 = vsub.s32 %v6706, %v6708
        %v6710 = vrot.slane %v6682, %v6709
        %v6711 = vcombine.low %v6689, %v6696
        %v6712 = vcombine.low %v6703, %v6710
        %v6714 = vunpack.c.l.s4 1966171168
        %v6715 = vunpack.c.0.s8 %v6714
        %v6716 = vlaneseq
        %v6717 = vshrl.u32 %v6716, 7
        %v6718 = vsub.s32 %v6715, %v6717
        %v6719 = vrot.slane %v6711, %v6718
        %v6721 = vunpack.c.l.s4 1966171168
        %v6722 = vunpack.c.0.s8 %v6721
        %v6723 = vlaneseq
        %v6724 = vshrl.u32 %v6723, 7
        %v6725 = vsub.s32 %v6722, %v6724
        %v6726 = vrot.slane %v6712, %v6725
        %v6727 = vcombine.low %v6719, %v6726
        %v6728 = vcombine.low %v6517, %v6531
        %v6730 = vunpack.c.l.s4 1966171168
        %v6731 = vunpack.c.0.s8 %v6730
        %v6732 = vlaneseq
        %v6733 = vshrl.u32 %v6732, 7
        %v6734 = vsub.s32 %v6731, %v6733
        %v6735 = vrot.slane %v6728, %v6734
        %v6737 = vunpack.c.l.s4 1966171168
        %v6738 = vunpack.c.0.s8 %v6737
        %v6739 = vlaneseq
        %v6740 = vshrl.u32 %v6739, 7
        %v6741 = vsub.s32 %v6738, %v6740
        %v6742 = vrot.slane %v6735, %v6741
        %v6748 = vpack.c.bf16 %v6629, %v6580
        %v6749 = vpack.c.bf16 %v6727, %v6678
        %v6750 = vpack.c.bf16 %v6742, %v6742
        %v6755 = vunpack.c.l.b16 %v2702
        %v6756 = vunpack.c.l.b16 %v2703
        %v6757 = vunpack.c.l.b16 %v2704
        %v6758 = vunpack.c.l.b16 %v2705
        %v6759 = vpack.c.b16 %v6756, %v6755
        %v6760 = vpack.c.b16 %v6758, %v6757
        %v6764 = vsel %vm3408, %v6748, 0
        %v6767 = vsel %vm3408, %v6749, 0
        %v6770 = vsel %vm3408, %v6750, 0
        %6772 = vmatprep.subr.bf16.mxu0 0
        %6773 = vmatpush1.bf16.msra.mxu0 %v6759
        %6774 = vmatprep.subr.bf16.mxu0 0
        %6775 = vmatpush1.bf16.msra.mxu0 %v6760
        %6776 = vmatprep.subr.bf16.mxu0 0
        %6777 = vmatpush1.bf16.msra.mxu0 0
        %6778 = vmatprep.subr.bf16.mxu0 0
        %6779 = vmatpush1.bf16.msra.mxu0 0
        %6780 = vmatprep.subr.bf16.mxu0 0
        %6781 = vmatpush1.bf16.msra.mxu0 0
        %6782 = vmatprep.subr.bf16.mxu0 0
        %6783 = vmatpush1.bf16.msra.mxu0 0
        %6784 = vmatprep.subr.bf16.mxu0 0
        %6785 = vmatpush1.bf16.msra.mxu0 0
        %6786 = vmatprep.subr.bf16.mxu0 0
        %6787 = vmatpush1.bf16.msra.mxu0 0
        %6788 = vmatprep.subr.bf16.mxu0 0
        %6789 = vmatpush1.bf16.msra.mxu0 0
        %6790 = vmatprep.subr.bf16.mxu0 0
        %6791 = vmatpush1.bf16.msra.mxu0 0
        %6792 = vmatprep.subr.bf16.mxu0 0
        %6793 = vmatpush1.bf16.msra.mxu0 0
        %6794 = vmatprep.subr.bf16.mxu0 0
        %6795 = vmatpush1.bf16.msra.mxu0 0
        %6796 = vmatprep.subr.bf16.mxu0 0
        %6797 = vmatpush1.bf16.msra.mxu0 0
        %6798 = vmatprep.subr.bf16.mxu0 0
        %6799 = vmatpush1.bf16.msra.mxu0 0
        %6800 = vmatprep.subr.bf16.mxu0 0
        %6801 = vmatpush1.bf16.msra.mxu0 0
        %6802 = vmatprep.subr.bf16.mxu0 0
        %6803 = vmatpush1.bf16.msra.mxu0 0
        %6804 = vmatprep.mubr.bf16.mxu0 0
        %6805 = vmatmul.mubr.bf16.gmra.mrb[0].mxu0 %v6764
        %v6806 = vpop.f32.mrb[0].mxu0
        %v6807 = vadd.f32 0.0, %v6806
        %v6808 = vpop.f32.mrb[0].mxu0
        %v6809 = vpop.f32.mrb[0].mxu0
        %v6810 = vadd.f32 0.0, %v6809
        %v6811 = vpop.f32.mrb[0].mxu0
        %6812 = vmatprep.mubr.bf16.mxu0 0
        %6813 = vmatmul.mubr.bf16.gmra.mrb[0].mxu0 %v6767
        %v6814 = vpop.f32.mrb[0].mxu0
        %v6815 = vadd.f32 0.0, %v6814
        %v6816 = vpop.f32.mrb[0].mxu0
        %v6817 = vpop.f32.mrb[0].mxu0
        %v6818 = vadd.f32 0.0, %v6817
        %v6819 = vpop.f32.mrb[0].mxu0
        %6820 = vmatprep.mubr.bf16.mxu0 0
        %6821 = vmatmul.mubr.bf16.gmra.mrb[0].mxu0 %v6770
        %v6822 = vpop.f32.mrb[0].mxu0
        %v6823 = vadd.f32 0.0, %v6822
        %v6824 = vpop.f32.mrb[0].mxu0
        %v6825 = vpop.f32.mrb[0].mxu0
        %v6826 = vpop.f32.mrb[0].mxu0
        %6827 = vdwg.mxu0
        %v6828 = vadd.f32 %v5967, %v6807
        %v6829 = vadd.f32 %v5968, %v6810
        %v6830 = vadd.f32 %v5969, %v6815
        %v6831 = vadd.f32 %v5970, %v6818
        %v6832 = vadd.f32 %v5971, %v6823
        %v6833 = vld [vmem:[%s909] sm:$0x1]
        %v6835 = vlaneseq
        %v6836 = vshrl.u32 %v6835, 7
        %v6837 = vsub.s32 0, %v6836
        %v6838 = vrot.slane %v6833, %v6837
        %v6840 = vadd.f32 %v6828, %v6838
        %v6841 = vadd.f32 %v6829, %v6838
        %v6842 = vadd.f32 %v6830, %v6838
        %v6843 = vadd.f32 %v6831, %v6838
        %v6844 = vadd.f32 %v6832, %v6838
        %v6850 = vcombine.high %v6840, %v6840
        %v6852 = vunpack.c.l.s4 1966171168
        %v6853 = vunpack.c.0.s8 %v6852
        %v6854 = vlaneseq
        %v6855 = vshrl.u32 %v6854, 7
        %v6856 = vsub.s32 %v6853, %v6855
        %v6857 = vrot.slane %v6840, %v6856
        %v6859 = vunpack.c.l.s4 1966171168
        %v6860 = vunpack.c.0.s8 %v6859
        %v6861 = vlaneseq
        %v6862 = vshrl.u32 %v6861, 7
        %v6863 = vsub.s32 %v6860, %v6862
        %v6864 = vrot.slane %v6850, %v6863
        %v6865 = vcombine.high %v6857, %v6857
        %v6866 = vcombine.high %v6864, %v6864
        %v6868 = vunpack.c.l.s4 1966171168
        %v6869 = vunpack.c.0.s8 %v6868
        %v6870 = vlaneseq
        %v6871 = vshrl.u32 %v6870, 7
        %v6872 = vsub.s32 %v6869, %v6871
        %v6873 = vrot.slane %v6857, %v6872
        %v6875 = vunpack.c.l.s4 1966171168
        %v6876 = vunpack.c.0.s8 %v6875
        %v6877 = vlaneseq
        %v6878 = vshrl.u32 %v6877, 7
        %v6879 = vsub.s32 %v6876, %v6878
        %v6880 = vrot.slane %v6864, %v6879
        %v6882 = vunpack.c.l.s4 1966171168
        %v6883 = vunpack.c.0.s8 %v6882
        %v6884 = vlaneseq
        %v6885 = vshrl.u32 %v6884, 7
        %v6886 = vsub.s32 %v6883, %v6885
        %v6887 = vrot.slane %v6865, %v6886
        %v6889 = vunpack.c.l.s4 1966171168
        %v6890 = vunpack.c.0.s8 %v6889
        %v6891 = vlaneseq
        %v6892 = vshrl.u32 %v6891, 7
        %v6893 = vsub.s32 %v6890, %v6892
        %v6894 = vrot.slane %v6866, %v6893
        %v6895 = vcombine.high %v6873, %v6873
        %v6896 = vcombine.high %v6880, %v6880
        %v6897 = vcombine.high %v6887, %v6887
        %v6898 = vcombine.high %v6894, %v6894
        %v6899 = vcombine.high %v6841, %v6841
        %v6901 = vunpack.c.l.s4 1966171168
        %v6902 = vunpack.c.0.s8 %v6901
        %v6903 = vlaneseq
        %v6904 = vshrl.u32 %v6903, 7
        %v6905 = vsub.s32 %v6902, %v6904
        %v6906 = vrot.slane %v6841, %v6905
        %v6908 = vunpack.c.l.s4 1966171168
        %v6909 = vunpack.c.0.s8 %v6908
        %v6910 = vlaneseq
        %v6911 = vshrl.u32 %v6910, 7
        %v6912 = vsub.s32 %v6909, %v6911
        %v6913 = vrot.slane %v6899, %v6912
        %v6914 = vcombine.high %v6906, %v6906
        %v6915 = vcombine.high %v6913, %v6913
        %v6917 = vunpack.c.l.s4 1966171168
        %v6918 = vunpack.c.0.s8 %v6917
        %v6919 = vlaneseq
        %v6920 = vshrl.u32 %v6919, 7
        %v6921 = vsub.s32 %v6918, %v6920
        %v6922 = vrot.slane %v6906, %v6921
        %v6924 = vunpack.c.l.s4 1966171168
        %v6925 = vunpack.c.0.s8 %v6924
        %v6926 = vlaneseq
        %v6927 = vshrl.u32 %v6926, 7
        %v6928 = vsub.s32 %v6925, %v6927
        %v6929 = vrot.slane %v6913, %v6928
        %v6931 = vunpack.c.l.s4 1966171168
        %v6932 = vunpack.c.0.s8 %v6931
        %v6933 = vlaneseq
        %v6934 = vshrl.u32 %v6933, 7
        %v6935 = vsub.s32 %v6932, %v6934
        %v6936 = vrot.slane %v6914, %v6935
        %v6938 = vunpack.c.l.s4 1966171168
        %v6939 = vunpack.c.0.s8 %v6938
        %v6940 = vlaneseq
        %v6941 = vshrl.u32 %v6940, 7
        %v6942 = vsub.s32 %v6939, %v6941
        %v6943 = vrot.slane %v6915, %v6942
        %v6944 = vcombine.high %v6922, %v6922
        %v6945 = vcombine.high %v6929, %v6929
        %v6946 = vcombine.high %v6936, %v6936
        %v6947 = vcombine.high %v6943, %v6943
        %v6948 = vcombine.high %v6842, %v6842
        %v6950 = vunpack.c.l.s4 1966171168
        %v6951 = vunpack.c.0.s8 %v6950
        %v6952 = vlaneseq
        %v6953 = vshrl.u32 %v6952, 7
        %v6954 = vsub.s32 %v6951, %v6953
        %v6955 = vrot.slane %v6842, %v6954
        %v6957 = vunpack.c.l.s4 1966171168
        %v6958 = vunpack.c.0.s8 %v6957
        %v6959 = vlaneseq
        %v6960 = vshrl.u32 %v6959, 7
        %v6961 = vsub.s32 %v6958, %v6960
        %v6962 = vrot.slane %v6948, %v6961
        %v6963 = vcombine.high %v6955, %v6955
        %v6964 = vcombine.high %v6962, %v6962
        %v6966 = vunpack.c.l.s4 1966171168
        %v6967 = vunpack.c.0.s8 %v6966
        %v6968 = vlaneseq
        %v6969 = vshrl.u32 %v6968, 7
        %v6970 = vsub.s32 %v6967, %v6969
        %v6971 = vrot.slane %v6955, %v6970
        %v6973 = vunpack.c.l.s4 1966171168
        %v6974 = vunpack.c.0.s8 %v6973
        %v6975 = vlaneseq
        %v6976 = vshrl.u32 %v6975, 7
        %v6977 = vsub.s32 %v6974, %v6976
        %v6978 = vrot.slane %v6962, %v6977
        %v6980 = vunpack.c.l.s4 1966171168
        %v6981 = vunpack.c.0.s8 %v6980
        %v6982 = vlaneseq
        %v6983 = vshrl.u32 %v6982, 7
        %v6984 = vsub.s32 %v6981, %v6983
        %v6985 = vrot.slane %v6963, %v6984
        %v6987 = vunpack.c.l.s4 1966171168
        %v6988 = vunpack.c.0.s8 %v6987
        %v6989 = vlaneseq
        %v6990 = vshrl.u32 %v6989, 7
        %v6991 = vsub.s32 %v6988, %v6990
        %v6992 = vrot.slane %v6964, %v6991
        %v6993 = vcombine.high %v6971, %v6971
        %v6994 = vcombine.high %v6978, %v6978
        %v6995 = vcombine.high %v6985, %v6985
        %v6996 = vcombine.high %v6992, %v6992
        %v6997 = vcombine.high %v6843, %v6843
        %v6999 = vunpack.c.l.s4 1966171168
        %v7000 = vunpack.c.0.s8 %v6999
        %v7001 = vlaneseq
        %v7002 = vshrl.u32 %v7001, 7
        %v7003 = vsub.s32 %v7000, %v7002
        %v7004 = vrot.slane %v6843, %v7003
        %v7006 = vunpack.c.l.s4 1966171168
        %v7007 = vunpack.c.0.s8 %v7006
        %v7008 = vlaneseq
        %v7009 = vshrl.u32 %v7008, 7
        %v7010 = vsub.s32 %v7007, %v7009
        %v7011 = vrot.slane %v6997, %v7010
        %v7012 = vcombine.high %v7004, %v7004
        %v7013 = vcombine.high %v7011, %v7011
        %v7015 = vunpack.c.l.s4 1966171168
        %v7016 = vunpack.c.0.s8 %v7015
        %v7017 = vlaneseq
        %v7018 = vshrl.u32 %v7017, 7
        %v7019 = vsub.s32 %v7016, %v7018
        %v7020 = vrot.slane %v7004, %v7019
        %v7022 = vunpack.c.l.s4 1966171168
        %v7023 = vunpack.c.0.s8 %v7022
        %v7024 = vlaneseq
        %v7025 = vshrl.u32 %v7024, 7
        %v7026 = vsub.s32 %v7023, %v7025
        %v7027 = vrot.slane %v7011, %v7026
        %v7029 = vunpack.c.l.s4 1966171168
        %v7030 = vunpack.c.0.s8 %v7029
        %v7031 = vlaneseq
        %v7032 = vshrl.u32 %v7031, 7
        %v7033 = vsub.s32 %v7030, %v7032
        %v7034 = vrot.slane %v7012, %v7033
        %v7036 = vunpack.c.l.s4 1966171168
        %v7037 = vunpack.c.0.s8 %v7036
        %v7038 = vlaneseq
        %v7039 = vshrl.u32 %v7038, 7
        %v7040 = vsub.s32 %v7037, %v7039
        %v7041 = vrot.slane %v7013, %v7040
        %v7042 = vcombine.high %v7020, %v7020
        %v7043 = vcombine.high %v7027, %v7027
        %v7044 = vcombine.high %v7034, %v7034
        %v7045 = vcombine.high %v7041, %v7041
        %v7047 = vunpack.c.l.s4 1966171168
        %v7048 = vunpack.c.0.s8 %v7047
        %v7049 = vlaneseq
        %v7050 = vshrl.u32 %v7049, 7
        %v7051 = vsub.s32 %v7048, %v7050
        %v7052 = vrot.slane %v6844, %v7051
        %v7053 = vcombine.high %v7052, %v7052
        %v7055 = vunpack.c.l.s4 1966171168
        %v7056 = vunpack.c.0.s8 %v7055
        %v7057 = vlaneseq
        %v7058 = vshrl.u32 %v7057, 7
        %v7059 = vsub.s32 %v7056, %v7058
        %v7060 = vrot.slane %v7052, %v7059
        %v7062 = vunpack.c.l.s4 1966171168
        %v7063 = vunpack.c.0.s8 %v7062
        %v7064 = vlaneseq
        %v7065 = vshrl.u32 %v7064, 7
        %v7066 = vsub.s32 %v7063, %v7065
        %v7067 = vrot.slane %v7053, %v7066
        %v7068 = vcombine.low %v6873, %v6887
        %v7069 = vcombine.low %v6895, %v6897
        %v7070 = vcombine.low %v6880, %v6894
        %v7071 = vcombine.low %v6896, %v6898
        %v7073 = vunpack.c.l.s4 1966171168
        %v7074 = vunpack.c.0.s8 %v7073
        %v7075 = vlaneseq
        %v7076 = vshrl.u32 %v7075, 7
        %v7077 = vsub.s32 %v7074, %v7076
        %v7078 = vrot.slane %v7068, %v7077
        %v7080 = vunpack.c.l.s4 1966171168
        %v7081 = vunpack.c.0.s8 %v7080
        %v7082 = vlaneseq
        %v7083 = vshrl.u32 %v7082, 7
        %v7084 = vsub.s32 %v7081, %v7083
        %v7085 = vrot.slane %v7069, %v7084
        %v7087 = vunpack.c.l.s4 1966171168
        %v7088 = vunpack.c.0.s8 %v7087
        %v7089 = vlaneseq
        %v7090 = vshrl.u32 %v7089, 7
        %v7091 = vsub.s32 %v7088, %v7090
        %v7092 = vrot.slane %v7070, %v7091
        %v7094 = vunpack.c.l.s4 1966171168
        %v7095 = vunpack.c.0.s8 %v7094
        %v7096 = vlaneseq
        %v7097 = vshrl.u32 %v7096, 7
        %v7098 = vsub.s32 %v7095, %v7097
        %v7099 = vrot.slane %v7071, %v7098
        %v7100 = vcombine.low %v7078, %v7085
        %v7101 = vcombine.low %v7092, %v7099
        %v7103 = vunpack.c.l.s4 1966171168
        %v7104 = vunpack.c.0.s8 %v7103
        %v7105 = vlaneseq
        %v7106 = vshrl.u32 %v7105, 7
        %v7107 = vsub.s32 %v7104, %v7106
        %v7108 = vrot.slane %v7100, %v7107
        %v7110 = vunpack.c.l.s4 1966171168
        %v7111 = vunpack.c.0.s8 %v7110
        %v7112 = vlaneseq
        %v7113 = vshrl.u32 %v7112, 7
        %v7114 = vsub.s32 %v7111, %v7113
        %v7115 = vrot.slane %v7101, %v7114
        %v7116 = vcombine.low %v7108, %v7115
        %v7117 = vcombine.low %v6922, %v6936
        %v7118 = vcombine.low %v6944, %v6946
        %v7119 = vcombine.low %v6929, %v6943
        %v7120 = vcombine.low %v6945, %v6947
        %v7122 = vunpack.c.l.s4 1966171168
        %v7123 = vunpack.c.0.s8 %v7122
        %v7124 = vlaneseq
        %v7125 = vshrl.u32 %v7124, 7
        %v7126 = vsub.s32 %v7123, %v7125
        %v7127 = vrot.slane %v7117, %v7126
        %v7129 = vunpack.c.l.s4 1966171168
        %v7130 = vunpack.c.0.s8 %v7129
        %v7131 = vlaneseq
        %v7132 = vshrl.u32 %v7131, 7
        %v7133 = vsub.s32 %v7130, %v7132
        %v7134 = vrot.slane %v7118, %v7133
        %v7136 = vunpack.c.l.s4 1966171168
        %v7137 = vunpack.c.0.s8 %v7136
        %v7138 = vlaneseq
        %v7139 = vshrl.u32 %v7138, 7
        %v7140 = vsub.s32 %v7137, %v7139
        %v7141 = vrot.slane %v7119, %v7140
        %v7143 = vunpack.c.l.s4 1966171168
        %v7144 = vunpack.c.0.s8 %v7143
        %v7145 = vlaneseq
        %v7146 = vshrl.u32 %v7145, 7
        %v7147 = vsub.s32 %v7144, %v7146
        %v7148 = vrot.slane %v7120, %v7147
        %v7149 = vcombine.low %v7127, %v7134
        %v7150 = vcombine.low %v7141, %v7148
        %v7152 = vunpack.c.l.s4 1966171168
        %v7153 = vunpack.c.0.s8 %v7152
        %v7154 = vlaneseq
        %v7155 = vshrl.u32 %v7154, 7
        %v7156 = vsub.s32 %v7153, %v7155
        %v7157 = vrot.slane %v7149, %v7156
        %v7159 = vunpack.c.l.s4 1966171168
        %v7160 = vunpack.c.0.s8 %v7159
        %v7161 = vlaneseq
        %v7162 = vshrl.u32 %v7161, 7
        %v7163 = vsub.s32 %v7160, %v7162
        %v7164 = vrot.slane %v7150, %v7163
        %v7165 = vcombine.low %v7157, %v7164
        %v7167 = vunpack.c.l.s4 1966171168
        %v7168 = vunpack.c.0.s8 %v7167
        %v7169 = vlaneseq
        %v7170 = vshrl.u32 %v7169, 7
        %v7171 = vsub.s32 %v7168, %v7170
        %v7172 = vrot.slane %v6971, %v7171
        %v7174 = vunpack.c.l.s4 1966171168
        %v7175 = vunpack.c.0.s8 %v7174
        %v7176 = vlaneseq
        %v7177 = vshrl.u32 %v7176, 7
        %v7178 = vsub.s32 %v7175, %v7177
        %v7179 = vrot.slane %v7172, %v7178
        %v7180 = vcombine.low %v6985, %v6993
        %v7181 = vcombine.low %v6995, %v6978
        %v7182 = vcombine.low %v6992, %v6994
        %v7183 = vcombine.low %v6996, %v7020
        %v7185 = vunpack.c.l.s4 1966171168
        %v7186 = vunpack.c.0.s8 %v7185
        %v7187 = vlaneseq
        %v7188 = vshrl.u32 %v7187, 7
        %v7189 = vsub.s32 %v7186, %v7188
        %v7190 = vrot.slane %v7180, %v7189
        %v7192 = vunpack.c.l.s4 1966171168
        %v7193 = vunpack.c.0.s8 %v7192
        %v7194 = vlaneseq
        %v7195 = vshrl.u32 %v7194, 7
        %v7196 = vsub.s32 %v7193, %v7195
        %v7197 = vrot.slane %v7181, %v7196
        %v7199 = vunpack.c.l.s4 1966171168
        %v7200 = vunpack.c.0.s8 %v7199
        %v7201 = vlaneseq
        %v7202 = vshrl.u32 %v7201, 7
        %v7203 = vsub.s32 %v7200, %v7202
        %v7204 = vrot.slane %v7182, %v7203
        %v7206 = vunpack.c.l.s4 1966171168
        %v7207 = vunpack.c.0.s8 %v7206
        %v7208 = vlaneseq
        %v7209 = vshrl.u32 %v7208, 7
        %v7210 = vsub.s32 %v7207, %v7209
        %v7211 = vrot.slane %v7183, %v7210
        %v7212 = vcombine.low %v7190, %v7197
        %v7213 = vcombine.low %v7204, %v7211
        %v7215 = vunpack.c.l.s4 1966171168
        %v7216 = vunpack.c.0.s8 %v7215
        %v7217 = vlaneseq
        %v7218 = vshrl.u32 %v7217, 7
        %v7219 = vsub.s32 %v7216, %v7218
        %v7220 = vrot.slane %v7212, %v7219
        %v7222 = vunpack.c.l.s4 1966171168
        %v7223 = vunpack.c.0.s8 %v7222
        %v7224 = vlaneseq
        %v7225 = vshrl.u32 %v7224, 7
        %v7226 = vsub.s32 %v7223, %v7225
        %v7227 = vrot.slane %v7213, %v7226
        %v7228 = vcombine.low %v7220, %v7227
        %v7229 = vcombine.low %v7034, %v7042
        %v7230 = vcombine.low %v7044, %v7027
        %v7231 = vcombine.low %v7041, %v7043
        %v7232 = vcombine.low %v7045, %v7060
        %v7234 = vunpack.c.l.s4 1966171168
        %v7235 = vunpack.c.0.s8 %v7234
        %v7236 = vlaneseq
        %v7237 = vshrl.u32 %v7236, 7
        %v7238 = vsub.s32 %v7235, %v7237
        %v7239 = vrot.slane %v7229, %v7238
        %v7241 = vunpack.c.l.s4 1966171168
        %v7242 = vunpack.c.0.s8 %v7241
        %v7243 = vlaneseq
        %v7244 = vshrl.u32 %v7243, 7
        %v7245 = vsub.s32 %v7242, %v7244
        %v7246 = vrot.slane %v7230, %v7245
        %v7248 = vunpack.c.l.s4 1966171168
        %v7249 = vunpack.c.0.s8 %v7248
        %v7250 = vlaneseq
        %v7251 = vshrl.u32 %v7250, 7
        %v7252 = vsub.s32 %v7249, %v7251
        %v7253 = vrot.slane %v7231, %v7252
        %v7255 = vunpack.c.l.s4 1966171168
        %v7256 = vunpack.c.0.s8 %v7255
        %v7257 = vlaneseq
        %v7258 = vshrl.u32 %v7257, 7
        %v7259 = vsub.s32 %v7256, %v7258
        %v7260 = vrot.slane %v7232, %v7259
        %v7261 = vcombine.low %v7239, %v7246
        %v7262 = vcombine.low %v7253, %v7260
        %v7264 = vunpack.c.l.s4 1966171168
        %v7265 = vunpack.c.0.s8 %v7264
        %v7266 = vlaneseq
        %v7267 = vshrl.u32 %v7266, 7
        %v7268 = vsub.s32 %v7265, %v7267
        %v7269 = vrot.slane %v7261, %v7268
        %v7271 = vunpack.c.l.s4 1966171168
        %v7272 = vunpack.c.0.s8 %v7271
        %v7273 = vlaneseq
        %v7274 = vshrl.u32 %v7273, 7
        %v7275 = vsub.s32 %v7272, %v7274
        %v7276 = vrot.slane %v7262, %v7275
        %v7277 = vcombine.low %v7269, %v7276
        %v7279 = vunpack.c.l.s4 1966171168
        %v7280 = vunpack.c.0.s8 %v7279
        %v7281 = vlaneseq
        %v7282 = vshrl.u32 %v7281, 7
        %v7283 = vsub.s32 %v7280, %v7282
        %v7284 = vrot.slane %v7067, %v7283
        %v7286 = vunpack.c.l.s4 1966171168
        %v7287 = vunpack.c.0.s8 %v7286
        %v7288 = vlaneseq
        %v7289 = vshrl.u32 %v7288, 7
        %v7290 = vsub.s32 %v7287, %v7289
        %v7291 = vrot.slane %v7284, %v7290
        %v7298 = vadd.f32 %v1169, %v7116
        %v7299 = vadd.f32 %v1170, %v7165
        %v7300 = vadd.f32 %v1171, %v7179
        %v7301 = vadd.f32 %v1172, %v7228
        %v7302 = vadd.f32 %v1173, %v7277
        %v7303 = vadd.f32 %v1174, %v7291
        %v7304 = vld [vmem:[%s917] sm:$0x1]
        %v7305 = vld [vmem:[%s925] sm:$0x1]
        %7306 = vadd.xlane.f32.xlu0 %v7298
        %v7307 = vpop.xlane.xlu0 %7306
        %7308 = vadd.xlane.f32.xlu0 %v7299
        %v7309 = vpop.xlane.xlu0 %7308
        %v7310 = vsel %vm1181, %v7300, 0.0
        %7311 = vadd.xlane.f32.xlu0 %v7310
        %v7312 = vpop.xlane.xlu0 %7311
        %7313 = vadd.xlane.f32.xlu0 %v7301
        %v7314 = vpop.xlane.xlu0 %7313
        %7315 = vadd.xlane.f32.xlu0 %v7302
        %v7316 = vpop.xlane.xlu0 %7315
        %v7317 = vsel %vm1181, %v7303, 0.0
        %7318 = vadd.xlane.f32.xlu0 %v7317
        %v7319 = vpop.xlane.xlu0 %7318
        %v7320 = vmul.f32 %v7307, %v1192
        %v7321 = vmul.f32 %v7309, %v1192
        %v7322 = vmul.f32 %v7312, %v1192
        %v7323 = vmul.f32 %v7314, %v1192
        %v7324 = vmul.f32 %v7316, %v1192
        %v7325 = vmul.f32 %v7319, %v1192
        %v7326 = vsub.f32 %v7298, %v7320
        %v7327 = vsub.f32 %v7299, %v7321
        %v7328 = vsub.f32 %v7300, %v7322
        %v7329 = vsub.f32 %v7301, %v7323
        %v7330 = vsub.f32 %v7302, %v7324
        %v7331 = vsub.f32 %v7303, %v7325
        %v7332 = vmul.f32 %v7326, %v7326
        %v7333 = vmul.f32 %v7327, %v7327
        %v7334 = vmul.f32 %v7328, %v7328
        %v7335 = vmul.f32 %v7329, %v7329
        %v7336 = vmul.f32 %v7330, %v7330
        %v7337 = vmul.f32 %v7331, %v7331
        %7338 = vadd.xlane.f32.xlu0 %v7332
        %v7339 = vpop.xlane.xlu0 %7338
        %7340 = vadd.xlane.f32.xlu0 %v7333
        %v7341 = vpop.xlane.xlu0 %7340
        %v7342 = vsel %vm1181, %v7334, 0.0
        %7343 = vadd.xlane.f32.xlu0 %v7342
        %v7344 = vpop.xlane.xlu0 %7343
        %7345 = vadd.xlane.f32.xlu0 %v7335
        %v7346 = vpop.xlane.xlu0 %7345
        %7347 = vadd.xlane.f32.xlu0 %v7336
        %v7348 = vpop.xlane.xlu0 %7347
        %v7349 = vsel %vm1181, %v7337, 0.0
        %7350 = vadd.xlane.f32.xlu0 %v7349
        %v7351 = vpop.xlane.xlu0 %7350
        %v7352 = vmul.f32 %v7339, %v1192
        %v7353 = vmul.f32 %v7341, %v1192
        %v7354 = vmul.f32 %v7344, %v1192
        %v7355 = vmul.f32 %v7346, %v1192
        %v7356 = vmul.f32 %v7348, %v1192
        %v7357 = vmul.f32 %v7351, %v1192
        %v7358 = vadd.f32 %v7352, 1e-05
        %v7359 = vadd.f32 %v7353, 1e-05
        %v7360 = vadd.f32 %v7354, 1e-05
        %v7361 = vadd.f32 %v7355, 1e-05
        %v7362 = vadd.f32 %v7356, 1e-05
        %v7363 = vadd.f32 %v7357, 1e-05
        %v7364 = vrsqrt.pop %v7358
        %v7365 = vrsqrt.pop %v7359
        %v7366 = vrsqrt.pop %v7360
        %v7367 = vrsqrt.pop %v7361
        %v7368 = vrsqrt.pop %v7362
        %v7369 = vrsqrt.pop %v7363
        %v7370 = vmul.f32 %v7326, %v7364
        %v7371 = vmul.f32 %v7327, %v7365
        %v7372 = vmul.f32 %v7328, %v7366
        %v7373 = vmul.f32 %v7329, %v7367
        %v7374 = vmul.f32 %v7330, %v7368
        %v7375 = vmul.f32 %v7331, %v7369
        %v7377 = vlaneseq
        %v7378 = vshrl.u32 %v7377, 7
        %v7379 = vsub.s32 0, %v7378
        %v7380 = vrot.slane %v7304, %v7379
        %v7382 = vmul.f32 %v7370, %v7380
        %v7383 = vmul.f32 %v7371, %v7380
        %v7384 = vmul.f32 %v7372, %v7380
        %v7385 = vmul.f32 %v7373, %v7380
        %v7386 = vmul.f32 %v7374, %v7380
        %v7387 = vmul.f32 %v7375, %v7380
        %v7389 = vlaneseq
        %v7390 = vshrl.u32 %v7389, 7
        %v7391 = vsub.s32 0, %v7390
        %v7392 = vrot.slane %v7305, %v7391
        %v7394 = vadd.f32 %v7382, %v7392
        %v7395 = vadd.f32 %v7383, %v7392
        %v7396 = vadd.f32 %v7384, %v7392
        %v7397 = vadd.f32 %v7385, %v7392
        %v7398 = vadd.f32 %v7386, %v7392
        %v7399 = vadd.f32 %v7387, %v7392
        %v7406 = vcombine.high %v7394, %v7394
        %v7408 = vunpack.c.l.s4 1966171168
        %v7409 = vunpack.c.0.s8 %v7408
        %v7410 = vlaneseq
        %v7411 = vshrl.u32 %v7410, 7
        %v7412 = vsub.s32 %v7409, %v7411
        %v7413 = vrot.slane %v7394, %v7412
        %v7415 = vunpack.c.l.s4 1966171168
        %v7416 = vunpack.c.0.s8 %v7415
        %v7417 = vlaneseq
        %v7418 = vshrl.u32 %v7417, 7
        %v7419 = vsub.s32 %v7416, %v7418
        %v7420 = vrot.slane %v7406, %v7419
        %v7421 = vcombine.high %v7413, %v7413
        %v7422 = vcombine.high %v7420, %v7420
        %v7424 = vunpack.c.l.s4 1966171168
        %v7425 = vunpack.c.0.s8 %v7424
        %v7426 = vlaneseq
        %v7427 = vshrl.u32 %v7426, 7
        %v7428 = vsub.s32 %v7425, %v7427
        %v7429 = vrot.slane %v7413, %v7428
        %v7431 = vunpack.c.l.s4 1966171168
        %v7432 = vunpack.c.0.s8 %v7431
        %v7433 = vlaneseq
        %v7434 = vshrl.u32 %v7433, 7
        %v7435 = vsub.s32 %v7432, %v7434
        %v7436 = vrot.slane %v7420, %v7435
        %v7438 = vunpack.c.l.s4 1966171168
        %v7439 = vunpack.c.0.s8 %v7438
        %v7440 = vlaneseq
        %v7441 = vshrl.u32 %v7440, 7
        %v7442 = vsub.s32 %v7439, %v7441
        %v7443 = vrot.slane %v7421, %v7442
        %v7445 = vunpack.c.l.s4 1966171168
        %v7446 = vunpack.c.0.s8 %v7445
        %v7447 = vlaneseq
        %v7448 = vshrl.u32 %v7447, 7
        %v7449 = vsub.s32 %v7446, %v7448
        %v7450 = vrot.slane %v7422, %v7449
        %v7451 = vcombine.high %v7429, %v7429
        %v7452 = vcombine.high %v7436, %v7436
        %v7453 = vcombine.high %v7443, %v7443
        %v7454 = vcombine.high %v7450, %v7450
        %v7455 = vcombine.high %v7395, %v7395
        %v7457 = vunpack.c.l.s4 1966171168
        %v7458 = vunpack.c.0.s8 %v7457
        %v7459 = vlaneseq
        %v7460 = vshrl.u32 %v7459, 7
        %v7461 = vsub.s32 %v7458, %v7460
        %v7462 = vrot.slane %v7395, %v7461
        %v7464 = vunpack.c.l.s4 1966171168
        %v7465 = vunpack.c.0.s8 %v7464
        %v7466 = vlaneseq
        %v7467 = vshrl.u32 %v7466, 7
        %v7468 = vsub.s32 %v7465, %v7467
        %v7469 = vrot.slane %v7455, %v7468
        %v7470 = vcombine.high %v7462, %v7462
        %v7471 = vcombine.high %v7469, %v7469
        %v7473 = vunpack.c.l.s4 1966171168
        %v7474 = vunpack.c.0.s8 %v7473
        %v7475 = vlaneseq
        %v7476 = vshrl.u32 %v7475, 7
        %v7477 = vsub.s32 %v7474, %v7476
        %v7478 = vrot.slane %v7462, %v7477
        %v7480 = vunpack.c.l.s4 1966171168
        %v7481 = vunpack.c.0.s8 %v7480
        %v7482 = vlaneseq
        %v7483 = vshrl.u32 %v7482, 7
        %v7484 = vsub.s32 %v7481, %v7483
        %v7485 = vrot.slane %v7469, %v7484
        %v7487 = vunpack.c.l.s4 1966171168
        %v7488 = vunpack.c.0.s8 %v7487
        %v7489 = vlaneseq
        %v7490 = vshrl.u32 %v7489, 7
        %v7491 = vsub.s32 %v7488, %v7490
        %v7492 = vrot.slane %v7470, %v7491
        %v7494 = vunpack.c.l.s4 1966171168
        %v7495 = vunpack.c.0.s8 %v7494
        %v7496 = vlaneseq
        %v7497 = vshrl.u32 %v7496, 7
        %v7498 = vsub.s32 %v7495, %v7497
        %v7499 = vrot.slane %v7471, %v7498
        %v7500 = vcombine.high %v7478, %v7478
        %v7501 = vcombine.high %v7485, %v7485
        %v7502 = vcombine.high %v7492, %v7492
        %v7503 = vcombine.high %v7499, %v7499
        %v7505 = vunpack.c.l.s4 1966171168
        %v7506 = vunpack.c.0.s8 %v7505
        %v7507 = vlaneseq
        %v7508 = vshrl.u32 %v7507, 7
        %v7509 = vsub.s32 %v7506, %v7508
        %v7510 = vrot.slane %v7396, %v7509
        %v7512 = vunpack.c.l.s4 1966171168
        %v7513 = vunpack.c.0.s8 %v7512
        %v7514 = vlaneseq
        %v7515 = vshrl.u32 %v7514, 7
        %v7516 = vsub.s32 %v7513, %v7515
        %v7517 = vrot.slane %v7510, %v7516
        %v7518 = vcombine.high %v7397, %v7397
        %v7520 = vunpack.c.l.s4 1966171168
        %v7521 = vunpack.c.0.s8 %v7520
        %v7522 = vlaneseq
        %v7523 = vshrl.u32 %v7522, 7
        %v7524 = vsub.s32 %v7521, %v7523
        %v7525 = vrot.slane %v7397, %v7524
        %v7527 = vunpack.c.l.s4 1966171168
        %v7528 = vunpack.c.0.s8 %v7527
        %v7529 = vlaneseq
        %v7530 = vshrl.u32 %v7529, 7
        %v7531 = vsub.s32 %v7528, %v7530
        %v7532 = vrot.slane %v7518, %v7531
        %v7533 = vcombine.high %v7525, %v7525
        %v7534 = vcombine.high %v7532, %v7532
        %v7536 = vunpack.c.l.s4 1966171168
        %v7537 = vunpack.c.0.s8 %v7536
        %v7538 = vlaneseq
        %v7539 = vshrl.u32 %v7538, 7
        %v7540 = vsub.s32 %v7537, %v7539
        %v7541 = vrot.slane %v7525, %v7540
        %v7543 = vunpack.c.l.s4 1966171168
        %v7544 = vunpack.c.0.s8 %v7543
        %v7545 = vlaneseq
        %v7546 = vshrl.u32 %v7545, 7
        %v7547 = vsub.s32 %v7544, %v7546
        %v7548 = vrot.slane %v7532, %v7547
        %v7550 = vunpack.c.l.s4 1966171168
        %v7551 = vunpack.c.0.s8 %v7550
        %v7552 = vlaneseq
        %v7553 = vshrl.u32 %v7552, 7
        %v7554 = vsub.s32 %v7551, %v7553
        %v7555 = vrot.slane %v7533, %v7554
        %v7557 = vunpack.c.l.s4 1966171168
        %v7558 = vunpack.c.0.s8 %v7557
        %v7559 = vlaneseq
        %v7560 = vshrl.u32 %v7559, 7
        %v7561 = vsub.s32 %v7558, %v7560
        %v7562 = vrot.slane %v7534, %v7561
        %v7563 = vcombine.high %v7541, %v7541
        %v7564 = vcombine.high %v7548, %v7548
        %v7565 = vcombine.high %v7555, %v7555
        %v7566 = vcombine.high %v7562, %v7562
        %v7567 = vcombine.high %v7398, %v7398
        %v7569 = vunpack.c.l.s4 1966171168
        %v7570 = vunpack.c.0.s8 %v7569
        %v7571 = vlaneseq
        %v7572 = vshrl.u32 %v7571, 7
        %v7573 = vsub.s32 %v7570, %v7572
        %v7574 = vrot.slane %v7398, %v7573
        %v7576 = vunpack.c.l.s4 1966171168
        %v7577 = vunpack.c.0.s8 %v7576
        %v7578 = vlaneseq
        %v7579 = vshrl.u32 %v7578, 7
        %v7580 = vsub.s32 %v7577, %v7579
        %v7581 = vrot.slane %v7567, %v7580
        %v7582 = vcombine.high %v7574, %v7574
        %v7583 = vcombine.high %v7581, %v7581
        %v7585 = vunpack.c.l.s4 1966171168
        %v7586 = vunpack.c.0.s8 %v7585
        %v7587 = vlaneseq
        %v7588 = vshrl.u32 %v7587, 7
        %v7589 = vsub.s32 %v7586, %v7588
        %v7590 = vrot.slane %v7574, %v7589
        %v7592 = vunpack.c.l.s4 1966171168
        %v7593 = vunpack.c.0.s8 %v7592
        %v7594 = vlaneseq
        %v7595 = vshrl.u32 %v7594, 7
        %v7596 = vsub.s32 %v7593, %v7595
        %v7597 = vrot.slane %v7581, %v7596
        %v7599 = vunpack.c.l.s4 1966171168
        %v7600 = vunpack.c.0.s8 %v7599
        %v7601 = vlaneseq
        %v7602 = vshrl.u32 %v7601, 7
        %v7603 = vsub.s32 %v7600, %v7602
        %v7604 = vrot.slane %v7582, %v7603
        %v7606 = vunpack.c.l.s4 1966171168
        %v7607 = vunpack.c.0.s8 %v7606
        %v7608 = vlaneseq
        %v7609 = vshrl.u32 %v7608, 7
        %v7610 = vsub.s32 %v7607, %v7609
        %v7611 = vrot.slane %v7583, %v7610
        %v7612 = vcombine.high %v7590, %v7590
        %v7613 = vcombine.high %v7597, %v7597
        %v7614 = vcombine.high %v7604, %v7604
        %v7615 = vcombine.high %v7611, %v7611
        %v7617 = vunpack.c.l.s4 1966171168
        %v7618 = vunpack.c.0.s8 %v7617
        %v7619 = vlaneseq
        %v7620 = vshrl.u32 %v7619, 7
        %v7621 = vsub.s32 %v7618, %v7620
        %v7622 = vrot.slane %v7399, %v7621
        %v7624 = vunpack.c.l.s4 1966171168
        %v7625 = vunpack.c.0.s8 %v7624
        %v7626 = vlaneseq
        %v7627 = vshrl.u32 %v7626, 7
        %v7628 = vsub.s32 %v7625, %v7627
        %v7629 = vrot.slane %v7622, %v7628
        %v7630 = vcombine.low %v7429, %v7443
        %v7631 = vcombine.low %v7451, %v7453
        %v7632 = vcombine.low %v7436, %v7450
        %v7633 = vcombine.low %v7452, %v7454
        %v7635 = vunpack.c.l.s4 1966171168
        %v7636 = vunpack.c.0.s8 %v7635
        %v7637 = vlaneseq
        %v7638 = vshrl.u32 %v7637, 7
        %v7639 = vsub.s32 %v7636, %v7638
        %v7640 = vrot.slane %v7630, %v7639
        %v7642 = vunpack.c.l.s4 1966171168
        %v7643 = vunpack.c.0.s8 %v7642
        %v7644 = vlaneseq
        %v7645 = vshrl.u32 %v7644, 7
        %v7646 = vsub.s32 %v7643, %v7645
        %v7647 = vrot.slane %v7631, %v7646
        %v7649 = vunpack.c.l.s4 1966171168
        %v7650 = vunpack.c.0.s8 %v7649
        %v7651 = vlaneseq
        %v7652 = vshrl.u32 %v7651, 7
        %v7653 = vsub.s32 %v7650, %v7652
        %v7654 = vrot.slane %v7632, %v7653
        %v7656 = vunpack.c.l.s4 1966171168
        %v7657 = vunpack.c.0.s8 %v7656
        %v7658 = vlaneseq
        %v7659 = vshrl.u32 %v7658, 7
        %v7660 = vsub.s32 %v7657, %v7659
        %v7661 = vrot.slane %v7633, %v7660
        %v7662 = vcombine.low %v7640, %v7647
        %v7663 = vcombine.low %v7654, %v7661
        %v7665 = vunpack.c.l.s4 1966171168
        %v7666 = vunpack.c.0.s8 %v7665
        %v7667 = vlaneseq
        %v7668 = vshrl.u32 %v7667, 7
        %v7669 = vsub.s32 %v7666, %v7668
        %v7670 = vrot.slane %v7662, %v7669
        %v7672 = vunpack.c.l.s4 1966171168
        %v7673 = vunpack.c.0.s8 %v7672
        %v7674 = vlaneseq
        %v7675 = vshrl.u32 %v7674, 7
        %v7676 = vsub.s32 %v7673, %v7675
        %v7677 = vrot.slane %v7663, %v7676
        %v7678 = vcombine.low %v7670, %v7677
        %v7679 = vcombine.low %v7478, %v7492
        %v7680 = vcombine.low %v7500, %v7502
        %v7681 = vcombine.low %v7485, %v7499
        %v7682 = vcombine.low %v7501, %v7503
        %v7684 = vunpack.c.l.s4 1966171168
        %v7685 = vunpack.c.0.s8 %v7684
        %v7686 = vlaneseq
        %v7687 = vshrl.u32 %v7686, 7
        %v7688 = vsub.s32 %v7685, %v7687
        %v7689 = vrot.slane %v7679, %v7688
        %v7691 = vunpack.c.l.s4 1966171168
        %v7692 = vunpack.c.0.s8 %v7691
        %v7693 = vlaneseq
        %v7694 = vshrl.u32 %v7693, 7
        %v7695 = vsub.s32 %v7692, %v7694
        %v7696 = vrot.slane %v7680, %v7695
        %v7698 = vunpack.c.l.s4 1966171168
        %v7699 = vunpack.c.0.s8 %v7698
        %v7700 = vlaneseq
        %v7701 = vshrl.u32 %v7700, 7
        %v7702 = vsub.s32 %v7699, %v7701
        %v7703 = vrot.slane %v7681, %v7702
        %v7705 = vunpack.c.l.s4 1966171168
        %v7706 = vunpack.c.0.s8 %v7705
        %v7707 = vlaneseq
        %v7708 = vshrl.u32 %v7707, 7
        %v7709 = vsub.s32 %v7706, %v7708
        %v7710 = vrot.slane %v7682, %v7709
        %v7711 = vcombine.low %v7689, %v7696
        %v7712 = vcombine.low %v7703, %v7710
        %v7714 = vunpack.c.l.s4 1966171168
        %v7715 = vunpack.c.0.s8 %v7714
        %v7716 = vlaneseq
        %v7717 = vshrl.u32 %v7716, 7
        %v7718 = vsub.s32 %v7715, %v7717
        %v7719 = vrot.slane %v7711, %v7718
        %v7721 = vunpack.c.l.s4 1966171168
        %v7722 = vunpack.c.0.s8 %v7721
        %v7723 = vlaneseq
        %v7724 = vshrl.u32 %v7723, 7
        %v7725 = vsub.s32 %v7722, %v7724
        %v7726 = vrot.slane %v7712, %v7725
        %v7727 = vcombine.low %v7719, %v7726
        %v7728 = vcombine.low %v7517, %v7541
        %v7729 = vcombine.low %v7555, %v7563
        %v7730 = vcombine.low %v7565, %v7548
        %v7731 = vcombine.low %v7562, %v7564
        %v7733 = vunpack.c.l.s4 1966171168
        %v7734 = vunpack.c.0.s8 %v7733
        %v7735 = vlaneseq
        %v7736 = vshrl.u32 %v7735, 7
        %v7737 = vsub.s32 %v7734, %v7736
        %v7738 = vrot.slane %v7728, %v7737
        %v7740 = vunpack.c.l.s4 1966171168
        %v7741 = vunpack.c.0.s8 %v7740
        %v7742 = vlaneseq
        %v7743 = vshrl.u32 %v7742, 7
        %v7744 = vsub.s32 %v7741, %v7743
        %v7745 = vrot.slane %v7729, %v7744
        %v7747 = vunpack.c.l.s4 1966171168
        %v7748 = vunpack.c.0.s8 %v7747
        %v7749 = vlaneseq
        %v7750 = vshrl.u32 %v7749, 7
        %v7751 = vsub.s32 %v7748, %v7750
        %v7752 = vrot.slane %v7730, %v7751
        %v7754 = vunpack.c.l.s4 1966171168
        %v7755 = vunpack.c.0.s8 %v7754
        %v7756 = vlaneseq
        %v7757 = vshrl.u32 %v7756, 7
        %v7758 = vsub.s32 %v7755, %v7757
        %v7759 = vrot.slane %v7731, %v7758
        %v7760 = vcombine.low %v7738, %v7745
        %v7761 = vcombine.low %v7752, %v7759
        %v7763 = vunpack.c.l.s4 1966171168
        %v7764 = vunpack.c.0.s8 %v7763
        %v7765 = vlaneseq
        %v7766 = vshrl.u32 %v7765, 7
        %v7767 = vsub.s32 %v7764, %v7766
        %v7768 = vrot.slane %v7760, %v7767
        %v7770 = vunpack.c.l.s4 1966171168
        %v7771 = vunpack.c.0.s8 %v7770
        %v7772 = vlaneseq
        %v7773 = vshrl.u32 %v7772, 7
        %v7774 = vsub.s32 %v7771, %v7773
        %v7775 = vrot.slane %v7761, %v7774
        %v7776 = vcombine.low %v7768, %v7775
        %v7777 = vcombine.low %v7566, %v7590
        %v7778 = vcombine.low %v7604, %v7612
        %v7779 = vcombine.low %v7614, %v7597
        %v7780 = vcombine.low %v7611, %v7613
        %v7782 = vunpack.c.l.s4 1966171168
        %v7783 = vunpack.c.0.s8 %v7782
        %v7784 = vlaneseq
        %v7785 = vshrl.u32 %v7784, 7
        %v7786 = vsub.s32 %v7783, %v7785
        %v7787 = vrot.slane %v7777, %v7786
        %v7789 = vunpack.c.l.s4 1966171168
        %v7790 = vunpack.c.0.s8 %v7789
        %v7791 = vlaneseq
        %v7792 = vshrl.u32 %v7791, 7
        %v7793 = vsub.s32 %v7790, %v7792
        %v7794 = vrot.slane %v7778, %v7793
        %v7796 = vunpack.c.l.s4 1966171168
        %v7797 = vunpack.c.0.s8 %v7796
        %v7798 = vlaneseq
        %v7799 = vshrl.u32 %v7798, 7
        %v7800 = vsub.s32 %v7797, %v7799
        %v7801 = vrot.slane %v7779, %v7800
        %v7803 = vunpack.c.l.s4 1966171168
        %v7804 = vunpack.c.0.s8 %v7803
        %v7805 = vlaneseq
        %v7806 = vshrl.u32 %v7805, 7
        %v7807 = vsub.s32 %v7804, %v7806
        %v7808 = vrot.slane %v7780, %v7807
        %v7809 = vcombine.low %v7787, %v7794
        %v7810 = vcombine.low %v7801, %v7808
        %v7812 = vunpack.c.l.s4 1966171168
        %v7813 = vunpack.c.0.s8 %v7812
        %v7814 = vlaneseq
        %v7815 = vshrl.u32 %v7814, 7
        %v7816 = vsub.s32 %v7813, %v7815
        %v7817 = vrot.slane %v7809, %v7816
        %v7819 = vunpack.c.l.s4 1966171168
        %v7820 = vunpack.c.0.s8 %v7819
        %v7821 = vlaneseq
        %v7822 = vshrl.u32 %v7821, 7
        %v7823 = vsub.s32 %v7820, %v7822
        %v7824 = vrot.slane %v7810, %v7823
        %v7825 = vcombine.low %v7817, %v7824
        %v7826 = vcombine.low %v7615, %v7629
        %v7828 = vunpack.c.l.s4 1966171168
        %v7829 = vunpack.c.0.s8 %v7828
        %v7830 = vlaneseq
        %v7831 = vshrl.u32 %v7830, 7
        %v7832 = vsub.s32 %v7829, %v7831
        %v7833 = vrot.slane %v7826, %v7832
        %v7835 = vunpack.c.l.s4 1966171168
        %v7836 = vunpack.c.0.s8 %v7835
        %v7837 = vlaneseq
        %v7838 = vshrl.u32 %v7837, 7
        %v7839 = vsub.s32 %v7836, %v7838
        %v7840 = vrot.slane %v7833, %v7839
        %v7846 = vpack.c.bf16 %v7727, %v7678
        %v7847 = vpack.c.bf16 %v7825, %v7776
        %v7848 = vpack.c.bf16 %v7840, %v7840
        %v7849 = vld [vmem:[%s934] sm:$0xff]
        %v7850 = vld [vmem:[%s934 + $0x8] sm:$0xff]
        %v7851 = vld [vmem:[%s934 + $0x10] sm:$0xff]
        %v7852 = vld [vmem:[%s934 + $0x18] sm:$0xff]
        %v7853 = vld [vmem:[%s934 + $0x20] sm:$0xff]
        %v7854 = vld [vmem:[%s934 + $0x28] sm:$0xff]
        %v7855 = vld [vmem:[%s934 + $0x30] sm:$0xff]
        %v7856 = vld [vmem:[%s934 + $0x38] sm:$0xff]
        %v7857 = vld [vmem:[%s934 + $0x40] sm:$0xff]
        %v7858 = vld [vmem:[%s934 + $0x48] sm:$0xff]
        %v7859 = vld [vmem:[%s934 + $0x50] sm:$0xff]
        %v7860 = vld [vmem:[%s934 + $0x58] sm:$0xff]
        %v7861 = vld [vmem:[%s934 + $0x60] sm:$0xff]
        %v7862 = vld [vmem:[%s934 + $0x68] sm:$0xff]
        %v7863 = vld [vmem:[%s934 + $0x70] sm:$0xff]
        %v7864 = vld [vmem:[%s934 + $0x78] sm:$0xff]
        %v7865 = vld [vmem:[%s1062] sm:$0x3]
        %v7867 = vlaneseq
        %v7868 = vshrl.u32 %v7867, 7
        %v7869 = vsub.s32 0, %v7868
        %v7870 = vrot.slane %v7865, %v7869
        %v7871 = vlaneseq
        %v7872 = vshrl.u32 %v7871, 7
        %v7873 = vsub.s32 1, %v7872
        %v7874 = vrot.slane %v7865, %v7873
        %v7893 = vunpack.c.l.b16 %v7849
        %v7894 = vunpack.c.h.b16 %v7849
        %v7895 = vunpack.c.l.b16 %v7850
        %v7896 = vunpack.c.h.b16 %v7850
        %v7897 = vunpack.c.l.b16 %v7851
        %v7898 = vunpack.c.h.b16 %v7851
        %v7899 = vunpack.c.l.b16 %v7852
        %v7900 = vunpack.c.h.b16 %v7852
        %v7901 = vunpack.c.l.b16 %v7853
        %v7902 = vunpack.c.h.b16 %v7853
        %v7903 = vunpack.c.l.b16 %v7854
        %v7904 = vunpack.c.h.b16 %v7854
        %v7905 = vunpack.c.l.b16 %v7855
        %v7906 = vunpack.c.h.b16 %v7855
        %v7907 = vunpack.c.l.b16 %v7856
        %v7908 = vunpack.c.h.b16 %v7856
        %v7909 = vunpack.c.l.b16 %v7857
        %v7910 = vunpack.c.h.b16 %v7857
        %v7911 = vunpack.c.l.b16 %v7858
        %v7912 = vunpack.c.h.b16 %v7858
        %v7913 = vunpack.c.l.b16 %v7859
        %v7914 = vunpack.c.h.b16 %v7859
        %v7915 = vunpack.c.l.b16 %v7860
        %v7916 = vunpack.c.h.b16 %v7860
        %v7917 = vunpack.c.l.b16 %v7861
        %v7918 = vunpack.c.h.b16 %v7861
        %v7919 = vunpack.c.l.b16 %v7862
        %v7920 = vunpack.c.h.b16 %v7862
        %v7921 = vunpack.c.l.b16 %v7863
        %v7922 = vunpack.c.h.b16 %v7863
        %v7923 = vunpack.c.l.b16 %v7864
        %v7924 = vunpack.c.h.b16 %v7864
        %v7925 = vpack.c.b16 %v7895, %v7893
        %v7926 = vpack.c.b16 %v7896, %v7894
        %v7927 = vpack.c.b16 %v7899, %v7897
        %v7928 = vpack.c.b16 %v7900, %v7898
        %v7929 = vpack.c.b16 %v7903, %v7901
        %v7930 = vpack.c.b16 %v7904, %v7902
        %v7931 = vpack.c.b16 %v7907, %v7905
        %v7932 = vpack.c.b16 %v7908, %v7906
        %v7933 = vpack.c.b16 %v7911, %v7909
        %v7934 = vpack.c.b16 %v7912, %v7910
        %v7935 = vpack.c.b16 %v7915, %v7913
        %v7936 = vpack.c.b16 %v7916, %v7914
        %v7937 = vpack.c.b16 %v7919, %v7917
        %v7938 = vpack.c.b16 %v7920, %v7918
        %v7939 = vpack.c.b16 %v7923, %v7921
        %v7940 = vpack.c.b16 %v7924, %v7922
        %7957 = vmatprep.subr.bf16.mxu0 %v7926
        %7958 = vmatpush1.bf16.msra.mxu0 %v7925
        %7959 = vmatprep.subr.bf16.mxu0 %v7928
        %7960 = vmatpush1.bf16.msra.mxu0 %v7927
        %7961 = vmatprep.subr.bf16.mxu0 %v7930
        %7962 = vmatpush1.bf16.msra.mxu0 %v7929
        %7963 = vmatprep.subr.bf16.mxu0 %v7932
        %7964 = vmatpush1.bf16.msra.mxu0 %v7931
        %7965 = vmatprep.subr.bf16.mxu0 %v7934
        %7966 = vmatpush1.bf16.msra.mxu0 %v7933
        %7967 = vmatprep.subr.bf16.mxu0 %v7936
        %7968 = vmatpush1.bf16.msra.mxu0 %v7935
        %7969 = vmatprep.subr.bf16.mxu0 %v7938
        %7970 = vmatpush1.bf16.msra.mxu0 %v7937
        %7971 = vmatprep.subr.bf16.mxu0 %v7940
        %7972 = vmatpush1.bf16.msra.mxu0 %v7939
        %7973 = vmatprep.subr.bf16.mxu0 0
        %7974 = vmatpush1.bf16.msra.mxu0 0
        %7975 = vmatprep.subr.bf16.mxu0 0
        %7976 = vmatpush1.bf16.msra.mxu0 0
        %7977 = vmatprep.subr.bf16.mxu0 0
        %7978 = vmatpush1.bf16.msra.mxu0 0
        %7979 = vmatprep.subr.bf16.mxu0 0
        %7980 = vmatpush1.bf16.msra.mxu0 0
        %7981 = vmatprep.subr.bf16.mxu0 0
        %7982 = vmatpush1.bf16.msra.mxu0 0
        %7983 = vmatprep.subr.bf16.mxu0 0
        %7984 = vmatpush1.bf16.msra.mxu0 0
        %7985 = vmatprep.subr.bf16.mxu0 0
        %7986 = vmatpush1.bf16.msra.mxu0 0
        %7987 = vmatprep.subr.bf16.mxu0 0
        %7988 = vmatpush1.bf16.msra.mxu0 0
        %7989 = vmatprep.mubr.bf16.mxu0 0
        %7990 = vmatmul.mubr.bf16.gmra.mrb[0].mxu0 %v7846
        %v7991 = vpop.f32.mrb[0].mxu0
        %v7992 = vadd.f32 %v7870, %v7991
        %v7993 = vpop.f32.mrb[0].mxu0
        %v7994 = vadd.f32 %v7874, %v7993
        %v7995 = vpop.f32.mrb[0].mxu0
        %v7996 = vadd.f32 %v7870, %v7995
        %v7997 = vpop.f32.mrb[0].mxu0
        %v7998 = vadd.f32 %v7874, %v7997
        %7999 = vmatprep.mubr.bf16.mxu0 0
        %8000 = vmatmul.mubr.bf16.gmra.mrb[0].mxu0 %v7847
        %v8001 = vpop.f32.mrb[0].mxu0
        %v8002 = vadd.f32 %v7870, %v8001
        %v8003 = vpop.f32.mrb[0].mxu0
        %v8004 = vadd.f32 %v7874, %v8003
        %v8005 = vpop.f32.mrb[0].mxu0
        %v8006 = vadd.f32 %v7870, %v8005
        %v8007 = vpop.f32.mrb[0].mxu0
        %v8008 = vadd.f32 %v7874, %v8007
        %8009 = vmatprep.mubr.bf16.mxu0 0
        %8010 = vmatmul.mubr.bf16.gmra.mrb[0].mxu0 %v7848
        %v8011 = vpop.f32.mrb[0].mxu0
        %v8012 = vadd.f32 %v7870, %v8011
        %v8013 = vpop.f32.mrb[0].mxu0
        %v8014 = vadd.f32 %v7874, %v8013
        %v8015 = vpop.f32.mrb[0].mxu0
        %v8016 = vpop.f32.mrb[0].mxu0
        %8017 = vdwg.mxu0
        %v8018 = vmul.f32 %v7992, %v7992
        %v8019 = vmul.f32 %v7994, %v7994
        %v8020 = vmul.f32 %v7996, %v7996
        %v8021 = vmul.f32 %v7998, %v7998
        %v8022 = vmul.f32 %v8002, %v8002
        %v8023 = vmul.f32 %v8004, %v8004
        %v8024 = vmul.f32 %v8006, %v8006
        %v8025 = vmul.f32 %v8008, %v8008
        %v8026 = vmul.f32 %v8012, %v8012
        %v8027 = vmul.f32 %v8014, %v8014
        %v8028 = vmul.f32 %v7992, %v8018
        %v8029 = vmul.f32 %v7994, %v8019
        %v8030 = vmul.f32 %v7996, %v8020
        %v8031 = vmul.f32 %v7998, %v8021
        %v8032 = vmul.f32 %v8002, %v8022
        %v8033 = vmul.f32 %v8004, %v8023
        %v8034 = vmul.f32 %v8006, %v8024
        %v8035 = vmul.f32 %v8008, %v8025
        %v8036 = vmul.f32 %v8012, %v8026
        %v8037 = vmul.f32 %v8014, %v8027
        %v8038 = vmul.f32 %v8028, 0.044715
        %v8039 = vmul.f32 %v8029, 0.044715
        %v8040 = vmul.f32 %v8030, 0.044715
        %v8041 = vmul.f32 %v8031, 0.044715
        %v8042 = vmul.f32 %v8032, 0.044715
        %v8043 = vmul.f32 %v8033, 0.044715
        %v8044 = vmul.f32 %v8034, 0.044715
        %v8045 = vmul.f32 %v8035, 0.044715
        %v8046 = vmul.f32 %v8036, 0.044715
        %v8047 = vmul.f32 %v8037, 0.044715
        %v8048 = vadd.f32 %v7992, %v8038
        %v8049 = vadd.f32 %v7994, %v8039
        %v8050 = vadd.f32 %v7996, %v8040
        %v8051 = vadd.f32 %v7998, %v8041
        %v8052 = vadd.f32 %v8002, %v8042
        %v8053 = vadd.f32 %v8004, %v8043
        %v8054 = vadd.f32 %v8006, %v8044
        %v8055 = vadd.f32 %v8008, %v8045
        %v8056 = vadd.f32 %v8012, %v8046
        %v8057 = vadd.f32 %v8014, %v8047
        %v8058 = vmul.f32 %v8048, 0.7978846
        %v8059 = vmul.f32 %v8049, 0.7978846
        %v8060 = vmul.f32 %v8050, 0.7978846
        %v8061 = vmul.f32 %v8051, 0.7978846
        %v8062 = vmul.f32 %v8052, 0.7978846
        %v8063 = vmul.f32 %v8053, 0.7978846
        %v8064 = vmul.f32 %v8054, 0.7978846
        %v8065 = vmul.f32 %v8055, 0.7978846
        %v8066 = vmul.f32 %v8056, 0.7978846
        %v8067 = vmul.f32 %v8057, 0.7978846
        %v8068 = vtanh.pop %v8058
        %v8069 = vtanh.pop %v8059
        %v8070 = vtanh.pop %v8060
        %v8071 = vtanh.pop %v8061
        %v8072 = vtanh.pop %v8062
        %v8073 = vtanh.pop %v8063
        %v8074 = vtanh.pop %v8064
        %v8075 = vtanh.pop %v8065
        %v8076 = vtanh.pop %v8066
        %v8077 = vtanh.pop %v8067
        %v8078 = vadd.f32 %v8068, 1.0
        %v8079 = vadd.f32 %v8069, 1.0
        %v8080 = vadd.f32 %v8070, 1.0
        %v8081 = vadd.f32 %v8071, 1.0
        %v8082 = vadd.f32 %v8072, 1.0
        %v8083 = vadd.f32 %v8073, 1.0
        %v8084 = vadd.f32 %v8074, 1.0
        %v8085 = vadd.f32 %v8075, 1.0
        %v8086 = vadd.f32 %v8076, 1.0
        %v8087 = vadd.f32 %v8077, 1.0
        %v8088 = vmul.f32 %v8078, 0.5
        %v8089 = vmul.f32 %v8079, 0.5
        %v8090 = vmul.f32 %v8080, 0.5
        %v8091 = vmul.f32 %v8081, 0.5
        %v8092 = vmul.f32 %v8082, 0.5
        %v8093 = vmul.f32 %v8083, 0.5
        %v8094 = vmul.f32 %v8084, 0.5
        %v8095 = vmul.f32 %v8085, 0.5
        %v8096 = vmul.f32 %v8086, 0.5
        %v8097 = vmul.f32 %v8087, 0.5
        %v8098 = vmul.f32 %v7992, %v8088
        %v8099 = vmul.f32 %v7994, %v8089
        %v8100 = vmul.f32 %v7996, %v8090
        %v8101 = vmul.f32 %v7998, %v8091
        %v8102 = vmul.f32 %v8002, %v8092
        %v8103 = vmul.f32 %v8004, %v8093
        %v8104 = vmul.f32 %v8006, %v8094
        %v8105 = vmul.f32 %v8008, %v8095
        %v8106 = vmul.f32 %v8012, %v8096
        %v8107 = vmul.f32 %v8014, %v8097
        %v8108 = vpack.c.bf16 %v8100, %v8098
        %v8109 = vpack.c.bf16 %v8101, %v8099
        %v8110 = vpack.c.bf16 %v8104, %v8102
        %v8111 = vpack.c.bf16 %v8105, %v8103
        %v8112 = vpack.c.bf16 %v8106, %v8106
        %v8113 = vpack.c.bf16 %v8107, %v8107
        %v8114 = vld [vmem:[%s943] sm:$0xf]
        %v8115 = vld [vmem:[%s943 + $0x4] sm:$0xf]
        %v8116 = vld [vmem:[%s943 + $0x8] sm:$0xf]
        %v8117 = vld [vmem:[%s943 + $0xc] sm:$0xf]
        %v8118 = vld [vmem:[%s943 + $0x10] sm:$0xf]
        %v8119 = vld [vmem:[%s943 + $0x14] sm:$0xf]
        %v8120 = vld [vmem:[%s943 + $0x18] sm:$0xf]
        %v8121 = vld [vmem:[%s943 + $0x1c] sm:$0xf]
        %v8122 = vld [vmem:[%s943 + $0x20] sm:$0xf]
        %v8123 = vld [vmem:[%s943 + $0x24] sm:$0xf]
        %v8124 = vld [vmem:[%s943 + $0x28] sm:$0xf]
        %v8125 = vld [vmem:[%s943 + $0x2c] sm:$0xf]
        %v8126 = vld [vmem:[%s943 + $0x30] sm:$0xf]
        %v8127 = vld [vmem:[%s943 + $0x34] sm:$0xf]
        %v8128 = vld [vmem:[%s943 + $0x38] sm:$0xf]
        %v8129 = vld [vmem:[%s943 + $0x3c] sm:$0xf]
        %v8130 = vld [vmem:[%s943 + $0x40] sm:$0xf]
        %v8131 = vld [vmem:[%s943 + $0x44] sm:$0xf]
        %v8132 = vld [vmem:[%s943 + $0x48] sm:$0xf]
        %v8133 = vld [vmem:[%s943 + $0x4c] sm:$0xf]
        %v8134 = vld [vmem:[%s943 + $0x50] sm:$0xf]
        %v8135 = vld [vmem:[%s943 + $0x54] sm:$0xf]
        %v8136 = vld [vmem:[%s943 + $0x58] sm:$0xf]
        %v8137 = vld [vmem:[%s943 + $0x5c] sm:$0xf]
        %v8138 = vld [vmem:[%s943 + $0x60] sm:$0xf]
        %v8139 = vld [vmem:[%s943 + $0x64] sm:$0xf]
        %v8140 = vld [vmem:[%s943 + $0x68] sm:$0xf]
        %v8141 = vld [vmem:[%s943 + $0x6c] sm:$0xf]
        %v8142 = vld [vmem:[%s943 + $0x70] sm:$0xf]
        %v8143 = vld [vmem:[%s943 + $0x74] sm:$0xf]
        %v8144 = vld [vmem:[%s943 + $0x78] sm:$0xf]
        %v8145 = vld [vmem:[%s943 + $0x7c] sm:$0xf]
        %v8146 = vld [vmem:[%s951] sm:$0x1]
        %v8148 = vlaneseq
        %v8149 = vshrl.u32 %v8148, 7
        %v8150 = vsub.s32 0, %v8149
        %v8151 = vrot.slane %v8146, %v8150
        %v8185 = vunpack.c.l.b16 %v8114
        %v8186 = vunpack.c.l.b16 %v8115
        %v8187 = vunpack.c.l.b16 %v8116
        %v8188 = vunpack.c.l.b16 %v8117
        %v8189 = vunpack.c.l.b16 %v8118
        %v8190 = vunpack.c.l.b16 %v8119
        %v8191 = vunpack.c.l.b16 %v8120
        %v8192 = vunpack.c.l.b16 %v8121
        %v8193 = vunpack.c.l.b16 %v8122
        %v8194 = vunpack.c.l.b16 %v8123
        %v8195 = vunpack.c.l.b16 %v8124
        %v8196 = vunpack.c.l.b16 %v8125
        %v8197 = vunpack.c.l.b16 %v8126
        %v8198 = vunpack.c.l.b16 %v8127
        %v8199 = vunpack.c.l.b16 %v8128
        %v8200 = vunpack.c.l.b16 %v8129
        %v8201 = vunpack.c.l.b16 %v8130
        %v8202 = vunpack.c.l.b16 %v8131
        %v8203 = vunpack.c.l.b16 %v8132
        %v8204 = vunpack.c.l.b16 %v8133
        %v8205 = vunpack.c.l.b16 %v8134
        %v8206 = vunpack.c.l.b16 %v8135
        %v8207 = vunpack.c.l.b16 %v8136
        %v8208 = vunpack.c.l.b16 %v8137
        %v8209 = vunpack.c.l.b16 %v8138
        %v8210 = vunpack.c.l.b16 %v8139
        %v8211 = vunpack.c.l.b16 %v8140
        %v8212 = vunpack.c.l.b16 %v8141
        %v8213 = vunpack.c.l.b16 %v8142
        %v8214 = vunpack.c.l.b16 %v8143
        %v8215 = vunpack.c.l.b16 %v8144
        %v8216 = vunpack.c.l.b16 %v8145
        %v8217 = vpack.c.b16 %v8186, %v8185
        %v8218 = vpack.c.b16 %v8188, %v8187
        %v8219 = vpack.c.b16 %v8190, %v8189
        %v8220 = vpack.c.b16 %v8192, %v8191
        %v8221 = vpack.c.b16 %v8194, %v8193
        %v8222 = vpack.c.b16 %v8196, %v8195
        %v8223 = vpack.c.b16 %v8198, %v8197
        %v8224 = vpack.c.b16 %v8200, %v8199
        %v8225 = vpack.c.b16 %v8202, %v8201
        %v8226 = vpack.c.b16 %v8204, %v8203
        %v8227 = vpack.c.b16 %v8206, %v8205
        %v8228 = vpack.c.b16 %v8208, %v8207
        %v8229 = vpack.c.b16 %v8210, %v8209
        %v8230 = vpack.c.b16 %v8212, %v8211
        %v8231 = vpack.c.b16 %v8214, %v8213
        %v8232 = vpack.c.b16 %v8216, %v8215
        %8249 = vmatprep.subr.bf16.mxu0 0
        %8250 = vmatpush1.bf16.msra.mxu0 %v8217
        %8251 = vmatprep.subr.bf16.mxu0 0
        %8252 = vmatpush1.bf16.msra.mxu0 %v8218
        %8253 = vmatprep.subr.bf16.mxu0 0
        %8254 = vmatpush1.bf16.msra.mxu0 %v8219
        %8255 = vmatprep.subr.bf16.mxu0 0
        %8256 = vmatpush1.bf16.msra.mxu0 %v8220
        %8257 = vmatprep.subr.bf16.mxu0 0
        %8258 = vmatpush1.bf16.msra.mxu0 %v8221
        %8259 = vmatprep.subr.bf16.mxu0 0
        %8260 = vmatpush1.bf16.msra.mxu0 %v8222
        %8261 = vmatprep.subr.bf16.mxu0 0
        %8262 = vmatpush1.bf16.msra.mxu0 %v8223
        %8263 = vmatprep.subr.bf16.mxu0 0
        %8264 = vmatpush1.bf16.msra.mxu0 %v8224
        %8265 = vmatprep.subr.bf16.mxu0 0
        %8266 = vmatpush1.bf16.msra.mxu0 %v8225
        %8267 = vmatprep.subr.bf16.mxu0 0
        %8268 = vmatpush1.bf16.msra.mxu0 %v8226
        %8269 = vmatprep.subr.bf16.mxu0 0
        %8270 = vmatpush1.bf16.msra.mxu0 %v8227
        %8271 = vmatprep.subr.bf16.mxu0 0
        %8272 = vmatpush1.bf16.msra.mxu0 %v8228
        %8273 = vmatprep.subr.bf16.mxu0 0
        %8274 = vmatpush1.bf16.msra.mxu0 %v8229
        %8275 = vmatprep.subr.bf16.mxu0 0
        %8276 = vmatpush1.bf16.msra.mxu0 %v8230
        %8277 = vmatprep.subr.bf16.mxu0 0
        %8278 = vmatpush1.bf16.msra.mxu0 %v8231
        %8279 = vmatprep.subr.bf16.mxu0 0
        %8280 = vmatpush1.bf16.msra.mxu0 %v8232
        %8281 = vmatprep.mubr.bf16.mxu0 %v8109
        %8282 = vmatmul.mubr.bf16.gmra.mrb[0].mxu0 %v8108
        %v8283 = vpop.f32.mrb[0].mxu0
        %v8284 = vadd.f32 %v8151, %v8283
        %v8285 = vpop.f32.mrb[0].mxu0
        %v8286 = vpop.f32.mrb[0].mxu0
        %v8287 = vadd.f32 %v8151, %v8286
        %v8288 = vpop.f32.mrb[0].mxu0
        %8289 = vmatprep.mubr.bf16.mxu0 %v8111
        %8290 = vmatmul.mubr.bf16.gmra.mrb[0].mxu0 %v8110
        %v8291 = vpop.f32.mrb[0].mxu0
        %v8292 = vadd.f32 %v8151, %v8291
        %v8293 = vpop.f32.mrb[0].mxu0
        %v8294 = vpop.f32.mrb[0].mxu0
        %v8295 = vadd.f32 %v8151, %v8294
        %v8296 = vpop.f32.mrb[0].mxu0
        %8297 = vmatprep.mubr.bf16.mxu0 %v8113
        %8298 = vmatmul.mubr.bf16.gmra.mrb[0].mxu0 %v8112
        %v8299 = vpop.f32.mrb[0].mxu0
        %v8300 = vadd.f32 %v8151, %v8299
        %v8301 = vpop.f32.mrb[0].mxu0
        %v8302 = vpop.f32.mrb[0].mxu0
        %v8303 = vpop.f32.mrb[0].mxu0
        %8304 = vdwg.mxu0
        %v8310 = vcombine.high %v8284, %v8284
        %v8312 = vunpack.c.l.s4 1966171168
        %v8313 = vunpack.c.0.s8 %v8312
        %v8314 = vlaneseq
        %v8315 = vshrl.u32 %v8314, 7
        %v8316 = vsub.s32 %v8313, %v8315
        %v8317 = vrot.slane %v8284, %v8316
        %v8319 = vunpack.c.l.s4 1966171168
        %v8320 = vunpack.c.0.s8 %v8319
        %v8321 = vlaneseq
        %v8322 = vshrl.u32 %v8321, 7
        %v8323 = vsub.s32 %v8320, %v8322
        %v8324 = vrot.slane %v8310, %v8323
        %v8325 = vcombine.high %v8317, %v8317
        %v8326 = vcombine.high %v8324, %v8324
        %v8328 = vunpack.c.l.s4 1966171168
        %v8329 = vunpack.c.0.s8 %v8328
        %v8330 = vlaneseq
        %v8331 = vshrl.u32 %v8330, 7
        %v8332 = vsub.s32 %v8329, %v8331
        %v8333 = vrot.slane %v8317, %v8332
        %v8335 = vunpack.c.l.s4 1966171168
        %v8336 = vunpack.c.0.s8 %v8335
        %v8337 = vlaneseq
        %v8338 = vshrl.u32 %v8337, 7
        %v8339 = vsub.s32 %v8336, %v8338
        %v8340 = vrot.slane %v8324, %v8339
        %v8342 = vunpack.c.l.s4 1966171168
        %v8343 = vunpack.c.0.s8 %v8342
        %v8344 = vlaneseq
        %v8345 = vshrl.u32 %v8344, 7
        %v8346 = vsub.s32 %v8343, %v8345
        %v8347 = vrot.slane %v8325, %v8346
        %v8349 = vunpack.c.l.s4 1966171168
        %v8350 = vunpack.c.0.s8 %v8349
        %v8351 = vlaneseq
        %v8352 = vshrl.u32 %v8351, 7
        %v8353 = vsub.s32 %v8350, %v8352
        %v8354 = vrot.slane %v8326, %v8353
        %v8355 = vcombine.high %v8333, %v8333
        %v8356 = vcombine.high %v8340, %v8340
        %v8357 = vcombine.high %v8347, %v8347
        %v8358 = vcombine.high %v8354, %v8354
        %v8359 = vcombine.high %v8287, %v8287
        %v8361 = vunpack.c.l.s4 1966171168
        %v8362 = vunpack.c.0.s8 %v8361
        %v8363 = vlaneseq
        %v8364 = vshrl.u32 %v8363, 7
        %v8365 = vsub.s32 %v8362, %v8364
        %v8366 = vrot.slane %v8287, %v8365
        %v8368 = vunpack.c.l.s4 1966171168
        %v8369 = vunpack.c.0.s8 %v8368
        %v8370 = vlaneseq
        %v8371 = vshrl.u32 %v8370, 7
        %v8372 = vsub.s32 %v8369, %v8371
        %v8373 = vrot.slane %v8359, %v8372
        %v8374 = vcombine.high %v8366, %v8366
        %v8375 = vcombine.high %v8373, %v8373
        %v8377 = vunpack.c.l.s4 1966171168
        %v8378 = vunpack.c.0.s8 %v8377
        %v8379 = vlaneseq
        %v8380 = vshrl.u32 %v8379, 7
        %v8381 = vsub.s32 %v8378, %v8380
        %v8382 = vrot.slane %v8366, %v8381
        %v8384 = vunpack.c.l.s4 1966171168
        %v8385 = vunpack.c.0.s8 %v8384
        %v8386 = vlaneseq
        %v8387 = vshrl.u32 %v8386, 7
        %v8388 = vsub.s32 %v8385, %v8387
        %v8389 = vrot.slane %v8373, %v8388
        %v8391 = vunpack.c.l.s4 1966171168
        %v8392 = vunpack.c.0.s8 %v8391
        %v8393 = vlaneseq
        %v8394 = vshrl.u32 %v8393, 7
        %v8395 = vsub.s32 %v8392, %v8394
        %v8396 = vrot.slane %v8374, %v8395
        %v8398 = vunpack.c.l.s4 1966171168
        %v8399 = vunpack.c.0.s8 %v8398
        %v8400 = vlaneseq
        %v8401 = vshrl.u32 %v8400, 7
        %v8402 = vsub.s32 %v8399, %v8401
        %v8403 = vrot.slane %v8375, %v8402
        %v8404 = vcombine.high %v8382, %v8382
        %v8405 = vcombine.high %v8389, %v8389
        %v8406 = vcombine.high %v8396, %v8396
        %v8407 = vcombine.high %v8403, %v8403
        %v8408 = vcombine.high %v8292, %v8292
        %v8410 = vunpack.c.l.s4 1966171168
        %v8411 = vunpack.c.0.s8 %v8410
        %v8412 = vlaneseq
        %v8413 = vshrl.u32 %v8412, 7
        %v8414 = vsub.s32 %v8411, %v8413
        %v8415 = vrot.slane %v8292, %v8414
        %v8417 = vunpack.c.l.s4 1966171168
        %v8418 = vunpack.c.0.s8 %v8417
        %v8419 = vlaneseq
        %v8420 = vshrl.u32 %v8419, 7
        %v8421 = vsub.s32 %v8418, %v8420
        %v8422 = vrot.slane %v8408, %v8421
        %v8423 = vcombine.high %v8415, %v8415
        %v8424 = vcombine.high %v8422, %v8422
        %v8426 = vunpack.c.l.s4 1966171168
        %v8427 = vunpack.c.0.s8 %v8426
        %v8428 = vlaneseq
        %v8429 = vshrl.u32 %v8428, 7
        %v8430 = vsub.s32 %v8427, %v8429
        %v8431 = vrot.slane %v8415, %v8430
        %v8433 = vunpack.c.l.s4 1966171168
        %v8434 = vunpack.c.0.s8 %v8433
        %v8435 = vlaneseq
        %v8436 = vshrl.u32 %v8435, 7
        %v8437 = vsub.s32 %v8434, %v8436
        %v8438 = vrot.slane %v8422, %v8437
        %v8440 = vunpack.c.l.s4 1966171168
        %v8441 = vunpack.c.0.s8 %v8440
        %v8442 = vlaneseq
        %v8443 = vshrl.u32 %v8442, 7
        %v8444 = vsub.s32 %v8441, %v8443
        %v8445 = vrot.slane %v8423, %v8444
        %v8447 = vunpack.c.l.s4 1966171168
        %v8448 = vunpack.c.0.s8 %v8447
        %v8449 = vlaneseq
        %v8450 = vshrl.u32 %v8449, 7
        %v8451 = vsub.s32 %v8448, %v8450
        %v8452 = vrot.slane %v8424, %v8451
        %v8453 = vcombine.high %v8431, %v8431
        %v8454 = vcombine.high %v8438, %v8438
        %v8455 = vcombine.high %v8445, %v8445
        %v8456 = vcombine.high %v8452, %v8452
        %v8457 = vcombine.high %v8295, %v8295
        %v8459 = vunpack.c.l.s4 1966171168
        %v8460 = vunpack.c.0.s8 %v8459
        %v8461 = vlaneseq
        %v8462 = vshrl.u32 %v8461, 7
        %v8463 = vsub.s32 %v8460, %v8462
        %v8464 = vrot.slane %v8295, %v8463
        %v8466 = vunpack.c.l.s4 1966171168
        %v8467 = vunpack.c.0.s8 %v8466
        %v8468 = vlaneseq
        %v8469 = vshrl.u32 %v8468, 7
        %v8470 = vsub.s32 %v8467, %v8469
        %v8471 = vrot.slane %v8457, %v8470
        %v8472 = vcombine.high %v8464, %v8464
        %v8473 = vcombine.high %v8471, %v8471
        %v8475 = vunpack.c.l.s4 1966171168
        %v8476 = vunpack.c.0.s8 %v8475
        %v8477 = vlaneseq
        %v8478 = vshrl.u32 %v8477, 7
        %v8479 = vsub.s32 %v8476, %v8478
        %v8480 = vrot.slane %v8464, %v8479
        %v8482 = vunpack.c.l.s4 1966171168
        %v8483 = vunpack.c.0.s8 %v8482
        %v8484 = vlaneseq
        %v8485 = vshrl.u32 %v8484, 7
        %v8486 = vsub.s32 %v8483, %v8485
        %v8487 = vrot.slane %v8471, %v8486
        %v8489 = vunpack.c.l.s4 1966171168
        %v8490 = vunpack.c.0.s8 %v8489
        %v8491 = vlaneseq
        %v8492 = vshrl.u32 %v8491, 7
        %v8493 = vsub.s32 %v8490, %v8492
        %v8494 = vrot.slane %v8472, %v8493
        %v8496 = vunpack.c.l.s4 1966171168
        %v8497 = vunpack.c.0.s8 %v8496
        %v8498 = vlaneseq
        %v8499 = vshrl.u32 %v8498, 7
        %v8500 = vsub.s32 %v8497, %v8499
        %v8501 = vrot.slane %v8473, %v8500
        %v8502 = vcombine.high %v8480, %v8480
        %v8503 = vcombine.high %v8487, %v8487
        %v8504 = vcombine.high %v8494, %v8494
        %v8505 = vcombine.high %v8501, %v8501
        %v8507 = vunpack.c.l.s4 1966171168
        %v8508 = vunpack.c.0.s8 %v8507
        %v8509 = vlaneseq
        %v8510 = vshrl.u32 %v8509, 7
        %v8511 = vsub.s32 %v8508, %v8510
        %v8512 = vrot.slane %v8300, %v8511
        %v8513 = vcombine.high %v8512, %v8512
        %v8515 = vunpack.c.l.s4 1966171168
        %v8516 = vunpack.c.0.s8 %v8515
        %v8517 = vlaneseq
        %v8518 = vshrl.u32 %v8517, 7
        %v8519 = vsub.s32 %v8516, %v8518
        %v8520 = vrot.slane %v8512, %v8519
        %v8522 = vunpack.c.l.s4 1966171168
        %v8523 = vunpack.c.0.s8 %v8522
        %v8524 = vlaneseq
        %v8525 = vshrl.u32 %v8524, 7
        %v8526 = vsub.s32 %v8523, %v8525
        %v8527 = vrot.slane %v8513, %v8526
        %v8528 = vcombine.low %v8333, %v8347
        %v8529 = vcombine.low %v8355, %v8357
        %v8530 = vcombine.low %v8340, %v8354
        %v8531 = vcombine.low %v8356, %v8358
        %v8533 = vunpack.c.l.s4 1966171168
        %v8534 = vunpack.c.0.s8 %v8533
        %v8535 = vlaneseq
        %v8536 = vshrl.u32 %v8535, 7
        %v8537 = vsub.s32 %v8534, %v8536
        %v8538 = vrot.slane %v8528, %v8537
        %v8540 = vunpack.c.l.s4 1966171168
        %v8541 = vunpack.c.0.s8 %v8540
        %v8542 = vlaneseq
        %v8543 = vshrl.u32 %v8542, 7
        %v8544 = vsub.s32 %v8541, %v8543
        %v8545 = vrot.slane %v8529, %v8544
        %v8547 = vunpack.c.l.s4 1966171168
        %v8548 = vunpack.c.0.s8 %v8547
        %v8549 = vlaneseq
        %v8550 = vshrl.u32 %v8549, 7
        %v8551 = vsub.s32 %v8548, %v8550
        %v8552 = vrot.slane %v8530, %v8551
        %v8554 = vunpack.c.l.s4 1966171168
        %v8555 = vunpack.c.0.s8 %v8554
        %v8556 = vlaneseq
        %v8557 = vshrl.u32 %v8556, 7
        %v8558 = vsub.s32 %v8555, %v8557
        %v8559 = vrot.slane %v8531, %v8558
        %v8560 = vcombine.low %v8538, %v8545
        %v8561 = vcombine.low %v8552, %v8559
        %v8563 = vunpack.c.l.s4 1966171168
        %v8564 = vunpack.c.0.s8 %v8563
        %v8565 = vlaneseq
        %v8566 = vshrl.u32 %v8565, 7
        %v8567 = vsub.s32 %v8564, %v8566
        %v8568 = vrot.slane %v8560, %v8567
        %v8570 = vunpack.c.l.s4 1966171168
        %v8571 = vunpack.c.0.s8 %v8570
        %v8572 = vlaneseq
        %v8573 = vshrl.u32 %v8572, 7
        %v8574 = vsub.s32 %v8571, %v8573
        %v8575 = vrot.slane %v8561, %v8574
        %v8576 = vcombine.low %v8568, %v8575
        %v8577 = vcombine.low %v8382, %v8396
        %v8578 = vcombine.low %v8404, %v8406
        %v8579 = vcombine.low %v8389, %v8403
        %v8580 = vcombine.low %v8405, %v8407
        %v8582 = vunpack.c.l.s4 1966171168
        %v8583 = vunpack.c.0.s8 %v8582
        %v8584 = vlaneseq
        %v8585 = vshrl.u32 %v8584, 7
        %v8586 = vsub.s32 %v8583, %v8585
        %v8587 = vrot.slane %v8577, %v8586
        %v8589 = vunpack.c.l.s4 1966171168
        %v8590 = vunpack.c.0.s8 %v8589
        %v8591 = vlaneseq
        %v8592 = vshrl.u32 %v8591, 7
        %v8593 = vsub.s32 %v8590, %v8592
        %v8594 = vrot.slane %v8578, %v8593
        %v8596 = vunpack.c.l.s4 1966171168
        %v8597 = vunpack.c.0.s8 %v8596
        %v8598 = vlaneseq
        %v8599 = vshrl.u32 %v8598, 7
        %v8600 = vsub.s32 %v8597, %v8599
        %v8601 = vrot.slane %v8579, %v8600
        %v8603 = vunpack.c.l.s4 1966171168
        %v8604 = vunpack.c.0.s8 %v8603
        %v8605 = vlaneseq
        %v8606 = vshrl.u32 %v8605, 7
        %v8607 = vsub.s32 %v8604, %v8606
        %v8608 = vrot.slane %v8580, %v8607
        %v8609 = vcombine.low %v8587, %v8594
        %v8610 = vcombine.low %v8601, %v8608
        %v8612 = vunpack.c.l.s4 1966171168
        %v8613 = vunpack.c.0.s8 %v8612
        %v8614 = vlaneseq
        %v8615 = vshrl.u32 %v8614, 7
        %v8616 = vsub.s32 %v8613, %v8615
        %v8617 = vrot.slane %v8609, %v8616
        %v8619 = vunpack.c.l.s4 1966171168
        %v8620 = vunpack.c.0.s8 %v8619
        %v8621 = vlaneseq
        %v8622 = vshrl.u32 %v8621, 7
        %v8623 = vsub.s32 %v8620, %v8622
        %v8624 = vrot.slane %v8610, %v8623
        %v8625 = vcombine.low %v8617, %v8624
        %v8627 = vunpack.c.l.s4 1966171168
        %v8628 = vunpack.c.0.s8 %v8627
        %v8629 = vlaneseq
        %v8630 = vshrl.u32 %v8629, 7
        %v8631 = vsub.s32 %v8628, %v8630
        %v8632 = vrot.slane %v8431, %v8631
        %v8634 = vunpack.c.l.s4 1966171168
        %v8635 = vunpack.c.0.s8 %v8634
        %v8636 = vlaneseq
        %v8637 = vshrl.u32 %v8636, 7
        %v8638 = vsub.s32 %v8635, %v8637
        %v8639 = vrot.slane %v8632, %v8638
        %v8640 = vcombine.low %v8445, %v8453
        %v8641 = vcombine.low %v8455, %v8438
        %v8642 = vcombine.low %v8452, %v8454
        %v8643 = vcombine.low %v8456, %v8480
        %v8645 = vunpack.c.l.s4 1966171168
        %v8646 = vunpack.c.0.s8 %v8645
        %v8647 = vlaneseq
        %v8648 = vshrl.u32 %v8647, 7
        %v8649 = vsub.s32 %v8646, %v8648
        %v8650 = vrot.slane %v8640, %v8649
        %v8652 = vunpack.c.l.s4 1966171168
        %v8653 = vunpack.c.0.s8 %v8652
        %v8654 = vlaneseq
        %v8655 = vshrl.u32 %v8654, 7
        %v8656 = vsub.s32 %v8653, %v8655
        %v8657 = vrot.slane %v8641, %v8656
        %v8659 = vunpack.c.l.s4 1966171168
        %v8660 = vunpack.c.0.s8 %v8659
        %v8661 = vlaneseq
        %v8662 = vshrl.u32 %v8661, 7
        %v8663 = vsub.s32 %v8660, %v8662
        %v8664 = vrot.slane %v8642, %v8663
        %v8666 = vunpack.c.l.s4 1966171168
        %v8667 = vunpack.c.0.s8 %v8666
        %v8668 = vlaneseq
        %v8669 = vshrl.u32 %v8668, 7
        %v8670 = vsub.s32 %v8667, %v8669
        %v8671 = vrot.slane %v8643, %v8670
        %v8672 = vcombine.low %v8650, %v8657
        %v8673 = vcombine.low %v8664, %v8671
        %v8675 = vunpack.c.l.s4 1966171168
        %v8676 = vunpack.c.0.s8 %v8675
        %v8677 = vlaneseq
        %v8678 = vshrl.u32 %v8677, 7
        %v8679 = vsub.s32 %v8676, %v8678
        %v8680 = vrot.slane %v8672, %v8679
        %v8682 = vunpack.c.l.s4 1966171168
        %v8683 = vunpack.c.0.s8 %v8682
        %v8684 = vlaneseq
        %v8685 = vshrl.u32 %v8684, 7
        %v8686 = vsub.s32 %v8683, %v8685
        %v8687 = vrot.slane %v8673, %v8686
        %v8688 = vcombine.low %v8680, %v8687
        %v8689 = vcombine.low %v8494, %v8502
        %v8690 = vcombine.low %v8504, %v8487
        %v8691 = vcombine.low %v8501, %v8503
        %v8692 = vcombine.low %v8505, %v8520
        %v8694 = vunpack.c.l.s4 1966171168
        %v8695 = vunpack.c.0.s8 %v8694
        %v8696 = vlaneseq
        %v8697 = vshrl.u32 %v8696, 7
        %v8698 = vsub.s32 %v8695, %v8697
        %v8699 = vrot.slane %v8689, %v8698
        %v8701 = vunpack.c.l.s4 1966171168
        %v8702 = vunpack.c.0.s8 %v8701
        %v8703 = vlaneseq
        %v8704 = vshrl.u32 %v8703, 7
        %v8705 = vsub.s32 %v8702, %v8704
        %v8706 = vrot.slane %v8690, %v8705
        %v8708 = vunpack.c.l.s4 1966171168
        %v8709 = vunpack.c.0.s8 %v8708
        %v8710 = vlaneseq
        %v8711 = vshrl.u32 %v8710, 7
        %v8712 = vsub.s32 %v8709, %v8711
        %v8713 = vrot.slane %v8691, %v8712
        %v8715 = vunpack.c.l.s4 1966171168
        %v8716 = vunpack.c.0.s8 %v8715
        %v8717 = vlaneseq
        %v8718 = vshrl.u32 %v8717, 7
        %v8719 = vsub.s32 %v8716, %v8718
        %v8720 = vrot.slane %v8692, %v8719
        %v8721 = vcombine.low %v8699, %v8706
        %v8722 = vcombine.low %v8713, %v8720
        %v8724 = vunpack.c.l.s4 1966171168
        %v8725 = vunpack.c.0.s8 %v8724
        %v8726 = vlaneseq
        %v8727 = vshrl.u32 %v8726, 7
        %v8728 = vsub.s32 %v8725, %v8727
        %v8729 = vrot.slane %v8721, %v8728
        %v8731 = vunpack.c.l.s4 1966171168
        %v8732 = vunpack.c.0.s8 %v8731
        %v8733 = vlaneseq
        %v8734 = vshrl.u32 %v8733, 7
        %v8735 = vsub.s32 %v8732, %v8734
        %v8736 = vrot.slane %v8722, %v8735
        %v8737 = vcombine.low %v8729, %v8736
        %v8739 = vunpack.c.l.s4 1966171168
        %v8740 = vunpack.c.0.s8 %v8739
        %v8741 = vlaneseq
        %v8742 = vshrl.u32 %v8741, 7
        %v8743 = vsub.s32 %v8740, %v8742
        %v8744 = vrot.slane %v8527, %v8743
        %v8746 = vunpack.c.l.s4 1966171168
        %v8747 = vunpack.c.0.s8 %v8746
        %v8748 = vlaneseq
        %v8749 = vshrl.u32 %v8748, 7
        %v8750 = vsub.s32 %v8747, %v8749
        %v8751 = vrot.slane %v8744, %v8750
        %v8758 = vadd.f32 %v7298, %v8576
        %v8759 = vadd.f32 %v7299, %v8625
        %v8760 = vadd.f32 %v7300, %v8639
        %v8761 = vadd.f32 %v7301, %v8688
        %v8762 = vadd.f32 %v7302, %v8737
        %v8763 = vadd.f32 %v7303, %v8751
        %8764 = vst [vmem:[#allocation2] sm:$0xff] %v8758
        %8765 = vst [vmem:[#allocation2 + $0x8] sm:$0xff] %v8759
        %8766 = vst [vmem:[#allocation2 + $0x10] sm:$0x1] %v8760
        %8767 = vst [vmem:[#allocation2 + $0x18] sm:$0xff] %v8761
        %8768 = vst [vmem:[#allocation2 + $0x20] sm:$0xff] %v8762
        %8769 = vst [vmem:[#allocation2 + $0x28] sm:$0x1] %v8763
        %p8770 = scmp.eq.s32.totalorder %s35, 1
        // Predicated region
        $region173: #{tpu_custom_call.1} parent=99 // pred_check
          %p8771 = pneg %p8770
        $region174: #{tpu_custom_call.1} parent=99 // pred_check_branch
          %8773 = sbr.rel (%p8771) target = $region176
        $region175: #{tpu_custom_call.1} parent=99 // pred_region
          %v8774 = vld [vmem:[#allocation22] sm:$0x1]
          %v8775 = vld [vmem:[#allocation23] sm:$0x1]
          %v8778 = vrot.slane %v8761, 7
          %vm8779 = vcmask 1041409
          %v8780 = vsel %vm8779, %v8778, %v8758
          %vm8782 = vcmask 1041408
          %v8783 = vsel %vm8782, %v8780, 0.0
          %8784 = vadd.xlane.f32.xlu0 %v8783
          %v8785 = vpop.xlane.xlu0 %8784
          %v8786 = vmul.f32 %v8785, %v1192
          %v8788 = vrot.slane %v8786, 1
          %v8791 = vsub.f32 %v8758, %v8786
          %v8792 = vsub.f32 %v8761, %v8788
          %v8793 = vmul.f32 %v8791, %v8791
          %v8794 = vmul.f32 %v8792, %v8792
          %v8797 = vrot.slane %v8794, 7
          %v8798 = vsel %vm8779, %v8797, %v8793
          %v8800 = vsel %vm8782, %v8798, 0.0
          %8801 = vadd.xlane.f32.xlu0 %v8800
          %v8802 = vpop.xlane.xlu0 %8801
          %v8803 = vmul.f32 %v8802, %v1192
          %v8804 = vadd.f32 %v8803, 1e-05
          %v8805 = vrsqrt.pop %v8804
          %v8807 = vrot.slane %v8805, 1
          %v8810 = vmul.f32 %v8791, %v8805
          %v8811 = vmul.f32 %v8792, %v8807
          %v8813 = vlaneseq
          %v8814 = vshrl.u32 %v8813, 7
          %v8815 = vsub.s32 0, %v8814
          %v8816 = vrot.slane %v8774, %v8815
          %v8818 = vmul.f32 %v8810, %v8816
          %v8819 = vmul.f32 %v8811, %v8816
          %v8821 = vlaneseq
          %v8822 = vshrl.u32 %v8821, 7
          %v8823 = vsub.s32 0, %v8822
          %v8824 = vrot.slane %v8775, %v8823
          %v8826 = vadd.f32 %v8818, %v8824
          %v8827 = vadd.f32 %v8819, %v8824
          %v8828 = vpack.c.bf16 %v8826, %v8826
          %v8829 = vpack.c.bf16 %v8827, %v8827
          %v8830 = vld [vmem:[%s18] sm:$0xf]
          %v8831 = vld [vmem:[%s18 + $0x4] sm:$0xf]
          %v8832 = vld [vmem:[%s18 + $0x8] sm:$0xf]
          %v8833 = vld [vmem:[%s18 + $0xc] sm:$0xf]
          %v8834 = vld [vmem:[%s18 + $0x10] sm:$0xf]
          %v8835 = vld [vmem:[%s18 + $0x14] sm:$0xf]
          %v8836 = vld [vmem:[%s18 + $0x18] sm:$0xf]
          %v8837 = vld [vmem:[%s18 + $0x1c] sm:$0xf]
          %v8838 = vld [vmem:[%s18 + $0x20] sm:$0xf]
          %v8839 = vld [vmem:[%s18 + $0x24] sm:$0xf]
          %v8840 = vld [vmem:[%s18 + $0x28] sm:$0xf]
          %v8841 = vld [vmem:[%s18 + $0x2c] sm:$0xf]
          %v8842 = vld [vmem:[%s18 + $0x30] sm:$0xf]
          %v8843 = vld [vmem:[%s18 + $0x34] sm:$0xf]
          %v8844 = vld [vmem:[%s18 + $0x38] sm:$0xf]
          %v8845 = vld [vmem:[%s18 + $0x3c] sm:$0xf]
          %v8846 = vld [vmem:[%s19] sm:$0x1]
          %v8848 = vlaneseq
          %v8849 = vshrl.u32 %v8848, 7
          %v8850 = vsub.s32 0, %v8849
          %v8851 = vrot.slane %v8846, %v8850
          %v8855 = vunpack.c.l.b16 %v8828
          %v8856 = vunpack.c.l.b16 %v8829
          %v8857 = vrot.slane %v8856, 7
          %v8858 = vsel %vm8779, %v8857, %v8855
          %v8859 = vpack.c.b16 %v8858, %v8858
          %v8877 = vunpack.c.l.b16 %v8830
          %v8878 = vunpack.c.l.b16 %v8831
          %v8879 = vunpack.c.l.b16 %v8832
          %v8880 = vunpack.c.l.b16 %v8833
          %v8881 = vunpack.c.l.b16 %v8834
          %v8882 = vunpack.c.l.b16 %v8835
          %v8883 = vunpack.c.l.b16 %v8836
          %v8884 = vunpack.c.l.b16 %v8837
          %v8885 = vunpack.c.l.b16 %v8838
          %v8886 = vunpack.c.l.b16 %v8839
          %v8887 = vunpack.c.l.b16 %v8840
          %v8888 = vunpack.c.l.b16 %v8841
          %v8889 = vunpack.c.l.b16 %v8842
          %v8890 = vunpack.c.l.b16 %v8843
          %v8891 = vunpack.c.l.b16 %v8844
          %v8892 = vunpack.c.l.b16 %v8845
          %v8893 = vpack.c.b16 %v8878, %v8877
          %v8894 = vpack.c.b16 %v8880, %v8879
          %v8895 = vpack.c.b16 %v8882, %v8881
          %v8896 = vpack.c.b16 %v8884, %v8883
          %v8897 = vpack.c.b16 %v8886, %v8885
          %v8898 = vpack.c.b16 %v8888, %v8887
          %v8899 = vpack.c.b16 %v8890, %v8889
          %v8900 = vpack.c.b16 %v8892, %v8891
          %8909 = vmatprep.subr.bf16.mxu0 0
          %8910 = vmatpush1.bf16.msra.mxu0 %v8893
          %8911 = vmatprep.subr.bf16.mxu0 0
          %8912 = vmatpush1.bf16.msra.mxu0 %v8894
          %8913 = vmatprep.subr.bf16.mxu0 0
          %8914 = vmatpush1.bf16.msra.mxu0 %v8895
          %8915 = vmatprep.subr.bf16.mxu0 0
          %8916 = vmatpush1.bf16.msra.mxu0 %v8896
          %8917 = vmatprep.subr.bf16.mxu0 0
          %8918 = vmatpush1.bf16.msra.mxu0 %v8897
          %8919 = vmatprep.subr.bf16.mxu0 0
          %8920 = vmatpush1.bf16.msra.mxu0 %v8898
          %8921 = vmatprep.subr.bf16.mxu0 0
          %8922 = vmatpush1.bf16.msra.mxu0 %v8899
          %8923 = vmatprep.subr.bf16.mxu0 0
          %8924 = vmatpush1.bf16.msra.mxu0 %v8900
          %8925 = vmatprep.subr.bf16.mxu0 0
          %8926 = vmatpush1.bf16.msra.mxu0 0
          %8927 = vmatprep.subr.bf16.mxu0 0
          %8928 = vmatpush1.bf16.msra.mxu0 0
          %8929 = vmatprep.subr.bf16.mxu0 0
          %8930 = vmatpush1.bf16.msra.mxu0 0
          %8931 = vmatprep.subr.bf16.mxu0 0
          %8932 = vmatpush1.bf16.msra.mxu0 0
          %8933 = vmatprep.subr.bf16.mxu0 0
          %8934 = vmatpush1.bf16.msra.mxu0 0
          %8935 = vmatprep.subr.bf16.mxu0 0
          %8936 = vmatpush1.bf16.msra.mxu0 0
          %8937 = vmatprep.subr.bf16.mxu0 0
          %8938 = vmatpush1.bf16.msra.mxu0 0
          %8939 = vmatprep.subr.bf16.mxu0 0
          %8940 = vmatpush1.bf16.msra.mxu0 0
          %8941 = vmatprep.mubr.bf16.mxu0 0
          %8942 = vmatmul.mubr.bf16.gmra.mrb[0].mxu0 %v8859
          %v8943 = vpop.f32.mrb[0].mxu0
          %v8944 = vadd.f32 %v8851, %v8943
          %v8945 = vpop.f32.mrb[0].mxu0
          %v8946 = vpop.f32.mrb[0].mxu0
          %v8947 = vpop.f32.mrb[0].mxu0
          %8948 = vdwg.mxu0
          %8949 = vst [vmem:[#allocation24] sm:$0x3] %v8944
        $region176: #{tpu_custom_call.1} parent=99 // pred_fallthru
          _
        // Predicated region
        $region177: #{tpu_custom_call.1} parent=99 // pred_check
          %p8950 = pneg %p528
        $region178: #{tpu_custom_call.1} parent=99 // pred_check_branch
          %8952 = sbr.rel (%p8950) target = $region180
        $region179: #{tpu_custom_call.1} parent=99 // pred_region
          %s8954 = ssub.s32 32, 32
          %8955 = vsyncadd [#allocation5], %s8954
          %s8957 = sshll.u32 [#allocation24], 4
          %s8958 = int_to_ptr.vmem [resolvable:$true] %s8957
          %8960 = dma.vmem_to_hbm [thread:$0]  %s8958, 32, %s20, [#allocation5]
        $region180: #{tpu_custom_call.1} parent=99 // pred_fallthru
          _
        // Predicated region
        $region181: #{tpu_custom_call.1} parent=99 // pred_check
          %p8961 = pneg %p528
        $region182: #{tpu_custom_call.1} parent=99 // pred_check_branch
          %8963 = sbr.rel (%p8961) target = $region184
        $region183: #{tpu_custom_call.1} parent=99 // pred_region
          %8964 = dma.done [#allocation5], 32
        $region184: #{tpu_custom_call.1} parent=99 // pred_fallthru
          _
      $region100: #{tpu_custom_call.1} parent=5 // pred_fallthru
        _
      %p8965 = scmp.le.s32.totalorder 2, %s30
      // Predicated region
      $region185: #{tpu_custom_call.1} parent=5 // pred_check
        %p8966 = pneg %p8965
      $region186: #{tpu_custom_call.1} parent=5 // pred_check_branch
        %8968 = sbr.rel (%p8966) target = $region188
      $region187: #{tpu_custom_call.1} parent=5 // pred_region
        %s8969 = ssub.s32 %s30, 2
      $region188: #{tpu_custom_call.1} parent=5 // pred_fallthru
        _
    $region6: #{tpu_custom_call.1} parent=1 // loop_footer
      %s34 = sadd.s32 1, %s30
    $region7: #{tpu_custom_call.1} parent=1 // loop_footer_branch
      %29 = sbr.rel target = $region3
    $region8: #{tpu_custom_call.1} parent=1 // loop_exit
      _
    %8970 = vsyncpa [#allocation4], 1
    %s8971 = scalar_lea.sflag [#allocation4], 1
    %8972 = vsyncpa %s8971, 1
    %8973 = vsyncpa [#allocation7], 1
    %8974 = vsyncpa [#allocation10], 1
    %8975 = vsyncpa [#allocation5], 1
    %s8976 = scalar_lea.sflag [#allocation5], 1
    %8977 = vsyncpa %s8976, 1

</llo_original>
